<compile_context>
chip_gen: v7x
topology: tpu7x:2x2x1
jax: 0.10.0
libtpu: 0.0.40
codegen_flags: <defaults>
</compile_context>

<pallas_src>
import jax
import jax.numpy as jnp
from jax import lax
from jax.experimental import pallas as pl
from jax.experimental.pallas import tpu as pltpu


# ----------------------------------------------------------------------------
# Fused kernel.
#   xpc_ref : (4, N, 16, 96) f32  phase-decomposed input, lane = v*6 + c (6x rep)
#   w1l_ref : (25, 84)       f32  conv1 taps as lane vectors, col = pw*6 + c
#   b1l_ref : (1, 84)        f32  conv1 bias tiled over pw
#   w2k_ref : (150, 16)      f32  conv2, row = (kh*5+kw)*6 + cin
#   b2t_ref : (1, 400)       f32  conv2 bias tiled over the 25 pooled positions
#   fc*_ref : pre-transposed FC weights / (1, out) biases
#   o_ref   : (N, 10)        f32  logits
#   pat_ref : (N, 100, 150)  f32  scratch: conv2 im2col, row = ow*10 + oh
#   fcin_ref: (N, 400)       f32  scratch: pooled conv2 features, col = (qh*5+qw)*16+o
# ----------------------------------------------------------------------------
def _lenet_kernel(xpc_ref, w1l_ref, b1l_ref, w2k_ref, b2t_ref,
                  fc1w_ref, fc1b_ref, fc2w_ref, fc2b_ref, fc3w_ref, fc3b_ref,
                  o_ref, pat_ref, fcin_ref):
    nb = xpc_ref.shape[1]

    # ---- Stage 1: conv1 + ReLU + 2x2/2 max-pool (phase-decomposed, pure VPU) ----
    w1l = w1l_ref[...]                                      # (25, 84)
    pooled = None
    for dy in range(2):                                     # pool-window row offset
        for dx in range(2):                                 # pool-window col offset
            acc = None
            for i in range(5):                              # conv1 tap row
                for j in range(5):                          # conv1 tap col
                    a, r = divmod(dy + i, 2)                # x row  = 2*(ph+a) + r
                    b, s = divmod(dx + j, 2)                # x col  = 2*(pw+b) + s
                    xs = xpc_ref[2 * r + s, :, a:a + 14, b * 6:b * 6 + 84]
                    term = xs * w1l[i * 5 + j, :]           # all 6 channels at once
                    acc = term if acc is None else acc + term
            pooled = acc if pooled is None else jnp.maximum(pooled, acc)
    # relu(max(.) + b) == max(relu(. + b))  (monotonicity)
    p1 = jnp.maximum(pooled + b1l_ref[...], 0.0)            # (N, 14, 84), lane=pw*6+c

    # ---- Stage 2: conv2 im2col into (N, 100, 150), rows ordered ow*10 + oh ----
    for ow in range(10):
        for kh in range(5):
            pat_ref[:, ow * 10:ow * 10 + 10, kh * 30:kh * 30 + 30] = \
                p1[:, kh:kh + 10, ow * 6:ow * 6 + 30]

    # conv2 as one batched MXU matmul: (N, 100, 150) x (N, 150, 16).
    pat = pat_ref[...]
    w2b = jnp.broadcast_to(w2k_ref[...], (nb, 150, 16))
    c2 = jnp.einsum('nmk,nko->nmo', pat, w2b,
                    preferred_element_type=jnp.float32)     # (N, 100, 16)

    # 2x2/2 max-pool on the (oh, ow) grid folded into rows (row = ow*10 + oh).
    m1 = jnp.maximum(c2[:, 0:99, :], c2[:, 1:100, :])       # oh neighbour (+1)
    m2 = jnp.maximum(m1[:, 0:89, :], m1[:, 10:99, :])       # ow neighbour (+10)

    # Gather the 25 pooled positions into the fc1 input layout
    # (feature index = (qh*5 + qw)*16 + o).
    for qh in range(5):
        for qw in range(5):
            p = qh * 5 + qw
            fcin_ref[:, p * 16:(p + 1) * 16] = m2[:, 20 * qw + 2 * qh, :]

    # Deferred conv2 bias + ReLU (exact: max-pool commutes with +bias / relu).
    feat = jnp.maximum(fcin_ref[...] + b2t_ref[...], 0.0)   # (N, 400)

    # ---- FC stack, all resident in VMEM ----
    h = jnp.maximum(
        jnp.dot(feat, fc1w_ref[...], preferred_element_type=jnp.float32)
        + fc1b_ref[...], 0.0)                               # (N, 120)
    h = jnp.maximum(
        jnp.dot(h, fc2w_ref[...], preferred_element_type=jnp.float32)
        + fc2b_ref[...], 0.0)                               # (N, 84)
    o_ref[...] = (
        jnp.dot(h, fc3w_ref[...], preferred_element_type=jnp.float32)
        + fc3b_ref[...])                                    # (N, 10)
    # TODO(synk): calculate_loss / SGD optimizer step is training-side, not part of
    # the forward pass; not implemented as a kernel.


# ----------------------------------------------------------------------------
# Forward wrapper: tiny input prep (phase decompose + 6x lane replication) + one
# fused pallas_call.
# ----------------------------------------------------------------------------
def _vmem_spec():
    return pl.BlockSpec(memory_space=pltpu.MemorySpace.VMEM)


def net_forward(kp, x_nchw):
    n = x_nchw.shape[0]
    x = x_nchw.reshape(n, 32, 32).astype(jnp.float32)       # Cin == 1
    # Phase decomposition: xph[r, s, n, u, v] = x[n, 2u+r, 2v+s]
    xph = x.reshape(n, 16, 2, 16, 2).transpose(2, 4, 0, 1, 3).reshape(4, n, 16, 16)
    # Replicate 6x along lanes so lane index = v*6 + c (all conv1 channels at once).
    xpc = jnp.repeat(xph, 6, axis=-1)                       # (4, n, 16, 96), ~49 KB

    out = pl.pallas_call(
        _lenet_kernel,
        out_shape=jax.ShapeDtypeStruct((n, 10), jnp.float32),
        in_specs=[_vmem_spec()] * 11,
        out_specs=_vmem_spec(),
        scratch_shapes=[
            pltpu.VMEM((n, 100, 150), jnp.float32),         # conv2 im2col patches
            pltpu.VMEM((n, 400), jnp.float32),              # pooled conv2 features
        ],
    )(xpc, kp["conv1_wl"], kp["conv1_bl"], kp["conv2_w"], kp["conv2_bt"],
      kp["fc1_w"], kp["fc1_b"], kp["fc2_w"], kp["fc2_b"], kp["fc3_w"], kp["fc3_b"])
    return out


# ----------------------------------------------------------------------------
# Parameters: PyTorch-layout init + one-time conversion to kernel layout.
# ----------------------------------------------------------------------------
def init_torch_params(key):
    """PyTorch-layout parameters, torch-default-style uniform(-1/sqrt(fan_in), +)."""
    keys = jax.random.split(key, 10)

    def u(k, shape, fan_in):
        bound = 1.0 / float(fan_in) ** 0.5
        return jax.random.uniform(k, shape, jnp.float32, -bound, bound)

    return {
        "conv1_w": u(keys[0], (6, 1, 5, 5), 25),
        "conv1_b": u(keys[1], (6,), 25),
        "conv2_w": u(keys[2], (16, 6, 5, 5), 150),
        "conv2_b": u(keys[3], (16,), 150),
        "fc1_w": u(keys[4], (120, 400), 400),
        "fc1_b": u(keys[5], (120,), 400),
        "fc2_w": u(keys[6], (84, 120), 120),
        "fc2_b": u(keys[7], (84,), 120),
        "fc3_w": u(keys[8], (10, 84), 84),
        "fc3_b": u(keys[9], (10,), 84),
    }


def to_kernel_params(tp):
    """One-time (outside jit) conversion of PyTorch-layout weights to kernel layout."""
    w1 = tp["conv1_w"].reshape(6, 25)                          # [c, i*5+j]
    w1l = jnp.tile(jnp.transpose(w1), (1, 14))                 # (25, 84), col = pw*6+c
    b1l = jnp.tile(tp["conv1_b"].reshape(1, 6), (1, 14))       # (1, 84)
    w2k = jnp.transpose(tp["conv2_w"], (2, 3, 1, 0)).reshape(150, 16)
    b2t = jnp.tile(tp["conv2_b"].reshape(1, 16), (1, 25))      # (1, 400), col = p*16+o
    # The kernel flattens conv2's pooled output in (h, w, c) order; torch uses
    # (c, h, w): permute fc1's 400 input columns once here to match.
    fc1 = (tp["fc1_w"].reshape(120, 16, 5, 5)
           .transpose(0, 2, 3, 1).reshape(120, 400).T)
    return {
        "conv1_wl": w1l,
        "conv1_bl": b1l,
        "conv2_w": w2k,
        "conv2_bt": b2t,
        "fc1_w": fc1,
        "fc1_b": tp["fc1_b"].reshape(1, 120),
        "fc2_w": tp["fc2_w"].T,
        "fc2_b": tp["fc2_b"].reshape(1, 84),
        "fc3_w": tp["fc3_w"].T,
        "fc3_b": tp["fc3_b"].reshape(1, 10),
    }


# ----------------------------------------------------------------------------
# Pure-JAX reference (torch semantics) for a correctness check.
# ----------------------------------------------------------------------------
def reference_forward(tp, x_nchw):
    hi = lax.Precision.HIGHEST
    y = lax.conv_general_dilated(
        x_nchw, tp["conv1_w"], (1, 1), "VALID",
        dimension_numbers=("NCHW", "OIHW", "NCHW"), precision=hi)
    y = jnp.maximum(y + tp["conv1_b"].reshape(1, 6, 1, 1), 0.0)
    y = lax.reduce_window(y, -jnp.inf, lax.max, (1, 1, 2, 2), (1, 1, 2, 2), "VALID")
    y = lax.conv_general_dilated(
        y, tp["conv2_w"], (1, 1), "VALID",
        dimension_numbers=("NCHW", "OIHW", "NCHW"), precision=hi)
    y = jnp.maximum(y + tp["conv2_b"].reshape(1, 16, 1, 1), 0.0)
    y = lax.reduce_window(y, -jnp.inf, lax.max, (1, 1, 2, 2), (1, 1, 2, 2), "VALID")
    y = y.reshape(y.shape[0], -1)                            # (N, 400) in torch order
    y = jnp.maximum(jnp.dot(y, tp["fc1_w"].T, precision=hi) + tp["fc1_b"], 0.0)
    y = jnp.maximum(jnp.dot(y, tp["fc2_w"].T, precision=hi) + tp["fc2_b"], 0.0)
    return jnp.dot(y, tp["fc3_w"].T, precision=hi) + tp["fc3_b"]


if __name__ == "__main__":
    key = jax.random.PRNGKey(0)
    pkey, xkey = jax.random.split(key)
    torch_params = init_torch_params(pkey)
    kparams = to_kernel_params(torch_params)                 # eager, one-time
    x = jax.random.normal(xkey, (2, 1, 32, 32), jnp.float32)  # NCHW, like PyTorch

    out = jax.block_until_ready(jax.jit(net_forward)(kparams, x))
    assert out.shape == (2, 10) and out.dtype == jnp.float32

    ref = jax.block_until_ready(jax.jit(reference_forward)(torch_params, x))
    max_diff = float(jnp.max(jnp.abs(out - ref)))
    assert jnp.allclose(out, ref, atol=5e-2, rtol=5e-2), f"max abs diff {max_diff}"
    print("KERNEL_OK")
</pallas_src>

<mosaic_0001>
module attributes {stable_mosaic.version = 11 : i64} {
  func.func @_lenet_kernel(%arg0: memref<4x2x16x96xf32, #tpu.memory_space<vmem>>, %arg1: memref<25x84xf32, #tpu.memory_space<vmem>>, %arg2: memref<1x84xf32, #tpu.memory_space<vmem>>, %arg3: memref<150x16xf32, #tpu.memory_space<vmem>>, %arg4: memref<1x400xf32, #tpu.memory_space<vmem>>, %arg5: memref<400x120xf32, #tpu.memory_space<vmem>>, %arg6: memref<1x120xf32, #tpu.memory_space<vmem>>, %arg7: memref<120x84xf32, #tpu.memory_space<vmem>>, %arg8: memref<1x84xf32, #tpu.memory_space<vmem>>, %arg9: memref<84x10xf32, #tpu.memory_space<vmem>>, %arg10: memref<1x10xf32, #tpu.memory_space<vmem>>, %arg11: memref<2x10xf32, #tpu.memory_space<vmem>>, %arg12: memref<2x100x150xf32, #tpu.memory_space<vmem>>, %arg13: memref<2x400xf32, #tpu.memory_space<vmem>>) attributes {dimension_semantics = [], scalar_prefetch = 0 : i64, scratch_operands = 2 : i64, tpu.core_type = #tpu.core_type<tc>} {
    %c0 = arith.constant 0 : index
    %c0_0 = arith.constant 0 : index
    %0 = vector.load %arg1[%c0, %c0_0] : memref<25x84xf32, #tpu.memory_space<vmem>>, vector<25x84xf32>
    %c0_1 = arith.constant 0 : index
    %c0_2 = arith.constant 0 : index
    %c0_3 = arith.constant 0 : index
    %c0_4 = arith.constant 0 : index
    %1 = vector.load %arg0[%c0_1, %c0_2, %c0_3, %c0_4] : memref<4x2x16x96xf32, #tpu.memory_space<vmem>>, vector<1x2x14x84xf32>
    %2 = vector.shape_cast %1 : vector<1x2x14x84xf32> to vector<2x14x84xf32>
    %3 = vector.extract_strided_slice %0 {offsets = [0, 0], sizes = [1, 84], strides = [1, 1]} : vector<25x84xf32> to vector<1x84xf32>
    %4 = vector.shape_cast %3 : vector<1x84xf32> to vector<84xf32>
    %5 = vector.shape_cast %4 : vector<84xf32> to vector<1x1x84xf32>
    %6 = vector.broadcast %5 : vector<1x1x84xf32> to vector<2x14x84xf32>
    %7 = arith.mulf %2, %6 : vector<2x14x84xf32>
    %c1 = arith.constant 1 : index
    %c0_5 = arith.constant 0 : index
    %c0_6 = arith.constant 0 : index
    %c0_7 = arith.constant 0 : index
    %8 = vector.load %arg0[%c1, %c0_5, %c0_6, %c0_7] : memref<4x2x16x96xf32, #tpu.memory_space<vmem>>, vector<1x2x14x84xf32>
    %9 = vector.shape_cast %8 : vector<1x2x14x84xf32> to vector<2x14x84xf32>
    %10 = vector.extract_strided_slice %0 {offsets = [1, 0], sizes = [1, 84], strides = [1, 1]} : vector<25x84xf32> to vector<1x84xf32>
    %11 = vector.shape_cast %10 : vector<1x84xf32> to vector<84xf32>
    %12 = vector.shape_cast %11 : vector<84xf32> to vector<1x1x84xf32>
    %13 = vector.broadcast %12 : vector<1x1x84xf32> to vector<2x14x84xf32>
    %14 = arith.mulf %9, %13 : vector<2x14x84xf32>
    %15 = arith.addf %7, %14 : vector<2x14x84xf32>
    %c0_8 = arith.constant 0 : index
    %c0_9 = arith.constant 0 : index
    %c0_10 = arith.constant 0 : index
    %c6 = arith.constant 6 : index
    %16 = vector.load %arg0[%c0_8, %c0_9, %c0_10, %c6] : memref<4x2x16x96xf32, #tpu.memory_space<vmem>>, vector<1x2x14x84xf32>
    %17 = vector.shape_cast %16 : vector<1x2x14x84xf32> to vector<2x14x84xf32>
    %18 = vector.extract_strided_slice %0 {offsets = [2, 0], sizes = [1, 84], strides = [1, 1]} : vector<25x84xf32> to vector<1x84xf32>
    %19 = vector.shape_cast %18 : vector<1x84xf32> to vector<84xf32>
    %20 = vector.shape_cast %19 : vector<84xf32> to vector<1x1x84xf32>
    %21 = vector.broadcast %20 : vector<1x1x84xf32> to vector<2x14x84xf32>
    %22 = arith.mulf %17, %21 : vector<2x14x84xf32>
    %23 = arith.addf %15, %22 : vector<2x14x84xf32>
    %c1_11 = arith.constant 1 : index
    %c0_12 = arith.constant 0 : index
    %c0_13 = arith.constant 0 : index
    %c6_14 = arith.constant 6 : index
    %24 = vector.load %arg0[%c1_11, %c0_12, %c0_13, %c6_14] : memref<4x2x16x96xf32, #tpu.memory_space<vmem>>, vector<1x2x14x84xf32>
    %25 = vector.shape_cast %24 : vector<1x2x14x84xf32> to vector<2x14x84xf32>
    %26 = vector.extract_strided_slice %0 {offsets = [3, 0], sizes = [1, 84], strides = [1, 1]} : vector<25x84xf32> to vector<1x84xf32>
    %27 = vector.shape_cast %26 : vector<1x84xf32> to vector<84xf32>
    %28 = vector.shape_cast %27 : vector<84xf32> to vector<1x1x84xf32>
    %29 = vector.broadcast %28 : vector<1x1x84xf32> to vector<2x14x84xf32>
    %30 = arith.mulf %25, %29 : vector<2x14x84xf32>
    %31 = arith.addf %23, %30 : vector<2x14x84xf32>
    %c0_15 = arith.constant 0 : index
    %c0_16 = arith.constant 0 : index
    %c0_17 = arith.constant 0 : index
    %c12 = arith.constant 12 : index
    %32 = vector.load %arg0[%c0_15, %c0_16, %c0_17, %c12] : memref<4x2x16x96xf32, #tpu.memory_space<vmem>>, vector<1x2x14x84xf32>
    %33 = vector.shape_cast %32 : vector<1x2x14x84xf32> to vector<2x14x84xf32>
    %34 = vector.extract_strided_slice %0 {offsets = [4, 0], sizes = [1, 84], strides = [1, 1]} : vector<25x84xf32> to vector<1x84xf32>
    %35 = vector.shape_cast %34 : vector<1x84xf32> to vector<84xf32>
    %36 = vector.shape_cast %35 : vector<84xf32> to vector<1x1x84xf32>
    %37 = vector.broadcast %36 : vector<1x1x84xf32> to vector<2x14x84xf32>
    %38 = arith.mulf %33, %37 : vector<2x14x84xf32>
    %39 = arith.addf %31, %38 : vector<2x14x84xf32>
    %c2 = arith.constant 2 : index
    %c0_18 = arith.constant 0 : index
    %c0_19 = arith.constant 0 : index
    %c0_20 = arith.constant 0 : index
    %40 = vector.load %arg0[%c2, %c0_18, %c0_19, %c0_20] : memref<4x2x16x96xf32, #tpu.memory_space<vmem>>, vector<1x2x14x84xf32>
    %41 = vector.shape_cast %40 : vector<1x2x14x84xf32> to vector<2x14x84xf32>
    %42 = vector.extract_strided_slice %0 {offsets = [5, 0], sizes = [1, 84], strides = [1, 1]} : vector<25x84xf32> to vector<1x84xf32>
    %43 = vector.shape_cast %42 : vector<1x84xf32> to vector<84xf32>
    %44 = vector.shape_cast %43 : vector<84xf32> to vector<1x1x84xf32>
    %45 = vector.broadcast %44 : vector<1x1x84xf32> to vector<2x14x84xf32>
    %46 = arith.mulf %41, %45 : vector<2x14x84xf32>
    %47 = arith.addf %39, %46 : vector<2x14x84xf32>
    %c3 = arith.constant 3 : index
    %c0_21 = arith.constant 0 : index
    %c0_22 = arith.constant 0 : index
    %c0_23 = arith.constant 0 : index
    %48 = vector.load %arg0[%c3, %c0_21, %c0_22, %c0_23] : memref<4x2x16x96xf32, #tpu.memory_space<vmem>>, vector<1x2x14x84xf32>
    %49 = vector.shape_cast %48 : vector<1x2x14x84xf32> to vector<2x14x84xf32>
    %50 = vector.extract_strided_slice %0 {offsets = [6, 0], sizes = [1, 84], strides = [1, 1]} : vector<25x84xf32> to vector<1x84xf32>
    %51 = vector.shape_cast %50 : vector<1x84xf32> to vector<84xf32>
    %52 = vector.shape_cast %51 : vector<84xf32> to vector<1x1x84xf32>
    %53 = vector.broadcast %52 : vector<1x1x84xf32> to vector<2x14x84xf32>
    %54 = arith.mulf %49, %53 : vector<2x14x84xf32>
    %55 = arith.addf %47, %54 : vector<2x14x84xf32>
    %c2_24 = arith.constant 2 : index
    %c0_25 = arith.constant 0 : index
    %c0_26 = arith.constant 0 : index
    %c6_27 = arith.constant 6 : index
    %56 = vector.load %arg0[%c2_24, %c0_25, %c0_26, %c6_27] : memref<4x2x16x96xf32, #tpu.memory_space<vmem>>, vector<1x2x14x84xf32>
    %57 = vector.shape_cast %56 : vector<1x2x14x84xf32> to vector<2x14x84xf32>
    %58 = vector.extract_strided_slice %0 {offsets = [7, 0], sizes = [1, 84], strides = [1, 1]} : vector<25x84xf32> to vector<1x84xf32>
    %59 = vector.shape_cast %58 : vector<1x84xf32> to vector<84xf32>
    %60 = vector.shape_cast %59 : vector<84xf32> to vector<1x1x84xf32>
    %61 = vector.broadcast %60 : vector<1x1x84xf32> to vector<2x14x84xf32>
    %62 = arith.mulf %57, %61 : vector<2x14x84xf32>
    %63 = arith.addf %55, %62 : vector<2x14x84xf32>
    %c3_28 = arith.constant 3 : index
    %c0_29 = arith.constant 0 : index
    %c0_30 = arith.constant 0 : index
    %c6_31 = arith.constant 6 : index
    %64 = vector.load %arg0[%c3_28, %c0_29, %c0_30, %c6_31] : memref<4x2x16x96xf32, #tpu.memory_space<vmem>>, vector<1x2x14x84xf32>
    %65 = vector.shape_cast %64 : vector<1x2x14x84xf32> to vector<2x14x84xf32>
    %66 = vector.extract_strided_slice %0 {offsets = [8, 0], sizes = [1, 84], strides = [1, 1]} : vector<25x84xf32> to vector<1x84xf32>
    %67 = vector.shape_cast %66 : vector<1x84xf32> to vector<84xf32>
    %68 = vector.shape_cast %67 : vector<84xf32> to vector<1x1x84xf32>
    %69 = vector.broadcast %68 : vector<1x1x84xf32> to vector<2x14x84xf32>
    %70 = arith.mulf %65, %69 : vector<2x14x84xf32>
    %71 = arith.addf %63, %70 : vector<2x14x84xf32>
    %c2_32 = arith.constant 2 : index
    %c0_33 = arith.constant 0 : index
    %c0_34 = arith.constant 0 : index
    %c12_35 = arith.constant 12 : index
    %72 = vector.load %arg0[%c2_32, %c0_33, %c0_34, %c12_35] : memref<4x2x16x96xf32, #tpu.memory_space<vmem>>, vector<1x2x14x84xf32>
    %73 = vector.shape_cast %72 : vector<1x2x14x84xf32> to vector<2x14x84xf32>
    %74 = vector.extract_strided_slice %0 {offsets = [9, 0], sizes = [1, 84], strides = [1, 1]} : vector<25x84xf32> to vector<1x84xf32>
    %75 = vector.shape_cast %74 : vector<1x84xf32> to vector<84xf32>
    %76 = vector.shape_cast %75 : vector<84xf32> to vector<1x1x84xf32>
    %77 = vector.broadcast %76 : vector<1x1x84xf32> to vector<2x14x84xf32>
    %78 = arith.mulf %73, %77 : vector<2x14x84xf32>
    %79 = arith.addf %71, %78 : vector<2x14x84xf32>
    %c0_36 = arith.constant 0 : index
    %c0_37 = arith.constant 0 : index
    %c1_38 = arith.constant 1 : index
    %c0_39 = arith.constant 0 : index
    %80 = vector.load %arg0[%c0_36, %c0_37, %c1_38, %c0_39] : memref<4x2x16x96xf32, #tpu.memory_space<vmem>>, vector<1x2x14x84xf32>
    %81 = vector.shape_cast %80 : vector<1x2x14x84xf32> to vector<2x14x84xf32>
    %82 = vector.extract_strided_slice %0 {offsets = [10, 0], sizes = [1, 84], strides = [1, 1]} : vector<25x84xf32> to vector<1x84xf32>
    %83 = vector.shape_cast %82 : vector<1x84xf32> to vector<84xf32>
    %84 = vector.shape_cast %83 : vector<84xf32> to vector<1x1x84xf32>
    %85 = vector.broadcast %84 : vector<1x1x84xf32> to vector<2x14x84xf32>
    %86 = arith.mulf %81, %85 : vector<2x14x84xf32>
    %87 = arith.addf %79, %86 : vector<2x14x84xf32>
    %c1_40 = arith.constant 1 : index
    %c0_41 = arith.constant 0 : index
    %c1_42 = arith.constant 1 : index
    %c0_43 = arith.constant 0 : index
    %88 = vector.load %arg0[%c1_40, %c0_41, %c1_42, %c0_43] : memref<4x2x16x96xf32, #tpu.memory_space<vmem>>, vector<1x2x14x84xf32>
    %89 = vector.shape_cast %88 : vector<1x2x14x84xf32> to vector<2x14x84xf32>
    %90 = vector.extract_strided_slice %0 {offsets = [11, 0], sizes = [1, 84], strides = [1, 1]} : vector<25x84xf32> to vector<1x84xf32>
    %91 = vector.shape_cast %90 : vector<1x84xf32> to vector<84xf32>
    %92 = vector.shape_cast %91 : vector<84xf32> to vector<1x1x84xf32>
    %93 = vector.broadcast %92 : vector<1x1x84xf32> to vector<2x14x84xf32>
    %94 = arith.mulf %89, %93 : vector<2x14x84xf32>
    %95 = arith.addf %87, %94 : vector<2x14x84xf32>
    %c0_44 = arith.constant 0 : index
    %c0_45 = arith.constant 0 : index
    %c1_46 = arith.constant 1 : index
    %c6_47 = arith.constant 6 : index
    %96 = vector.load %arg0[%c0_44, %c0_45, %c1_46, %c6_47] : memref<4x2x16x96xf32, #tpu.memory_space<vmem>>, vector<1x2x14x84xf32>
    %97 = vector.shape_cast %96 : vector<1x2x14x84xf32> to vector<2x14x84xf32>
    %98 = vector.extract_strided_slice %0 {offsets = [12, 0], sizes = [1, 84], strides = [1, 1]} : vector<25x84xf32> to vector<1x84xf32>
    %99 = vector.shape_cast %98 : vector<1x84xf32> to vector<84xf32>
    %100 = vector.shape_cast %99 : vector<84xf32> to vector<1x1x84xf32>
    %101 = vector.broadcast %100 : vector<1x1x84xf32> to vector<2x14x84xf32>
    %102 = arith.mulf %97, %101 : vector<2x14x84xf32>
    %103 = arith.addf %95, %102 : vector<2x14x84xf32>
    %c1_48 = arith.constant 1 : index
    %c0_49 = arith.constant 0 : index
    %c1_50 = arith.constant 1 : index
    %c6_51 = arith.constant 6 : index
    %104 = vector.load %arg0[%c1_48, %c0_49, %c1_50, %c6_51] : memref<4x2x16x96xf32, #tpu.memory_space<vmem>>, vector<1x2x14x84xf32>
    %105 = vector.shape_cast %104 : vector<1x2x14x84xf32> to vector<2x14x84xf32>
    %106 = vector.extract_strided_slice %0 {offsets = [13, 0], sizes = [1, 84], strides = [1, 1]} : vector<25x84xf32> to vector<1x84xf32>
    %107 = vector.shape_cast %106 : vector<1x84xf32> to vector<84xf32>
    %108 = vector.shape_cast %107 : vector<84xf32> to vector<1x1x84xf32>
    %109 = vector.broadcast %108 : vector<1x1x84xf32> to vector<2x14x84xf32>
    %110 = arith.mulf %105, %109 : vector<2x14x84xf32>
    %111 = arith.addf %103, %110 : vector<2x14x84xf32>
    %c0_52 = arith.constant 0 : index
    %c0_53 = arith.constant 0 : index
    %c1_54 = arith.constant 1 : index
    %c12_55 = arith.constant 12 : index
    %112 = vector.load %arg0[%c0_52, %c0_53, %c1_54, %c12_55] : memref<4x2x16x96xf32, #tpu.memory_space<vmem>>, vector<1x2x14x84xf32>
    %113 = vector.shape_cast %112 : vector<1x2x14x84xf32> to vector<2x14x84xf32>
    %114 = vector.extract_strided_slice %0 {offsets = [14, 0], sizes = [1, 84], strides = [1, 1]} : vector<25x84xf32> to vector<1x84xf32>
    %115 = vector.shape_cast %114 : vector<1x84xf32> to vector<84xf32>
    %116 = vector.shape_cast %115 : vector<84xf32> to vector<1x1x84xf32>
    %117 = vector.broadcast %116 : vector<1x1x84xf32> to vector<2x14x84xf32>
    %118 = arith.mulf %113, %117 : vector<2x14x84xf32>
    %119 = arith.addf %111, %118 : vector<2x14x84xf32>
    %c2_56 = arith.constant 2 : index
    %c0_57 = arith.constant 0 : index
    %c1_58 = arith.constant 1 : index
    %c0_59 = arith.constant 0 : index
    %120 = vector.load %arg0[%c2_56, %c0_57, %c1_58, %c0_59] : memref<4x2x16x96xf32, #tpu.memory_space<vmem>>, vector<1x2x14x84xf32>
    %121 = vector.shape_cast %120 : vector<1x2x14x84xf32> to vector<2x14x84xf32>
    %122 = vector.extract_strided_slice %0 {offsets = [15, 0], sizes = [1, 84], strides = [1, 1]} : vector<25x84xf32> to vector<1x84xf32>
    %123 = vector.shape_cast %122 : vector<1x84xf32> to vector<84xf32>
    %124 = vector.shape_cast %123 : vector<84xf32> to vector<1x1x84xf32>
    %125 = vector.broadcast %124 : vector<1x1x84xf32> to vector<2x14x84xf32>
    %126 = arith.mulf %121, %125 : vector<2x14x84xf32>
    %127 = arith.addf %119, %126 : vector<2x14x84xf32>
    %c3_60 = arith.constant 3 : index
    %c0_61 = arith.constant 0 : index
    %c1_62 = arith.constant 1 : index
    %c0_63 = arith.constant 0 : index
    %128 = vector.load %arg0[%c3_60, %c0_61, %c1_62, %c0_63] : memref<4x2x16x96xf32, #tpu.memory_space<vmem>>, vector<1x2x14x84xf32>
    %129 = vector.shape_cast %128 : vector<1x2x14x84xf32> to vector<2x14x84xf32>
    %130 = vector.extract_strided_slice %0 {offsets = [16, 0], sizes = [1, 84], strides = [1, 1]} : vector<25x84xf32> to vector<1x84xf32>
    %131 = vector.shape_cast %130 : vector<1x84xf32> to vector<84xf32>
    %132 = vector.shape_cast %131 : vector<84xf32> to vector<1x1x84xf32>
    %133 = vector.broadcast %132 : vector<1x1x84xf32> to vector<2x14x84xf32>
    %134 = arith.mulf %129, %133 : vector<2x14x84xf32>
    %135 = arith.addf %127, %134 : vector<2x14x84xf32>
    %c2_64 = arith.constant 2 : index
    %c0_65 = arith.constant 0 : index
    %c1_66 = arith.constant 1 : index
    %c6_67 = arith.constant 6 : index
    %136 = vector.load %arg0[%c2_64, %c0_65, %c1_66, %c6_67] : memref<4x2x16x96xf32, #tpu.memory_space<vmem>>, vector<1x2x14x84xf32>
    %137 = vector.shape_cast %136 : vector<1x2x14x84xf32> to vector<2x14x84xf32>
    %138 = vector.extract_strided_slice %0 {offsets = [17, 0], sizes = [1, 84], strides = [1, 1]} : vector<25x84xf32> to vector<1x84xf32>
    %139 = vector.shape_cast %138 : vector<1x84xf32> to vector<84xf32>
    %140 = vector.shape_cast %139 : vector<84xf32> to vector<1x1x84xf32>
    %141 = vector.broadcast %140 : vector<1x1x84xf32> to vector<2x14x84xf32>
    %142 = arith.mulf %137, %141 : vector<2x14x84xf32>
    %143 = arith.addf %135, %142 : vector<2x14x84xf32>
    %c3_68 = arith.constant 3 : index
    %c0_69 = arith.constant 0 : index
    %c1_70 = arith.constant 1 : index
    %c6_71 = arith.constant 6 : index
    %144 = vector.load %arg0[%c3_68, %c0_69, %c1_70, %c6_71] : memref<4x2x16x96xf32, #tpu.memory_space<vmem>>, vector<1x2x14x84xf32>
    %145 = vector.shape_cast %144 : vector<1x2x14x84xf32> to vector<2x14x84xf32>
    %146 = vector.extract_strided_slice %0 {offsets = [18, 0], sizes = [1, 84], strides = [1, 1]} : vector<25x84xf32> to vector<1x84xf32>
    %147 = vector.shape_cast %146 : vector<1x84xf32> to vector<84xf32>
    %148 = vector.shape_cast %147 : vector<84xf32> to vector<1x1x84xf32>
    %149 = vector.broadcast %148 : vector<1x1x84xf32> to vector<2x14x84xf32>
    %150 = arith.mulf %145, %149 : vector<2x14x84xf32>
    %151 = arith.addf %143, %150 : vector<2x14x84xf32>
    %c2_72 = arith.constant 2 : index
    %c0_73 = arith.constant 0 : index
    %c1_74 = arith.constant 1 : index
    %c12_75 = arith.constant 12 : index
    %152 = vector.load %arg0[%c2_72, %c0_73, %c1_74, %c12_75] : memref<4x2x16x96xf32, #tpu.memory_space<vmem>>, vector<1x2x14x84xf32>
    %153 = vector.shape_cast %152 : vector<1x2x14x84xf32> to vector<2x14x84xf32>
    %154 = vector.extract_strided_slice %0 {offsets = [19, 0], sizes = [1, 84], strides = [1, 1]} : vector<25x84xf32> to vector<1x84xf32>
    %155 = vector.shape_cast %154 : vector<1x84xf32> to vector<84xf32>
    %156 = vector.shape_cast %155 : vector<84xf32> to vector<1x1x84xf32>
    %157 = vector.broadcast %156 : vector<1x1x84xf32> to vector<2x14x84xf32>
    %158 = arith.mulf %153, %157 : vector<2x14x84xf32>
    %159 = arith.addf %151, %158 : vector<2x14x84xf32>
    %c0_76 = arith.constant 0 : index
    %c0_77 = arith.constant 0 : index
    %c2_78 = arith.constant 2 : index
    %c0_79 = arith.constant 0 : index
    %160 = vector.load %arg0[%c0_76, %c0_77, %c2_78, %c0_79] : memref<4x2x16x96xf32, #tpu.memory_space<vmem>>, vector<1x2x14x84xf32>
    %161 = vector.shape_cast %160 : vector<1x2x14x84xf32> to vector<2x14x84xf32>
    %162 = vector.extract_strided_slice %0 {offsets = [20, 0], sizes = [1, 84], strides = [1, 1]} : vector<25x84xf32> to vector<1x84xf32>
    %163 = vector.shape_cast %162 : vector<1x84xf32> to vector<84xf32>
    %164 = vector.shape_cast %163 : vector<84xf32> to vector<1x1x84xf32>
    %165 = vector.broadcast %164 : vector<1x1x84xf32> to vector<2x14x84xf32>
    %166 = arith.mulf %161, %165 : vector<2x14x84xf32>
    %167 = arith.addf %159, %166 : vector<2x14x84xf32>
    %c1_80 = arith.constant 1 : index
    %c0_81 = arith.constant 0 : index
    %c2_82 = arith.constant 2 : index
    %c0_83 = arith.constant 0 : index
    %168 = vector.load %arg0[%c1_80, %c0_81, %c2_82, %c0_83] : memref<4x2x16x96xf32, #tpu.memory_space<vmem>>, vector<1x2x14x84xf32>
    %169 = vector.shape_cast %168 : vector<1x2x14x84xf32> to vector<2x14x84xf32>
    %170 = vector.extract_strided_slice %0 {offsets = [21, 0], sizes = [1, 84], strides = [1, 1]} : vector<25x84xf32> to vector<1x84xf32>
    %171 = vector.shape_cast %170 : vector<1x84xf32> to vector<84xf32>
    %172 = vector.shape_cast %171 : vector<84xf32> to vector<1x1x84xf32>
    %173 = vector.broadcast %172 : vector<1x1x84xf32> to vector<2x14x84xf32>
    %174 = arith.mulf %169, %173 : vector<2x14x84xf32>
    %175 = arith.addf %167, %174 : vector<2x14x84xf32>
    %c0_84 = arith.constant 0 : index
    %c0_85 = arith.constant 0 : index
    %c2_86 = arith.constant 2 : index
    %c6_87 = arith.constant 6 : index
    %176 = vector.load %arg0[%c0_84, %c0_85, %c2_86, %c6_87] : memref<4x2x16x96xf32, #tpu.memory_space<vmem>>, vector<1x2x14x84xf32>
    %177 = vector.shape_cast %176 : vector<1x2x14x84xf32> to vector<2x14x84xf32>
    %178 = vector.extract_strided_slice %0 {offsets = [22, 0], sizes = [1, 84], strides = [1, 1]} : vector<25x84xf32> to vector<1x84xf32>
    %179 = vector.shape_cast %178 : vector<1x84xf32> to vector<84xf32>
    %180 = vector.shape_cast %179 : vector<84xf32> to vector<1x1x84xf32>
    %181 = vector.broadcast %180 : vector<1x1x84xf32> to vector<2x14x84xf32>
    %182 = arith.mulf %177, %181 : vector<2x14x84xf32>
    %183 = arith.addf %175, %182 : vector<2x14x84xf32>
    %c1_88 = arith.constant 1 : index
    %c0_89 = arith.constant 0 : index
    %c2_90 = arith.constant 2 : index
    %c6_91 = arith.constant 6 : index
    %184 = vector.load %arg0[%c1_88, %c0_89, %c2_90, %c6_91] : memref<4x2x16x96xf32, #tpu.memory_space<vmem>>, vector<1x2x14x84xf32>
    %185 = vector.shape_cast %184 : vector<1x2x14x84xf32> to vector<2x14x84xf32>
    %186 = vector.extract_strided_slice %0 {offsets = [23, 0], sizes = [1, 84], strides = [1, 1]} : vector<25x84xf32> to vector<1x84xf32>
    %187 = vector.shape_cast %186 : vector<1x84xf32> to vector<84xf32>
    %188 = vector.shape_cast %187 : vector<84xf32> to vector<1x1x84xf32>
    %189 = vector.broadcast %188 : vector<1x1x84xf32> to vector<2x14x84xf32>
    %190 = arith.mulf %185, %189 : vector<2x14x84xf32>
    %191 = arith.addf %183, %190 : vector<2x14x84xf32>
    %c0_92 = arith.constant 0 : index
    %c0_93 = arith.constant 0 : index
    %c2_94 = arith.constant 2 : index
    %c12_95 = arith.constant 12 : index
    %192 = vector.load %arg0[%c0_92, %c0_93, %c2_94, %c12_95] : memref<4x2x16x96xf32, #tpu.memory_space<vmem>>, vector<1x2x14x84xf32>
    %193 = vector.shape_cast %192 : vector<1x2x14x84xf32> to vector<2x14x84xf32>
    %194 = vector.extract_strided_slice %0 {offsets = [24, 0], sizes = [1, 84], strides = [1, 1]} : vector<25x84xf32> to vector<1x84xf32>
    %195 = vector.shape_cast %194 : vector<1x84xf32> to vector<84xf32>
    %196 = vector.shape_cast %195 : vector<84xf32> to vector<1x1x84xf32>
    %197 = vector.broadcast %196 : vector<1x1x84xf32> to vector<2x14x84xf32>
    %198 = arith.mulf %193, %197 : vector<2x14x84xf32>
    %199 = arith.addf %191, %198 : vector<2x14x84xf32>
    %c1_96 = arith.constant 1 : index
    %c0_97 = arith.constant 0 : index
    %c0_98 = arith.constant 0 : index
    %c0_99 = arith.constant 0 : index
    %200 = vector.load %arg0[%c1_96, %c0_97, %c0_98, %c0_99] : memref<4x2x16x96xf32, #tpu.memory_space<vmem>>, vector<1x2x14x84xf32>
    %201 = vector.shape_cast %200 : vector<1x2x14x84xf32> to vector<2x14x84xf32>
    %202 = vector.extract_strided_slice %0 {offsets = [0, 0], sizes = [1, 84], strides = [1, 1]} : vector<25x84xf32> to vector<1x84xf32>
    %203 = vector.shape_cast %202 : vector<1x84xf32> to vector<84xf32>
    %204 = vector.shape_cast %203 : vector<84xf32> to vector<1x1x84xf32>
    %205 = vector.broadcast %204 : vector<1x1x84xf32> to vector<2x14x84xf32>
    %206 = arith.mulf %201, %205 : vector<2x14x84xf32>
    %c0_100 = arith.constant 0 : index
    %c0_101 = arith.constant 0 : index
    %c0_102 = arith.constant 0 : index
    %c6_103 = arith.constant 6 : index
    %207 = vector.load %arg0[%c0_100, %c0_101, %c0_102, %c6_103] : memref<4x2x16x96xf32, #tpu.memory_space<vmem>>, vector<1x2x14x84xf32>
    %208 = vector.shape_cast %207 : vector<1x2x14x84xf32> to vector<2x14x84xf32>
    %209 = vector.extract_strided_slice %0 {offsets = [1, 0], sizes = [1, 84], strides = [1, 1]} : vector<25x84xf32> to vector<1x84xf32>
    %210 = vector.shape_cast %209 : vector<1x84xf32> to vector<84xf32>
    %211 = vector.shape_cast %210 : vector<84xf32> to vector<1x1x84xf32>
    %212 = vector.broadcast %211 : vector<1x1x84xf32> to vector<2x14x84xf32>
    %213 = arith.mulf %208, %212 : vector<2x14x84xf32>
    %214 = arith.addf %206, %213 : vector<2x14x84xf32>
    %c1_104 = arith.constant 1 : index
    %c0_105 = arith.constant 0 : index
    %c0_106 = arith.constant 0 : index
    %c6_107 = arith.constant 6 : index
    %215 = vector.load %arg0[%c1_104, %c0_105, %c0_106, %c6_107] : memref<4x2x16x96xf32, #tpu.memory_space<vmem>>, vector<1x2x14x84xf32>
    %216 = vector.shape_cast %215 : vector<1x2x14x84xf32> to vector<2x14x84xf32>
    %217 = vector.extract_strided_slice %0 {offsets = [2, 0], sizes = [1, 84], strides = [1, 1]} : vector<25x84xf32> to vector<1x84xf32>
    %218 = vector.shape_cast %217 : vector<1x84xf32> to vector<84xf32>
    %219 = vector.shape_cast %218 : vector<84xf32> to vector<1x1x84xf32>
    %220 = vector.broadcast %219 : vector<1x1x84xf32> to vector<2x14x84xf32>
    %221 = arith.mulf %216, %220 : vector<2x14x84xf32>
    %222 = arith.addf %214, %221 : vector<2x14x84xf32>
    %c0_108 = arith.constant 0 : index
    %c0_109 = arith.constant 0 : index
    %c0_110 = arith.constant 0 : index
    %c12_111 = arith.constant 12 : index
    %223 = vector.load %arg0[%c0_108, %c0_109, %c0_110, %c12_111] : memref<4x2x16x96xf32, #tpu.memory_space<vmem>>, vector<1x2x14x84xf32>
    %224 = vector.shape_cast %223 : vector<1x2x14x84xf32> to vector<2x14x84xf32>
    %225 = vector.extract_strided_slice %0 {offsets = [3, 0], sizes = [1, 84], strides = [1, 1]} : vector<25x84xf32> to vector<1x84xf32>
    %226 = vector.shape_cast %225 : vector<1x84xf32> to vector<84xf32>
    %227 = vector.shape_cast %226 : vector<84xf32> to vector<1x1x84xf32>
    %228 = vector.broadcast %227 : vector<1x1x84xf32> to vector<2x14x84xf32>
    %229 = arith.mulf %224, %228 : vector<2x14x84xf32>
    %230 = arith.addf %222, %229 : vector<2x14x84xf32>
    %c1_112 = arith.constant 1 : index
    %c0_113 = arith.constant 0 : index
    %c0_114 = arith.constant 0 : index
    %c12_115 = arith.constant 12 : index
    %231 = vector.load %arg0[%c1_112, %c0_113, %c0_114, %c12_115] : memref<4x2x16x96xf32, #tpu.memory_space<vmem>>, vector<1x2x14x84xf32>
    %232 = vector.shape_cast %231 : vector<1x2x14x84xf32> to vector<2x14x84xf32>
    %233 = vector.extract_strided_slice %0 {offsets = [4, 0], sizes = [1, 84], strides = [1, 1]} : vector<25x84xf32> to vector<1x84xf32>
    %234 = vector.shape_cast %233 : vector<1x84xf32> to vector<84xf32>
    %235 = vector.shape_cast %234 : vector<84xf32> to vector<1x1x84xf32>
    %236 = vector.broadcast %235 : vector<1x1x84xf32> to vector<2x14x84xf32>
    %237 = arith.mulf %232, %236 : vector<2x14x84xf32>
    %238 = arith.addf %230, %237 : vector<2x14x84xf32>
    %c3_116 = arith.constant 3 : index
    %c0_117 = arith.constant 0 : index
    %c0_118 = arith.constant 0 : index
    %c0_119 = arith.constant 0 : index
    %239 = vector.load %arg0[%c3_116, %c0_117, %c0_118, %c0_119] : memref<4x2x16x96xf32, #tpu.memory_space<vmem>>, vector<1x2x14x84xf32>
    %240 = vector.shape_cast %239 : vector<1x2x14x84xf32> to vector<2x14x84xf32>
    %241 = vector.extract_strided_slice %0 {offsets = [5, 0], sizes = [1, 84], strides = [1, 1]} : vector<25x84xf32> to vector<1x84xf32>
    %242 = vector.shape_cast %241 : vector<1x84xf32> to vector<84xf32>
    %243 = vector.shape_cast %242 : vector<84xf32> to vector<1x1x84xf32>
    %244 = vector.broadcast %243 : vector<1x1x84xf32> to vector<2x14x84xf32>
    %245 = arith.mulf %240, %244 : vector<2x14x84xf32>
    %246 = arith.addf %238, %245 : vector<2x14x84xf32>
    %c2_120 = arith.constant 2 : index
    %c0_121 = arith.constant 0 : index
    %c0_122 = arith.constant 0 : index
    %c6_123 = arith.constant 6 : index
    %247 = vector.load %arg0[%c2_120, %c0_121, %c0_122, %c6_123] : memref<4x2x16x96xf32, #tpu.memory_space<vmem>>, vector<1x2x14x84xf32>
    %248 = vector.shape_cast %247 : vector<1x2x14x84xf32> to vector<2x14x84xf32>
    %249 = vector.extract_strided_slice %0 {offsets = [6, 0], sizes = [1, 84], strides = [1, 1]} : vector<25x84xf32> to vector<1x84xf32>
    %250 = vector.shape_cast %249 : vector<1x84xf32> to vector<84xf32>
    %251 = vector.shape_cast %250 : vector<84xf32> to vector<1x1x84xf32>
    %252 = vector.broadcast %251 : vector<1x1x84xf32> to vector<2x14x84xf32>
    %253 = arith.mulf %248, %252 : vector<2x14x84xf32>
    %254 = arith.addf %246, %253 : vector<2x14x84xf32>
    %c3_124 = arith.constant 3 : index
    %c0_125 = arith.constant 0 : index
    %c0_126 = arith.constant 0 : index
    %c6_127 = arith.constant 6 : index
    %255 = vector.load %arg0[%c3_124, %c0_125, %c0_126, %c6_127] : memref<4x2x16x96xf32, #tpu.memory_space<vmem>>, vector<1x2x14x84xf32>
    %256 = vector.shape_cast %255 : vector<1x2x14x84xf32> to vector<2x14x84xf32>
    %257 = vector.extract_strided_slice %0 {offsets = [7, 0], sizes = [1, 84], strides = [1, 1]} : vector<25x84xf32> to vector<1x84xf32>
    %258 = vector.shape_cast %257 : vector<1x84xf32> to vector<84xf32>
    %259 = vector.shape_cast %258 : vector<84xf32> to vector<1x1x84xf32>
    %260 = vector.broadcast %259 : vector<1x1x84xf32> to vector<2x14x84xf32>
    %261 = arith.mulf %256, %260 : vector<2x14x84xf32>
    %262 = arith.addf %254, %261 : vector<2x14x84xf32>
    %c2_128 = arith.constant 2 : index
    %c0_129 = arith.constant 0 : index
    %c0_130 = arith.constant 0 : index
    %c12_131 = arith.constant 12 : index
    %263 = vector.load %arg0[%c2_128, %c0_129, %c0_130, %c12_131] : memref<4x2x16x96xf32, #tpu.memory_space<vmem>>, vector<1x2x14x84xf32>
    %264 = vector.shape_cast %263 : vector<1x2x14x84xf32> to vector<2x14x84xf32>
    %265 = vector.extract_strided_slice %0 {offsets = [8, 0], sizes = [1, 84], strides = [1, 1]} : vector<25x84xf32> to vector<1x84xf32>
    %266 = vector.shape_cast %265 : vector<1x84xf32> to vector<84xf32>
    %267 = vector.shape_cast %266 : vector<84xf32> to vector<1x1x84xf32>
    %268 = vector.broadcast %267 : vector<1x1x84xf32> to vector<2x14x84xf32>
    %269 = arith.mulf %264, %268 : vector<2x14x84xf32>
    %270 = arith.addf %262, %269 : vector<2x14x84xf32>
    %c3_132 = arith.constant 3 : index
    %c0_133 = arith.constant 0 : index
    %c0_134 = arith.constant 0 : index
    %c12_135 = arith.constant 12 : index
    %271 = vector.load %arg0[%c3_132, %c0_133, %c0_134, %c12_135] : memref<4x2x16x96xf32, #tpu.memory_space<vmem>>, vector<1x2x14x84xf32>
    %272 = vector.shape_cast %271 : vector<1x2x14x84xf32> to vector<2x14x84xf32>
    %273 = vector.extract_strided_slice %0 {offsets = [9, 0], sizes = [1, 84], strides = [1, 1]} : vector<25x84xf32> to vector<1x84xf32>
    %274 = vector.shape_cast %273 : vector<1x84xf32> to vector<84xf32>
    %275 = vector.shape_cast %274 : vector<84xf32> to vector<1x1x84xf32>
    %276 = vector.broadcast %275 : vector<1x1x84xf32> to vector<2x14x84xf32>
    %277 = arith.mulf %272, %276 : vector<2x14x84xf32>
    %278 = arith.addf %270, %277 : vector<2x14x84xf32>
    %c1_136 = arith.constant 1 : index
    %c0_137 = arith.constant 0 : index
    %c1_138 = arith.constant 1 : index
    %c0_139 = arith.constant 0 : index
    %279 = vector.load %arg0[%c1_136, %c0_137, %c1_138, %c0_139] : memref<4x2x16x96xf32, #tpu.memory_space<vmem>>, vector<1x2x14x84xf32>
    %280 = vector.shape_cast %279 : vector<1x2x14x84xf32> to vector<2x14x84xf32>
    %281 = vector.extract_strided_slice %0 {offsets = [10, 0], sizes = [1, 84], strides = [1, 1]} : vector<25x84xf32> to vector<1x84xf32>
    %282 = vector.shape_cast %281 : vector<1x84xf32> to vector<84xf32>
    %283 = vector.shape_cast %282 : vector<84xf32> to vector<1x1x84xf32>
    %284 = vector.broadcast %283 : vector<1x1x84xf32> to vector<2x14x84xf32>
    %285 = arith.mulf %280, %284 : vector<2x14x84xf32>
    %286 = arith.addf %278, %285 : vector<2x14x84xf32>
    %c0_140 = arith.constant 0 : index
    %c0_141 = arith.constant 0 : index
    %c1_142 = arith.constant 1 : index
    %c6_143 = arith.constant 6 : index
    %287 = vector.load %arg0[%c0_140, %c0_141, %c1_142, %c6_143] : memref<4x2x16x96xf32, #tpu.memory_space<vmem>>, vector<1x2x14x84xf32>
    %288 = vector.shape_cast %287 : vector<1x2x14x84xf32> to vector<2x14x84xf32>
    %289 = vector.extract_strided_slice %0 {offsets = [11, 0], sizes = [1, 84], strides = [1, 1]} : vector<25x84xf32> to vector<1x84xf32>
    %290 = vector.shape_cast %289 : vector<1x84xf32> to vector<84xf32>
    %291 = vector.shape_cast %290 : vector<84xf32> to vector<1x1x84xf32>
    %292 = vector.broadcast %291 : vector<1x1x84xf32> to vector<2x14x84xf32>
    %293 = arith.mulf %288, %292 : vector<2x14x84xf32>
    %294 = arith.addf %286, %293 : vector<2x14x84xf32>
    %c1_144 = arith.constant 1 : index
    %c0_145 = arith.constant 0 : index
    %c1_146 = arith.constant 1 : index
    %c6_147 = arith.constant 6 : index
    %295 = vector.load %arg0[%c1_144, %c0_145, %c1_146, %c6_147] : memref<4x2x16x96xf32, #tpu.memory_space<vmem>>, vector<1x2x14x84xf32>
    %296 = vector.shape_cast %295 : vector<1x2x14x84xf32> to vector<2x14x84xf32>
    %297 = vector.extract_strided_slice %0 {offsets = [12, 0], sizes = [1, 84], strides = [1, 1]} : vector<25x84xf32> to vector<1x84xf32>
    %298 = vector.shape_cast %297 : vector<1x84xf32> to vector<84xf32>
    %299 = vector.shape_cast %298 : vector<84xf32> to vector<1x1x84xf32>
    %300 = vector.broadcast %299 : vector<1x1x84xf32> to vector<2x14x84xf32>
    %301 = arith.mulf %296, %300 : vector<2x14x84xf32>
    %302 = arith.addf %294, %301 : vector<2x14x84xf32>
    %c0_148 = arith.constant 0 : index
    %c0_149 = arith.constant 0 : index
    %c1_150 = arith.constant 1 : index
    %c12_151 = arith.constant 12 : index
    %303 = vector.load %arg0[%c0_148, %c0_149, %c1_150, %c12_151] : memref<4x2x16x96xf32, #tpu.memory_space<vmem>>, vector<1x2x14x84xf32>
    %304 = vector.shape_cast %303 : vector<1x2x14x84xf32> to vector<2x14x84xf32>
    %305 = vector.extract_strided_slice %0 {offsets = [13, 0], sizes = [1, 84], strides = [1, 1]} : vector<25x84xf32> to vector<1x84xf32>
    %306 = vector.shape_cast %305 : vector<1x84xf32> to vector<84xf32>
    %307 = vector.shape_cast %306 : vector<84xf32> to vector<1x1x84xf32>
    %308 = vector.broadcast %307 : vector<1x1x84xf32> to vector<2x14x84xf32>
    %309 = arith.mulf %304, %308 : vector<2x14x84xf32>
    %310 = arith.addf %302, %309 : vector<2x14x84xf32>
    %c1_152 = arith.constant 1 : index
    %c0_153 = arith.constant 0 : index
    %c1_154 = arith.constant 1 : index
    %c12_155 = arith.constant 12 : index
    %311 = vector.load %arg0[%c1_152, %c0_153, %c1_154, %c12_155] : memref<4x2x16x96xf32, #tpu.memory_space<vmem>>, vector<1x2x14x84xf32>
    %312 = vector.shape_cast %311 : vector<1x2x14x84xf32> to vector<2x14x84xf32>
    %313 = vector.extract_strided_slice %0 {offsets = [14, 0], sizes = [1, 84], strides = [1, 1]} : vector<25x84xf32> to vector<1x84xf32>
    %314 = vector.shape_cast %313 : vector<1x84xf32> to vector<84xf32>
    %315 = vector.shape_cast %314 : vector<84xf32> to vector<1x1x84xf32>
    %316 = vector.broadcast %315 : vector<1x1x84xf32> to vector<2x14x84xf32>
    %317 = arith.mulf %312, %316 : vector<2x14x84xf32>
    %318 = arith.addf %310, %317 : vector<2x14x84xf32>
    %c3_156 = arith.constant 3 : index
    %c0_157 = arith.constant 0 : index
    %c1_158 = arith.constant 1 : index
    %c0_159 = arith.constant 0 : index
    %319 = vector.load %arg0[%c3_156, %c0_157, %c1_158, %c0_159] : memref<4x2x16x96xf32, #tpu.memory_space<vmem>>, vector<1x2x14x84xf32>
    %320 = vector.shape_cast %319 : vector<1x2x14x84xf32> to vector<2x14x84xf32>
    %321 = vector.extract_strided_slice %0 {offsets = [15, 0], sizes = [1, 84], strides = [1, 1]} : vector<25x84xf32> to vector<1x84xf32>
    %322 = vector.shape_cast %321 : vector<1x84xf32> to vector<84xf32>
    %323 = vector.shape_cast %322 : vector<84xf32> to vector<1x1x84xf32>
    %324 = vector.broadcast %323 : vector<1x1x84xf32> to vector<2x14x84xf32>
    %325 = arith.mulf %320, %324 : vector<2x14x84xf32>
    %326 = arith.addf %318, %325 : vector<2x14x84xf32>
    %c2_160 = arith.constant 2 : index
    %c0_161 = arith.constant 0 : index
    %c1_162 = arith.constant 1 : index
    %c6_163 = arith.constant 6 : index
    %327 = vector.load %arg0[%c2_160, %c0_161, %c1_162, %c6_163] : memref<4x2x16x96xf32, #tpu.memory_space<vmem>>, vector<1x2x14x84xf32>
    %328 = vector.shape_cast %327 : vector<1x2x14x84xf32> to vector<2x14x84xf32>
    %329 = vector.extract_strided_slice %0 {offsets = [16, 0], sizes = [1, 84], strides = [1, 1]} : vector<25x84xf32> to vector<1x84xf32>
    %330 = vector.shape_cast %329 : vector<1x84xf32> to vector<84xf32>
    %331 = vector.shape_cast %330 : vector<84xf32> to vector<1x1x84xf32>
    %332 = vector.broadcast %331 : vector<1x1x84xf32> to vector<2x14x84xf32>
    %333 = arith.mulf %328, %332 : vector<2x14x84xf32>
    %334 = arith.addf %326, %333 : vector<2x14x84xf32>
    %c3_164 = arith.constant 3 : index
    %c0_165 = arith.constant 0 : index
    %c1_166 = arith.constant 1 : index
    %c6_167 = arith.constant 6 : index
    %335 = vector.load %arg0[%c3_164, %c0_165, %c1_166, %c6_167] : memref<4x2x16x96xf32, #tpu.memory_space<vmem>>, vector<1x2x14x84xf32>
    %336 = vector.shape_cast %335 : vector<1x2x14x84xf32> to vector<2x14x84xf32>
    %337 = vector.extract_strided_slice %0 {offsets = [17, 0], sizes = [1, 84], strides = [1, 1]} : vector<25x84xf32> to vector<1x84xf32>
    %338 = vector.shape_cast %337 : vector<1x84xf32> to vector<84xf32>
    %339 = vector.shape_cast %338 : vector<84xf32> to vector<1x1x84xf32>
    %340 = vector.broadcast %339 : vector<1x1x84xf32> to vector<2x14x84xf32>
    %341 = arith.mulf %336, %340 : vector<2x14x84xf32>
    %342 = arith.addf %334, %341 : vector<2x14x84xf32>
    %c2_168 = arith.constant 2 : index
    %c0_169 = arith.constant 0 : index
    %c1_170 = arith.constant 1 : index
    %c12_171 = arith.constant 12 : index
    %343 = vector.load %arg0[%c2_168, %c0_169, %c1_170, %c12_171] : memref<4x2x16x96xf32, #tpu.memory_space<vmem>>, vector<1x2x14x84xf32>
    %344 = vector.shape_cast %343 : vector<1x2x14x84xf32> to vector<2x14x84xf32>
    %345 = vector.extract_strided_slice %0 {offsets = [18, 0], sizes = [1, 84], strides = [1, 1]} : vector<25x84xf32> to vector<1x84xf32>
    %346 = vector.shape_cast %345 : vector<1x84xf32> to vector<84xf32>
    %347 = vector.shape_cast %346 : vector<84xf32> to vector<1x1x84xf32>
    %348 = vector.broadcast %347 : vector<1x1x84xf32> to vector<2x14x84xf32>
    %349 = arith.mulf %344, %348 : vector<2x14x84xf32>
    %350 = arith.addf %342, %349 : vector<2x14x84xf32>
    %c3_172 = arith.constant 3 : index
    %c0_173 = arith.constant 0 : index
    %c1_174 = arith.constant 1 : index
    %c12_175 = arith.constant 12 : index
    %351 = vector.load %arg0[%c3_172, %c0_173, %c1_174, %c12_175] : memref<4x2x16x96xf32, #tpu.memory_space<vmem>>, vector<1x2x14x84xf32>
    %352 = vector.shape_cast %351 : vector<1x2x14x84xf32> to vector<2x14x84xf32>
    %353 = vector.extract_strided_slice %0 {offsets = [19, 0], sizes = [1, 84], strides = [1, 1]} : vector<25x84xf32> to vector<1x84xf32>
    %354 = vector.shape_cast %353 : vector<1x84xf32> to vector<84xf32>
    %355 = vector.shape_cast %354 : vector<84xf32> to vector<1x1x84xf32>
    %356 = vector.broadcast %355 : vector<1x1x84xf32> to vector<2x14x84xf32>
    %357 = arith.mulf %352, %356 : vector<2x14x84xf32>
    %358 = arith.addf %350, %357 : vector<2x14x84xf32>
    %c1_176 = arith.constant 1 : index
    %c0_177 = arith.constant 0 : index
    %c2_178 = arith.constant 2 : index
    %c0_179 = arith.constant 0 : index
    %359 = vector.load %arg0[%c1_176, %c0_177, %c2_178, %c0_179] : memref<4x2x16x96xf32, #tpu.memory_space<vmem>>, vector<1x2x14x84xf32>
    %360 = vector.shape_cast %359 : vector<1x2x14x84xf32> to vector<2x14x84xf32>
    %361 = vector.extract_strided_slice %0 {offsets = [20, 0], sizes = [1, 84], strides = [1, 1]} : vector<25x84xf32> to vector<1x84xf32>
    %362 = vector.shape_cast %361 : vector<1x84xf32> to vector<84xf32>
    %363 = vector.shape_cast %362 : vector<84xf32> to vector<1x1x84xf32>
    %364 = vector.broadcast %363 : vector<1x1x84xf32> to vector<2x14x84xf32>
    %365 = arith.mulf %360, %364 : vector<2x14x84xf32>
    %366 = arith.addf %358, %365 : vector<2x14x84xf32>
    %c0_180 = arith.constant 0 : index
    %c0_181 = arith.constant 0 : index
    %c2_182 = arith.constant 2 : index
    %c6_183 = arith.constant 6 : index
    %367 = vector.load %arg0[%c0_180, %c0_181, %c2_182, %c6_183] : memref<4x2x16x96xf32, #tpu.memory_space<vmem>>, vector<1x2x14x84xf32>
    %368 = vector.shape_cast %367 : vector<1x2x14x84xf32> to vector<2x14x84xf32>
    %369 = vector.extract_strided_slice %0 {offsets = [21, 0], sizes = [1, 84], strides = [1, 1]} : vector<25x84xf32> to vector<1x84xf32>
    %370 = vector.shape_cast %369 : vector<1x84xf32> to vector<84xf32>
    %371 = vector.shape_cast %370 : vector<84xf32> to vector<1x1x84xf32>
    %372 = vector.broadcast %371 : vector<1x1x84xf32> to vector<2x14x84xf32>
    %373 = arith.mulf %368, %372 : vector<2x14x84xf32>
    %374 = arith.addf %366, %373 : vector<2x14x84xf32>
    %c1_184 = arith.constant 1 : index
    %c0_185 = arith.constant 0 : index
    %c2_186 = arith.constant 2 : index
    %c6_187 = arith.constant 6 : index
    %375 = vector.load %arg0[%c1_184, %c0_185, %c2_186, %c6_187] : memref<4x2x16x96xf32, #tpu.memory_space<vmem>>, vector<1x2x14x84xf32>
    %376 = vector.shape_cast %375 : vector<1x2x14x84xf32> to vector<2x14x84xf32>
    %377 = vector.extract_strided_slice %0 {offsets = [22, 0], sizes = [1, 84], strides = [1, 1]} : vector<25x84xf32> to vector<1x84xf32>
    %378 = vector.shape_cast %377 : vector<1x84xf32> to vector<84xf32>
    %379 = vector.shape_cast %378 : vector<84xf32> to vector<1x1x84xf32>
    %380 = vector.broadcast %379 : vector<1x1x84xf32> to vector<2x14x84xf32>
    %381 = arith.mulf %376, %380 : vector<2x14x84xf32>
    %382 = arith.addf %374, %381 : vector<2x14x84xf32>
    %c0_188 = arith.constant 0 : index
    %c0_189 = arith.constant 0 : index
    %c2_190 = arith.constant 2 : index
    %c12_191 = arith.constant 12 : index
    %383 = vector.load %arg0[%c0_188, %c0_189, %c2_190, %c12_191] : memref<4x2x16x96xf32, #tpu.memory_space<vmem>>, vector<1x2x14x84xf32>
    %384 = vector.shape_cast %383 : vector<1x2x14x84xf32> to vector<2x14x84xf32>
    %385 = vector.extract_strided_slice %0 {offsets = [23, 0], sizes = [1, 84], strides = [1, 1]} : vector<25x84xf32> to vector<1x84xf32>
    %386 = vector.shape_cast %385 : vector<1x84xf32> to vector<84xf32>
    %387 = vector.shape_cast %386 : vector<84xf32> to vector<1x1x84xf32>
    %388 = vector.broadcast %387 : vector<1x1x84xf32> to vector<2x14x84xf32>
    %389 = arith.mulf %384, %388 : vector<2x14x84xf32>
    %390 = arith.addf %382, %389 : vector<2x14x84xf32>
    %c1_192 = arith.constant 1 : index
    %c0_193 = arith.constant 0 : index
    %c2_194 = arith.constant 2 : index
    %c12_195 = arith.constant 12 : index
    %391 = vector.load %arg0[%c1_192, %c0_193, %c2_194, %c12_195] : memref<4x2x16x96xf32, #tpu.memory_space<vmem>>, vector<1x2x14x84xf32>
    %392 = vector.shape_cast %391 : vector<1x2x14x84xf32> to vector<2x14x84xf32>
    %393 = vector.extract_strided_slice %0 {offsets = [24, 0], sizes = [1, 84], strides = [1, 1]} : vector<25x84xf32> to vector<1x84xf32>
    %394 = vector.shape_cast %393 : vector<1x84xf32> to vector<84xf32>
    %395 = vector.shape_cast %394 : vector<84xf32> to vector<1x1x84xf32>
    %396 = vector.broadcast %395 : vector<1x1x84xf32> to vector<2x14x84xf32>
    %397 = arith.mulf %392, %396 : vector<2x14x84xf32>
    %398 = arith.addf %390, %397 : vector<2x14x84xf32>
    %399 = arith.maximumf %199, %398 : vector<2x14x84xf32>
    %c2_196 = arith.constant 2 : index
    %c0_197 = arith.constant 0 : index
    %c0_198 = arith.constant 0 : index
    %c0_199 = arith.constant 0 : index
    %400 = vector.load %arg0[%c2_196, %c0_197, %c0_198, %c0_199] : memref<4x2x16x96xf32, #tpu.memory_space<vmem>>, vector<1x2x14x84xf32>
    %401 = vector.shape_cast %400 : vector<1x2x14x84xf32> to vector<2x14x84xf32>
    %402 = vector.extract_strided_slice %0 {offsets = [0, 0], sizes = [1, 84], strides = [1, 1]} : vector<25x84xf32> to vector<1x84xf32>
    %403 = vector.shape_cast %402 : vector<1x84xf32> to vector<84xf32>
    %404 = vector.shape_cast %403 : vector<84xf32> to vector<1x1x84xf32>
    %405 = vector.broadcast %404 : vector<1x1x84xf32> to vector<2x14x84xf32>
    %406 = arith.mulf %401, %405 : vector<2x14x84xf32>
    %c3_200 = arith.constant 3 : index
    %c0_201 = arith.constant 0 : index
    %c0_202 = arith.constant 0 : index
    %c0_203 = arith.constant 0 : index
    %407 = vector.load %arg0[%c3_200, %c0_201, %c0_202, %c0_203] : memref<4x2x16x96xf32, #tpu.memory_space<vmem>>, vector<1x2x14x84xf32>
    %408 = vector.shape_cast %407 : vector<1x2x14x84xf32> to vector<2x14x84xf32>
    %409 = vector.extract_strided_slice %0 {offsets = [1, 0], sizes = [1, 84], strides = [1, 1]} : vector<25x84xf32> to vector<1x84xf32>
    %410 = vector.shape_cast %409 : vector<1x84xf32> to vector<84xf32>
    %411 = vector.shape_cast %410 : vector<84xf32> to vector<1x1x84xf32>
    %412 = vector.broadcast %411 : vector<1x1x84xf32> to vector<2x14x84xf32>
    %413 = arith.mulf %408, %412 : vector<2x14x84xf32>
    %414 = arith.addf %406, %413 : vector<2x14x84xf32>
    %c2_204 = arith.constant 2 : index
    %c0_205 = arith.constant 0 : index
    %c0_206 = arith.constant 0 : index
    %c6_207 = arith.constant 6 : index
    %415 = vector.load %arg0[%c2_204, %c0_205, %c0_206, %c6_207] : memref<4x2x16x96xf32, #tpu.memory_space<vmem>>, vector<1x2x14x84xf32>
    %416 = vector.shape_cast %415 : vector<1x2x14x84xf32> to vector<2x14x84xf32>
    %417 = vector.extract_strided_slice %0 {offsets = [2, 0], sizes = [1, 84], strides = [1, 1]} : vector<25x84xf32> to vector<1x84xf32>
    %418 = vector.shape_cast %417 : vector<1x84xf32> to vector<84xf32>
    %419 = vector.shape_cast %418 : vector<84xf32> to vector<1x1x84xf32>
    %420 = vector.broadcast %419 : vector<1x1x84xf32> to vector<2x14x84xf32>
    %421 = arith.mulf %416, %420 : vector<2x14x84xf32>
    %422 = arith.addf %414, %421 : vector<2x14x84xf32>
    %c3_208 = arith.constant 3 : index
    %c0_209 = arith.constant 0 : index
    %c0_210 = arith.constant 0 : index
    %c6_211 = arith.constant 6 : index
    %423 = vector.load %arg0[%c3_208, %c0_209, %c0_210, %c6_211] : memref<4x2x16x96xf32, #tpu.memory_space<vmem>>, vector<1x2x14x84xf32>
    %424 = vector.shape_cast %423 : vector<1x2x14x84xf32> to vector<2x14x84xf32>
    %425 = vector.extract_strided_slice %0 {offsets = [3, 0], sizes = [1, 84], strides = [1, 1]} : vector<25x84xf32> to vector<1x84xf32>
    %426 = vector.shape_cast %425 : vector<1x84xf32> to vector<84xf32>
    %427 = vector.shape_cast %426 : vector<84xf32> to vector<1x1x84xf32>
    %428 = vector.broadcast %427 : vector<1x1x84xf32> to vector<2x14x84xf32>
    %429 = arith.mulf %424, %428 : vector<2x14x84xf32>
    %430 = arith.addf %422, %429 : vector<2x14x84xf32>
    %c2_212 = arith.constant 2 : index
    %c0_213 = arith.constant 0 : index
    %c0_214 = arith.constant 0 : index
    %c12_215 = arith.constant 12 : index
    %431 = vector.load %arg0[%c2_212, %c0_213, %c0_214, %c12_215] : memref<4x2x16x96xf32, #tpu.memory_space<vmem>>, vector<1x2x14x84xf32>
    %432 = vector.shape_cast %431 : vector<1x2x14x84xf32> to vector<2x14x84xf32>
    %433 = vector.extract_strided_slice %0 {offsets = [4, 0], sizes = [1, 84], strides = [1, 1]} : vector<25x84xf32> to vector<1x84xf32>
    %434 = vector.shape_cast %433 : vector<1x84xf32> to vector<84xf32>
    %435 = vector.shape_cast %434 : vector<84xf32> to vector<1x1x84xf32>
    %436 = vector.broadcast %435 : vector<1x1x84xf32> to vector<2x14x84xf32>
    %437 = arith.mulf %432, %436 : vector<2x14x84xf32>
    %438 = arith.addf %430, %437 : vector<2x14x84xf32>
    %c0_216 = arith.constant 0 : index
    %c0_217 = arith.constant 0 : index
    %c1_218 = arith.constant 1 : index
    %c0_219 = arith.constant 0 : index
    %439 = vector.load %arg0[%c0_216, %c0_217, %c1_218, %c0_219] : memref<4x2x16x96xf32, #tpu.memory_space<vmem>>, vector<1x2x14x84xf32>
    %440 = vector.shape_cast %439 : vector<1x2x14x84xf32> to vector<2x14x84xf32>
    %441 = vector.extract_strided_slice %0 {offsets = [5, 0], sizes = [1, 84], strides = [1, 1]} : vector<25x84xf32> to vector<1x84xf32>
    %442 = vector.shape_cast %441 : vector<1x84xf32> to vector<84xf32>
    %443 = vector.shape_cast %442 : vector<84xf32> to vector<1x1x84xf32>
    %444 = vector.broadcast %443 : vector<1x1x84xf32> to vector<2x14x84xf32>
    %445 = arith.mulf %440, %444 : vector<2x14x84xf32>
    %446 = arith.addf %438, %445 : vector<2x14x84xf32>
    %c1_220 = arith.constant 1 : index
    %c0_221 = arith.constant 0 : index
    %c1_222 = arith.constant 1 : index
    %c0_223 = arith.constant 0 : index
    %447 = vector.load %arg0[%c1_220, %c0_221, %c1_222, %c0_223] : memref<4x2x16x96xf32, #tpu.memory_space<vmem>>, vector<1x2x14x84xf32>
    %448 = vector.shape_cast %447 : vector<1x2x14x84xf32> to vector<2x14x84xf32>
    %449 = vector.extract_strided_slice %0 {offsets = [6, 0], sizes = [1, 84], strides = [1, 1]} : vector<25x84xf32> to vector<1x84xf32>
    %450 = vector.shape_cast %449 : vector<1x84xf32> to vector<84xf32>
    %451 = vector.shape_cast %450 : vector<84xf32> to vector<1x1x84xf32>
    %452 = vector.broadcast %451 : vector<1x1x84xf32> to vector<2x14x84xf32>
    %453 = arith.mulf %448, %452 : vector<2x14x84xf32>
    %454 = arith.addf %446, %453 : vector<2x14x84xf32>
    %c0_224 = arith.constant 0 : index
    %c0_225 = arith.constant 0 : index
    %c1_226 = arith.constant 1 : index
    %c6_227 = arith.constant 6 : index
    %455 = vector.load %arg0[%c0_224, %c0_225, %c1_226, %c6_227] : memref<4x2x16x96xf32, #tpu.memory_space<vmem>>, vector<1x2x14x84xf32>
    %456 = vector.shape_cast %455 : vector<1x2x14x84xf32> to vector<2x14x84xf32>
    %457 = vector.extract_strided_slice %0 {offsets = [7, 0], sizes = [1, 84], strides = [1, 1]} : vector<25x84xf32> to vector<1x84xf32>
    %458 = vector.shape_cast %457 : vector<1x84xf32> to vector<84xf32>
    %459 = vector.shape_cast %458 : vector<84xf32> to vector<1x1x84xf32>
    %460 = vector.broadcast %459 : vector<1x1x84xf32> to vector<2x14x84xf32>
    %461 = arith.mulf %456, %460 : vector<2x14x84xf32>
    %462 = arith.addf %454, %461 : vector<2x14x84xf32>
    %c1_228 = arith.constant 1 : index
    %c0_229 = arith.constant 0 : index
    %c1_230 = arith.constant 1 : index
    %c6_231 = arith.constant 6 : index
    %463 = vector.load %arg0[%c1_228, %c0_229, %c1_230, %c6_231] : memref<4x2x16x96xf32, #tpu.memory_space<vmem>>, vector<1x2x14x84xf32>
    %464 = vector.shape_cast %463 : vector<1x2x14x84xf32> to vector<2x14x84xf32>
    %465 = vector.extract_strided_slice %0 {offsets = [8, 0], sizes = [1, 84], strides = [1, 1]} : vector<25x84xf32> to vector<1x84xf32>
    %466 = vector.shape_cast %465 : vector<1x84xf32> to vector<84xf32>
    %467 = vector.shape_cast %466 : vector<84xf32> to vector<1x1x84xf32>
    %468 = vector.broadcast %467 : vector<1x1x84xf32> to vector<2x14x84xf32>
    %469 = arith.mulf %464, %468 : vector<2x14x84xf32>
    %470 = arith.addf %462, %469 : vector<2x14x84xf32>
    %c0_232 = arith.constant 0 : index
    %c0_233 = arith.constant 0 : index
    %c1_234 = arith.constant 1 : index
    %c12_235 = arith.constant 12 : index
    %471 = vector.load %arg0[%c0_232, %c0_233, %c1_234, %c12_235] : memref<4x2x16x96xf32, #tpu.memory_space<vmem>>, vector<1x2x14x84xf32>
    %472 = vector.shape_cast %471 : vector<1x2x14x84xf32> to vector<2x14x84xf32>
    %473 = vector.extract_strided_slice %0 {offsets = [9, 0], sizes = [1, 84], strides = [1, 1]} : vector<25x84xf32> to vector<1x84xf32>
    %474 = vector.shape_cast %473 : vector<1x84xf32> to vector<84xf32>
    %475 = vector.shape_cast %474 : vector<84xf32> to vector<1x1x84xf32>
    %476 = vector.broadcast %475 : vector<1x1x84xf32> to vector<2x14x84xf32>
    %477 = arith.mulf %472, %476 : vector<2x14x84xf32>
    %478 = arith.addf %470, %477 : vector<2x14x84xf32>
    %c2_236 = arith.constant 2 : index
    %c0_237 = arith.constant 0 : index
    %c1_238 = arith.constant 1 : index
    %c0_239 = arith.constant 0 : index
    %479 = vector.load %arg0[%c2_236, %c0_237, %c1_238, %c0_239] : memref<4x2x16x96xf32, #tpu.memory_space<vmem>>, vector<1x2x14x84xf32>
    %480 = vector.shape_cast %479 : vector<1x2x14x84xf32> to vector<2x14x84xf32>
    %481 = vector.extract_strided_slice %0 {offsets = [10, 0], sizes = [1, 84], strides = [1, 1]} : vector<25x84xf32> to vector<1x84xf32>
    %482 = vector.shape_cast %481 : vector<1x84xf32> to vector<84xf32>
    %483 = vector.shape_cast %482 : vector<84xf32> to vector<1x1x84xf32>
    %484 = vector.broadcast %483 : vector<1x1x84xf32> to vector<2x14x84xf32>
    %485 = arith.mulf %480, %484 : vector<2x14x84xf32>
    %486 = arith.addf %478, %485 : vector<2x14x84xf32>
    %c3_240 = arith.constant 3 : index
    %c0_241 = arith.constant 0 : index
    %c1_242 = arith.constant 1 : index
    %c0_243 = arith.constant 0 : index
    %487 = vector.load %arg0[%c3_240, %c0_241, %c1_242, %c0_243] : memref<4x2x16x96xf32, #tpu.memory_space<vmem>>, vector<1x2x14x84xf32>
    %488 = vector.shape_cast %487 : vector<1x2x14x84xf32> to vector<2x14x84xf32>
    %489 = vector.extract_strided_slice %0 {offsets = [11, 0], sizes = [1, 84], strides = [1, 1]} : vector<25x84xf32> to vector<1x84xf32>
    %490 = vector.shape_cast %489 : vector<1x84xf32> to vector<84xf32>
    %491 = vector.shape_cast %490 : vector<84xf32> to vector<1x1x84xf32>
    %492 = vector.broadcast %491 : vector<1x1x84xf32> to vector<2x14x84xf32>
    %493 = arith.mulf %488, %492 : vector<2x14x84xf32>
    %494 = arith.addf %486, %493 : vector<2x14x84xf32>
    %c2_244 = arith.constant 2 : index
    %c0_245 = arith.constant 0 : index
    %c1_246 = arith.constant 1 : index
    %c6_247 = arith.constant 6 : index
    %495 = vector.load %arg0[%c2_244, %c0_245, %c1_246, %c6_247] : memref<4x2x16x96xf32, #tpu.memory_space<vmem>>, vector<1x2x14x84xf32>
    %496 = vector.shape_cast %495 : vector<1x2x14x84xf32> to vector<2x14x84xf32>
    %497 = vector.extract_strided_slice %0 {offsets = [12, 0], sizes = [1, 84], strides = [1, 1]} : vector<25x84xf32> to vector<1x84xf32>
    %498 = vector.shape_cast %497 : vector<1x84xf32> to vector<84xf32>
    %499 = vector.shape_cast %498 : vector<84xf32> to vector<1x1x84xf32>
    %500 = vector.broadcast %499 : vector<1x1x84xf32> to vector<2x14x84xf32>
    %501 = arith.mulf %496, %500 : vector<2x14x84xf32>
    %502 = arith.addf %494, %501 : vector<2x14x84xf32>
    %c3_248 = arith.constant 3 : index
    %c0_249 = arith.constant 0 : index
    %c1_250 = arith.constant 1 : index
    %c6_251 = arith.constant 6 : index
    %503 = vector.load %arg0[%c3_248, %c0_249, %c1_250, %c6_251] : memref<4x2x16x96xf32, #tpu.memory_space<vmem>>, vector<1x2x14x84xf32>
    %504 = vector.shape_cast %503 : vector<1x2x14x84xf32> to vector<2x14x84xf32>
    %505 = vector.extract_strided_slice %0 {offsets = [13, 0], sizes = [1, 84], strides = [1, 1]} : vector<25x84xf32> to vector<1x84xf32>
    %506 = vector.shape_cast %505 : vector<1x84xf32> to vector<84xf32>
    %507 = vector.shape_cast %506 : vector<84xf32> to vector<1x1x84xf32>
    %508 = vector.broadcast %507 : vector<1x1x84xf32> to vector<2x14x84xf32>
    %509 = arith.mulf %504, %508 : vector<2x14x84xf32>
    %510 = arith.addf %502, %509 : vector<2x14x84xf32>
    %c2_252 = arith.constant 2 : index
    %c0_253 = arith.constant 0 : index
    %c1_254 = arith.constant 1 : index
    %c12_255 = arith.constant 12 : index
    %511 = vector.load %arg0[%c2_252, %c0_253, %c1_254, %c12_255] : memref<4x2x16x96xf32, #tpu.memory_space<vmem>>, vector<1x2x14x84xf32>
    %512 = vector.shape_cast %511 : vector<1x2x14x84xf32> to vector<2x14x84xf32>
    %513 = vector.extract_strided_slice %0 {offsets = [14, 0], sizes = [1, 84], strides = [1, 1]} : vector<25x84xf32> to vector<1x84xf32>
    %514 = vector.shape_cast %513 : vector<1x84xf32> to vector<84xf32>
    %515 = vector.shape_cast %514 : vector<84xf32> to vector<1x1x84xf32>
    %516 = vector.broadcast %515 : vector<1x1x84xf32> to vector<2x14x84xf32>
    %517 = arith.mulf %512, %516 : vector<2x14x84xf32>
    %518 = arith.addf %510, %517 : vector<2x14x84xf32>
    %c0_256 = arith.constant 0 : index
    %c0_257 = arith.constant 0 : index
    %c2_258 = arith.constant 2 : index
    %c0_259 = arith.constant 0 : index
    %519 = vector.load %arg0[%c0_256, %c0_257, %c2_258, %c0_259] : memref<4x2x16x96xf32, #tpu.memory_space<vmem>>, vector<1x2x14x84xf32>
    %520 = vector.shape_cast %519 : vector<1x2x14x84xf32> to vector<2x14x84xf32>
    %521 = vector.extract_strided_slice %0 {offsets = [15, 0], sizes = [1, 84], strides = [1, 1]} : vector<25x84xf32> to vector<1x84xf32>
    %522 = vector.shape_cast %521 : vector<1x84xf32> to vector<84xf32>
    %523 = vector.shape_cast %522 : vector<84xf32> to vector<1x1x84xf32>
    %524 = vector.broadcast %523 : vector<1x1x84xf32> to vector<2x14x84xf32>
    %525 = arith.mulf %520, %524 : vector<2x14x84xf32>
    %526 = arith.addf %518, %525 : vector<2x14x84xf32>
    %c1_260 = arith.constant 1 : index
    %c0_261 = arith.constant 0 : index
    %c2_262 = arith.constant 2 : index
    %c0_263 = arith.constant 0 : index
    %527 = vector.load %arg0[%c1_260, %c0_261, %c2_262, %c0_263] : memref<4x2x16x96xf32, #tpu.memory_space<vmem>>, vector<1x2x14x84xf32>
    %528 = vector.shape_cast %527 : vector<1x2x14x84xf32> to vector<2x14x84xf32>
    %529 = vector.extract_strided_slice %0 {offsets = [16, 0], sizes = [1, 84], strides = [1, 1]} : vector<25x84xf32> to vector<1x84xf32>
    %530 = vector.shape_cast %529 : vector<1x84xf32> to vector<84xf32>
    %531 = vector.shape_cast %530 : vector<84xf32> to vector<1x1x84xf32>
    %532 = vector.broadcast %531 : vector<1x1x84xf32> to vector<2x14x84xf32>
    %533 = arith.mulf %528, %532 : vector<2x14x84xf32>
    %534 = arith.addf %526, %533 : vector<2x14x84xf32>
    %c0_264 = arith.constant 0 : index
    %c0_265 = arith.constant 0 : index
    %c2_266 = arith.constant 2 : index
    %c6_267 = arith.constant 6 : index
    %535 = vector.load %arg0[%c0_264, %c0_265, %c2_266, %c6_267] : memref<4x2x16x96xf32, #tpu.memory_space<vmem>>, vector<1x2x14x84xf32>
    %536 = vector.shape_cast %535 : vector<1x2x14x84xf32> to vector<2x14x84xf32>
    %537 = vector.extract_strided_slice %0 {offsets = [17, 0], sizes = [1, 84], strides = [1, 1]} : vector<25x84xf32> to vector<1x84xf32>
    %538 = vector.shape_cast %537 : vector<1x84xf32> to vector<84xf32>
    %539 = vector.shape_cast %538 : vector<84xf32> to vector<1x1x84xf32>
    %540 = vector.broadcast %539 : vector<1x1x84xf32> to vector<2x14x84xf32>
    %541 = arith.mulf %536, %540 : vector<2x14x84xf32>
    %542 = arith.addf %534, %541 : vector<2x14x84xf32>
    %c1_268 = arith.constant 1 : index
    %c0_269 = arith.constant 0 : index
    %c2_270 = arith.constant 2 : index
    %c6_271 = arith.constant 6 : index
    %543 = vector.load %arg0[%c1_268, %c0_269, %c2_270, %c6_271] : memref<4x2x16x96xf32, #tpu.memory_space<vmem>>, vector<1x2x14x84xf32>
    %544 = vector.shape_cast %543 : vector<1x2x14x84xf32> to vector<2x14x84xf32>
    %545 = vector.extract_strided_slice %0 {offsets = [18, 0], sizes = [1, 84], strides = [1, 1]} : vector<25x84xf32> to vector<1x84xf32>
    %546 = vector.shape_cast %545 : vector<1x84xf32> to vector<84xf32>
    %547 = vector.shape_cast %546 : vector<84xf32> to vector<1x1x84xf32>
    %548 = vector.broadcast %547 : vector<1x1x84xf32> to vector<2x14x84xf32>
    %549 = arith.mulf %544, %548 : vector<2x14x84xf32>
    %550 = arith.addf %542, %549 : vector<2x14x84xf32>
    %c0_272 = arith.constant 0 : index
    %c0_273 = arith.constant 0 : index
    %c2_274 = arith.constant 2 : index
    %c12_275 = arith.constant 12 : index
    %551 = vector.load %arg0[%c0_272, %c0_273, %c2_274, %c12_275] : memref<4x2x16x96xf32, #tpu.memory_space<vmem>>, vector<1x2x14x84xf32>
    %552 = vector.shape_cast %551 : vector<1x2x14x84xf32> to vector<2x14x84xf32>
    %553 = vector.extract_strided_slice %0 {offsets = [19, 0], sizes = [1, 84], strides = [1, 1]} : vector<25x84xf32> to vector<1x84xf32>
    %554 = vector.shape_cast %553 : vector<1x84xf32> to vector<84xf32>
    %555 = vector.shape_cast %554 : vector<84xf32> to vector<1x1x84xf32>
    %556 = vector.broadcast %555 : vector<1x1x84xf32> to vector<2x14x84xf32>
    %557 = arith.mulf %552, %556 : vector<2x14x84xf32>
    %558 = arith.addf %550, %557 : vector<2x14x84xf32>
    %c2_276 = arith.constant 2 : index
    %c0_277 = arith.constant 0 : index
    %c2_278 = arith.constant 2 : index
    %c0_279 = arith.constant 0 : index
    %559 = vector.load %arg0[%c2_276, %c0_277, %c2_278, %c0_279] : memref<4x2x16x96xf32, #tpu.memory_space<vmem>>, vector<1x2x14x84xf32>
    %560 = vector.shape_cast %559 : vector<1x2x14x84xf32> to vector<2x14x84xf32>
    %561 = vector.extract_strided_slice %0 {offsets = [20, 0], sizes = [1, 84], strides = [1, 1]} : vector<25x84xf32> to vector<1x84xf32>
    %562 = vector.shape_cast %561 : vector<1x84xf32> to vector<84xf32>
    %563 = vector.shape_cast %562 : vector<84xf32> to vector<1x1x84xf32>
    %564 = vector.broadcast %563 : vector<1x1x84xf32> to vector<2x14x84xf32>
    %565 = arith.mulf %560, %564 : vector<2x14x84xf32>
    %566 = arith.addf %558, %565 : vector<2x14x84xf32>
    %c3_280 = arith.constant 3 : index
    %c0_281 = arith.constant 0 : index
    %c2_282 = arith.constant 2 : index
    %c0_283 = arith.constant 0 : index
    %567 = vector.load %arg0[%c3_280, %c0_281, %c2_282, %c0_283] : memref<4x2x16x96xf32, #tpu.memory_space<vmem>>, vector<1x2x14x84xf32>
    %568 = vector.shape_cast %567 : vector<1x2x14x84xf32> to vector<2x14x84xf32>
    %569 = vector.extract_strided_slice %0 {offsets = [21, 0], sizes = [1, 84], strides = [1, 1]} : vector<25x84xf32> to vector<1x84xf32>
    %570 = vector.shape_cast %569 : vector<1x84xf32> to vector<84xf32>
    %571 = vector.shape_cast %570 : vector<84xf32> to vector<1x1x84xf32>
    %572 = vector.broadcast %571 : vector<1x1x84xf32> to vector<2x14x84xf32>
    %573 = arith.mulf %568, %572 : vector<2x14x84xf32>
    %574 = arith.addf %566, %573 : vector<2x14x84xf32>
    %c2_284 = arith.constant 2 : index
    %c0_285 = arith.constant 0 : index
    %c2_286 = arith.constant 2 : index
    %c6_287 = arith.constant 6 : index
    %575 = vector.load %arg0[%c2_284, %c0_285, %c2_286, %c6_287] : memref<4x2x16x96xf32, #tpu.memory_space<vmem>>, vector<1x2x14x84xf32>
    %576 = vector.shape_cast %575 : vector<1x2x14x84xf32> to vector<2x14x84xf32>
    %577 = vector.extract_strided_slice %0 {offsets = [22, 0], sizes = [1, 84], strides = [1, 1]} : vector<25x84xf32> to vector<1x84xf32>
    %578 = vector.shape_cast %577 : vector<1x84xf32> to vector<84xf32>
    %579 = vector.shape_cast %578 : vector<84xf32> to vector<1x1x84xf32>
    %580 = vector.broadcast %579 : vector<1x1x84xf32> to vector<2x14x84xf32>
    %581 = arith.mulf %576, %580 : vector<2x14x84xf32>
    %582 = arith.addf %574, %581 : vector<2x14x84xf32>
    %c3_288 = arith.constant 3 : index
    %c0_289 = arith.constant 0 : index
    %c2_290 = arith.constant 2 : index
    %c6_291 = arith.constant 6 : index
    %583 = vector.load %arg0[%c3_288, %c0_289, %c2_290, %c6_291] : memref<4x2x16x96xf32, #tpu.memory_space<vmem>>, vector<1x2x14x84xf32>
    %584 = vector.shape_cast %583 : vector<1x2x14x84xf32> to vector<2x14x84xf32>
    %585 = vector.extract_strided_slice %0 {offsets = [23, 0], sizes = [1, 84], strides = [1, 1]} : vector<25x84xf32> to vector<1x84xf32>
    %586 = vector.shape_cast %585 : vector<1x84xf32> to vector<84xf32>
    %587 = vector.shape_cast %586 : vector<84xf32> to vector<1x1x84xf32>
    %588 = vector.broadcast %587 : vector<1x1x84xf32> to vector<2x14x84xf32>
    %589 = arith.mulf %584, %588 : vector<2x14x84xf32>
    %590 = arith.addf %582, %589 : vector<2x14x84xf32>
    %c2_292 = arith.constant 2 : index
    %c0_293 = arith.constant 0 : index
    %c2_294 = arith.constant 2 : index
    %c12_295 = arith.constant 12 : index
    %591 = vector.load %arg0[%c2_292, %c0_293, %c2_294, %c12_295] : memref<4x2x16x96xf32, #tpu.memory_space<vmem>>, vector<1x2x14x84xf32>
    %592 = vector.shape_cast %591 : vector<1x2x14x84xf32> to vector<2x14x84xf32>
    %593 = vector.extract_strided_slice %0 {offsets = [24, 0], sizes = [1, 84], strides = [1, 1]} : vector<25x84xf32> to vector<1x84xf32>
    %594 = vector.shape_cast %593 : vector<1x84xf32> to vector<84xf32>
    %595 = vector.shape_cast %594 : vector<84xf32> to vector<1x1x84xf32>
    %596 = vector.broadcast %595 : vector<1x1x84xf32> to vector<2x14x84xf32>
    %597 = arith.mulf %592, %596 : vector<2x14x84xf32>
    %598 = arith.addf %590, %597 : vector<2x14x84xf32>
    %599 = arith.maximumf %399, %598 : vector<2x14x84xf32>
    %c3_296 = arith.constant 3 : index
    %c0_297 = arith.constant 0 : index
    %c0_298 = arith.constant 0 : index
    %c0_299 = arith.constant 0 : index
    %600 = vector.load %arg0[%c3_296, %c0_297, %c0_298, %c0_299] : memref<4x2x16x96xf32, #tpu.memory_space<vmem>>, vector<1x2x14x84xf32>
    %601 = vector.shape_cast %600 : vector<1x2x14x84xf32> to vector<2x14x84xf32>
    %602 = vector.extract_strided_slice %0 {offsets = [0, 0], sizes = [1, 84], strides = [1, 1]} : vector<25x84xf32> to vector<1x84xf32>
    %603 = vector.shape_cast %602 : vector<1x84xf32> to vector<84xf32>
    %604 = vector.shape_cast %603 : vector<84xf32> to vector<1x1x84xf32>
    %605 = vector.broadcast %604 : vector<1x1x84xf32> to vector<2x14x84xf32>
    %606 = arith.mulf %601, %605 : vector<2x14x84xf32>
    %c2_300 = arith.constant 2 : index
    %c0_301 = arith.constant 0 : index
    %c0_302 = arith.constant 0 : index
    %c6_303 = arith.constant 6 : index
    %607 = vector.load %arg0[%c2_300, %c0_301, %c0_302, %c6_303] : memref<4x2x16x96xf32, #tpu.memory_space<vmem>>, vector<1x2x14x84xf32>
    %608 = vector.shape_cast %607 : vector<1x2x14x84xf32> to vector<2x14x84xf32>
    %609 = vector.extract_strided_slice %0 {offsets = [1, 0], sizes = [1, 84], strides = [1, 1]} : vector<25x84xf32> to vector<1x84xf32>
    %610 = vector.shape_cast %609 : vector<1x84xf32> to vector<84xf32>
    %611 = vector.shape_cast %610 : vector<84xf32> to vector<1x1x84xf32>
    %612 = vector.broadcast %611 : vector<1x1x84xf32> to vector<2x14x84xf32>
    %613 = arith.mulf %608, %612 : vector<2x14x84xf32>
    %614 = arith.addf %606, %613 : vector<2x14x84xf32>
    %c3_304 = arith.constant 3 : index
    %c0_305 = arith.constant 0 : index
    %c0_306 = arith.constant 0 : index
    %c6_307 = arith.constant 6 : index
    %615 = vector.load %arg0[%c3_304, %c0_305, %c0_306, %c6_307] : memref<4x2x16x96xf32, #tpu.memory_space<vmem>>, vector<1x2x14x84xf32>
    %616 = vector.shape_cast %615 : vector<1x2x14x84xf32> to vector<2x14x84xf32>
    %617 = vector.extract_strided_slice %0 {offsets = [2, 0], sizes = [1, 84], strides = [1, 1]} : vector<25x84xf32> to vector<1x84xf32>
    %618 = vector.shape_cast %617 : vector<1x84xf32> to vector<84xf32>
    %619 = vector.shape_cast %618 : vector<84xf32> to vector<1x1x84xf32>
    %620 = vector.broadcast %619 : vector<1x1x84xf32> to vector<2x14x84xf32>
    %621 = arith.mulf %616, %620 : vector<2x14x84xf32>
    %622 = arith.addf %614, %621 : vector<2x14x84xf32>
    %c2_308 = arith.constant 2 : index
    %c0_309 = arith.constant 0 : index
    %c0_310 = arith.constant 0 : index
    %c12_311 = arith.constant 12 : index
    %623 = vector.load %arg0[%c2_308, %c0_309, %c0_310, %c12_311] : memref<4x2x16x96xf32, #tpu.memory_space<vmem>>, vector<1x2x14x84xf32>
    %624 = vector.shape_cast %623 : vector<1x2x14x84xf32> to vector<2x14x84xf32>
    %625 = vector.extract_strided_slice %0 {offsets = [3, 0], sizes = [1, 84], strides = [1, 1]} : vector<25x84xf32> to vector<1x84xf32>
    %626 = vector.shape_cast %625 : vector<1x84xf32> to vector<84xf32>
    %627 = vector.shape_cast %626 : vector<84xf32> to vector<1x1x84xf32>
    %628 = vector.broadcast %627 : vector<1x1x84xf32> to vector<2x14x84xf32>
    %629 = arith.mulf %624, %628 : vector<2x14x84xf32>
    %630 = arith.addf %622, %629 : vector<2x14x84xf32>
    %c3_312 = arith.constant 3 : index
    %c0_313 = arith.constant 0 : index
    %c0_314 = arith.constant 0 : index
    %c12_315 = arith.constant 12 : index
    %631 = vector.load %arg0[%c3_312, %c0_313, %c0_314, %c12_315] : memref<4x2x16x96xf32, #tpu.memory_space<vmem>>, vector<1x2x14x84xf32>
    %632 = vector.shape_cast %631 : vector<1x2x14x84xf32> to vector<2x14x84xf32>
    %633 = vector.extract_strided_slice %0 {offsets = [4, 0], sizes = [1, 84], strides = [1, 1]} : vector<25x84xf32> to vector<1x84xf32>
    %634 = vector.shape_cast %633 : vector<1x84xf32> to vector<84xf32>
    %635 = vector.shape_cast %634 : vector<84xf32> to vector<1x1x84xf32>
    %636 = vector.broadcast %635 : vector<1x1x84xf32> to vector<2x14x84xf32>
    %637 = arith.mulf %632, %636 : vector<2x14x84xf32>
    %638 = arith.addf %630, %637 : vector<2x14x84xf32>
    %c1_316 = arith.constant 1 : index
    %c0_317 = arith.constant 0 : index
    %c1_318 = arith.constant 1 : index
    %c0_319 = arith.constant 0 : index
    %639 = vector.load %arg0[%c1_316, %c0_317, %c1_318, %c0_319] : memref<4x2x16x96xf32, #tpu.memory_space<vmem>>, vector<1x2x14x84xf32>
    %640 = vector.shape_cast %639 : vector<1x2x14x84xf32> to vector<2x14x84xf32>
    %641 = vector.extract_strided_slice %0 {offsets = [5, 0], sizes = [1, 84], strides = [1, 1]} : vector<25x84xf32> to vector<1x84xf32>
    %642 = vector.shape_cast %641 : vector<1x84xf32> to vector<84xf32>
    %643 = vector.shape_cast %642 : vector<84xf32> to vector<1x1x84xf32>
    %644 = vector.broadcast %643 : vector<1x1x84xf32> to vector<2x14x84xf32>
    %645 = arith.mulf %640, %644 : vector<2x14x84xf32>
    %646 = arith.addf %638, %645 : vector<2x14x84xf32>
    %c0_320 = arith.constant 0 : index
    %c0_321 = arith.constant 0 : index
    %c1_322 = arith.constant 1 : index
    %c6_323 = arith.constant 6 : index
    %647 = vector.load %arg0[%c0_320, %c0_321, %c1_322, %c6_323] : memref<4x2x16x96xf32, #tpu.memory_space<vmem>>, vector<1x2x14x84xf32>
    %648 = vector.shape_cast %647 : vector<1x2x14x84xf32> to vector<2x14x84xf32>
    %649 = vector.extract_strided_slice %0 {offsets = [6, 0], sizes = [1, 84], strides = [1, 1]} : vector<25x84xf32> to vector<1x84xf32>
    %650 = vector.shape_cast %649 : vector<1x84xf32> to vector<84xf32>
    %651 = vector.shape_cast %650 : vector<84xf32> to vector<1x1x84xf32>
    %652 = vector.broadcast %651 : vector<1x1x84xf32> to vector<2x14x84xf32>
    %653 = arith.mulf %648, %652 : vector<2x14x84xf32>
    %654 = arith.addf %646, %653 : vector<2x14x84xf32>
    %c1_324 = arith.constant 1 : index
    %c0_325 = arith.constant 0 : index
    %c1_326 = arith.constant 1 : index
    %c6_327 = arith.constant 6 : index
    %655 = vector.load %arg0[%c1_324, %c0_325, %c1_326, %c6_327] : memref<4x2x16x96xf32, #tpu.memory_space<vmem>>, vector<1x2x14x84xf32>
    %656 = vector.shape_cast %655 : vector<1x2x14x84xf32> to vector<2x14x84xf32>
    %657 = vector.extract_strided_slice %0 {offsets = [7, 0], sizes = [1, 84], strides = [1, 1]} : vector<25x84xf32> to vector<1x84xf32>
    %658 = vector.shape_cast %657 : vector<1x84xf32> to vector<84xf32>
    %659 = vector.shape_cast %658 : vector<84xf32> to vector<1x1x84xf32>
    %660 = vector.broadcast %659 : vector<1x1x84xf32> to vector<2x14x84xf32>
    %661 = arith.mulf %656, %660 : vector<2x14x84xf32>
    %662 = arith.addf %654, %661 : vector<2x14x84xf32>
    %c0_328 = arith.constant 0 : index
    %c0_329 = arith.constant 0 : index
    %c1_330 = arith.constant 1 : index
    %c12_331 = arith.constant 12 : index
    %663 = vector.load %arg0[%c0_328, %c0_329, %c1_330, %c12_331] : memref<4x2x16x96xf32, #tpu.memory_space<vmem>>, vector<1x2x14x84xf32>
    %664 = vector.shape_cast %663 : vector<1x2x14x84xf32> to vector<2x14x84xf32>
    %665 = vector.extract_strided_slice %0 {offsets = [8, 0], sizes = [1, 84], strides = [1, 1]} : vector<25x84xf32> to vector<1x84xf32>
    %666 = vector.shape_cast %665 : vector<1x84xf32> to vector<84xf32>
    %667 = vector.shape_cast %666 : vector<84xf32> to vector<1x1x84xf32>
    %668 = vector.broadcast %667 : vector<1x1x84xf32> to vector<2x14x84xf32>
    %669 = arith.mulf %664, %668 : vector<2x14x84xf32>
    %670 = arith.addf %662, %669 : vector<2x14x84xf32>
    %c1_332 = arith.constant 1 : index
    %c0_333 = arith.constant 0 : index
    %c1_334 = arith.constant 1 : index
    %c12_335 = arith.constant 12 : index
    %671 = vector.load %arg0[%c1_332, %c0_333, %c1_334, %c12_335] : memref<4x2x16x96xf32, #tpu.memory_space<vmem>>, vector<1x2x14x84xf32>
    %672 = vector.shape_cast %671 : vector<1x2x14x84xf32> to vector<2x14x84xf32>
    %673 = vector.extract_strided_slice %0 {offsets = [9, 0], sizes = [1, 84], strides = [1, 1]} : vector<25x84xf32> to vector<1x84xf32>
    %674 = vector.shape_cast %673 : vector<1x84xf32> to vector<84xf32>
    %675 = vector.shape_cast %674 : vector<84xf32> to vector<1x1x84xf32>
    %676 = vector.broadcast %675 : vector<1x1x84xf32> to vector<2x14x84xf32>
    %677 = arith.mulf %672, %676 : vector<2x14x84xf32>
    %678 = arith.addf %670, %677 : vector<2x14x84xf32>
    %c3_336 = arith.constant 3 : index
    %c0_337 = arith.constant 0 : index
    %c1_338 = arith.constant 1 : index
    %c0_339 = arith.constant 0 : index
    %679 = vector.load %arg0[%c3_336, %c0_337, %c1_338, %c0_339] : memref<4x2x16x96xf32, #tpu.memory_space<vmem>>, vector<1x2x14x84xf32>
    %680 = vector.shape_cast %679 : vector<1x2x14x84xf32> to vector<2x14x84xf32>
    %681 = vector.extract_strided_slice %0 {offsets = [10, 0], sizes = [1, 84], strides = [1, 1]} : vector<25x84xf32> to vector<1x84xf32>
    %682 = vector.shape_cast %681 : vector<1x84xf32> to vector<84xf32>
    %683 = vector.shape_cast %682 : vector<84xf32> to vector<1x1x84xf32>
    %684 = vector.broadcast %683 : vector<1x1x84xf32> to vector<2x14x84xf32>
    %685 = arith.mulf %680, %684 : vector<2x14x84xf32>
    %686 = arith.addf %678, %685 : vector<2x14x84xf32>
    %c2_340 = arith.constant 2 : index
    %c0_341 = arith.constant 0 : index
    %c1_342 = arith.constant 1 : index
    %c6_343 = arith.constant 6 : index
    %687 = vector.load %arg0[%c2_340, %c0_341, %c1_342, %c6_343] : memref<4x2x16x96xf32, #tpu.memory_space<vmem>>, vector<1x2x14x84xf32>
    %688 = vector.shape_cast %687 : vector<1x2x14x84xf32> to vector<2x14x84xf32>
    %689 = vector.extract_strided_slice %0 {offsets = [11, 0], sizes = [1, 84], strides = [1, 1]} : vector<25x84xf32> to vector<1x84xf32>
    %690 = vector.shape_cast %689 : vector<1x84xf32> to vector<84xf32>
    %691 = vector.shape_cast %690 : vector<84xf32> to vector<1x1x84xf32>
    %692 = vector.broadcast %691 : vector<1x1x84xf32> to vector<2x14x84xf32>
    %693 = arith.mulf %688, %692 : vector<2x14x84xf32>
    %694 = arith.addf %686, %693 : vector<2x14x84xf32>
    %c3_344 = arith.constant 3 : index
    %c0_345 = arith.constant 0 : index
    %c1_346 = arith.constant 1 : index
    %c6_347 = arith.constant 6 : index
    %695 = vector.load %arg0[%c3_344, %c0_345, %c1_346, %c6_347] : memref<4x2x16x96xf32, #tpu.memory_space<vmem>>, vector<1x2x14x84xf32>
    %696 = vector.shape_cast %695 : vector<1x2x14x84xf32> to vector<2x14x84xf32>
    %697 = vector.extract_strided_slice %0 {offsets = [12, 0], sizes = [1, 84], strides = [1, 1]} : vector<25x84xf32> to vector<1x84xf32>
    %698 = vector.shape_cast %697 : vector<1x84xf32> to vector<84xf32>
    %699 = vector.shape_cast %698 : vector<84xf32> to vector<1x1x84xf32>
    %700 = vector.broadcast %699 : vector<1x1x84xf32> to vector<2x14x84xf32>
    %701 = arith.mulf %696, %700 : vector<2x14x84xf32>
    %702 = arith.addf %694, %701 : vector<2x14x84xf32>
    %c2_348 = arith.constant 2 : index
    %c0_349 = arith.constant 0 : index
    %c1_350 = arith.constant 1 : index
    %c12_351 = arith.constant 12 : index
    %703 = vector.load %arg0[%c2_348, %c0_349, %c1_350, %c12_351] : memref<4x2x16x96xf32, #tpu.memory_space<vmem>>, vector<1x2x14x84xf32>
    %704 = vector.shape_cast %703 : vector<1x2x14x84xf32> to vector<2x14x84xf32>
    %705 = vector.extract_strided_slice %0 {offsets = [13, 0], sizes = [1, 84], strides = [1, 1]} : vector<25x84xf32> to vector<1x84xf32>
    %706 = vector.shape_cast %705 : vector<1x84xf32> to vector<84xf32>
    %707 = vector.shape_cast %706 : vector<84xf32> to vector<1x1x84xf32>
    %708 = vector.broadcast %707 : vector<1x1x84xf32> to vector<2x14x84xf32>
    %709 = arith.mulf %704, %708 : vector<2x14x84xf32>
    %710 = arith.addf %702, %709 : vector<2x14x84xf32>
    %c3_352 = arith.constant 3 : index
    %c0_353 = arith.constant 0 : index
    %c1_354 = arith.constant 1 : index
    %c12_355 = arith.constant 12 : index
    %711 = vector.load %arg0[%c3_352, %c0_353, %c1_354, %c12_355] : memref<4x2x16x96xf32, #tpu.memory_space<vmem>>, vector<1x2x14x84xf32>
    %712 = vector.shape_cast %711 : vector<1x2x14x84xf32> to vector<2x14x84xf32>
    %713 = vector.extract_strided_slice %0 {offsets = [14, 0], sizes = [1, 84], strides = [1, 1]} : vector<25x84xf32> to vector<1x84xf32>
    %714 = vector.shape_cast %713 : vector<1x84xf32> to vector<84xf32>
    %715 = vector.shape_cast %714 : vector<84xf32> to vector<1x1x84xf32>
    %716 = vector.broadcast %715 : vector<1x1x84xf32> to vector<2x14x84xf32>
    %717 = arith.mulf %712, %716 : vector<2x14x84xf32>
    %718 = arith.addf %710, %717 : vector<2x14x84xf32>
    %c1_356 = arith.constant 1 : index
    %c0_357 = arith.constant 0 : index
    %c2_358 = arith.constant 2 : index
    %c0_359 = arith.constant 0 : index
    %719 = vector.load %arg0[%c1_356, %c0_357, %c2_358, %c0_359] : memref<4x2x16x96xf32, #tpu.memory_space<vmem>>, vector<1x2x14x84xf32>
    %720 = vector.shape_cast %719 : vector<1x2x14x84xf32> to vector<2x14x84xf32>
    %721 = vector.extract_strided_slice %0 {offsets = [15, 0], sizes = [1, 84], strides = [1, 1]} : vector<25x84xf32> to vector<1x84xf32>
    %722 = vector.shape_cast %721 : vector<1x84xf32> to vector<84xf32>
    %723 = vector.shape_cast %722 : vector<84xf32> to vector<1x1x84xf32>
    %724 = vector.broadcast %723 : vector<1x1x84xf32> to vector<2x14x84xf32>
    %725 = arith.mulf %720, %724 : vector<2x14x84xf32>
    %726 = arith.addf %718, %725 : vector<2x14x84xf32>
    %c0_360 = arith.constant 0 : index
    %c0_361 = arith.constant 0 : index
    %c2_362 = arith.constant 2 : index
    %c6_363 = arith.constant 6 : index
    %727 = vector.load %arg0[%c0_360, %c0_361, %c2_362, %c6_363] : memref<4x2x16x96xf32, #tpu.memory_space<vmem>>, vector<1x2x14x84xf32>
    %728 = vector.shape_cast %727 : vector<1x2x14x84xf32> to vector<2x14x84xf32>
    %729 = vector.extract_strided_slice %0 {offsets = [16, 0], sizes = [1, 84], strides = [1, 1]} : vector<25x84xf32> to vector<1x84xf32>
    %730 = vector.shape_cast %729 : vector<1x84xf32> to vector<84xf32>
    %731 = vector.shape_cast %730 : vector<84xf32> to vector<1x1x84xf32>
    %732 = vector.broadcast %731 : vector<1x1x84xf32> to vector<2x14x84xf32>
    %733 = arith.mulf %728, %732 : vector<2x14x84xf32>
    %734 = arith.addf %726, %733 : vector<2x14x84xf32>
    %c1_364 = arith.constant 1 : index
    %c0_365 = arith.constant 0 : index
    %c2_366 = arith.constant 2 : index
    %c6_367 = arith.constant 6 : index
    %735 = vector.load %arg0[%c1_364, %c0_365, %c2_366, %c6_367] : memref<4x2x16x96xf32, #tpu.memory_space<vmem>>, vector<1x2x14x84xf32>
    %736 = vector.shape_cast %735 : vector<1x2x14x84xf32> to vector<2x14x84xf32>
    %737 = vector.extract_strided_slice %0 {offsets = [17, 0], sizes = [1, 84], strides = [1, 1]} : vector<25x84xf32> to vector<1x84xf32>
    %738 = vector.shape_cast %737 : vector<1x84xf32> to vector<84xf32>
    %739 = vector.shape_cast %738 : vector<84xf32> to vector<1x1x84xf32>
    %740 = vector.broadcast %739 : vector<1x1x84xf32> to vector<2x14x84xf32>
    %741 = arith.mulf %736, %740 : vector<2x14x84xf32>
    %742 = arith.addf %734, %741 : vector<2x14x84xf32>
    %c0_368 = arith.constant 0 : index
    %c0_369 = arith.constant 0 : index
    %c2_370 = arith.constant 2 : index
    %c12_371 = arith.constant 12 : index
    %743 = vector.load %arg0[%c0_368, %c0_369, %c2_370, %c12_371] : memref<4x2x16x96xf32, #tpu.memory_space<vmem>>, vector<1x2x14x84xf32>
    %744 = vector.shape_cast %743 : vector<1x2x14x84xf32> to vector<2x14x84xf32>
    %745 = vector.extract_strided_slice %0 {offsets = [18, 0], sizes = [1, 84], strides = [1, 1]} : vector<25x84xf32> to vector<1x84xf32>
    %746 = vector.shape_cast %745 : vector<1x84xf32> to vector<84xf32>
    %747 = vector.shape_cast %746 : vector<84xf32> to vector<1x1x84xf32>
    %748 = vector.broadcast %747 : vector<1x1x84xf32> to vector<2x14x84xf32>
    %749 = arith.mulf %744, %748 : vector<2x14x84xf32>
    %750 = arith.addf %742, %749 : vector<2x14x84xf32>
    %c1_372 = arith.constant 1 : index
    %c0_373 = arith.constant 0 : index
    %c2_374 = arith.constant 2 : index
    %c12_375 = arith.constant 12 : index
    %751 = vector.load %arg0[%c1_372, %c0_373, %c2_374, %c12_375] : memref<4x2x16x96xf32, #tpu.memory_space<vmem>>, vector<1x2x14x84xf32>
    %752 = vector.shape_cast %751 : vector<1x2x14x84xf32> to vector<2x14x84xf32>
    %753 = vector.extract_strided_slice %0 {offsets = [19, 0], sizes = [1, 84], strides = [1, 1]} : vector<25x84xf32> to vector<1x84xf32>
    %754 = vector.shape_cast %753 : vector<1x84xf32> to vector<84xf32>
    %755 = vector.shape_cast %754 : vector<84xf32> to vector<1x1x84xf32>
    %756 = vector.broadcast %755 : vector<1x1x84xf32> to vector<2x14x84xf32>
    %757 = arith.mulf %752, %756 : vector<2x14x84xf32>
    %758 = arith.addf %750, %757 : vector<2x14x84xf32>
    %c3_376 = arith.constant 3 : index
    %c0_377 = arith.constant 0 : index
    %c2_378 = arith.constant 2 : index
    %c0_379 = arith.constant 0 : index
    %759 = vector.load %arg0[%c3_376, %c0_377, %c2_378, %c0_379] : memref<4x2x16x96xf32, #tpu.memory_space<vmem>>, vector<1x2x14x84xf32>
    %760 = vector.shape_cast %759 : vector<1x2x14x84xf32> to vector<2x14x84xf32>
    %761 = vector.extract_strided_slice %0 {offsets = [20, 0], sizes = [1, 84], strides = [1, 1]} : vector<25x84xf32> to vector<1x84xf32>
    %762 = vector.shape_cast %761 : vector<1x84xf32> to vector<84xf32>
    %763 = vector.shape_cast %762 : vector<84xf32> to vector<1x1x84xf32>
    %764 = vector.broadcast %763 : vector<1x1x84xf32> to vector<2x14x84xf32>
    %765 = arith.mulf %760, %764 : vector<2x14x84xf32>
    %766 = arith.addf %758, %765 : vector<2x14x84xf32>
    %c2_380 = arith.constant 2 : index
    %c0_381 = arith.constant 0 : index
    %c2_382 = arith.constant 2 : index
    %c6_383 = arith.constant 6 : index
    %767 = vector.load %arg0[%c2_380, %c0_381, %c2_382, %c6_383] : memref<4x2x16x96xf32, #tpu.memory_space<vmem>>, vector<1x2x14x84xf32>
    %768 = vector.shape_cast %767 : vector<1x2x14x84xf32> to vector<2x14x84xf32>
    %769 = vector.extract_strided_slice %0 {offsets = [21, 0], sizes = [1, 84], strides = [1, 1]} : vector<25x84xf32> to vector<1x84xf32>
    %770 = vector.shape_cast %769 : vector<1x84xf32> to vector<84xf32>
    %771 = vector.shape_cast %770 : vector<84xf32> to vector<1x1x84xf32>
    %772 = vector.broadcast %771 : vector<1x1x84xf32> to vector<2x14x84xf32>
    %773 = arith.mulf %768, %772 : vector<2x14x84xf32>
    %774 = arith.addf %766, %773 : vector<2x14x84xf32>
    %c3_384 = arith.constant 3 : index
    %c0_385 = arith.constant 0 : index
    %c2_386 = arith.constant 2 : index
    %c6_387 = arith.constant 6 : index
    %775 = vector.load %arg0[%c3_384, %c0_385, %c2_386, %c6_387] : memref<4x2x16x96xf32, #tpu.memory_space<vmem>>, vector<1x2x14x84xf32>
    %776 = vector.shape_cast %775 : vector<1x2x14x84xf32> to vector<2x14x84xf32>
    %777 = vector.extract_strided_slice %0 {offsets = [22, 0], sizes = [1, 84], strides = [1, 1]} : vector<25x84xf32> to vector<1x84xf32>
    %778 = vector.shape_cast %777 : vector<1x84xf32> to vector<84xf32>
    %779 = vector.shape_cast %778 : vector<84xf32> to vector<1x1x84xf32>
    %780 = vector.broadcast %779 : vector<1x1x84xf32> to vector<2x14x84xf32>
    %781 = arith.mulf %776, %780 : vector<2x14x84xf32>
    %782 = arith.addf %774, %781 : vector<2x14x84xf32>
    %c2_388 = arith.constant 2 : index
    %c0_389 = arith.constant 0 : index
    %c2_390 = arith.constant 2 : index
    %c12_391 = arith.constant 12 : index
    %783 = vector.load %arg0[%c2_388, %c0_389, %c2_390, %c12_391] : memref<4x2x16x96xf32, #tpu.memory_space<vmem>>, vector<1x2x14x84xf32>
    %784 = vector.shape_cast %783 : vector<1x2x14x84xf32> to vector<2x14x84xf32>
    %785 = vector.extract_strided_slice %0 {offsets = [23, 0], sizes = [1, 84], strides = [1, 1]} : vector<25x84xf32> to vector<1x84xf32>
    %786 = vector.shape_cast %785 : vector<1x84xf32> to vector<84xf32>
    %787 = vector.shape_cast %786 : vector<84xf32> to vector<1x1x84xf32>
    %788 = vector.broadcast %787 : vector<1x1x84xf32> to vector<2x14x84xf32>
    %789 = arith.mulf %784, %788 : vector<2x14x84xf32>
    %790 = arith.addf %782, %789 : vector<2x14x84xf32>
    %c3_392 = arith.constant 3 : index
    %c0_393 = arith.constant 0 : index
    %c2_394 = arith.constant 2 : index
    %c12_395 = arith.constant 12 : index
    %791 = vector.load %arg0[%c3_392, %c0_393, %c2_394, %c12_395] : memref<4x2x16x96xf32, #tpu.memory_space<vmem>>, vector<1x2x14x84xf32>
    %792 = vector.shape_cast %791 : vector<1x2x14x84xf32> to vector<2x14x84xf32>
    %793 = vector.extract_strided_slice %0 {offsets = [24, 0], sizes = [1, 84], strides = [1, 1]} : vector<25x84xf32> to vector<1x84xf32>
    %794 = vector.shape_cast %793 : vector<1x84xf32> to vector<84xf32>
    %795 = vector.shape_cast %794 : vector<84xf32> to vector<1x1x84xf32>
    %796 = vector.broadcast %795 : vector<1x1x84xf32> to vector<2x14x84xf32>
    %797 = arith.mulf %792, %796 : vector<2x14x84xf32>
    %798 = arith.addf %790, %797 : vector<2x14x84xf32>
    %799 = arith.maximumf %599, %798 : vector<2x14x84xf32>
    %c0_396 = arith.constant 0 : index
    %c0_397 = arith.constant 0 : index
    %800 = vector.load %arg2[%c0_396, %c0_397] : memref<1x84xf32, #tpu.memory_space<vmem>>, vector<1x84xf32>
    %801 = vector.shape_cast %800 : vector<1x84xf32> to vector<1x1x84xf32>
    %802 = vector.broadcast %801 : vector<1x1x84xf32> to vector<2x14x84xf32>
    %803 = arith.addf %799, %802 : vector<2x14x84xf32>
    %cst = arith.constant 0.000000e+00 : f32
    %804 = vector.broadcast %cst : f32 to vector<2x14x84xf32>
    %805 = arith.maximumf %803, %804 : vector<2x14x84xf32>
    %806 = vector.extract_strided_slice %805 {offsets = [0, 0, 0], sizes = [2, 10, 30], strides = [1, 1, 1]} : vector<2x14x84xf32> to vector<2x10x30xf32>
    %c0_398 = arith.constant 0 : index
    %c0_399 = arith.constant 0 : index
    %c0_400 = arith.constant 0 : index
    %807 = vector.load %arg12[%c0_398, %c0_399, %c0_400] : memref<2x100x150xf32, #tpu.memory_space<vmem>>, vector<2x10x30xf32>
    tpu.vector_store %arg12[%c0_398, %c0_399, %c0_400], %806 {strides = array<i32>} : memref<2x100x150xf32, #tpu.memory_space<vmem>>, vector<2x10x30xf32>,
    %808 = vector.extract_strided_slice %805 {offsets = [0, 1, 0], sizes = [2, 10, 30], strides = [1, 1, 1]} : vector<2x14x84xf32> to vector<2x10x30xf32>
    %c0_401 = arith.constant 0 : index
    %c0_402 = arith.constant 0 : index
    %c30 = arith.constant 30 : index
    %809 = vector.load %arg12[%c0_401, %c0_402, %c30] : memref<2x100x150xf32, #tpu.memory_space<vmem>>, vector<2x10x30xf32>
    tpu.vector_store %arg12[%c0_401, %c0_402, %c30], %808 {strides = array<i32>} : memref<2x100x150xf32, #tpu.memory_space<vmem>>, vector<2x10x30xf32>,
    %810 = vector.extract_strided_slice %805 {offsets = [0, 2, 0], sizes = [2, 10, 30], strides = [1, 1, 1]} : vector<2x14x84xf32> to vector<2x10x30xf32>
    %c0_403 = arith.constant 0 : index
    %c0_404 = arith.constant 0 : index
    %c60 = arith.constant 60 : index
    %811 = vector.load %arg12[%c0_403, %c0_404, %c60] : memref<2x100x150xf32, #tpu.memory_space<vmem>>, vector<2x10x30xf32>
    tpu.vector_store %arg12[%c0_403, %c0_404, %c60], %810 {strides = array<i32>} : memref<2x100x150xf32, #tpu.memory_space<vmem>>, vector<2x10x30xf32>,
    %812 = vector.extract_strided_slice %805 {offsets = [0, 3, 0], sizes = [2, 10, 30], strides = [1, 1, 1]} : vector<2x14x84xf32> to vector<2x10x30xf32>
    %c0_405 = arith.constant 0 : index
    %c0_406 = arith.constant 0 : index
    %c90 = arith.constant 90 : index
    %813 = vector.load %arg12[%c0_405, %c0_406, %c90] : memref<2x100x150xf32, #tpu.memory_space<vmem>>, vector<2x10x30xf32>
    tpu.vector_store %arg12[%c0_405, %c0_406, %c90], %812 {strides = array<i32>} : memref<2x100x150xf32, #tpu.memory_space<vmem>>, vector<2x10x30xf32>,
    %814 = vector.extract_strided_slice %805 {offsets = [0, 4, 0], sizes = [2, 10, 30], strides = [1, 1, 1]} : vector<2x14x84xf32> to vector<2x10x30xf32>
    %c0_407 = arith.constant 0 : index
    %c0_408 = arith.constant 0 : index
    %c120 = arith.constant 120 : index
    %815 = vector.load %arg12[%c0_407, %c0_408, %c120] : memref<2x100x150xf32, #tpu.memory_space<vmem>>, vector<2x10x30xf32>
    tpu.vector_store %arg12[%c0_407, %c0_408, %c120], %814 {strides = array<i32>} : memref<2x100x150xf32, #tpu.memory_space<vmem>>, vector<2x10x30xf32>,
    %816 = vector.extract_strided_slice %805 {offsets = [0, 0, 6], sizes = [2, 10, 30], strides = [1, 1, 1]} : vector<2x14x84xf32> to vector<2x10x30xf32>
    %c0_409 = arith.constant 0 : index
    %c10 = arith.constant 10 : index
    %c0_410 = arith.constant 0 : index
    %817 = vector.load %arg12[%c0_409, %c10, %c0_410] : memref<2x100x150xf32, #tpu.memory_space<vmem>>, vector<2x10x30xf32>
    tpu.vector_store %arg12[%c0_409, %c10, %c0_410], %816 {strides = array<i32>} : memref<2x100x150xf32, #tpu.memory_space<vmem>>, vector<2x10x30xf32>,
    %818 = vector.extract_strided_slice %805 {offsets = [0, 1, 6], sizes = [2, 10, 30], strides = [1, 1, 1]} : vector<2x14x84xf32> to vector<2x10x30xf32>
    %c0_411 = arith.constant 0 : index
    %c10_412 = arith.constant 10 : index
    %c30_413 = arith.constant 30 : index
    %819 = vector.load %arg12[%c0_411, %c10_412, %c30_413] : memref<2x100x150xf32, #tpu.memory_space<vmem>>, vector<2x10x30xf32>
    tpu.vector_store %arg12[%c0_411, %c10_412, %c30_413], %818 {strides = array<i32>} : memref<2x100x150xf32, #tpu.memory_space<vmem>>, vector<2x10x30xf32>,
    %820 = vector.extract_strided_slice %805 {offsets = [0, 2, 6], sizes = [2, 10, 30], strides = [1, 1, 1]} : vector<2x14x84xf32> to vector<2x10x30xf32>
    %c0_414 = arith.constant 0 : index
    %c10_415 = arith.constant 10 : index
    %c60_416 = arith.constant 60 : index
    %821 = vector.load %arg12[%c0_414, %c10_415, %c60_416] : memref<2x100x150xf32, #tpu.memory_space<vmem>>, vector<2x10x30xf32>
    tpu.vector_store %arg12[%c0_414, %c10_415, %c60_416], %820 {strides = array<i32>} : memref<2x100x150xf32, #tpu.memory_space<vmem>>, vector<2x10x30xf32>,
    %822 = vector.extract_strided_slice %805 {offsets = [0, 3, 6], sizes = [2, 10, 30], strides = [1, 1, 1]} : vector<2x14x84xf32> to vector<2x10x30xf32>
    %c0_417 = arith.constant 0 : index
    %c10_418 = arith.constant 10 : index
    %c90_419 = arith.constant 90 : index
    %823 = vector.load %arg12[%c0_417, %c10_418, %c90_419] : memref<2x100x150xf32, #tpu.memory_space<vmem>>, vector<2x10x30xf32>
    tpu.vector_store %arg12[%c0_417, %c10_418, %c90_419], %822 {strides = array<i32>} : memref<2x100x150xf32, #tpu.memory_space<vmem>>, vector<2x10x30xf32>,
    %824 = vector.extract_strided_slice %805 {offsets = [0, 4, 6], sizes = [2, 10, 30], strides = [1, 1, 1]} : vector<2x14x84xf32> to vector<2x10x30xf32>
    %c0_420 = arith.constant 0 : index
    %c10_421 = arith.constant 10 : index
    %c120_422 = arith.constant 120 : index
    %825 = vector.load %arg12[%c0_420, %c10_421, %c120_422] : memref<2x100x150xf32, #tpu.memory_space<vmem>>, vector<2x10x30xf32>
    tpu.vector_store %arg12[%c0_420, %c10_421, %c120_422], %824 {strides = array<i32>} : memref<2x100x150xf32, #tpu.memory_space<vmem>>, vector<2x10x30xf32>,
    %826 = vector.extract_strided_slice %805 {offsets = [0, 0, 12], sizes = [2, 10, 30], strides = [1, 1, 1]} : vector<2x14x84xf32> to vector<2x10x30xf32>
    %c0_423 = arith.constant 0 : index
    %c20 = arith.constant 20 : index
    %c0_424 = arith.constant 0 : index
    %827 = vector.load %arg12[%c0_423, %c20, %c0_424] : memref<2x100x150xf32, #tpu.memory_space<vmem>>, vector<2x10x30xf32>
    tpu.vector_store %arg12[%c0_423, %c20, %c0_424], %826 {strides = array<i32>} : memref<2x100x150xf32, #tpu.memory_space<vmem>>, vector<2x10x30xf32>,
    %828 = vector.extract_strided_slice %805 {offsets = [0, 1, 12], sizes = [2, 10, 30], strides = [1, 1, 1]} : vector<2x14x84xf32> to vector<2x10x30xf32>
    %c0_425 = arith.constant 0 : index
    %c20_426 = arith.constant 20 : index
    %c30_427 = arith.constant 30 : index
    %829 = vector.load %arg12[%c0_425, %c20_426, %c30_427] : memref<2x100x150xf32, #tpu.memory_space<vmem>>, vector<2x10x30xf32>
    tpu.vector_store %arg12[%c0_425, %c20_426, %c30_427], %828 {strides = array<i32>} : memref<2x100x150xf32, #tpu.memory_space<vmem>>, vector<2x10x30xf32>,
    %830 = vector.extract_strided_slice %805 {offsets = [0, 2, 12], sizes = [2, 10, 30], strides = [1, 1, 1]} : vector<2x14x84xf32> to vector<2x10x30xf32>
    %c0_428 = arith.constant 0 : index
    %c20_429 = arith.constant 20 : index
    %c60_430 = arith.constant 60 : index
    %831 = vector.load %arg12[%c0_428, %c20_429, %c60_430] : memref<2x100x150xf32, #tpu.memory_space<vmem>>, vector<2x10x30xf32>
    tpu.vector_store %arg12[%c0_428, %c20_429, %c60_430], %830 {strides = array<i32>} : memref<2x100x150xf32, #tpu.memory_space<vmem>>, vector<2x10x30xf32>,
    %832 = vector.extract_strided_slice %805 {offsets = [0, 3, 12], sizes = [2, 10, 30], strides = [1, 1, 1]} : vector<2x14x84xf32> to vector<2x10x30xf32>
    %c0_431 = arith.constant 0 : index
    %c20_432 = arith.constant 20 : index
    %c90_433 = arith.constant 90 : index
    %833 = vector.load %arg12[%c0_431, %c20_432, %c90_433] : memref<2x100x150xf32, #tpu.memory_space<vmem>>, vector<2x10x30xf32>
    tpu.vector_store %arg12[%c0_431, %c20_432, %c90_433], %832 {strides = array<i32>} : memref<2x100x150xf32, #tpu.memory_space<vmem>>, vector<2x10x30xf32>,
    %834 = vector.extract_strided_slice %805 {offsets = [0, 4, 12], sizes = [2, 10, 30], strides = [1, 1, 1]} : vector<2x14x84xf32> to vector<2x10x30xf32>
    %c0_434 = arith.constant 0 : index
    %c20_435 = arith.constant 20 : index
    %c120_436 = arith.constant 120 : index
    %835 = vector.load %arg12[%c0_434, %c20_435, %c120_436] : memref<2x100x150xf32, #tpu.memory_space<vmem>>, vector<2x10x30xf32>
    tpu.vector_store %arg12[%c0_434, %c20_435, %c120_436], %834 {strides = array<i32>} : memref<2x100x150xf32, #tpu.memory_space<vmem>>, vector<2x10x30xf32>,
    %836 = vector.extract_strided_slice %805 {offsets = [0, 0, 18], sizes = [2, 10, 30], strides = [1, 1, 1]} : vector<2x14x84xf32> to vector<2x10x30xf32>
    %c0_437 = arith.constant 0 : index
    %c30_438 = arith.constant 30 : index
    %c0_439 = arith.constant 0 : index
    %837 = vector.load %arg12[%c0_437, %c30_438, %c0_439] : memref<2x100x150xf32, #tpu.memory_space<vmem>>, vector<2x10x30xf32>
    tpu.vector_store %arg12[%c0_437, %c30_438, %c0_439], %836 {strides = array<i32>} : memref<2x100x150xf32, #tpu.memory_space<vmem>>, vector<2x10x30xf32>,
    %838 = vector.extract_strided_slice %805 {offsets = [0, 1, 18], sizes = [2, 10, 30], strides = [1, 1, 1]} : vector<2x14x84xf32> to vector<2x10x30xf32>
    %c0_440 = arith.constant 0 : index
    %c30_441 = arith.constant 30 : index
    %c30_442 = arith.constant 30 : index
    %839 = vector.load %arg12[%c0_440, %c30_441, %c30_442] : memref<2x100x150xf32, #tpu.memory_space<vmem>>, vector<2x10x30xf32>
    tpu.vector_store %arg12[%c0_440, %c30_441, %c30_442], %838 {strides = array<i32>} : memref<2x100x150xf32, #tpu.memory_space<vmem>>, vector<2x10x30xf32>,
    %840 = vector.extract_strided_slice %805 {offsets = [0, 2, 18], sizes = [2, 10, 30], strides = [1, 1, 1]} : vector<2x14x84xf32> to vector<2x10x30xf32>
    %c0_443 = arith.constant 0 : index
    %c30_444 = arith.constant 30 : index
    %c60_445 = arith.constant 60 : index
    %841 = vector.load %arg12[%c0_443, %c30_444, %c60_445] : memref<2x100x150xf32, #tpu.memory_space<vmem>>, vector<2x10x30xf32>
    tpu.vector_store %arg12[%c0_443, %c30_444, %c60_445], %840 {strides = array<i32>} : memref<2x100x150xf32, #tpu.memory_space<vmem>>, vector<2x10x30xf32>,
    %842 = vector.extract_strided_slice %805 {offsets = [0, 3, 18], sizes = [2, 10, 30], strides = [1, 1, 1]} : vector<2x14x84xf32> to vector<2x10x30xf32>
    %c0_446 = arith.constant 0 : index
    %c30_447 = arith.constant 30 : index
    %c90_448 = arith.constant 90 : index
    %843 = vector.load %arg12[%c0_446, %c30_447, %c90_448] : memref<2x100x150xf32, #tpu.memory_space<vmem>>, vector<2x10x30xf32>
    tpu.vector_store %arg12[%c0_446, %c30_447, %c90_448], %842 {strides = array<i32>} : memref<2x100x150xf32, #tpu.memory_space<vmem>>, vector<2x10x30xf32>,
    %844 = vector.extract_strided_slice %805 {offsets = [0, 4, 18], sizes = [2, 10, 30], strides = [1, 1, 1]} : vector<2x14x84xf32> to vector<2x10x30xf32>
    %c0_449 = arith.constant 0 : index
    %c30_450 = arith.constant 30 : index
    %c120_451 = arith.constant 120 : index
    %845 = vector.load %arg12[%c0_449, %c30_450, %c120_451] : memref<2x100x150xf32, #tpu.memory_space<vmem>>, vector<2x10x30xf32>
    tpu.vector_store %arg12[%c0_449, %c30_450, %c120_451], %844 {strides = array<i32>} : memref<2x100x150xf32, #tpu.memory_space<vmem>>, vector<2x10x30xf32>,
    %846 = vector.extract_strided_slice %805 {offsets = [0, 0, 24], sizes = [2, 10, 30], strides = [1, 1, 1]} : vector<2x14x84xf32> to vector<2x10x30xf32>
    %c0_452 = arith.constant 0 : index
    %c40 = arith.constant 40 : index
    %c0_453 = arith.constant 0 : index
    %847 = vector.load %arg12[%c0_452, %c40, %c0_453] : memref<2x100x150xf32, #tpu.memory_space<vmem>>, vector<2x10x30xf32>
    tpu.vector_store %arg12[%c0_452, %c40, %c0_453], %846 {strides = array<i32>} : memref<2x100x150xf32, #tpu.memory_space<vmem>>, vector<2x10x30xf32>,
    %848 = vector.extract_strided_slice %805 {offsets = [0, 1, 24], sizes = [2, 10, 30], strides = [1, 1, 1]} : vector<2x14x84xf32> to vector<2x10x30xf32>
    %c0_454 = arith.constant 0 : index
    %c40_455 = arith.constant 40 : index
    %c30_456 = arith.constant 30 : index
    %849 = vector.load %arg12[%c0_454, %c40_455, %c30_456] : memref<2x100x150xf32, #tpu.memory_space<vmem>>, vector<2x10x30xf32>
    tpu.vector_store %arg12[%c0_454, %c40_455, %c30_456], %848 {strides = array<i32>} : memref<2x100x150xf32, #tpu.memory_space<vmem>>, vector<2x10x30xf32>,
    %850 = vector.extract_strided_slice %805 {offsets = [0, 2, 24], sizes = [2, 10, 30], strides = [1, 1, 1]} : vector<2x14x84xf32> to vector<2x10x30xf32>
    %c0_457 = arith.constant 0 : index
    %c40_458 = arith.constant 40 : index
    %c60_459 = arith.constant 60 : index
    %851 = vector.load %arg12[%c0_457, %c40_458, %c60_459] : memref<2x100x150xf32, #tpu.memory_space<vmem>>, vector<2x10x30xf32>
    tpu.vector_store %arg12[%c0_457, %c40_458, %c60_459], %850 {strides = array<i32>} : memref<2x100x150xf32, #tpu.memory_space<vmem>>, vector<2x10x30xf32>,
    %852 = vector.extract_strided_slice %805 {offsets = [0, 3, 24], sizes = [2, 10, 30], strides = [1, 1, 1]} : vector<2x14x84xf32> to vector<2x10x30xf32>
    %c0_460 = arith.constant 0 : index
    %c40_461 = arith.constant 40 : index
    %c90_462 = arith.constant 90 : index
    %853 = vector.load %arg12[%c0_460, %c40_461, %c90_462] : memref<2x100x150xf32, #tpu.memory_space<vmem>>, vector<2x10x30xf32>
    tpu.vector_store %arg12[%c0_460, %c40_461, %c90_462], %852 {strides = array<i32>} : memref<2x100x150xf32, #tpu.memory_space<vmem>>, vector<2x10x30xf32>,
    %854 = vector.extract_strided_slice %805 {offsets = [0, 4, 24], sizes = [2, 10, 30], strides = [1, 1, 1]} : vector<2x14x84xf32> to vector<2x10x30xf32>
    %c0_463 = arith.constant 0 : index
    %c40_464 = arith.constant 40 : index
    %c120_465 = arith.constant 120 : index
    %855 = vector.load %arg12[%c0_463, %c40_464, %c120_465] : memref<2x100x150xf32, #tpu.memory_space<vmem>>, vector<2x10x30xf32>
    tpu.vector_store %arg12[%c0_463, %c40_464, %c120_465], %854 {strides = array<i32>} : memref<2x100x150xf32, #tpu.memory_space<vmem>>, vector<2x10x30xf32>,
    %856 = vector.extract_strided_slice %805 {offsets = [0, 0, 30], sizes = [2, 10, 30], strides = [1, 1, 1]} : vector<2x14x84xf32> to vector<2x10x30xf32>
    %c0_466 = arith.constant 0 : index
    %c50 = arith.constant 50 : index
    %c0_467 = arith.constant 0 : index
    %857 = vector.load %arg12[%c0_466, %c50, %c0_467] : memref<2x100x150xf32, #tpu.memory_space<vmem>>, vector<2x10x30xf32>
    tpu.vector_store %arg12[%c0_466, %c50, %c0_467], %856 {strides = array<i32>} : memref<2x100x150xf32, #tpu.memory_space<vmem>>, vector<2x10x30xf32>,
    %858 = vector.extract_strided_slice %805 {offsets = [0, 1, 30], sizes = [2, 10, 30], strides = [1, 1, 1]} : vector<2x14x84xf32> to vector<2x10x30xf32>
    %c0_468 = arith.constant 0 : index
    %c50_469 = arith.constant 50 : index
    %c30_470 = arith.constant 30 : index
    %859 = vector.load %arg12[%c0_468, %c50_469, %c30_470] : memref<2x100x150xf32, #tpu.memory_space<vmem>>, vector<2x10x30xf32>
    tpu.vector_store %arg12[%c0_468, %c50_469, %c30_470], %858 {strides = array<i32>} : memref<2x100x150xf32, #tpu.memory_space<vmem>>, vector<2x10x30xf32>,
    %860 = vector.extract_strided_slice %805 {offsets = [0, 2, 30], sizes = [2, 10, 30], strides = [1, 1, 1]} : vector<2x14x84xf32> to vector<2x10x30xf32>
    %c0_471 = arith.constant 0 : index
    %c50_472 = arith.constant 50 : index
    %c60_473 = arith.constant 60 : index
    %861 = vector.load %arg12[%c0_471, %c50_472, %c60_473] : memref<2x100x150xf32, #tpu.memory_space<vmem>>, vector<2x10x30xf32>
    tpu.vector_store %arg12[%c0_471, %c50_472, %c60_473], %860 {strides = array<i32>} : memref<2x100x150xf32, #tpu.memory_space<vmem>>, vector<2x10x30xf32>,
    %862 = vector.extract_strided_slice %805 {offsets = [0, 3, 30], sizes = [2, 10, 30], strides = [1, 1, 1]} : vector<2x14x84xf32> to vector<2x10x30xf32>
    %c0_474 = arith.constant 0 : index
    %c50_475 = arith.constant 50 : index
    %c90_476 = arith.constant 90 : index
    %863 = vector.load %arg12[%c0_474, %c50_475, %c90_476] : memref<2x100x150xf32, #tpu.memory_space<vmem>>, vector<2x10x30xf32>
    tpu.vector_store %arg12[%c0_474, %c50_475, %c90_476], %862 {strides = array<i32>} : memref<2x100x150xf32, #tpu.memory_space<vmem>>, vector<2x10x30xf32>,
    %864 = vector.extract_strided_slice %805 {offsets = [0, 4, 30], sizes = [2, 10, 30], strides = [1, 1, 1]} : vector<2x14x84xf32> to vector<2x10x30xf32>
    %c0_477 = arith.constant 0 : index
    %c50_478 = arith.constant 50 : index
    %c120_479 = arith.constant 120 : index
    %865 = vector.load %arg12[%c0_477, %c50_478, %c120_479] : memref<2x100x150xf32, #tpu.memory_space<vmem>>, vector<2x10x30xf32>
    tpu.vector_store %arg12[%c0_477, %c50_478, %c120_479], %864 {strides = array<i32>} : memref<2x100x150xf32, #tpu.memory_space<vmem>>, vector<2x10x30xf32>,
    %866 = vector.extract_strided_slice %805 {offsets = [0, 0, 36], sizes = [2, 10, 30], strides = [1, 1, 1]} : vector<2x14x84xf32> to vector<2x10x30xf32>
    %c0_480 = arith.constant 0 : index
    %c60_481 = arith.constant 60 : index
    %c0_482 = arith.constant 0 : index
    %867 = vector.load %arg12[%c0_480, %c60_481, %c0_482] : memref<2x100x150xf32, #tpu.memory_space<vmem>>, vector<2x10x30xf32>
    tpu.vector_store %arg12[%c0_480, %c60_481, %c0_482], %866 {strides = array<i32>} : memref<2x100x150xf32, #tpu.memory_space<vmem>>, vector<2x10x30xf32>,
    %868 = vector.extract_strided_slice %805 {offsets = [0, 1, 36], sizes = [2, 10, 30], strides = [1, 1, 1]} : vector<2x14x84xf32> to vector<2x10x30xf32>
    %c0_483 = arith.constant 0 : index
    %c60_484 = arith.constant 60 : index
    %c30_485 = arith.constant 30 : index
    %869 = vector.load %arg12[%c0_483, %c60_484, %c30_485] : memref<2x100x150xf32, #tpu.memory_space<vmem>>, vector<2x10x30xf32>
    tpu.vector_store %arg12[%c0_483, %c60_484, %c30_485], %868 {strides = array<i32>} : memref<2x100x150xf32, #tpu.memory_space<vmem>>, vector<2x10x30xf32>,
    %870 = vector.extract_strided_slice %805 {offsets = [0, 2, 36], sizes = [2, 10, 30], strides = [1, 1, 1]} : vector<2x14x84xf32> to vector<2x10x30xf32>
    %c0_486 = arith.constant 0 : index
    %c60_487 = arith.constant 60 : index
    %c60_488 = arith.constant 60 : index
    %871 = vector.load %arg12[%c0_486, %c60_487, %c60_488] : memref<2x100x150xf32, #tpu.memory_space<vmem>>, vector<2x10x30xf32>
    tpu.vector_store %arg12[%c0_486, %c60_487, %c60_488], %870 {strides = array<i32>} : memref<2x100x150xf32, #tpu.memory_space<vmem>>, vector<2x10x30xf32>,
    %872 = vector.extract_strided_slice %805 {offsets = [0, 3, 36], sizes = [2, 10, 30], strides = [1, 1, 1]} : vector<2x14x84xf32> to vector<2x10x30xf32>
    %c0_489 = arith.constant 0 : index
    %c60_490 = arith.constant 60 : index
    %c90_491 = arith.constant 90 : index
    %873 = vector.load %arg12[%c0_489, %c60_490, %c90_491] : memref<2x100x150xf32, #tpu.memory_space<vmem>>, vector<2x10x30xf32>
    tpu.vector_store %arg12[%c0_489, %c60_490, %c90_491], %872 {strides = array<i32>} : memref<2x100x150xf32, #tpu.memory_space<vmem>>, vector<2x10x30xf32>,
    %874 = vector.extract_strided_slice %805 {offsets = [0, 4, 36], sizes = [2, 10, 30], strides = [1, 1, 1]} : vector<2x14x84xf32> to vector<2x10x30xf32>
    %c0_492 = arith.constant 0 : index
    %c60_493 = arith.constant 60 : index
    %c120_494 = arith.constant 120 : index
    %875 = vector.load %arg12[%c0_492, %c60_493, %c120_494] : memref<2x100x150xf32, #tpu.memory_space<vmem>>, vector<2x10x30xf32>
    tpu.vector_store %arg12[%c0_492, %c60_493, %c120_494], %874 {strides = array<i32>} : memref<2x100x150xf32, #tpu.memory_space<vmem>>, vector<2x10x30xf32>,
    %876 = vector.extract_strided_slice %805 {offsets = [0, 0, 42], sizes = [2, 10, 30], strides = [1, 1, 1]} : vector<2x14x84xf32> to vector<2x10x30xf32>
    %c0_495 = arith.constant 0 : index
    %c70 = arith.constant 70 : index
    %c0_496 = arith.constant 0 : index
    %877 = vector.load %arg12[%c0_495, %c70, %c0_496] : memref<2x100x150xf32, #tpu.memory_space<vmem>>, vector<2x10x30xf32>
    tpu.vector_store %arg12[%c0_495, %c70, %c0_496], %876 {strides = array<i32>} : memref<2x100x150xf32, #tpu.memory_space<vmem>>, vector<2x10x30xf32>,
    %878 = vector.extract_strided_slice %805 {offsets = [0, 1, 42], sizes = [2, 10, 30], strides = [1, 1, 1]} : vector<2x14x84xf32> to vector<2x10x30xf32>
    %c0_497 = arith.constant 0 : index
    %c70_498 = arith.constant 70 : index
    %c30_499 = arith.constant 30 : index
    %879 = vector.load %arg12[%c0_497, %c70_498, %c30_499] : memref<2x100x150xf32, #tpu.memory_space<vmem>>, vector<2x10x30xf32>
    tpu.vector_store %arg12[%c0_497, %c70_498, %c30_499], %878 {strides = array<i32>} : memref<2x100x150xf32, #tpu.memory_space<vmem>>, vector<2x10x30xf32>,
    %880 = vector.extract_strided_slice %805 {offsets = [0, 2, 42], sizes = [2, 10, 30], strides = [1, 1, 1]} : vector<2x14x84xf32> to vector<2x10x30xf32>
    %c0_500 = arith.constant 0 : index
    %c70_501 = arith.constant 70 : index
    %c60_502 = arith.constant 60 : index
    %881 = vector.load %arg12[%c0_500, %c70_501, %c60_502] : memref<2x100x150xf32, #tpu.memory_space<vmem>>, vector<2x10x30xf32>
    tpu.vector_store %arg12[%c0_500, %c70_501, %c60_502], %880 {strides = array<i32>} : memref<2x100x150xf32, #tpu.memory_space<vmem>>, vector<2x10x30xf32>,
    %882 = vector.extract_strided_slice %805 {offsets = [0, 3, 42], sizes = [2, 10, 30], strides = [1, 1, 1]} : vector<2x14x84xf32> to vector<2x10x30xf32>
    %c0_503 = arith.constant 0 : index
    %c70_504 = arith.constant 70 : index
    %c90_505 = arith.constant 90 : index
    %883 = vector.load %arg12[%c0_503, %c70_504, %c90_505] : memref<2x100x150xf32, #tpu.memory_space<vmem>>, vector<2x10x30xf32>
    tpu.vector_store %arg12[%c0_503, %c70_504, %c90_505], %882 {strides = array<i32>} : memref<2x100x150xf32, #tpu.memory_space<vmem>>, vector<2x10x30xf32>,
    %884 = vector.extract_strided_slice %805 {offsets = [0, 4, 42], sizes = [2, 10, 30], strides = [1, 1, 1]} : vector<2x14x84xf32> to vector<2x10x30xf32>
    %c0_506 = arith.constant 0 : index
    %c70_507 = arith.constant 70 : index
    %c120_508 = arith.constant 120 : index
    %885 = vector.load %arg12[%c0_506, %c70_507, %c120_508] : memref<2x100x150xf32, #tpu.memory_space<vmem>>, vector<2x10x30xf32>
    tpu.vector_store %arg12[%c0_506, %c70_507, %c120_508], %884 {strides = array<i32>} : memref<2x100x150xf32, #tpu.memory_space<vmem>>, vector<2x10x30xf32>,
    %886 = vector.extract_strided_slice %805 {offsets = [0, 0, 48], sizes = [2, 10, 30], strides = [1, 1, 1]} : vector<2x14x84xf32> to vector<2x10x30xf32>
    %c0_509 = arith.constant 0 : index
    %c80 = arith.constant 80 : index
    %c0_510 = arith.constant 0 : index
    %887 = vector.load %arg12[%c0_509, %c80, %c0_510] : memref<2x100x150xf32, #tpu.memory_space<vmem>>, vector<2x10x30xf32>
    tpu.vector_store %arg12[%c0_509, %c80, %c0_510], %886 {strides = array<i32>} : memref<2x100x150xf32, #tpu.memory_space<vmem>>, vector<2x10x30xf32>,
    %888 = vector.extract_strided_slice %805 {offsets = [0, 1, 48], sizes = [2, 10, 30], strides = [1, 1, 1]} : vector<2x14x84xf32> to vector<2x10x30xf32>
    %c0_511 = arith.constant 0 : index
    %c80_512 = arith.constant 80 : index
    %c30_513 = arith.constant 30 : index
    %889 = vector.load %arg12[%c0_511, %c80_512, %c30_513] : memref<2x100x150xf32, #tpu.memory_space<vmem>>, vector<2x10x30xf32>
    tpu.vector_store %arg12[%c0_511, %c80_512, %c30_513], %888 {strides = array<i32>} : memref<2x100x150xf32, #tpu.memory_space<vmem>>, vector<2x10x30xf32>,
    %890 = vector.extract_strided_slice %805 {offsets = [0, 2, 48], sizes = [2, 10, 30], strides = [1, 1, 1]} : vector<2x14x84xf32> to vector<2x10x30xf32>
    %c0_514 = arith.constant 0 : index
    %c80_515 = arith.constant 80 : index
    %c60_516 = arith.constant 60 : index
    %891 = vector.load %arg12[%c0_514, %c80_515, %c60_516] : memref<2x100x150xf32, #tpu.memory_space<vmem>>, vector<2x10x30xf32>
    tpu.vector_store %arg12[%c0_514, %c80_515, %c60_516], %890 {strides = array<i32>} : memref<2x100x150xf32, #tpu.memory_space<vmem>>, vector<2x10x30xf32>,
    %892 = vector.extract_strided_slice %805 {offsets = [0, 3, 48], sizes = [2, 10, 30], strides = [1, 1, 1]} : vector<2x14x84xf32> to vector<2x10x30xf32>
    %c0_517 = arith.constant 0 : index
    %c80_518 = arith.constant 80 : index
    %c90_519 = arith.constant 90 : index
    %893 = vector.load %arg12[%c0_517, %c80_518, %c90_519] : memref<2x100x150xf32, #tpu.memory_space<vmem>>, vector<2x10x30xf32>
    tpu.vector_store %arg12[%c0_517, %c80_518, %c90_519], %892 {strides = array<i32>} : memref<2x100x150xf32, #tpu.memory_space<vmem>>, vector<2x10x30xf32>,
    %894 = vector.extract_strided_slice %805 {offsets = [0, 4, 48], sizes = [2, 10, 30], strides = [1, 1, 1]} : vector<2x14x84xf32> to vector<2x10x30xf32>
    %c0_520 = arith.constant 0 : index
    %c80_521 = arith.constant 80 : index
    %c120_522 = arith.constant 120 : index
    %895 = vector.load %arg12[%c0_520, %c80_521, %c120_522] : memref<2x100x150xf32, #tpu.memory_space<vmem>>, vector<2x10x30xf32>
    tpu.vector_store %arg12[%c0_520, %c80_521, %c120_522], %894 {strides = array<i32>} : memref<2x100x150xf32, #tpu.memory_space<vmem>>, vector<2x10x30xf32>,
    %896 = vector.extract_strided_slice %805 {offsets = [0, 0, 54], sizes = [2, 10, 30], strides = [1, 1, 1]} : vector<2x14x84xf32> to vector<2x10x30xf32>
    %c0_523 = arith.constant 0 : index
    %c90_524 = arith.constant 90 : index
    %c0_525 = arith.constant 0 : index
    %897 = vector.load %arg12[%c0_523, %c90_524, %c0_525] : memref<2x100x150xf32, #tpu.memory_space<vmem>>, vector<2x10x30xf32>
    tpu.vector_store %arg12[%c0_523, %c90_524, %c0_525], %896 {strides = array<i32>} : memref<2x100x150xf32, #tpu.memory_space<vmem>>, vector<2x10x30xf32>,
    %898 = vector.extract_strided_slice %805 {offsets = [0, 1, 54], sizes = [2, 10, 30], strides = [1, 1, 1]} : vector<2x14x84xf32> to vector<2x10x30xf32>
    %c0_526 = arith.constant 0 : index
    %c90_527 = arith.constant 90 : index
    %c30_528 = arith.constant 30 : index
    %899 = vector.load %arg12[%c0_526, %c90_527, %c30_528] : memref<2x100x150xf32, #tpu.memory_space<vmem>>, vector<2x10x30xf32>
    tpu.vector_store %arg12[%c0_526, %c90_527, %c30_528], %898 {strides = array<i32>} : memref<2x100x150xf32, #tpu.memory_space<vmem>>, vector<2x10x30xf32>,
    %900 = vector.extract_strided_slice %805 {offsets = [0, 2, 54], sizes = [2, 10, 30], strides = [1, 1, 1]} : vector<2x14x84xf32> to vector<2x10x30xf32>
    %c0_529 = arith.constant 0 : index
    %c90_530 = arith.constant 90 : index
    %c60_531 = arith.constant 60 : index
    %901 = vector.load %arg12[%c0_529, %c90_530, %c60_531] : memref<2x100x150xf32, #tpu.memory_space<vmem>>, vector<2x10x30xf32>
    tpu.vector_store %arg12[%c0_529, %c90_530, %c60_531], %900 {strides = array<i32>} : memref<2x100x150xf32, #tpu.memory_space<vmem>>, vector<2x10x30xf32>,
    %902 = vector.extract_strided_slice %805 {offsets = [0, 3, 54], sizes = [2, 10, 30], strides = [1, 1, 1]} : vector<2x14x84xf32> to vector<2x10x30xf32>
    %c0_532 = arith.constant 0 : index
    %c90_533 = arith.constant 90 : index
    %c90_534 = arith.constant 90 : index
    %903 = vector.load %arg12[%c0_532, %c90_533, %c90_534] : memref<2x100x150xf32, #tpu.memory_space<vmem>>, vector<2x10x30xf32>
    tpu.vector_store %arg12[%c0_532, %c90_533, %c90_534], %902 {strides = array<i32>} : memref<2x100x150xf32, #tpu.memory_space<vmem>>, vector<2x10x30xf32>,
    %904 = vector.extract_strided_slice %805 {offsets = [0, 4, 54], sizes = [2, 10, 30], strides = [1, 1, 1]} : vector<2x14x84xf32> to vector<2x10x30xf32>
    %c0_535 = arith.constant 0 : index
    %c90_536 = arith.constant 90 : index
    %c120_537 = arith.constant 120 : index
    %905 = vector.load %arg12[%c0_535, %c90_536, %c120_537] : memref<2x100x150xf32, #tpu.memory_space<vmem>>, vector<2x10x30xf32>
    tpu.vector_store %arg12[%c0_535, %c90_536, %c120_537], %904 {strides = array<i32>} : memref<2x100x150xf32, #tpu.memory_space<vmem>>, vector<2x10x30xf32>,
    %c0_538 = arith.constant 0 : index
    %c0_539 = arith.constant 0 : index
    %c0_540 = arith.constant 0 : index
    %906 = vector.load %arg12[%c0_538, %c0_539, %c0_540] : memref<2x100x150xf32, #tpu.memory_space<vmem>>, vector<2x100x150xf32>
    %c0_541 = arith.constant 0 : index
    %c0_542 = arith.constant 0 : index
    %907 = vector.load %arg3[%c0_541, %c0_542] : memref<150x16xf32, #tpu.memory_space<vmem>>, vector<150x16xf32>
    %908 = vector.shape_cast %907 : vector<150x16xf32> to vector<1x150x16xf32>
    %909 = vector.broadcast %908 : vector<1x150x16xf32> to vector<2x150x16xf32>
    "tpu.trace_start"() <{level = 10 : i32, message = "nmk,nko->nmo"}> : () -> ()
    %cst_543 = arith.constant dense<0.000000e+00> : vector<2x100x16xf32>
    %910 = tpu.matmul %906, %909, %cst_543 {dimension_numbers = #tpu.dot_dimension_numbers<[2], [1], [1], [2], [0, 0, 0, 1, 1, 2], [0], [0]>} : vector<2x100x150xf32>, vector<2x150x16xf32>, vector<2x100x16xf32> -> vector<2x100x16xf32>
    "tpu.trace_stop"() : () -> ()
    %911 = vector.extract_strided_slice %910 {offsets = [0, 0, 0], sizes = [2, 99, 16], strides = [1, 1, 1]} : vector<2x100x16xf32> to vector<2x99x16xf32>
    %912 = vector.extract_strided_slice %910 {offsets = [0, 1, 0], sizes = [2, 99, 16], strides = [1, 1, 1]} : vector<2x100x16xf32> to vector<2x99x16xf32>
    %913 = arith.maximumf %911, %912 : vector<2x99x16xf32>
    %914 = vector.extract_strided_slice %913 {offsets = [0, 0, 0], sizes = [2, 89, 16], strides = [1, 1, 1]} : vector<2x99x16xf32> to vector<2x89x16xf32>
    %915 = vector.extract_strided_slice %913 {offsets = [0, 10, 0], sizes = [2, 89, 16], strides = [1, 1, 1]} : vector<2x99x16xf32> to vector<2x89x16xf32>
    %916 = arith.maximumf %914, %915 : vector<2x89x16xf32>
    %917 = vector.extract_strided_slice %916 {offsets = [0, 0, 0], sizes = [2, 1, 16], strides = [1, 1, 1]} : vector<2x89x16xf32> to vector<2x1x16xf32>
    %918 = vector.shape_cast %917 : vector<2x1x16xf32> to vector<2x16xf32>
    %c0_544 = arith.constant 0 : index
    %c0_545 = arith.constant 0 : index
    %919 = vector.load %arg13[%c0_544, %c0_545] : memref<2x400xf32, #tpu.memory_space<vmem>>, vector<2x16xf32>
    tpu.vector_store %arg13[%c0_544, %c0_545], %918 {strides = array<i32>} : memref<2x400xf32, #tpu.memory_space<vmem>>, vector<2x16xf32>,
    %920 = vector.extract_strided_slice %916 {offsets = [0, 20, 0], sizes = [2, 1, 16], strides = [1, 1, 1]} : vector<2x89x16xf32> to vector<2x1x16xf32>
    %921 = vector.shape_cast %920 : vector<2x1x16xf32> to vector<2x16xf32>
    %c0_546 = arith.constant 0 : index
    %c16 = arith.constant 16 : index
    %922 = vector.load %arg13[%c0_546, %c16] : memref<2x400xf32, #tpu.memory_space<vmem>>, vector<2x16xf32>
    tpu.vector_store %arg13[%c0_546, %c16], %921 {strides = array<i32>} : memref<2x400xf32, #tpu.memory_space<vmem>>, vector<2x16xf32>,
    %923 = vector.extract_strided_slice %916 {offsets = [0, 40, 0], sizes = [2, 1, 16], strides = [1, 1, 1]} : vector<2x89x16xf32> to vector<2x1x16xf32>
    %924 = vector.shape_cast %923 : vector<2x1x16xf32> to vector<2x16xf32>
    %c0_547 = arith.constant 0 : index
    %c32 = arith.constant 32 : index
    %925 = vector.load %arg13[%c0_547, %c32] : memref<2x400xf32, #tpu.memory_space<vmem>>, vector<2x16xf32>
    tpu.vector_store %arg13[%c0_547, %c32], %924 {strides = array<i32>} : memref<2x400xf32, #tpu.memory_space<vmem>>, vector<2x16xf32>,
    %926 = vector.extract_strided_slice %916 {offsets = [0, 60, 0], sizes = [2, 1, 16], strides = [1, 1, 1]} : vector<2x89x16xf32> to vector<2x1x16xf32>
    %927 = vector.shape_cast %926 : vector<2x1x16xf32> to vector<2x16xf32>
    %c0_548 = arith.constant 0 : index
    %c48 = arith.constant 48 : index
    %928 = vector.load %arg13[%c0_548, %c48] : memref<2x400xf32, #tpu.memory_space<vmem>>, vector<2x16xf32>
    tpu.vector_store %arg13[%c0_548, %c48], %927 {strides = array<i32>} : memref<2x400xf32, #tpu.memory_space<vmem>>, vector<2x16xf32>,
    %929 = vector.extract_strided_slice %916 {offsets = [0, 80, 0], sizes = [2, 1, 16], strides = [1, 1, 1]} : vector<2x89x16xf32> to vector<2x1x16xf32>
    %930 = vector.shape_cast %929 : vector<2x1x16xf32> to vector<2x16xf32>
    %c0_549 = arith.constant 0 : index
    %c64 = arith.constant 64 : index
    %931 = vector.load %arg13[%c0_549, %c64] : memref<2x400xf32, #tpu.memory_space<vmem>>, vector<2x16xf32>
    tpu.vector_store %arg13[%c0_549, %c64], %930 {strides = array<i32>} : memref<2x400xf32, #tpu.memory_space<vmem>>, vector<2x16xf32>,
    %932 = vector.extract_strided_slice %916 {offsets = [0, 2, 0], sizes = [2, 1, 16], strides = [1, 1, 1]} : vector<2x89x16xf32> to vector<2x1x16xf32>
    %933 = vector.shape_cast %932 : vector<2x1x16xf32> to vector<2x16xf32>
    %c0_550 = arith.constant 0 : index
    %c80_551 = arith.constant 80 : index
    %934 = vector.load %arg13[%c0_550, %c80_551] : memref<2x400xf32, #tpu.memory_space<vmem>>, vector<2x16xf32>
    tpu.vector_store %arg13[%c0_550, %c80_551], %933 {strides = array<i32>} : memref<2x400xf32, #tpu.memory_space<vmem>>, vector<2x16xf32>,
    %935 = vector.extract_strided_slice %916 {offsets = [0, 22, 0], sizes = [2, 1, 16], strides = [1, 1, 1]} : vector<2x89x16xf32> to vector<2x1x16xf32>
    %936 = vector.shape_cast %935 : vector<2x1x16xf32> to vector<2x16xf32>
    %c0_552 = arith.constant 0 : index
    %c96 = arith.constant 96 : index
    %937 = vector.load %arg13[%c0_552, %c96] : memref<2x400xf32, #tpu.memory_space<vmem>>, vector<2x16xf32>
    tpu.vector_store %arg13[%c0_552, %c96], %936 {strides = array<i32>} : memref<2x400xf32, #tpu.memory_space<vmem>>, vector<2x16xf32>,
    %938 = vector.extract_strided_slice %916 {offsets = [0, 42, 0], sizes = [2, 1, 16], strides = [1, 1, 1]} : vector<2x89x16xf32> to vector<2x1x16xf32>
    %939 = vector.shape_cast %938 : vector<2x1x16xf32> to vector<2x16xf32>
    %c0_553 = arith.constant 0 : index
    %c112 = arith.constant 112 : index
    %940 = vector.load %arg13[%c0_553, %c112] : memref<2x400xf32, #tpu.memory_space<vmem>>, vector<2x16xf32>
    tpu.vector_store %arg13[%c0_553, %c112], %939 {strides = array<i32>} : memref<2x400xf32, #tpu.memory_space<vmem>>, vector<2x16xf32>,
    %941 = vector.extract_strided_slice %916 {offsets = [0, 62, 0], sizes = [2, 1, 16], strides = [1, 1, 1]} : vector<2x89x16xf32> to vector<2x1x16xf32>
    %942 = vector.shape_cast %941 : vector<2x1x16xf32> to vector<2x16xf32>
    %c0_554 = arith.constant 0 : index
    %c128 = arith.constant 128 : index
    %943 = vector.load %arg13[%c0_554, %c128] : memref<2x400xf32, #tpu.memory_space<vmem>>, vector<2x16xf32>
    tpu.vector_store %arg13[%c0_554, %c128], %942 {strides = array<i32>} : memref<2x400xf32, #tpu.memory_space<vmem>>, vector<2x16xf32>,
    %944 = vector.extract_strided_slice %916 {offsets = [0, 82, 0], sizes = [2, 1, 16], strides = [1, 1, 1]} : vector<2x89x16xf32> to vector<2x1x16xf32>
    %945 = vector.shape_cast %944 : vector<2x1x16xf32> to vector<2x16xf32>
    %c0_555 = arith.constant 0 : index
    %c144 = arith.constant 144 : index
    %946 = vector.load %arg13[%c0_555, %c144] : memref<2x400xf32, #tpu.memory_space<vmem>>, vector<2x16xf32>
    tpu.vector_store %arg13[%c0_555, %c144], %945 {strides = array<i32>} : memref<2x400xf32, #tpu.memory_space<vmem>>, vector<2x16xf32>,
    %947 = vector.extract_strided_slice %916 {offsets = [0, 4, 0], sizes = [2, 1, 16], strides = [1, 1, 1]} : vector<2x89x16xf32> to vector<2x1x16xf32>
    %948 = vector.shape_cast %947 : vector<2x1x16xf32> to vector<2x16xf32>
    %c0_556 = arith.constant 0 : index
    %c160 = arith.constant 160 : index
    %949 = vector.load %arg13[%c0_556, %c160] : memref<2x400xf32, #tpu.memory_space<vmem>>, vector<2x16xf32>
    tpu.vector_store %arg13[%c0_556, %c160], %948 {strides = array<i32>} : memref<2x400xf32, #tpu.memory_space<vmem>>, vector<2x16xf32>,
    %950 = vector.extract_strided_slice %916 {offsets = [0, 24, 0], sizes = [2, 1, 16], strides = [1, 1, 1]} : vector<2x89x16xf32> to vector<2x1x16xf32>
    %951 = vector.shape_cast %950 : vector<2x1x16xf32> to vector<2x16xf32>
    %c0_557 = arith.constant 0 : index
    %c176 = arith.constant 176 : index
    %952 = vector.load %arg13[%c0_557, %c176] : memref<2x400xf32, #tpu.memory_space<vmem>>, vector<2x16xf32>
    tpu.vector_store %arg13[%c0_557, %c176], %951 {strides = array<i32>} : memref<2x400xf32, #tpu.memory_space<vmem>>, vector<2x16xf32>,
    %953 = vector.extract_strided_slice %916 {offsets = [0, 44, 0], sizes = [2, 1, 16], strides = [1, 1, 1]} : vector<2x89x16xf32> to vector<2x1x16xf32>
    %954 = vector.shape_cast %953 : vector<2x1x16xf32> to vector<2x16xf32>
    %c0_558 = arith.constant 0 : index
    %c192 = arith.constant 192 : index
    %955 = vector.load %arg13[%c0_558, %c192] : memref<2x400xf32, #tpu.memory_space<vmem>>, vector<2x16xf32>
    tpu.vector_store %arg13[%c0_558, %c192], %954 {strides = array<i32>} : memref<2x400xf32, #tpu.memory_space<vmem>>, vector<2x16xf32>,
    %956 = vector.extract_strided_slice %916 {offsets = [0, 64, 0], sizes = [2, 1, 16], strides = [1, 1, 1]} : vector<2x89x16xf32> to vector<2x1x16xf32>
    %957 = vector.shape_cast %956 : vector<2x1x16xf32> to vector<2x16xf32>
    %c0_559 = arith.constant 0 : index
    %c208 = arith.constant 208 : index
    %958 = vector.load %arg13[%c0_559, %c208] : memref<2x400xf32, #tpu.memory_space<vmem>>, vector<2x16xf32>
    tpu.vector_store %arg13[%c0_559, %c208], %957 {strides = array<i32>} : memref<2x400xf32, #tpu.memory_space<vmem>>, vector<2x16xf32>,
    %959 = vector.extract_strided_slice %916 {offsets = [0, 84, 0], sizes = [2, 1, 16], strides = [1, 1, 1]} : vector<2x89x16xf32> to vector<2x1x16xf32>
    %960 = vector.shape_cast %959 : vector<2x1x16xf32> to vector<2x16xf32>
    %c0_560 = arith.constant 0 : index
    %c224 = arith.constant 224 : index
    %961 = vector.load %arg13[%c0_560, %c224] : memref<2x400xf32, #tpu.memory_space<vmem>>, vector<2x16xf32>
    tpu.vector_store %arg13[%c0_560, %c224], %960 {strides = array<i32>} : memref<2x400xf32, #tpu.memory_space<vmem>>, vector<2x16xf32>,
    %962 = vector.extract_strided_slice %916 {offsets = [0, 6, 0], sizes = [2, 1, 16], strides = [1, 1, 1]} : vector<2x89x16xf32> to vector<2x1x16xf32>
    %963 = vector.shape_cast %962 : vector<2x1x16xf32> to vector<2x16xf32>
    %c0_561 = arith.constant 0 : index
    %c240 = arith.constant 240 : index
    %964 = vector.load %arg13[%c0_561, %c240] : memref<2x400xf32, #tpu.memory_space<vmem>>, vector<2x16xf32>
    tpu.vector_store %arg13[%c0_561, %c240], %963 {strides = array<i32>} : memref<2x400xf32, #tpu.memory_space<vmem>>, vector<2x16xf32>,
    %965 = vector.extract_strided_slice %916 {offsets = [0, 26, 0], sizes = [2, 1, 16], strides = [1, 1, 1]} : vector<2x89x16xf32> to vector<2x1x16xf32>
    %966 = vector.shape_cast %965 : vector<2x1x16xf32> to vector<2x16xf32>
    %c0_562 = arith.constant 0 : index
    %c256 = arith.constant 256 : index
    %967 = vector.load %arg13[%c0_562, %c256] : memref<2x400xf32, #tpu.memory_space<vmem>>, vector<2x16xf32>
    tpu.vector_store %arg13[%c0_562, %c256], %966 {strides = array<i32>} : memref<2x400xf32, #tpu.memory_space<vmem>>, vector<2x16xf32>,
    %968 = vector.extract_strided_slice %916 {offsets = [0, 46, 0], sizes = [2, 1, 16], strides = [1, 1, 1]} : vector<2x89x16xf32> to vector<2x1x16xf32>
    %969 = vector.shape_cast %968 : vector<2x1x16xf32> to vector<2x16xf32>
    %c0_563 = arith.constant 0 : index
    %c272 = arith.constant 272 : index
    %970 = vector.load %arg13[%c0_563, %c272] : memref<2x400xf32, #tpu.memory_space<vmem>>, vector<2x16xf32>
    tpu.vector_store %arg13[%c0_563, %c272], %969 {strides = array<i32>} : memref<2x400xf32, #tpu.memory_space<vmem>>, vector<2x16xf32>,
    %971 = vector.extract_strided_slice %916 {offsets = [0, 66, 0], sizes = [2, 1, 16], strides = [1, 1, 1]} : vector<2x89x16xf32> to vector<2x1x16xf32>
    %972 = vector.shape_cast %971 : vector<2x1x16xf32> to vector<2x16xf32>
    %c0_564 = arith.constant 0 : index
    %c288 = arith.constant 288 : index
    %973 = vector.load %arg13[%c0_564, %c288] : memref<2x400xf32, #tpu.memory_space<vmem>>, vector<2x16xf32>
    tpu.vector_store %arg13[%c0_564, %c288], %972 {strides = array<i32>} : memref<2x400xf32, #tpu.memory_space<vmem>>, vector<2x16xf32>,
    %974 = vector.extract_strided_slice %916 {offsets = [0, 86, 0], sizes = [2, 1, 16], strides = [1, 1, 1]} : vector<2x89x16xf32> to vector<2x1x16xf32>
    %975 = vector.shape_cast %974 : vector<2x1x16xf32> to vector<2x16xf32>
    %c0_565 = arith.constant 0 : index
    %c304 = arith.constant 304 : index
    %976 = vector.load %arg13[%c0_565, %c304] : memref<2x400xf32, #tpu.memory_space<vmem>>, vector<2x16xf32>
    tpu.vector_store %arg13[%c0_565, %c304], %975 {strides = array<i32>} : memref<2x400xf32, #tpu.memory_space<vmem>>, vector<2x16xf32>,
    %977 = vector.extract_strided_slice %916 {offsets = [0, 8, 0], sizes = [2, 1, 16], strides = [1, 1, 1]} : vector<2x89x16xf32> to vector<2x1x16xf32>
    %978 = vector.shape_cast %977 : vector<2x1x16xf32> to vector<2x16xf32>
    %c0_566 = arith.constant 0 : index
    %c320 = arith.constant 320 : index
    %979 = vector.load %arg13[%c0_566, %c320] : memref<2x400xf32, #tpu.memory_space<vmem>>, vector<2x16xf32>
    tpu.vector_store %arg13[%c0_566, %c320], %978 {strides = array<i32>} : memref<2x400xf32, #tpu.memory_space<vmem>>, vector<2x16xf32>,
    %980 = vector.extract_strided_slice %916 {offsets = [0, 28, 0], sizes = [2, 1, 16], strides = [1, 1, 1]} : vector<2x89x16xf32> to vector<2x1x16xf32>
    %981 = vector.shape_cast %980 : vector<2x1x16xf32> to vector<2x16xf32>
    %c0_567 = arith.constant 0 : index
    %c336 = arith.constant 336 : index
    %982 = vector.load %arg13[%c0_567, %c336] : memref<2x400xf32, #tpu.memory_space<vmem>>, vector<2x16xf32>
    tpu.vector_store %arg13[%c0_567, %c336], %981 {strides = array<i32>} : memref<2x400xf32, #tpu.memory_space<vmem>>, vector<2x16xf32>,
    %983 = vector.extract_strided_slice %916 {offsets = [0, 48, 0], sizes = [2, 1, 16], strides = [1, 1, 1]} : vector<2x89x16xf32> to vector<2x1x16xf32>
    %984 = vector.shape_cast %983 : vector<2x1x16xf32> to vector<2x16xf32>
    %c0_568 = arith.constant 0 : index
    %c352 = arith.constant 352 : index
    %985 = vector.load %arg13[%c0_568, %c352] : memref<2x400xf32, #tpu.memory_space<vmem>>, vector<2x16xf32>
    tpu.vector_store %arg13[%c0_568, %c352], %984 {strides = array<i32>} : memref<2x400xf32, #tpu.memory_space<vmem>>, vector<2x16xf32>,
    %986 = vector.extract_strided_slice %916 {offsets = [0, 68, 0], sizes = [2, 1, 16], strides = [1, 1, 1]} : vector<2x89x16xf32> to vector<2x1x16xf32>
    %987 = vector.shape_cast %986 : vector<2x1x16xf32> to vector<2x16xf32>
    %c0_569 = arith.constant 0 : index
    %c368 = arith.constant 368 : index
    %988 = vector.load %arg13[%c0_569, %c368] : memref<2x400xf32, #tpu.memory_space<vmem>>, vector<2x16xf32>
    tpu.vector_store %arg13[%c0_569, %c368], %987 {strides = array<i32>} : memref<2x400xf32, #tpu.memory_space<vmem>>, vector<2x16xf32>,
    %989 = vector.extract_strided_slice %916 {offsets = [0, 88, 0], sizes = [2, 1, 16], strides = [1, 1, 1]} : vector<2x89x16xf32> to vector<2x1x16xf32>
    %990 = vector.shape_cast %989 : vector<2x1x16xf32> to vector<2x16xf32>
    %c0_570 = arith.constant 0 : index
    %c384 = arith.constant 384 : index
    %991 = vector.load %arg13[%c0_570, %c384] : memref<2x400xf32, #tpu.memory_space<vmem>>, vector<2x16xf32>
    tpu.vector_store %arg13[%c0_570, %c384], %990 {strides = array<i32>} : memref<2x400xf32, #tpu.memory_space<vmem>>, vector<2x16xf32>,
    %c0_571 = arith.constant 0 : index
    %c0_572 = arith.constant 0 : index
    %992 = vector.load %arg13[%c0_571, %c0_572] : memref<2x400xf32, #tpu.memory_space<vmem>>, vector<2x400xf32>
    %c0_573 = arith.constant 0 : index
    %c0_574 = arith.constant 0 : index
    %993 = vector.load %arg4[%c0_573, %c0_574] : memref<1x400xf32, #tpu.memory_space<vmem>>, vector<1x400xf32>
    %994 = vector.broadcast %993 : vector<1x400xf32> to vector<2x400xf32>
    %995 = arith.addf %992, %994 : vector<2x400xf32>
    %cst_575 = arith.constant 0.000000e+00 : f32
    %996 = vector.broadcast %cst_575 : f32 to vector<2x400xf32>
    %997 = arith.maximumf %995, %996 : vector<2x400xf32>
    %c0_576 = arith.constant 0 : index
    %c0_577 = arith.constant 0 : index
    %998 = vector.load %arg5[%c0_576, %c0_577] : memref<400x120xf32, #tpu.memory_space<vmem>>, vector<400x120xf32>
    %cst_578 = arith.constant dense<0.000000e+00> : vector<2x120xf32>
    %999 = tpu.matmul %997, %998, %cst_578 {dimension_numbers = #tpu.dot_dimension_numbers<[1], [0], [0], [1], [0, 0, 1, 1], [], []>} : vector<2x400xf32>, vector<400x120xf32>, vector<2x120xf32> -> vector<2x120xf32>
    %c0_579 = arith.constant 0 : index
    %c0_580 = arith.constant 0 : index
    %1000 = vector.load %arg6[%c0_579, %c0_580] : memref<1x120xf32, #tpu.memory_space<vmem>>, vector<1x120xf32>
    %1001 = vector.broadcast %1000 : vector<1x120xf32> to vector<2x120xf32>
    %1002 = arith.addf %999, %1001 : vector<2x120xf32>
    %cst_581 = arith.constant 0.000000e+00 : f32
    %1003 = vector.broadcast %cst_581 : f32 to vector<2x120xf32>
    %1004 = arith.maximumf %1002, %1003 : vector<2x120xf32>
    %c0_582 = arith.constant 0 : index
    %c0_583 = arith.constant 0 : index
    %1005 = vector.load %arg7[%c0_582, %c0_583] : memref<120x84xf32, #tpu.memory_space<vmem>>, vector<120x84xf32>
    %cst_584 = arith.constant dense<0.000000e+00> : vector<2x84xf32>
    %1006 = tpu.matmul %1004, %1005, %cst_584 {dimension_numbers = #tpu.dot_dimension_numbers<[1], [0], [0], [1], [0, 0, 1, 1], [], []>} : vector<2x120xf32>, vector<120x84xf32>, vector<2x84xf32> -> vector<2x84xf32>
    %c0_585 = arith.constant 0 : index
    %c0_586 = arith.constant 0 : index
    %1007 = vector.load %arg8[%c0_585, %c0_586] : memref<1x84xf32, #tpu.memory_space<vmem>>, vector<1x84xf32>
    %1008 = vector.broadcast %1007 : vector<1x84xf32> to vector<2x84xf32>
    %1009 = arith.addf %1006, %1008 : vector<2x84xf32>
    %cst_587 = arith.constant 0.000000e+00 : f32
    %1010 = vector.broadcast %cst_587 : f32 to vector<2x84xf32>
    %1011 = arith.maximumf %1009, %1010 : vector<2x84xf32>
    %c0_588 = arith.constant 0 : index
    %c0_589 = arith.constant 0 : index
    %1012 = vector.load %arg9[%c0_588, %c0_589] : memref<84x10xf32, #tpu.memory_space<vmem>>, vector<84x10xf32>
    %cst_590 = arith.constant dense<0.000000e+00> : vector<2x10xf32>
    %1013 = tpu.matmul %1011, %1012, %cst_590 {dimension_numbers = #tpu.dot_dimension_numbers<[1], [0], [0], [1], [0, 0, 1, 1], [], []>} : vector<2x84xf32>, vector<84x10xf32>, vector<2x10xf32> -> vector<2x10xf32>
    %c0_591 = arith.constant 0 : index
    %c0_592 = arith.constant 0 : index
    %1014 = vector.load %arg10[%c0_591, %c0_592] : memref<1x10xf32, #tpu.memory_space<vmem>>, vector<1x10xf32>
    %1015 = vector.broadcast %1014 : vector<1x10xf32> to vector<2x10xf32>
    %1016 = arith.addf %1013, %1015 : vector<2x10xf32>
    %c0_593 = arith.constant 0 : index
    %c0_594 = arith.constant 0 : index
    %1017 = vector.load %arg11[%c0_593, %c0_594] : memref<2x10xf32, #tpu.memory_space<vmem>>, vector<2x10xf32>
    tpu.vector_store %arg11[%c0_593, %c0_594], %1016 {strides = array<i32>} : memref<2x10xf32, #tpu.memory_space<vmem>>, vector<2x10xf32>,
    return
  }
}

</mosaic_0001>

<llo_original>
// kernel: net_forward.1
$region0: #{net_forward.1}
  #allocation0 [shape = 'u32[]', space=smem, size = 0x4, offset = 0x4, fixed_abs, tag = 'smem constant byte address 0x4 - core index']
  #allocation1 [shape = 'u32[144,128]{1,0:T(1,128)}', space=vmem, size = 0x12000, scoped, tag = 'internal scratch']
  #allocation2 [shape = 'f32[2,100,150]{2,1,0:T(8,128)}', space=vmem, size = 0x34000, scoped, tag = 'scratch operand']
  #allocation3 [shape = 'f32[2,400]{1,0:T(2,128)}', space=vmem, size = 0x1000, scoped, tag = 'scratch operand']
  %s0 = inlined_call_operand.vmem [shape: f32[4,2,16,96], index: 0, kind: input, shape index: {}]
  %s1 = inlined_call_operand.vmem [shape: f32[25,84], index: 1, kind: input, shape index: {}]
  %s2 = inlined_call_operand.vmem [shape: f32[1,84], index: 2, kind: input, shape index: {}]
  %s3 = inlined_call_operand.vmem [shape: f32[150,16], index: 3, kind: input, shape index: {}]
  %s4 = inlined_call_operand.vmem [shape: f32[1,400], index: 4, kind: input, shape index: {}]
  %s5 = inlined_call_operand.vmem [shape: f32[400,120], index: 5, kind: input, shape index: {}]
  %s6 = inlined_call_operand.vmem [shape: f32[1,120], index: 6, kind: input, shape index: {}]
  %s7 = inlined_call_operand.vmem [shape: f32[120,84], index: 7, kind: input, shape index: {}]
  %s8 = inlined_call_operand.vmem [shape: f32[1,84], index: 8, kind: input, shape index: {}]
  %s9 = inlined_call_operand.vmem [shape: f32[84,10], index: 9, kind: input, shape index: {}]
  %s10 = inlined_call_operand.vmem [shape: f32[1,10], index: 10, kind: input, shape index: {}]
  %s11 = inlined_call_operand.hbm [shape: f32[2,10], index: 11, kind: output, shape index: {}]
  %s12 = sld [smem:[#allocation0]]
  $region54: #{net_forward.1} parent=0
    _
  %s14 = ssub.s32 1, %s12
  %s15 = scalar_select 0, %s14, %s12
  $region1: #{net_forward.1} parent=0
    #allocation4 [shape = 'u8[1024]{0}', space=vmem, size = 0x400, scoped, tag = 'output window, operand 0, single buffered']
    #allocation5 [shape = 's32[1]{0}', space=sflag, size = 0x4, scoped, tag = 'scoped memory for net_forward.1']
    %16 = vsyncpa [#allocation5], 0
    // Predicated region
    $region2: #{net_forward.1} parent=1 // pred_check
      _
    $region3: #{net_forward.1} parent=1 // pred_check_branch
      %18 = sbr.rel (0) target = $region5
    $region4: #{net_forward.1} parent=1 // pred_region
      _
    $region5: #{net_forward.1} parent=1 // pred_fallthru
      _
    // Predicated region
    $region6: #{net_forward.1} parent=1 // pred_check
      _
    $region7: #{net_forward.1} parent=1 // pred_check_branch
      %20 = sbr.rel (0) target = $region9
    $region8: #{net_forward.1} parent=1 // pred_region
      _
    $region9: #{net_forward.1} parent=1 // pred_fallthru
      _
    // Predicated region
    $region10: #{net_forward.1} parent=1 // pred_check
      _
    $region11: #{net_forward.1} parent=1 // pred_check_branch
      %22 = sbr.rel (0) target = $region13
    $region12: #{net_forward.1} parent=1 // pred_region
      _
    $region13: #{net_forward.1} parent=1 // pred_fallthru
      _
    // Predicated region
    $region14: #{net_forward.1} parent=1 // pred_check
      _
    $region15: #{net_forward.1} parent=1 // pred_check_branch
      %24 = sbr.rel (0) target = $region17
    $region16: #{net_forward.1} parent=1 // pred_region
      _
    $region17: #{net_forward.1} parent=1 // pred_fallthru
      _
    // Predicated region
    $region18: #{net_forward.1} parent=1 // pred_check
      _
    $region19: #{net_forward.1} parent=1 // pred_check_branch
      %26 = sbr.rel (0) target = $region21
    $region20: #{net_forward.1} parent=1 // pred_region
      _
    $region21: #{net_forward.1} parent=1 // pred_fallthru
      _
    // Predicated region
    $region22: #{net_forward.1} parent=1 // pred_check
      _
    $region23: #{net_forward.1} parent=1 // pred_check_branch
      %28 = sbr.rel (0) target = $region25
    $region24: #{net_forward.1} parent=1 // pred_region
      _
    $region25: #{net_forward.1} parent=1 // pred_fallthru
      _
    // Predicated region
    $region26: #{net_forward.1} parent=1 // pred_check
      _
    $region27: #{net_forward.1} parent=1 // pred_check_branch
      %30 = sbr.rel (0) target = $region29
    $region28: #{net_forward.1} parent=1 // pred_region
      _
    $region29: #{net_forward.1} parent=1 // pred_fallthru
      _
    // Predicated region
    $region30: #{net_forward.1} parent=1 // pred_check
      _
    $region31: #{net_forward.1} parent=1 // pred_check_branch
      %32 = sbr.rel (0) target = $region33
    $region32: #{net_forward.1} parent=1 // pred_region
      _
    $region33: #{net_forward.1} parent=1 // pred_fallthru
      _
    // Predicated region
    $region34: #{net_forward.1} parent=1 // pred_check
      _
    $region35: #{net_forward.1} parent=1 // pred_check_branch
      %34 = sbr.rel (0) target = $region37
    $region36: #{net_forward.1} parent=1 // pred_region
      _
    $region37: #{net_forward.1} parent=1 // pred_fallthru
      _
    // Predicated region
    $region38: #{net_forward.1} parent=1 // pred_check
      _
    $region39: #{net_forward.1} parent=1 // pred_check_branch
      %36 = sbr.rel (0) target = $region41
    $region40: #{net_forward.1} parent=1 // pred_region
      _
    $region41: #{net_forward.1} parent=1 // pred_fallthru
      _
    // Predicated region
    $region42: #{net_forward.1} parent=1 // pred_check
      _
    $region43: #{net_forward.1} parent=1 // pred_check_branch
      %38 = sbr.rel (0) target = $region45
    $region44: #{net_forward.1} parent=1 // pred_region
      _
    $region45: #{net_forward.1} parent=1 // pred_fallthru
      _
    %v39 = vld [vmem:[%s1] sm:$0xff]
    %v40 = vld [vmem:[%s1 + $0x8] sm:$0xff]
    %v41 = vld [vmem:[%s1 + $0x10] sm:$0xff]
    %v42 = vld [vmem:[%s1 + $0x18] sm:$0x1]
    %v43 = vld [vmem:[%s0] sm:$0xff]
    %v44 = vld [vmem:[%s0 + $0x8] sm:$0x3f]
    %v45 = vld [vmem:[%s0 + $0x10] sm:$0xff]
    %v46 = vld [vmem:[%s0 + $0x18] sm:$0x3f]
    %v47 = vlaneseq
    %v48 = vshrl.u32 %v47, 7
    %v49 = vsub.s32 0, %v48
    %v50 = vrot.slane %v39, %v49
    %v51 = vmul.f32 %v43, %v50
    %v52 = vmul.f32 %v44, %v50
    %v53 = vmul.f32 %v45, %v50
    %v54 = vmul.f32 %v46, %v50
    %s55 = scalar_lea.vmem %s0, 32
    %v56 = vld [vmem:[%s55] sm:$0xff]
    %v57 = vld [vmem:[%s55 + $0x8] sm:$0x3f]
    %v58 = vld [vmem:[%s55 + $0x10] sm:$0xff]
    %v59 = vld [vmem:[%s55 + $0x18] sm:$0x3f]
    %v60 = vlaneseq
    %v61 = vshrl.u32 %v60, 7
    %v62 = vsub.s32 1, %v61
    %v63 = vrot.slane %v39, %v62
    %v64 = vmul.f32 %v56, %v63
    %v65 = vmul.f32 %v57, %v63
    %v66 = vmul.f32 %v58, %v63
    %v67 = vmul.f32 %v59, %v63
    %v68 = vadd.f32 %v51, %v64
    %v69 = vadd.f32 %v52, %v65
    %v70 = vadd.f32 %v53, %v66
    %v71 = vadd.f32 %v54, %v67
    %v72 = vlaneseq
    %v73 = vshrl.u32 %v72, 7
    %v74 = vsub.s32 2, %v73
    %v75 = vrot.slane %v39, %v74
    %77 = vrot.lane.b32.xlu0 %v75, 6
    %v78 = vpop.permute.xlu0 %77
    %v80 = vmul.f32 %v43, %v78
    %v81 = vmul.f32 %v44, %v78
    %v82 = vmul.f32 %v45, %v78
    %v83 = vmul.f32 %v46, %v78
    %88 = vrot.lane.b32.xlu0 %v80, 122
    %v89 = vpop.permute.xlu0 %88
    %90 = vrot.lane.b32.xlu0 %v81, 122
    %v91 = vpop.permute.xlu0 %90
    %92 = vrot.lane.b32.xlu0 %v82, 122
    %v93 = vpop.permute.xlu0 %92
    %94 = vrot.lane.b32.xlu0 %v83, 122
    %v95 = vpop.permute.xlu0 %94
    %v100 = vadd.f32 %v68, %v89
    %v101 = vadd.f32 %v69, %v91
    %v102 = vadd.f32 %v70, %v93
    %v103 = vadd.f32 %v71, %v95
    %v104 = vlaneseq
    %v105 = vshrl.u32 %v104, 7
    %v106 = vsub.s32 3, %v105
    %v107 = vrot.slane %v39, %v106
    %109 = vrot.lane.b32.xlu0 %v107, 6
    %v110 = vpop.permute.xlu0 %109
    %v112 = vmul.f32 %v56, %v110
    %v113 = vmul.f32 %v57, %v110
    %v114 = vmul.f32 %v58, %v110
    %v115 = vmul.f32 %v59, %v110
    %120 = vrot.lane.b32.xlu0 %v112, 122
    %v121 = vpop.permute.xlu0 %120
    %122 = vrot.lane.b32.xlu0 %v113, 122
    %v123 = vpop.permute.xlu0 %122
    %124 = vrot.lane.b32.xlu0 %v114, 122
    %v125 = vpop.permute.xlu0 %124
    %126 = vrot.lane.b32.xlu0 %v115, 122
    %v127 = vpop.permute.xlu0 %126
    %v132 = vadd.f32 %v100, %v121
    %v133 = vadd.f32 %v101, %v123
    %v134 = vadd.f32 %v102, %v125
    %v135 = vadd.f32 %v103, %v127
    %v136 = vlaneseq
    %v137 = vshrl.u32 %v136, 7
    %v138 = vsub.s32 4, %v137
    %v139 = vrot.slane %v39, %v138
    %141 = vrot.lane.b32.xlu0 %v139, 12
    %v142 = vpop.permute.xlu0 %141
    %v144 = vmul.f32 %v43, %v142
    %v145 = vmul.f32 %v44, %v142
    %v146 = vmul.f32 %v45, %v142
    %v147 = vmul.f32 %v46, %v142
    %152 = vrot.lane.b32.xlu0 %v144, 116
    %v153 = vpop.permute.xlu0 %152
    %154 = vrot.lane.b32.xlu0 %v145, 116
    %v155 = vpop.permute.xlu0 %154
    %156 = vrot.lane.b32.xlu0 %v146, 116
    %v157 = vpop.permute.xlu0 %156
    %158 = vrot.lane.b32.xlu0 %v147, 116
    %v159 = vpop.permute.xlu0 %158
    %v164 = vadd.f32 %v132, %v153
    %v165 = vadd.f32 %v133, %v155
    %v166 = vadd.f32 %v134, %v157
    %v167 = vadd.f32 %v135, %v159
    %s168 = scalar_lea.vmem %s0, 64
    %v169 = vld [vmem:[%s168] sm:$0xff]
    %v170 = vld [vmem:[%s168 + $0x8] sm:$0x3f]
    %v171 = vld [vmem:[%s168 + $0x10] sm:$0xff]
    %v172 = vld [vmem:[%s168 + $0x18] sm:$0x3f]
    %v173 = vlaneseq
    %v174 = vshrl.u32 %v173, 7
    %v175 = vsub.s32 5, %v174
    %v176 = vrot.slane %v39, %v175
    %v177 = vmul.f32 %v169, %v176
    %v178 = vmul.f32 %v170, %v176
    %v179 = vmul.f32 %v171, %v176
    %v180 = vmul.f32 %v172, %v176
    %v181 = vadd.f32 %v164, %v177
    %v182 = vadd.f32 %v165, %v178
    %v183 = vadd.f32 %v166, %v179
    %v184 = vadd.f32 %v167, %v180
    %s185 = scalar_lea.vmem %s0, 96
    %v186 = vld [vmem:[%s185] sm:$0xff]
    %v187 = vld [vmem:[%s185 + $0x8] sm:$0x3f]
    %v188 = vld [vmem:[%s185 + $0x10] sm:$0xff]
    %v189 = vld [vmem:[%s185 + $0x18] sm:$0x3f]
    %v190 = vlaneseq
    %v191 = vshrl.u32 %v190, 7
    %v192 = vsub.s32 6, %v191
    %v193 = vrot.slane %v39, %v192
    %v194 = vmul.f32 %v186, %v193
    %v195 = vmul.f32 %v187, %v193
    %v196 = vmul.f32 %v188, %v193
    %v197 = vmul.f32 %v189, %v193
    %v198 = vadd.f32 %v181, %v194
    %v199 = vadd.f32 %v182, %v195
    %v200 = vadd.f32 %v183, %v196
    %v201 = vadd.f32 %v184, %v197
    %v202 = vlaneseq
    %v203 = vshrl.u32 %v202, 7
    %v204 = vsub.s32 7, %v203
    %v205 = vrot.slane %v39, %v204
    %207 = vrot.lane.b32.xlu0 %v205, 6
    %v208 = vpop.permute.xlu0 %207
    %v210 = vmul.f32 %v169, %v208
    %v211 = vmul.f32 %v170, %v208
    %v212 = vmul.f32 %v171, %v208
    %v213 = vmul.f32 %v172, %v208
    %218 = vrot.lane.b32.xlu0 %v210, 122
    %v219 = vpop.permute.xlu0 %218
    %220 = vrot.lane.b32.xlu0 %v211, 122
    %v221 = vpop.permute.xlu0 %220
    %222 = vrot.lane.b32.xlu0 %v212, 122
    %v223 = vpop.permute.xlu0 %222
    %224 = vrot.lane.b32.xlu0 %v213, 122
    %v225 = vpop.permute.xlu0 %224
    %v230 = vadd.f32 %v198, %v219
    %v231 = vadd.f32 %v199, %v221
    %v232 = vadd.f32 %v200, %v223
    %v233 = vadd.f32 %v201, %v225
    %v234 = vlaneseq
    %v235 = vshrl.u32 %v234, 7
    %v236 = vsub.s32 0, %v235
    %v237 = vrot.slane %v40, %v236
    %239 = vrot.lane.b32.xlu0 %v237, 6
    %v240 = vpop.permute.xlu0 %239
    %v242 = vmul.f32 %v186, %v240
    %v243 = vmul.f32 %v187, %v240
    %v244 = vmul.f32 %v188, %v240
    %v245 = vmul.f32 %v189, %v240
    %250 = vrot.lane.b32.xlu0 %v242, 122
    %v251 = vpop.permute.xlu0 %250
    %252 = vrot.lane.b32.xlu0 %v243, 122
    %v253 = vpop.permute.xlu0 %252
    %254 = vrot.lane.b32.xlu0 %v244, 122
    %v255 = vpop.permute.xlu0 %254
    %256 = vrot.lane.b32.xlu0 %v245, 122
    %v257 = vpop.permute.xlu0 %256
    %v262 = vadd.f32 %v230, %v251
    %v263 = vadd.f32 %v231, %v253
    %v264 = vadd.f32 %v232, %v255
    %v265 = vadd.f32 %v233, %v257
    %v266 = vlaneseq
    %v267 = vshrl.u32 %v266, 7
    %v268 = vsub.s32 1, %v267
    %v269 = vrot.slane %v40, %v268
    %271 = vrot.lane.b32.xlu0 %v269, 12
    %v272 = vpop.permute.xlu0 %271
    %v274 = vmul.f32 %v169, %v272
    %v275 = vmul.f32 %v170, %v272
    %v276 = vmul.f32 %v171, %v272
    %v277 = vmul.f32 %v172, %v272
    %282 = vrot.lane.b32.xlu0 %v274, 116
    %v283 = vpop.permute.xlu0 %282
    %284 = vrot.lane.b32.xlu0 %v275, 116
    %v285 = vpop.permute.xlu0 %284
    %286 = vrot.lane.b32.xlu0 %v276, 116
    %v287 = vpop.permute.xlu0 %286
    %288 = vrot.lane.b32.xlu0 %v277, 116
    %v289 = vpop.permute.xlu0 %288
    %v294 = vadd.f32 %v262, %v283
    %v295 = vadd.f32 %v263, %v285
    %v296 = vadd.f32 %v264, %v287
    %v297 = vadd.f32 %v265, %v289
    %v298 = vld [vmem:[%s0 + $0x1] sm:$0xff]
    %v299 = vld [vmem:[%s0 + $0x9] sm:$0x3f]
    %v300 = vld [vmem:[%s0 + $0x11] sm:$0xff]
    %v301 = vld [vmem:[%s0 + $0x19] sm:$0x3f]
    %v302 = vlaneseq
    %v303 = vshrl.u32 %v302, 7
    %v304 = vsub.s32 2, %v303
    %v305 = vrot.slane %v40, %v304
    %v306 = vmul.f32 %v298, %v305
    %v307 = vmul.f32 %v299, %v305
    %v308 = vmul.f32 %v300, %v305
    %v309 = vmul.f32 %v301, %v305
    %v310 = vadd.f32 %v294, %v306
    %v311 = vadd.f32 %v295, %v307
    %v312 = vadd.f32 %v296, %v308
    %v313 = vadd.f32 %v297, %v309
    %v314 = vld [vmem:[%s55 + $0x1] sm:$0xff]
    %v315 = vld [vmem:[%s55 + $0x9] sm:$0x3f]
    %v316 = vld [vmem:[%s55 + $0x11] sm:$0xff]
    %v317 = vld [vmem:[%s55 + $0x19] sm:$0x3f]
    %v318 = vlaneseq
    %v319 = vshrl.u32 %v318, 7
    %v320 = vsub.s32 3, %v319
    %v321 = vrot.slane %v40, %v320
    %v322 = vmul.f32 %v314, %v321
    %v323 = vmul.f32 %v315, %v321
    %v324 = vmul.f32 %v316, %v321
    %v325 = vmul.f32 %v317, %v321
    %v326 = vadd.f32 %v310, %v322
    %v327 = vadd.f32 %v311, %v323
    %v328 = vadd.f32 %v312, %v324
    %v329 = vadd.f32 %v313, %v325
    %v330 = vlaneseq
    %v331 = vshrl.u32 %v330, 7
    %v332 = vsub.s32 4, %v331
    %v333 = vrot.slane %v40, %v332
    %335 = vrot.lane.b32.xlu0 %v333, 6
    %v336 = vpop.permute.xlu0 %335
    %v338 = vmul.f32 %v298, %v336
    %v339 = vmul.f32 %v299, %v336
    %v340 = vmul.f32 %v300, %v336
    %v341 = vmul.f32 %v301, %v336
    %346 = vrot.lane.b32.xlu0 %v338, 122
    %v347 = vpop.permute.xlu0 %346
    %348 = vrot.lane.b32.xlu0 %v339, 122
    %v349 = vpop.permute.xlu0 %348
    %350 = vrot.lane.b32.xlu0 %v340, 122
    %v351 = vpop.permute.xlu0 %350
    %352 = vrot.lane.b32.xlu0 %v341, 122
    %v353 = vpop.permute.xlu0 %352
    %v358 = vadd.f32 %v326, %v347
    %v359 = vadd.f32 %v327, %v349
    %v360 = vadd.f32 %v328, %v351
    %v361 = vadd.f32 %v329, %v353
    %v362 = vlaneseq
    %v363 = vshrl.u32 %v362, 7
    %v364 = vsub.s32 5, %v363
    %v365 = vrot.slane %v40, %v364
    %367 = vrot.lane.b32.xlu0 %v365, 6
    %v368 = vpop.permute.xlu0 %367
    %v370 = vmul.f32 %v314, %v368
    %v371 = vmul.f32 %v315, %v368
    %v372 = vmul.f32 %v316, %v368
    %v373 = vmul.f32 %v317, %v368
    %378 = vrot.lane.b32.xlu0 %v370, 122
    %v379 = vpop.permute.xlu0 %378
    %380 = vrot.lane.b32.xlu0 %v371, 122
    %v381 = vpop.permute.xlu0 %380
    %382 = vrot.lane.b32.xlu0 %v372, 122
    %v383 = vpop.permute.xlu0 %382
    %384 = vrot.lane.b32.xlu0 %v373, 122
    %v385 = vpop.permute.xlu0 %384
    %v390 = vadd.f32 %v358, %v379
    %v391 = vadd.f32 %v359, %v381
    %v392 = vadd.f32 %v360, %v383
    %v393 = vadd.f32 %v361, %v385
    %v394 = vlaneseq
    %v395 = vshrl.u32 %v394, 7
    %v396 = vsub.s32 6, %v395
    %v397 = vrot.slane %v40, %v396
    %399 = vrot.lane.b32.xlu0 %v397, 12
    %v400 = vpop.permute.xlu0 %399
    %v402 = vmul.f32 %v298, %v400
    %v403 = vmul.f32 %v299, %v400
    %v404 = vmul.f32 %v300, %v400
    %v405 = vmul.f32 %v301, %v400
    %410 = vrot.lane.b32.xlu0 %v402, 116
    %v411 = vpop.permute.xlu0 %410
    %412 = vrot.lane.b32.xlu0 %v403, 116
    %v413 = vpop.permute.xlu0 %412
    %414 = vrot.lane.b32.xlu0 %v404, 116
    %v415 = vpop.permute.xlu0 %414
    %416 = vrot.lane.b32.xlu0 %v405, 116
    %v417 = vpop.permute.xlu0 %416
    %v422 = vadd.f32 %v390, %v411
    %v423 = vadd.f32 %v391, %v413
    %v424 = vadd.f32 %v392, %v415
    %v425 = vadd.f32 %v393, %v417
    %v426 = vld [vmem:[%s168 + $0x1] sm:$0xff]
    %v427 = vld [vmem:[%s168 + $0x9] sm:$0x3f]
    %v428 = vld [vmem:[%s168 + $0x11] sm:$0xff]
    %v429 = vld [vmem:[%s168 + $0x19] sm:$0x3f]
    %v430 = vlaneseq
    %v431 = vshrl.u32 %v430, 7
    %v432 = vsub.s32 7, %v431
    %v433 = vrot.slane %v40, %v432
    %v434 = vmul.f32 %v426, %v433
    %v435 = vmul.f32 %v427, %v433
    %v436 = vmul.f32 %v428, %v433
    %v437 = vmul.f32 %v429, %v433
    %v438 = vadd.f32 %v422, %v434
    %v439 = vadd.f32 %v423, %v435
    %v440 = vadd.f32 %v424, %v436
    %v441 = vadd.f32 %v425, %v437
    %v442 = vld [vmem:[%s185 + $0x1] sm:$0xff]
    %v443 = vld [vmem:[%s185 + $0x9] sm:$0x3f]
    %v444 = vld [vmem:[%s185 + $0x11] sm:$0xff]
    %v445 = vld [vmem:[%s185 + $0x19] sm:$0x3f]
    %v446 = vlaneseq
    %v447 = vshrl.u32 %v446, 7
    %v448 = vsub.s32 0, %v447
    %v449 = vrot.slane %v41, %v448
    %v450 = vmul.f32 %v442, %v449
    %v451 = vmul.f32 %v443, %v449
    %v452 = vmul.f32 %v444, %v449
    %v453 = vmul.f32 %v445, %v449
    %v454 = vadd.f32 %v438, %v450
    %v455 = vadd.f32 %v439, %v451
    %v456 = vadd.f32 %v440, %v452
    %v457 = vadd.f32 %v441, %v453
    %v458 = vlaneseq
    %v459 = vshrl.u32 %v458, 7
    %v460 = vsub.s32 1, %v459
    %v461 = vrot.slane %v41, %v460
    %463 = vrot.lane.b32.xlu0 %v461, 6
    %v464 = vpop.permute.xlu0 %463
    %v466 = vmul.f32 %v426, %v464
    %v467 = vmul.f32 %v427, %v464
    %v468 = vmul.f32 %v428, %v464
    %v469 = vmul.f32 %v429, %v464
    %474 = vrot.lane.b32.xlu0 %v466, 122
    %v475 = vpop.permute.xlu0 %474
    %476 = vrot.lane.b32.xlu0 %v467, 122
    %v477 = vpop.permute.xlu0 %476
    %478 = vrot.lane.b32.xlu0 %v468, 122
    %v479 = vpop.permute.xlu0 %478
    %480 = vrot.lane.b32.xlu0 %v469, 122
    %v481 = vpop.permute.xlu0 %480
    %v486 = vadd.f32 %v454, %v475
    %v487 = vadd.f32 %v455, %v477
    %v488 = vadd.f32 %v456, %v479
    %v489 = vadd.f32 %v457, %v481
    %v490 = vlaneseq
    %v491 = vshrl.u32 %v490, 7
    %v492 = vsub.s32 2, %v491
    %v493 = vrot.slane %v41, %v492
    %495 = vrot.lane.b32.xlu0 %v493, 6
    %v496 = vpop.permute.xlu0 %495
    %v498 = vmul.f32 %v442, %v496
    %v499 = vmul.f32 %v443, %v496
    %v500 = vmul.f32 %v444, %v496
    %v501 = vmul.f32 %v445, %v496
    %506 = vrot.lane.b32.xlu0 %v498, 122
    %v507 = vpop.permute.xlu0 %506
    %508 = vrot.lane.b32.xlu0 %v499, 122
    %v509 = vpop.permute.xlu0 %508
    %510 = vrot.lane.b32.xlu0 %v500, 122
    %v511 = vpop.permute.xlu0 %510
    %512 = vrot.lane.b32.xlu0 %v501, 122
    %v513 = vpop.permute.xlu0 %512
    %v518 = vadd.f32 %v486, %v507
    %v519 = vadd.f32 %v487, %v509
    %v520 = vadd.f32 %v488, %v511
    %v521 = vadd.f32 %v489, %v513
    %v522 = vlaneseq
    %v523 = vshrl.u32 %v522, 7
    %v524 = vsub.s32 3, %v523
    %v525 = vrot.slane %v41, %v524
    %527 = vrot.lane.b32.xlu0 %v525, 12
    %v528 = vpop.permute.xlu0 %527
    %v530 = vmul.f32 %v426, %v528
    %v531 = vmul.f32 %v427, %v528
    %v532 = vmul.f32 %v428, %v528
    %v533 = vmul.f32 %v429, %v528
    %538 = vrot.lane.b32.xlu0 %v530, 116
    %v539 = vpop.permute.xlu0 %538
    %540 = vrot.lane.b32.xlu0 %v531, 116
    %v541 = vpop.permute.xlu0 %540
    %542 = vrot.lane.b32.xlu0 %v532, 116
    %v543 = vpop.permute.xlu0 %542
    %544 = vrot.lane.b32.xlu0 %v533, 116
    %v545 = vpop.permute.xlu0 %544
    %v550 = vadd.f32 %v518, %v539
    %v551 = vadd.f32 %v519, %v541
    %v552 = vadd.f32 %v520, %v543
    %v553 = vadd.f32 %v521, %v545
    %v554 = vld [vmem:[%s0 + $0x2] sm:$0xff]
    %v555 = vld [vmem:[%s0 + $0xa] sm:$0x3f]
    %v556 = vld [vmem:[%s0 + $0x12] sm:$0xff]
    %v557 = vld [vmem:[%s0 + $0x1a] sm:$0x3f]
    %v558 = vlaneseq
    %v559 = vshrl.u32 %v558, 7
    %v560 = vsub.s32 4, %v559
    %v561 = vrot.slane %v41, %v560
    %v562 = vmul.f32 %v554, %v561
    %v563 = vmul.f32 %v555, %v561
    %v564 = vmul.f32 %v556, %v561
    %v565 = vmul.f32 %v557, %v561
    %v566 = vadd.f32 %v550, %v562
    %v567 = vadd.f32 %v551, %v563
    %v568 = vadd.f32 %v552, %v564
    %v569 = vadd.f32 %v553, %v565
    %v570 = vld [vmem:[%s55 + $0x2] sm:$0xff]
    %v571 = vld [vmem:[%s55 + $0xa] sm:$0x3f]
    %v572 = vld [vmem:[%s55 + $0x12] sm:$0xff]
    %v573 = vld [vmem:[%s55 + $0x1a] sm:$0x3f]
    %v574 = vlaneseq
    %v575 = vshrl.u32 %v574, 7
    %v576 = vsub.s32 5, %v575
    %v577 = vrot.slane %v41, %v576
    %v578 = vmul.f32 %v570, %v577
    %v579 = vmul.f32 %v571, %v577
    %v580 = vmul.f32 %v572, %v577
    %v581 = vmul.f32 %v573, %v577
    %v582 = vadd.f32 %v566, %v578
    %v583 = vadd.f32 %v567, %v579
    %v584 = vadd.f32 %v568, %v580
    %v585 = vadd.f32 %v569, %v581
    %v586 = vlaneseq
    %v587 = vshrl.u32 %v586, 7
    %v588 = vsub.s32 6, %v587
    %v589 = vrot.slane %v41, %v588
    %591 = vrot.lane.b32.xlu0 %v589, 6
    %v592 = vpop.permute.xlu0 %591
    %v594 = vmul.f32 %v554, %v592
    %v595 = vmul.f32 %v555, %v592
    %v596 = vmul.f32 %v556, %v592
    %v597 = vmul.f32 %v557, %v592
    %602 = vrot.lane.b32.xlu0 %v594, 122
    %v603 = vpop.permute.xlu0 %602
    %604 = vrot.lane.b32.xlu0 %v595, 122
    %v605 = vpop.permute.xlu0 %604
    %606 = vrot.lane.b32.xlu0 %v596, 122
    %v607 = vpop.permute.xlu0 %606
    %608 = vrot.lane.b32.xlu0 %v597, 122
    %v609 = vpop.permute.xlu0 %608
    %v614 = vadd.f32 %v582, %v603
    %v615 = vadd.f32 %v583, %v605
    %v616 = vadd.f32 %v584, %v607
    %v617 = vadd.f32 %v585, %v609
    %v618 = vlaneseq
    %v619 = vshrl.u32 %v618, 7
    %v620 = vsub.s32 7, %v619
    %v621 = vrot.slane %v41, %v620
    %623 = vrot.lane.b32.xlu0 %v621, 6
    %v624 = vpop.permute.xlu0 %623
    %v626 = vmul.f32 %v570, %v624
    %v627 = vmul.f32 %v571, %v624
    %v628 = vmul.f32 %v572, %v624
    %v629 = vmul.f32 %v573, %v624
    %634 = vrot.lane.b32.xlu0 %v626, 122
    %v635 = vpop.permute.xlu0 %634
    %636 = vrot.lane.b32.xlu0 %v627, 122
    %v637 = vpop.permute.xlu0 %636
    %638 = vrot.lane.b32.xlu0 %v628, 122
    %v639 = vpop.permute.xlu0 %638
    %640 = vrot.lane.b32.xlu0 %v629, 122
    %v641 = vpop.permute.xlu0 %640
    %v646 = vadd.f32 %v614, %v635
    %v647 = vadd.f32 %v615, %v637
    %v648 = vadd.f32 %v616, %v639
    %v649 = vadd.f32 %v617, %v641
    %v650 = vlaneseq
    %v651 = vshrl.u32 %v650, 7
    %v652 = vsub.s32 0, %v651
    %v653 = vrot.slane %v42, %v652
    %655 = vrot.lane.b32.xlu0 %v653, 12
    %v656 = vpop.permute.xlu0 %655
    %v658 = vmul.f32 %v554, %v656
    %v659 = vmul.f32 %v555, %v656
    %v660 = vmul.f32 %v556, %v656
    %v661 = vmul.f32 %v557, %v656
    %666 = vrot.lane.b32.xlu0 %v658, 116
    %v667 = vpop.permute.xlu0 %666
    %668 = vrot.lane.b32.xlu0 %v659, 116
    %v669 = vpop.permute.xlu0 %668
    %670 = vrot.lane.b32.xlu0 %v660, 116
    %v671 = vpop.permute.xlu0 %670
    %672 = vrot.lane.b32.xlu0 %v661, 116
    %v673 = vpop.permute.xlu0 %672
    %v678 = vadd.f32 %v646, %v667
    %v679 = vadd.f32 %v647, %v669
    %v680 = vadd.f32 %v648, %v671
    %v681 = vadd.f32 %v649, %v673
    %v682 = vmul.f32 %v56, %v50
    %v683 = vmul.f32 %v57, %v50
    %v684 = vmul.f32 %v58, %v50
    %v685 = vmul.f32 %v59, %v50
    %687 = vrot.lane.b32.xlu0 %v63, 6
    %v688 = vpop.permute.xlu0 %687
    %v690 = vmul.f32 %v43, %v688
    %v691 = vmul.f32 %v44, %v688
    %v692 = vmul.f32 %v45, %v688
    %v693 = vmul.f32 %v46, %v688
    %698 = vrot.lane.b32.xlu0 %v690, 122
    %v699 = vpop.permute.xlu0 %698
    %700 = vrot.lane.b32.xlu0 %v691, 122
    %v701 = vpop.permute.xlu0 %700
    %702 = vrot.lane.b32.xlu0 %v692, 122
    %v703 = vpop.permute.xlu0 %702
    %704 = vrot.lane.b32.xlu0 %v693, 122
    %v705 = vpop.permute.xlu0 %704
    %v710 = vadd.f32 %v682, %v699
    %v711 = vadd.f32 %v683, %v701
    %v712 = vadd.f32 %v684, %v703
    %v713 = vadd.f32 %v685, %v705
    %v714 = vmul.f32 %v56, %v78
    %v715 = vmul.f32 %v57, %v78
    %v716 = vmul.f32 %v58, %v78
    %v717 = vmul.f32 %v59, %v78
    %722 = vrot.lane.b32.xlu0 %v714, 122
    %v723 = vpop.permute.xlu0 %722
    %724 = vrot.lane.b32.xlu0 %v715, 122
    %v725 = vpop.permute.xlu0 %724
    %726 = vrot.lane.b32.xlu0 %v716, 122
    %v727 = vpop.permute.xlu0 %726
    %728 = vrot.lane.b32.xlu0 %v717, 122
    %v729 = vpop.permute.xlu0 %728
    %v734 = vadd.f32 %v710, %v723
    %v735 = vadd.f32 %v711, %v725
    %v736 = vadd.f32 %v712, %v727
    %v737 = vadd.f32 %v713, %v729
    %738 = vrot.lane.b32.xlu0 %v107, 12
    %v739 = vpop.permute.xlu0 %738
    %v741 = vmul.f32 %v43, %v739
    %v742 = vmul.f32 %v44, %v739
    %v743 = vmul.f32 %v45, %v739
    %v744 = vmul.f32 %v46, %v739
    %749 = vrot.lane.b32.xlu0 %v741, 116
    %v750 = vpop.permute.xlu0 %749
    %751 = vrot.lane.b32.xlu0 %v742, 116
    %v752 = vpop.permute.xlu0 %751
    %753 = vrot.lane.b32.xlu0 %v743, 116
    %v754 = vpop.permute.xlu0 %753
    %755 = vrot.lane.b32.xlu0 %v744, 116
    %v756 = vpop.permute.xlu0 %755
    %v761 = vadd.f32 %v734, %v750
    %v762 = vadd.f32 %v735, %v752
    %v763 = vadd.f32 %v736, %v754
    %v764 = vadd.f32 %v737, %v756
    %v765 = vmul.f32 %v56, %v142
    %v766 = vmul.f32 %v57, %v142
    %v767 = vmul.f32 %v58, %v142
    %v768 = vmul.f32 %v59, %v142
    %773 = vrot.lane.b32.xlu0 %v765, 116
    %v774 = vpop.permute.xlu0 %773
    %775 = vrot.lane.b32.xlu0 %v766, 116
    %v776 = vpop.permute.xlu0 %775
    %777 = vrot.lane.b32.xlu0 %v767, 116
    %v778 = vpop.permute.xlu0 %777
    %779 = vrot.lane.b32.xlu0 %v768, 116
    %v780 = vpop.permute.xlu0 %779
    %v785 = vadd.f32 %v761, %v774
    %v786 = vadd.f32 %v762, %v776
    %v787 = vadd.f32 %v763, %v778
    %v788 = vadd.f32 %v764, %v780
    %v789 = vmul.f32 %v186, %v176
    %v790 = vmul.f32 %v187, %v176
    %v791 = vmul.f32 %v188, %v176
    %v792 = vmul.f32 %v189, %v176
    %v793 = vadd.f32 %v785, %v789
    %v794 = vadd.f32 %v786, %v790
    %v795 = vadd.f32 %v787, %v791
    %v796 = vadd.f32 %v788, %v792
    %798 = vrot.lane.b32.xlu0 %v193, 6
    %v799 = vpop.permute.xlu0 %798
    %v801 = vmul.f32 %v169, %v799
    %v802 = vmul.f32 %v170, %v799
    %v803 = vmul.f32 %v171, %v799
    %v804 = vmul.f32 %v172, %v799
    %809 = vrot.lane.b32.xlu0 %v801, 122
    %v810 = vpop.permute.xlu0 %809
    %811 = vrot.lane.b32.xlu0 %v802, 122
    %v812 = vpop.permute.xlu0 %811
    %813 = vrot.lane.b32.xlu0 %v803, 122
    %v814 = vpop.permute.xlu0 %813
    %815 = vrot.lane.b32.xlu0 %v804, 122
    %v816 = vpop.permute.xlu0 %815
    %v821 = vadd.f32 %v793, %v810
    %v822 = vadd.f32 %v794, %v812
    %v823 = vadd.f32 %v795, %v814
    %v824 = vadd.f32 %v796, %v816
    %v825 = vmul.f32 %v186, %v208
    %v826 = vmul.f32 %v187, %v208
    %v827 = vmul.f32 %v188, %v208
    %v828 = vmul.f32 %v189, %v208
    %833 = vrot.lane.b32.xlu0 %v825, 122
    %v834 = vpop.permute.xlu0 %833
    %835 = vrot.lane.b32.xlu0 %v826, 122
    %v836 = vpop.permute.xlu0 %835
    %837 = vrot.lane.b32.xlu0 %v827, 122
    %v838 = vpop.permute.xlu0 %837
    %839 = vrot.lane.b32.xlu0 %v828, 122
    %v840 = vpop.permute.xlu0 %839
    %v845 = vadd.f32 %v821, %v834
    %v846 = vadd.f32 %v822, %v836
    %v847 = vadd.f32 %v823, %v838
    %v848 = vadd.f32 %v824, %v840
    %849 = vrot.lane.b32.xlu0 %v237, 12
    %v850 = vpop.permute.xlu0 %849
    %v852 = vmul.f32 %v169, %v850
    %v853 = vmul.f32 %v170, %v850
    %v854 = vmul.f32 %v171, %v850
    %v855 = vmul.f32 %v172, %v850
    %860 = vrot.lane.b32.xlu0 %v852, 116
    %v861 = vpop.permute.xlu0 %860
    %862 = vrot.lane.b32.xlu0 %v853, 116
    %v863 = vpop.permute.xlu0 %862
    %864 = vrot.lane.b32.xlu0 %v854, 116
    %v865 = vpop.permute.xlu0 %864
    %866 = vrot.lane.b32.xlu0 %v855, 116
    %v867 = vpop.permute.xlu0 %866
    %v872 = vadd.f32 %v845, %v861
    %v873 = vadd.f32 %v846, %v863
    %v874 = vadd.f32 %v847, %v865
    %v875 = vadd.f32 %v848, %v867
    %v876 = vmul.f32 %v186, %v272
    %v877 = vmul.f32 %v187, %v272
    %v878 = vmul.f32 %v188, %v272
    %v879 = vmul.f32 %v189, %v272
    %884 = vrot.lane.b32.xlu0 %v876, 116
    %v885 = vpop.permute.xlu0 %884
    %886 = vrot.lane.b32.xlu0 %v877, 116
    %v887 = vpop.permute.xlu0 %886
    %888 = vrot.lane.b32.xlu0 %v878, 116
    %v889 = vpop.permute.xlu0 %888
    %890 = vrot.lane.b32.xlu0 %v879, 116
    %v891 = vpop.permute.xlu0 %890
    %v896 = vadd.f32 %v872, %v885
    %v897 = vadd.f32 %v873, %v887
    %v898 = vadd.f32 %v874, %v889
    %v899 = vadd.f32 %v875, %v891
    %v900 = vmul.f32 %v314, %v305
    %v901 = vmul.f32 %v315, %v305
    %v902 = vmul.f32 %v316, %v305
    %v903 = vmul.f32 %v317, %v305
    %v904 = vadd.f32 %v896, %v900
    %v905 = vadd.f32 %v897, %v901
    %v906 = vadd.f32 %v898, %v902
    %v907 = vadd.f32 %v899, %v903
    %909 = vrot.lane.b32.xlu0 %v321, 6
    %v910 = vpop.permute.xlu0 %909
    %v912 = vmul.f32 %v298, %v910
    %v913 = vmul.f32 %v299, %v910
    %v914 = vmul.f32 %v300, %v910
    %v915 = vmul.f32 %v301, %v910
    %920 = vrot.lane.b32.xlu0 %v912, 122
    %v921 = vpop.permute.xlu0 %920
    %922 = vrot.lane.b32.xlu0 %v913, 122
    %v923 = vpop.permute.xlu0 %922
    %924 = vrot.lane.b32.xlu0 %v914, 122
    %v925 = vpop.permute.xlu0 %924
    %926 = vrot.lane.b32.xlu0 %v915, 122
    %v927 = vpop.permute.xlu0 %926
    %v932 = vadd.f32 %v904, %v921
    %v933 = vadd.f32 %v905, %v923
    %v934 = vadd.f32 %v906, %v925
    %v935 = vadd.f32 %v907, %v927
    %v936 = vmul.f32 %v314, %v336
    %v937 = vmul.f32 %v315, %v336
    %v938 = vmul.f32 %v316, %v336
    %v939 = vmul.f32 %v317, %v336
    %944 = vrot.lane.b32.xlu0 %v936, 122
    %v945 = vpop.permute.xlu0 %944
    %946 = vrot.lane.b32.xlu0 %v937, 122
    %v947 = vpop.permute.xlu0 %946
    %948 = vrot.lane.b32.xlu0 %v938, 122
    %v949 = vpop.permute.xlu0 %948
    %950 = vrot.lane.b32.xlu0 %v939, 122
    %v951 = vpop.permute.xlu0 %950
    %v956 = vadd.f32 %v932, %v945
    %v957 = vadd.f32 %v933, %v947
    %v958 = vadd.f32 %v934, %v949
    %v959 = vadd.f32 %v935, %v951
    %960 = vrot.lane.b32.xlu0 %v365, 12
    %v961 = vpop.permute.xlu0 %960
    %v963 = vmul.f32 %v298, %v961
    %v964 = vmul.f32 %v299, %v961
    %v965 = vmul.f32 %v300, %v961
    %v966 = vmul.f32 %v301, %v961
    %971 = vrot.lane.b32.xlu0 %v963, 116
    %v972 = vpop.permute.xlu0 %971
    %973 = vrot.lane.b32.xlu0 %v964, 116
    %v974 = vpop.permute.xlu0 %973
    %975 = vrot.lane.b32.xlu0 %v965, 116
    %v976 = vpop.permute.xlu0 %975
    %977 = vrot.lane.b32.xlu0 %v966, 116
    %v978 = vpop.permute.xlu0 %977
    %v983 = vadd.f32 %v956, %v972
    %v984 = vadd.f32 %v957, %v974
    %v985 = vadd.f32 %v958, %v976
    %v986 = vadd.f32 %v959, %v978
    %v987 = vmul.f32 %v314, %v400
    %v988 = vmul.f32 %v315, %v400
    %v989 = vmul.f32 %v316, %v400
    %v990 = vmul.f32 %v317, %v400
    %995 = vrot.lane.b32.xlu0 %v987, 116
    %v996 = vpop.permute.xlu0 %995
    %997 = vrot.lane.b32.xlu0 %v988, 116
    %v998 = vpop.permute.xlu0 %997
    %999 = vrot.lane.b32.xlu0 %v989, 116
    %v1000 = vpop.permute.xlu0 %999
    %1001 = vrot.lane.b32.xlu0 %v990, 116
    %v1002 = vpop.permute.xlu0 %1001
    %v1007 = vadd.f32 %v983, %v996
    %v1008 = vadd.f32 %v984, %v998
    %v1009 = vadd.f32 %v985, %v1000
    %v1010 = vadd.f32 %v986, %v1002
    %v1011 = vmul.f32 %v442, %v433
    %v1012 = vmul.f32 %v443, %v433
    %v1013 = vmul.f32 %v444, %v433
    %v1014 = vmul.f32 %v445, %v433
    %v1015 = vadd.f32 %v1007, %v1011
    %v1016 = vadd.f32 %v1008, %v1012
    %v1017 = vadd.f32 %v1009, %v1013
    %v1018 = vadd.f32 %v1010, %v1014
    %1020 = vrot.lane.b32.xlu0 %v449, 6
    %v1021 = vpop.permute.xlu0 %1020
    %v1023 = vmul.f32 %v426, %v1021
    %v1024 = vmul.f32 %v427, %v1021
    %v1025 = vmul.f32 %v428, %v1021
    %v1026 = vmul.f32 %v429, %v1021
    %1031 = vrot.lane.b32.xlu0 %v1023, 122
    %v1032 = vpop.permute.xlu0 %1031
    %1033 = vrot.lane.b32.xlu0 %v1024, 122
    %v1034 = vpop.permute.xlu0 %1033
    %1035 = vrot.lane.b32.xlu0 %v1025, 122
    %v1036 = vpop.permute.xlu0 %1035
    %1037 = vrot.lane.b32.xlu0 %v1026, 122
    %v1038 = vpop.permute.xlu0 %1037
    %v1043 = vadd.f32 %v1015, %v1032
    %v1044 = vadd.f32 %v1016, %v1034
    %v1045 = vadd.f32 %v1017, %v1036
    %v1046 = vadd.f32 %v1018, %v1038
    %v1047 = vmul.f32 %v442, %v464
    %v1048 = vmul.f32 %v443, %v464
    %v1049 = vmul.f32 %v444, %v464
    %v1050 = vmul.f32 %v445, %v464
    %1055 = vrot.lane.b32.xlu0 %v1047, 122
    %v1056 = vpop.permute.xlu0 %1055
    %1057 = vrot.lane.b32.xlu0 %v1048, 122
    %v1058 = vpop.permute.xlu0 %1057
    %1059 = vrot.lane.b32.xlu0 %v1049, 122
    %v1060 = vpop.permute.xlu0 %1059
    %1061 = vrot.lane.b32.xlu0 %v1050, 122
    %v1062 = vpop.permute.xlu0 %1061
    %v1067 = vadd.f32 %v1043, %v1056
    %v1068 = vadd.f32 %v1044, %v1058
    %v1069 = vadd.f32 %v1045, %v1060
    %v1070 = vadd.f32 %v1046, %v1062
    %1071 = vrot.lane.b32.xlu0 %v493, 12
    %v1072 = vpop.permute.xlu0 %1071
    %v1074 = vmul.f32 %v426, %v1072
    %v1075 = vmul.f32 %v427, %v1072
    %v1076 = vmul.f32 %v428, %v1072
    %v1077 = vmul.f32 %v429, %v1072
    %1082 = vrot.lane.b32.xlu0 %v1074, 116
    %v1083 = vpop.permute.xlu0 %1082
    %1084 = vrot.lane.b32.xlu0 %v1075, 116
    %v1085 = vpop.permute.xlu0 %1084
    %1086 = vrot.lane.b32.xlu0 %v1076, 116
    %v1087 = vpop.permute.xlu0 %1086
    %1088 = vrot.lane.b32.xlu0 %v1077, 116
    %v1089 = vpop.permute.xlu0 %1088
    %v1094 = vadd.f32 %v1067, %v1083
    %v1095 = vadd.f32 %v1068, %v1085
    %v1096 = vadd.f32 %v1069, %v1087
    %v1097 = vadd.f32 %v1070, %v1089
    %v1098 = vmul.f32 %v442, %v528
    %v1099 = vmul.f32 %v443, %v528
    %v1100 = vmul.f32 %v444, %v528
    %v1101 = vmul.f32 %v445, %v528
    %1106 = vrot.lane.b32.xlu0 %v1098, 116
    %v1107 = vpop.permute.xlu0 %1106
    %1108 = vrot.lane.b32.xlu0 %v1099, 116
    %v1109 = vpop.permute.xlu0 %1108
    %1110 = vrot.lane.b32.xlu0 %v1100, 116
    %v1111 = vpop.permute.xlu0 %1110
    %1112 = vrot.lane.b32.xlu0 %v1101, 116
    %v1113 = vpop.permute.xlu0 %1112
    %v1118 = vadd.f32 %v1094, %v1107
    %v1119 = vadd.f32 %v1095, %v1109
    %v1120 = vadd.f32 %v1096, %v1111
    %v1121 = vadd.f32 %v1097, %v1113
    %v1122 = vmul.f32 %v570, %v561
    %v1123 = vmul.f32 %v571, %v561
    %v1124 = vmul.f32 %v572, %v561
    %v1125 = vmul.f32 %v573, %v561
    %v1126 = vadd.f32 %v1118, %v1122
    %v1127 = vadd.f32 %v1119, %v1123
    %v1128 = vadd.f32 %v1120, %v1124
    %v1129 = vadd.f32 %v1121, %v1125
    %1131 = vrot.lane.b32.xlu0 %v577, 6
    %v1132 = vpop.permute.xlu0 %1131
    %v1134 = vmul.f32 %v554, %v1132
    %v1135 = vmul.f32 %v555, %v1132
    %v1136 = vmul.f32 %v556, %v1132
    %v1137 = vmul.f32 %v557, %v1132
    %1142 = vrot.lane.b32.xlu0 %v1134, 122
    %v1143 = vpop.permute.xlu0 %1142
    %1144 = vrot.lane.b32.xlu0 %v1135, 122
    %v1145 = vpop.permute.xlu0 %1144
    %1146 = vrot.lane.b32.xlu0 %v1136, 122
    %v1147 = vpop.permute.xlu0 %1146
    %1148 = vrot.lane.b32.xlu0 %v1137, 122
    %v1149 = vpop.permute.xlu0 %1148
    %v1154 = vadd.f32 %v1126, %v1143
    %v1155 = vadd.f32 %v1127, %v1145
    %v1156 = vadd.f32 %v1128, %v1147
    %v1157 = vadd.f32 %v1129, %v1149
    %v1158 = vmul.f32 %v570, %v592
    %v1159 = vmul.f32 %v571, %v592
    %v1160 = vmul.f32 %v572, %v592
    %v1161 = vmul.f32 %v573, %v592
    %1166 = vrot.lane.b32.xlu0 %v1158, 122
    %v1167 = vpop.permute.xlu0 %1166
    %1168 = vrot.lane.b32.xlu0 %v1159, 122
    %v1169 = vpop.permute.xlu0 %1168
    %1170 = vrot.lane.b32.xlu0 %v1160, 122
    %v1171 = vpop.permute.xlu0 %1170
    %1172 = vrot.lane.b32.xlu0 %v1161, 122
    %v1173 = vpop.permute.xlu0 %1172
    %v1178 = vadd.f32 %v1154, %v1167
    %v1179 = vadd.f32 %v1155, %v1169
    %v1180 = vadd.f32 %v1156, %v1171
    %v1181 = vadd.f32 %v1157, %v1173
    %1182 = vrot.lane.b32.xlu0 %v621, 12
    %v1183 = vpop.permute.xlu0 %1182
    %v1185 = vmul.f32 %v554, %v1183
    %v1186 = vmul.f32 %v555, %v1183
    %v1187 = vmul.f32 %v556, %v1183
    %v1188 = vmul.f32 %v557, %v1183
    %1193 = vrot.lane.b32.xlu0 %v1185, 116
    %v1194 = vpop.permute.xlu0 %1193
    %1195 = vrot.lane.b32.xlu0 %v1186, 116
    %v1196 = vpop.permute.xlu0 %1195
    %1197 = vrot.lane.b32.xlu0 %v1187, 116
    %v1198 = vpop.permute.xlu0 %1197
    %1199 = vrot.lane.b32.xlu0 %v1188, 116
    %v1200 = vpop.permute.xlu0 %1199
    %v1205 = vadd.f32 %v1178, %v1194
    %v1206 = vadd.f32 %v1179, %v1196
    %v1207 = vadd.f32 %v1180, %v1198
    %v1208 = vadd.f32 %v1181, %v1200
    %v1209 = vmul.f32 %v570, %v656
    %v1210 = vmul.f32 %v571, %v656
    %v1211 = vmul.f32 %v572, %v656
    %v1212 = vmul.f32 %v573, %v656
    %1217 = vrot.lane.b32.xlu0 %v1209, 116
    %v1218 = vpop.permute.xlu0 %1217
    %1219 = vrot.lane.b32.xlu0 %v1210, 116
    %v1220 = vpop.permute.xlu0 %1219
    %1221 = vrot.lane.b32.xlu0 %v1211, 116
    %v1222 = vpop.permute.xlu0 %1221
    %1223 = vrot.lane.b32.xlu0 %v1212, 116
    %v1224 = vpop.permute.xlu0 %1223
    %v1229 = vadd.f32 %v1205, %v1218
    %v1230 = vadd.f32 %v1206, %v1220
    %v1231 = vadd.f32 %v1207, %v1222
    %v1232 = vadd.f32 %v1208, %v1224
    %v1233 = vmax.f32 %v678, %v1229
    %v1234 = vmax.f32 %v679, %v1230
    %v1235 = vmax.f32 %v680, %v1231
    %v1236 = vmax.f32 %v681, %v1232
    %v1237 = vmul.f32 %v169, %v50
    %v1238 = vmul.f32 %v170, %v50
    %v1239 = vmul.f32 %v171, %v50
    %v1240 = vmul.f32 %v172, %v50
    %v1241 = vmul.f32 %v186, %v63
    %v1242 = vmul.f32 %v187, %v63
    %v1243 = vmul.f32 %v188, %v63
    %v1244 = vmul.f32 %v189, %v63
    %v1245 = vadd.f32 %v1237, %v1241
    %v1246 = vadd.f32 %v1238, %v1242
    %v1247 = vadd.f32 %v1239, %v1243
    %v1248 = vadd.f32 %v1240, %v1244
    %v1249 = vmul.f32 %v169, %v78
    %v1250 = vmul.f32 %v170, %v78
    %v1251 = vmul.f32 %v171, %v78
    %v1252 = vmul.f32 %v172, %v78
    %1257 = vrot.lane.b32.xlu0 %v1249, 122
    %v1258 = vpop.permute.xlu0 %1257
    %1259 = vrot.lane.b32.xlu0 %v1250, 122
    %v1260 = vpop.permute.xlu0 %1259
    %1261 = vrot.lane.b32.xlu0 %v1251, 122
    %v1262 = vpop.permute.xlu0 %1261
    %1263 = vrot.lane.b32.xlu0 %v1252, 122
    %v1264 = vpop.permute.xlu0 %1263
    %v1269 = vadd.f32 %v1245, %v1258
    %v1270 = vadd.f32 %v1246, %v1260
    %v1271 = vadd.f32 %v1247, %v1262
    %v1272 = vadd.f32 %v1248, %v1264
    %v1273 = vmul.f32 %v186, %v110
    %v1274 = vmul.f32 %v187, %v110
    %v1275 = vmul.f32 %v188, %v110
    %v1276 = vmul.f32 %v189, %v110
    %1281 = vrot.lane.b32.xlu0 %v1273, 122
    %v1282 = vpop.permute.xlu0 %1281
    %1283 = vrot.lane.b32.xlu0 %v1274, 122
    %v1284 = vpop.permute.xlu0 %1283
    %1285 = vrot.lane.b32.xlu0 %v1275, 122
    %v1286 = vpop.permute.xlu0 %1285
    %1287 = vrot.lane.b32.xlu0 %v1276, 122
    %v1288 = vpop.permute.xlu0 %1287
    %v1293 = vadd.f32 %v1269, %v1282
    %v1294 = vadd.f32 %v1270, %v1284
    %v1295 = vadd.f32 %v1271, %v1286
    %v1296 = vadd.f32 %v1272, %v1288
    %v1297 = vmul.f32 %v169, %v142
    %v1298 = vmul.f32 %v170, %v142
    %v1299 = vmul.f32 %v171, %v142
    %v1300 = vmul.f32 %v172, %v142
    %1305 = vrot.lane.b32.xlu0 %v1297, 116
    %v1306 = vpop.permute.xlu0 %1305
    %1307 = vrot.lane.b32.xlu0 %v1298, 116
    %v1308 = vpop.permute.xlu0 %1307
    %1309 = vrot.lane.b32.xlu0 %v1299, 116
    %v1310 = vpop.permute.xlu0 %1309
    %1311 = vrot.lane.b32.xlu0 %v1300, 116
    %v1312 = vpop.permute.xlu0 %1311
    %v1317 = vadd.f32 %v1293, %v1306
    %v1318 = vadd.f32 %v1294, %v1308
    %v1319 = vadd.f32 %v1295, %v1310
    %v1320 = vadd.f32 %v1296, %v1312
    %v1321 = vmul.f32 %v298, %v176
    %v1322 = vmul.f32 %v299, %v176
    %v1323 = vmul.f32 %v300, %v176
    %v1324 = vmul.f32 %v301, %v176
    %v1325 = vadd.f32 %v1317, %v1321
    %v1326 = vadd.f32 %v1318, %v1322
    %v1327 = vadd.f32 %v1319, %v1323
    %v1328 = vadd.f32 %v1320, %v1324
    %v1329 = vmul.f32 %v314, %v193
    %v1330 = vmul.f32 %v315, %v193
    %v1331 = vmul.f32 %v316, %v193
    %v1332 = vmul.f32 %v317, %v193
    %v1333 = vadd.f32 %v1325, %v1329
    %v1334 = vadd.f32 %v1326, %v1330
    %v1335 = vadd.f32 %v1327, %v1331
    %v1336 = vadd.f32 %v1328, %v1332
    %v1337 = vmul.f32 %v298, %v208
    %v1338 = vmul.f32 %v299, %v208
    %v1339 = vmul.f32 %v300, %v208
    %v1340 = vmul.f32 %v301, %v208
    %1345 = vrot.lane.b32.xlu0 %v1337, 122
    %v1346 = vpop.permute.xlu0 %1345
    %1347 = vrot.lane.b32.xlu0 %v1338, 122
    %v1348 = vpop.permute.xlu0 %1347
    %1349 = vrot.lane.b32.xlu0 %v1339, 122
    %v1350 = vpop.permute.xlu0 %1349
    %1351 = vrot.lane.b32.xlu0 %v1340, 122
    %v1352 = vpop.permute.xlu0 %1351
    %v1357 = vadd.f32 %v1333, %v1346
    %v1358 = vadd.f32 %v1334, %v1348
    %v1359 = vadd.f32 %v1335, %v1350
    %v1360 = vadd.f32 %v1336, %v1352
    %v1361 = vmul.f32 %v314, %v240
    %v1362 = vmul.f32 %v315, %v240
    %v1363 = vmul.f32 %v316, %v240
    %v1364 = vmul.f32 %v317, %v240
    %1369 = vrot.lane.b32.xlu0 %v1361, 122
    %v1370 = vpop.permute.xlu0 %1369
    %1371 = vrot.lane.b32.xlu0 %v1362, 122
    %v1372 = vpop.permute.xlu0 %1371
    %1373 = vrot.lane.b32.xlu0 %v1363, 122
    %v1374 = vpop.permute.xlu0 %1373
    %1375 = vrot.lane.b32.xlu0 %v1364, 122
    %v1376 = vpop.permute.xlu0 %1375
    %v1381 = vadd.f32 %v1357, %v1370
    %v1382 = vadd.f32 %v1358, %v1372
    %v1383 = vadd.f32 %v1359, %v1374
    %v1384 = vadd.f32 %v1360, %v1376
    %v1385 = vmul.f32 %v298, %v272
    %v1386 = vmul.f32 %v299, %v272
    %v1387 = vmul.f32 %v300, %v272
    %v1388 = vmul.f32 %v301, %v272
    %1393 = vrot.lane.b32.xlu0 %v1385, 116
    %v1394 = vpop.permute.xlu0 %1393
    %1395 = vrot.lane.b32.xlu0 %v1386, 116
    %v1396 = vpop.permute.xlu0 %1395
    %1397 = vrot.lane.b32.xlu0 %v1387, 116
    %v1398 = vpop.permute.xlu0 %1397
    %1399 = vrot.lane.b32.xlu0 %v1388, 116
    %v1400 = vpop.permute.xlu0 %1399
    %v1405 = vadd.f32 %v1381, %v1394
    %v1406 = vadd.f32 %v1382, %v1396
    %v1407 = vadd.f32 %v1383, %v1398
    %v1408 = vadd.f32 %v1384, %v1400
    %v1409 = vmul.f32 %v426, %v305
    %v1410 = vmul.f32 %v427, %v305
    %v1411 = vmul.f32 %v428, %v305
    %v1412 = vmul.f32 %v429, %v305
    %v1413 = vadd.f32 %v1405, %v1409
    %v1414 = vadd.f32 %v1406, %v1410
    %v1415 = vadd.f32 %v1407, %v1411
    %v1416 = vadd.f32 %v1408, %v1412
    %v1417 = vmul.f32 %v442, %v321
    %v1418 = vmul.f32 %v443, %v321
    %v1419 = vmul.f32 %v444, %v321
    %v1420 = vmul.f32 %v445, %v321
    %v1421 = vadd.f32 %v1413, %v1417
    %v1422 = vadd.f32 %v1414, %v1418
    %v1423 = vadd.f32 %v1415, %v1419
    %v1424 = vadd.f32 %v1416, %v1420
    %v1425 = vmul.f32 %v426, %v336
    %v1426 = vmul.f32 %v427, %v336
    %v1427 = vmul.f32 %v428, %v336
    %v1428 = vmul.f32 %v429, %v336
    %1433 = vrot.lane.b32.xlu0 %v1425, 122
    %v1434 = vpop.permute.xlu0 %1433
    %1435 = vrot.lane.b32.xlu0 %v1426, 122
    %v1436 = vpop.permute.xlu0 %1435
    %1437 = vrot.lane.b32.xlu0 %v1427, 122
    %v1438 = vpop.permute.xlu0 %1437
    %1439 = vrot.lane.b32.xlu0 %v1428, 122
    %v1440 = vpop.permute.xlu0 %1439
    %v1445 = vadd.f32 %v1421, %v1434
    %v1446 = vadd.f32 %v1422, %v1436
    %v1447 = vadd.f32 %v1423, %v1438
    %v1448 = vadd.f32 %v1424, %v1440
    %v1449 = vmul.f32 %v442, %v368
    %v1450 = vmul.f32 %v443, %v368
    %v1451 = vmul.f32 %v444, %v368
    %v1452 = vmul.f32 %v445, %v368
    %1457 = vrot.lane.b32.xlu0 %v1449, 122
    %v1458 = vpop.permute.xlu0 %1457
    %1459 = vrot.lane.b32.xlu0 %v1450, 122
    %v1460 = vpop.permute.xlu0 %1459
    %1461 = vrot.lane.b32.xlu0 %v1451, 122
    %v1462 = vpop.permute.xlu0 %1461
    %1463 = vrot.lane.b32.xlu0 %v1452, 122
    %v1464 = vpop.permute.xlu0 %1463
    %v1469 = vadd.f32 %v1445, %v1458
    %v1470 = vadd.f32 %v1446, %v1460
    %v1471 = vadd.f32 %v1447, %v1462
    %v1472 = vadd.f32 %v1448, %v1464
    %v1473 = vmul.f32 %v426, %v400
    %v1474 = vmul.f32 %v427, %v400
    %v1475 = vmul.f32 %v428, %v400
    %v1476 = vmul.f32 %v429, %v400
    %1481 = vrot.lane.b32.xlu0 %v1473, 116
    %v1482 = vpop.permute.xlu0 %1481
    %1483 = vrot.lane.b32.xlu0 %v1474, 116
    %v1484 = vpop.permute.xlu0 %1483
    %1485 = vrot.lane.b32.xlu0 %v1475, 116
    %v1486 = vpop.permute.xlu0 %1485
    %1487 = vrot.lane.b32.xlu0 %v1476, 116
    %v1488 = vpop.permute.xlu0 %1487
    %v1493 = vadd.f32 %v1469, %v1482
    %v1494 = vadd.f32 %v1470, %v1484
    %v1495 = vadd.f32 %v1471, %v1486
    %v1496 = vadd.f32 %v1472, %v1488
    %v1497 = vmul.f32 %v554, %v433
    %v1498 = vmul.f32 %v555, %v433
    %v1499 = vmul.f32 %v556, %v433
    %v1500 = vmul.f32 %v557, %v433
    %v1501 = vadd.f32 %v1493, %v1497
    %v1502 = vadd.f32 %v1494, %v1498
    %v1503 = vadd.f32 %v1495, %v1499
    %v1504 = vadd.f32 %v1496, %v1500
    %v1505 = vmul.f32 %v570, %v449
    %v1506 = vmul.f32 %v571, %v449
    %v1507 = vmul.f32 %v572, %v449
    %v1508 = vmul.f32 %v573, %v449
    %v1509 = vadd.f32 %v1501, %v1505
    %v1510 = vadd.f32 %v1502, %v1506
    %v1511 = vadd.f32 %v1503, %v1507
    %v1512 = vadd.f32 %v1504, %v1508
    %v1513 = vmul.f32 %v554, %v464
    %v1514 = vmul.f32 %v555, %v464
    %v1515 = vmul.f32 %v556, %v464
    %v1516 = vmul.f32 %v557, %v464
    %1521 = vrot.lane.b32.xlu0 %v1513, 122
    %v1522 = vpop.permute.xlu0 %1521
    %1523 = vrot.lane.b32.xlu0 %v1514, 122
    %v1524 = vpop.permute.xlu0 %1523
    %1525 = vrot.lane.b32.xlu0 %v1515, 122
    %v1526 = vpop.permute.xlu0 %1525
    %1527 = vrot.lane.b32.xlu0 %v1516, 122
    %v1528 = vpop.permute.xlu0 %1527
    %v1533 = vadd.f32 %v1509, %v1522
    %v1534 = vadd.f32 %v1510, %v1524
    %v1535 = vadd.f32 %v1511, %v1526
    %v1536 = vadd.f32 %v1512, %v1528
    %v1537 = vmul.f32 %v570, %v496
    %v1538 = vmul.f32 %v571, %v496
    %v1539 = vmul.f32 %v572, %v496
    %v1540 = vmul.f32 %v573, %v496
    %1545 = vrot.lane.b32.xlu0 %v1537, 122
    %v1546 = vpop.permute.xlu0 %1545
    %1547 = vrot.lane.b32.xlu0 %v1538, 122
    %v1548 = vpop.permute.xlu0 %1547
    %1549 = vrot.lane.b32.xlu0 %v1539, 122
    %v1550 = vpop.permute.xlu0 %1549
    %1551 = vrot.lane.b32.xlu0 %v1540, 122
    %v1552 = vpop.permute.xlu0 %1551
    %v1557 = vadd.f32 %v1533, %v1546
    %v1558 = vadd.f32 %v1534, %v1548
    %v1559 = vadd.f32 %v1535, %v1550
    %v1560 = vadd.f32 %v1536, %v1552
    %v1561 = vmul.f32 %v554, %v528
    %v1562 = vmul.f32 %v555, %v528
    %v1563 = vmul.f32 %v556, %v528
    %v1564 = vmul.f32 %v557, %v528
    %1569 = vrot.lane.b32.xlu0 %v1561, 116
    %v1570 = vpop.permute.xlu0 %1569
    %1571 = vrot.lane.b32.xlu0 %v1562, 116
    %v1572 = vpop.permute.xlu0 %1571
    %1573 = vrot.lane.b32.xlu0 %v1563, 116
    %v1574 = vpop.permute.xlu0 %1573
    %1575 = vrot.lane.b32.xlu0 %v1564, 116
    %v1576 = vpop.permute.xlu0 %1575
    %v1581 = vadd.f32 %v1557, %v1570
    %v1582 = vadd.f32 %v1558, %v1572
    %v1583 = vadd.f32 %v1559, %v1574
    %v1584 = vadd.f32 %v1560, %v1576
    %v1585 = vld [vmem:[%s168 + $0x2] sm:$0xff]
    %v1586 = vld [vmem:[%s168 + $0xa] sm:$0x3f]
    %v1587 = vld [vmem:[%s168 + $0x12] sm:$0xff]
    %v1588 = vld [vmem:[%s168 + $0x1a] sm:$0x3f]
    %v1589 = vmul.f32 %v1585, %v561
    %v1590 = vmul.f32 %v1586, %v561
    %v1591 = vmul.f32 %v1587, %v561
    %v1592 = vmul.f32 %v1588, %v561
    %v1593 = vadd.f32 %v1581, %v1589
    %v1594 = vadd.f32 %v1582, %v1590
    %v1595 = vadd.f32 %v1583, %v1591
    %v1596 = vadd.f32 %v1584, %v1592
    %v1597 = vld [vmem:[%s185 + $0x2] sm:$0xff]
    %v1598 = vld [vmem:[%s185 + $0xa] sm:$0x3f]
    %v1599 = vld [vmem:[%s185 + $0x12] sm:$0xff]
    %v1600 = vld [vmem:[%s185 + $0x1a] sm:$0x3f]
    %v1601 = vmul.f32 %v1597, %v577
    %v1602 = vmul.f32 %v1598, %v577
    %v1603 = vmul.f32 %v1599, %v577
    %v1604 = vmul.f32 %v1600, %v577
    %v1605 = vadd.f32 %v1593, %v1601
    %v1606 = vadd.f32 %v1594, %v1602
    %v1607 = vadd.f32 %v1595, %v1603
    %v1608 = vadd.f32 %v1596, %v1604
    %v1609 = vmul.f32 %v1585, %v592
    %v1610 = vmul.f32 %v1586, %v592
    %v1611 = vmul.f32 %v1587, %v592
    %v1612 = vmul.f32 %v1588, %v592
    %1617 = vrot.lane.b32.xlu0 %v1609, 122
    %v1618 = vpop.permute.xlu0 %1617
    %1619 = vrot.lane.b32.xlu0 %v1610, 122
    %v1620 = vpop.permute.xlu0 %1619
    %1621 = vrot.lane.b32.xlu0 %v1611, 122
    %v1622 = vpop.permute.xlu0 %1621
    %1623 = vrot.lane.b32.xlu0 %v1612, 122
    %v1624 = vpop.permute.xlu0 %1623
    %v1629 = vadd.f32 %v1605, %v1618
    %v1630 = vadd.f32 %v1606, %v1620
    %v1631 = vadd.f32 %v1607, %v1622
    %v1632 = vadd.f32 %v1608, %v1624
    %v1633 = vmul.f32 %v1597, %v624
    %v1634 = vmul.f32 %v1598, %v624
    %v1635 = vmul.f32 %v1599, %v624
    %v1636 = vmul.f32 %v1600, %v624
    %1641 = vrot.lane.b32.xlu0 %v1633, 122
    %v1642 = vpop.permute.xlu0 %1641
    %1643 = vrot.lane.b32.xlu0 %v1634, 122
    %v1644 = vpop.permute.xlu0 %1643
    %1645 = vrot.lane.b32.xlu0 %v1635, 122
    %v1646 = vpop.permute.xlu0 %1645
    %1647 = vrot.lane.b32.xlu0 %v1636, 122
    %v1648 = vpop.permute.xlu0 %1647
    %v1653 = vadd.f32 %v1629, %v1642
    %v1654 = vadd.f32 %v1630, %v1644
    %v1655 = vadd.f32 %v1631, %v1646
    %v1656 = vadd.f32 %v1632, %v1648
    %v1657 = vmul.f32 %v1585, %v656
    %v1658 = vmul.f32 %v1586, %v656
    %v1659 = vmul.f32 %v1587, %v656
    %v1660 = vmul.f32 %v1588, %v656
    %1665 = vrot.lane.b32.xlu0 %v1657, 116
    %v1666 = vpop.permute.xlu0 %1665
    %1667 = vrot.lane.b32.xlu0 %v1658, 116
    %v1668 = vpop.permute.xlu0 %1667
    %1669 = vrot.lane.b32.xlu0 %v1659, 116
    %v1670 = vpop.permute.xlu0 %1669
    %1671 = vrot.lane.b32.xlu0 %v1660, 116
    %v1672 = vpop.permute.xlu0 %1671
    %v1677 = vadd.f32 %v1653, %v1666
    %v1678 = vadd.f32 %v1654, %v1668
    %v1679 = vadd.f32 %v1655, %v1670
    %v1680 = vadd.f32 %v1656, %v1672
    %v1681 = vmax.f32 %v1233, %v1677
    %v1682 = vmax.f32 %v1234, %v1678
    %v1683 = vmax.f32 %v1235, %v1679
    %v1684 = vmax.f32 %v1236, %v1680
    %v1685 = vmul.f32 %v186, %v50
    %v1686 = vmul.f32 %v187, %v50
    %v1687 = vmul.f32 %v188, %v50
    %v1688 = vmul.f32 %v189, %v50
    %v1689 = vmul.f32 %v169, %v688
    %v1690 = vmul.f32 %v170, %v688
    %v1691 = vmul.f32 %v171, %v688
    %v1692 = vmul.f32 %v172, %v688
    %1697 = vrot.lane.b32.xlu0 %v1689, 122
    %v1698 = vpop.permute.xlu0 %1697
    %1699 = vrot.lane.b32.xlu0 %v1690, 122
    %v1700 = vpop.permute.xlu0 %1699
    %1701 = vrot.lane.b32.xlu0 %v1691, 122
    %v1702 = vpop.permute.xlu0 %1701
    %1703 = vrot.lane.b32.xlu0 %v1692, 122
    %v1704 = vpop.permute.xlu0 %1703
    %v1709 = vadd.f32 %v1685, %v1698
    %v1710 = vadd.f32 %v1686, %v1700
    %v1711 = vadd.f32 %v1687, %v1702
    %v1712 = vadd.f32 %v1688, %v1704
    %v1713 = vmul.f32 %v186, %v78
    %v1714 = vmul.f32 %v187, %v78
    %v1715 = vmul.f32 %v188, %v78
    %v1716 = vmul.f32 %v189, %v78
    %1721 = vrot.lane.b32.xlu0 %v1713, 122
    %v1722 = vpop.permute.xlu0 %1721
    %1723 = vrot.lane.b32.xlu0 %v1714, 122
    %v1724 = vpop.permute.xlu0 %1723
    %1725 = vrot.lane.b32.xlu0 %v1715, 122
    %v1726 = vpop.permute.xlu0 %1725
    %1727 = vrot.lane.b32.xlu0 %v1716, 122
    %v1728 = vpop.permute.xlu0 %1727
    %v1733 = vadd.f32 %v1709, %v1722
    %v1734 = vadd.f32 %v1710, %v1724
    %v1735 = vadd.f32 %v1711, %v1726
    %v1736 = vadd.f32 %v1712, %v1728
    %v1737 = vmul.f32 %v169, %v739
    %v1738 = vmul.f32 %v170, %v739
    %v1739 = vmul.f32 %v171, %v739
    %v1740 = vmul.f32 %v172, %v739
    %1745 = vrot.lane.b32.xlu0 %v1737, 116
    %v1746 = vpop.permute.xlu0 %1745
    %1747 = vrot.lane.b32.xlu0 %v1738, 116
    %v1748 = vpop.permute.xlu0 %1747
    %1749 = vrot.lane.b32.xlu0 %v1739, 116
    %v1750 = vpop.permute.xlu0 %1749
    %1751 = vrot.lane.b32.xlu0 %v1740, 116
    %v1752 = vpop.permute.xlu0 %1751
    %v1757 = vadd.f32 %v1733, %v1746
    %v1758 = vadd.f32 %v1734, %v1748
    %v1759 = vadd.f32 %v1735, %v1750
    %v1760 = vadd.f32 %v1736, %v1752
    %v1761 = vmul.f32 %v186, %v142
    %v1762 = vmul.f32 %v187, %v142
    %v1763 = vmul.f32 %v188, %v142
    %v1764 = vmul.f32 %v189, %v142
    %1769 = vrot.lane.b32.xlu0 %v1761, 116
    %v1770 = vpop.permute.xlu0 %1769
    %1771 = vrot.lane.b32.xlu0 %v1762, 116
    %v1772 = vpop.permute.xlu0 %1771
    %1773 = vrot.lane.b32.xlu0 %v1763, 116
    %v1774 = vpop.permute.xlu0 %1773
    %1775 = vrot.lane.b32.xlu0 %v1764, 116
    %v1776 = vpop.permute.xlu0 %1775
    %v1781 = vadd.f32 %v1757, %v1770
    %v1782 = vadd.f32 %v1758, %v1772
    %v1783 = vadd.f32 %v1759, %v1774
    %v1784 = vadd.f32 %v1760, %v1776
    %v1785 = vmul.f32 %v314, %v176
    %v1786 = vmul.f32 %v315, %v176
    %v1787 = vmul.f32 %v316, %v176
    %v1788 = vmul.f32 %v317, %v176
    %v1789 = vadd.f32 %v1781, %v1785
    %v1790 = vadd.f32 %v1782, %v1786
    %v1791 = vadd.f32 %v1783, %v1787
    %v1792 = vadd.f32 %v1784, %v1788
    %v1793 = vmul.f32 %v298, %v799
    %v1794 = vmul.f32 %v299, %v799
    %v1795 = vmul.f32 %v300, %v799
    %v1796 = vmul.f32 %v301, %v799
    %1801 = vrot.lane.b32.xlu0 %v1793, 122
    %v1802 = vpop.permute.xlu0 %1801
    %1803 = vrot.lane.b32.xlu0 %v1794, 122
    %v1804 = vpop.permute.xlu0 %1803
    %1805 = vrot.lane.b32.xlu0 %v1795, 122
    %v1806 = vpop.permute.xlu0 %1805
    %1807 = vrot.lane.b32.xlu0 %v1796, 122
    %v1808 = vpop.permute.xlu0 %1807
    %v1813 = vadd.f32 %v1789, %v1802
    %v1814 = vadd.f32 %v1790, %v1804
    %v1815 = vadd.f32 %v1791, %v1806
    %v1816 = vadd.f32 %v1792, %v1808
    %v1817 = vmul.f32 %v314, %v208
    %v1818 = vmul.f32 %v315, %v208
    %v1819 = vmul.f32 %v316, %v208
    %v1820 = vmul.f32 %v317, %v208
    %1825 = vrot.lane.b32.xlu0 %v1817, 122
    %v1826 = vpop.permute.xlu0 %1825
    %1827 = vrot.lane.b32.xlu0 %v1818, 122
    %v1828 = vpop.permute.xlu0 %1827
    %1829 = vrot.lane.b32.xlu0 %v1819, 122
    %v1830 = vpop.permute.xlu0 %1829
    %1831 = vrot.lane.b32.xlu0 %v1820, 122
    %v1832 = vpop.permute.xlu0 %1831
    %v1837 = vadd.f32 %v1813, %v1826
    %v1838 = vadd.f32 %v1814, %v1828
    %v1839 = vadd.f32 %v1815, %v1830
    %v1840 = vadd.f32 %v1816, %v1832
    %v1841 = vmul.f32 %v298, %v850
    %v1842 = vmul.f32 %v299, %v850
    %v1843 = vmul.f32 %v300, %v850
    %v1844 = vmul.f32 %v301, %v850
    %1849 = vrot.lane.b32.xlu0 %v1841, 116
    %v1850 = vpop.permute.xlu0 %1849
    %1851 = vrot.lane.b32.xlu0 %v1842, 116
    %v1852 = vpop.permute.xlu0 %1851
    %1853 = vrot.lane.b32.xlu0 %v1843, 116
    %v1854 = vpop.permute.xlu0 %1853
    %1855 = vrot.lane.b32.xlu0 %v1844, 116
    %v1856 = vpop.permute.xlu0 %1855
    %v1861 = vadd.f32 %v1837, %v1850
    %v1862 = vadd.f32 %v1838, %v1852
    %v1863 = vadd.f32 %v1839, %v1854
    %v1864 = vadd.f32 %v1840, %v1856
    %v1865 = vmul.f32 %v314, %v272
    %v1866 = vmul.f32 %v315, %v272
    %v1867 = vmul.f32 %v316, %v272
    %v1868 = vmul.f32 %v317, %v272
    %1873 = vrot.lane.b32.xlu0 %v1865, 116
    %v1874 = vpop.permute.xlu0 %1873
    %1875 = vrot.lane.b32.xlu0 %v1866, 116
    %v1876 = vpop.permute.xlu0 %1875
    %1877 = vrot.lane.b32.xlu0 %v1867, 116
    %v1878 = vpop.permute.xlu0 %1877
    %1879 = vrot.lane.b32.xlu0 %v1868, 116
    %v1880 = vpop.permute.xlu0 %1879
    %v1885 = vadd.f32 %v1861, %v1874
    %v1886 = vadd.f32 %v1862, %v1876
    %v1887 = vadd.f32 %v1863, %v1878
    %v1888 = vadd.f32 %v1864, %v1880
    %v1889 = vmul.f32 %v442, %v305
    %v1890 = vmul.f32 %v443, %v305
    %v1891 = vmul.f32 %v444, %v305
    %v1892 = vmul.f32 %v445, %v305
    %v1893 = vadd.f32 %v1885, %v1889
    %v1894 = vadd.f32 %v1886, %v1890
    %v1895 = vadd.f32 %v1887, %v1891
    %v1896 = vadd.f32 %v1888, %v1892
    %v1897 = vmul.f32 %v426, %v910
    %v1898 = vmul.f32 %v427, %v910
    %v1899 = vmul.f32 %v428, %v910
    %v1900 = vmul.f32 %v429, %v910
    %1905 = vrot.lane.b32.xlu0 %v1897, 122
    %v1906 = vpop.permute.xlu0 %1905
    %1907 = vrot.lane.b32.xlu0 %v1898, 122
    %v1908 = vpop.permute.xlu0 %1907
    %1909 = vrot.lane.b32.xlu0 %v1899, 122
    %v1910 = vpop.permute.xlu0 %1909
    %1911 = vrot.lane.b32.xlu0 %v1900, 122
    %v1912 = vpop.permute.xlu0 %1911
    %v1917 = vadd.f32 %v1893, %v1906
    %v1918 = vadd.f32 %v1894, %v1908
    %v1919 = vadd.f32 %v1895, %v1910
    %v1920 = vadd.f32 %v1896, %v1912
    %v1921 = vmul.f32 %v442, %v336
    %v1922 = vmul.f32 %v443, %v336
    %v1923 = vmul.f32 %v444, %v336
    %v1924 = vmul.f32 %v445, %v336
    %1929 = vrot.lane.b32.xlu0 %v1921, 122
    %v1930 = vpop.permute.xlu0 %1929
    %1931 = vrot.lane.b32.xlu0 %v1922, 122
    %v1932 = vpop.permute.xlu0 %1931
    %1933 = vrot.lane.b32.xlu0 %v1923, 122
    %v1934 = vpop.permute.xlu0 %1933
    %1935 = vrot.lane.b32.xlu0 %v1924, 122
    %v1936 = vpop.permute.xlu0 %1935
    %v1941 = vadd.f32 %v1917, %v1930
    %v1942 = vadd.f32 %v1918, %v1932
    %v1943 = vadd.f32 %v1919, %v1934
    %v1944 = vadd.f32 %v1920, %v1936
    %v1945 = vmul.f32 %v426, %v961
    %v1946 = vmul.f32 %v427, %v961
    %v1947 = vmul.f32 %v428, %v961
    %v1948 = vmul.f32 %v429, %v961
    %1953 = vrot.lane.b32.xlu0 %v1945, 116
    %v1954 = vpop.permute.xlu0 %1953
    %1955 = vrot.lane.b32.xlu0 %v1946, 116
    %v1956 = vpop.permute.xlu0 %1955
    %1957 = vrot.lane.b32.xlu0 %v1947, 116
    %v1958 = vpop.permute.xlu0 %1957
    %1959 = vrot.lane.b32.xlu0 %v1948, 116
    %v1960 = vpop.permute.xlu0 %1959
    %v1965 = vadd.f32 %v1941, %v1954
    %v1966 = vadd.f32 %v1942, %v1956
    %v1967 = vadd.f32 %v1943, %v1958
    %v1968 = vadd.f32 %v1944, %v1960
    %v1969 = vmul.f32 %v442, %v400
    %v1970 = vmul.f32 %v443, %v400
    %v1971 = vmul.f32 %v444, %v400
    %v1972 = vmul.f32 %v445, %v400
    %1977 = vrot.lane.b32.xlu0 %v1969, 116
    %v1978 = vpop.permute.xlu0 %1977
    %1979 = vrot.lane.b32.xlu0 %v1970, 116
    %v1980 = vpop.permute.xlu0 %1979
    %1981 = vrot.lane.b32.xlu0 %v1971, 116
    %v1982 = vpop.permute.xlu0 %1981
    %1983 = vrot.lane.b32.xlu0 %v1972, 116
    %v1984 = vpop.permute.xlu0 %1983
    %v1989 = vadd.f32 %v1965, %v1978
    %v1990 = vadd.f32 %v1966, %v1980
    %v1991 = vadd.f32 %v1967, %v1982
    %v1992 = vadd.f32 %v1968, %v1984
    %v1993 = vmul.f32 %v570, %v433
    %v1994 = vmul.f32 %v571, %v433
    %v1995 = vmul.f32 %v572, %v433
    %v1996 = vmul.f32 %v573, %v433
    %v1997 = vadd.f32 %v1989, %v1993
    %v1998 = vadd.f32 %v1990, %v1994
    %v1999 = vadd.f32 %v1991, %v1995
    %v2000 = vadd.f32 %v1992, %v1996
    %v2001 = vmul.f32 %v554, %v1021
    %v2002 = vmul.f32 %v555, %v1021
    %v2003 = vmul.f32 %v556, %v1021
    %v2004 = vmul.f32 %v557, %v1021
    %2009 = vrot.lane.b32.xlu0 %v2001, 122
    %v2010 = vpop.permute.xlu0 %2009
    %2011 = vrot.lane.b32.xlu0 %v2002, 122
    %v2012 = vpop.permute.xlu0 %2011
    %2013 = vrot.lane.b32.xlu0 %v2003, 122
    %v2014 = vpop.permute.xlu0 %2013
    %2015 = vrot.lane.b32.xlu0 %v2004, 122
    %v2016 = vpop.permute.xlu0 %2015
    %v2021 = vadd.f32 %v1997, %v2010
    %v2022 = vadd.f32 %v1998, %v2012
    %v2023 = vadd.f32 %v1999, %v2014
    %v2024 = vadd.f32 %v2000, %v2016
    %v2025 = vmul.f32 %v570, %v464
    %v2026 = vmul.f32 %v571, %v464
    %v2027 = vmul.f32 %v572, %v464
    %v2028 = vmul.f32 %v573, %v464
    %2033 = vrot.lane.b32.xlu0 %v2025, 122
    %v2034 = vpop.permute.xlu0 %2033
    %2035 = vrot.lane.b32.xlu0 %v2026, 122
    %v2036 = vpop.permute.xlu0 %2035
    %2037 = vrot.lane.b32.xlu0 %v2027, 122
    %v2038 = vpop.permute.xlu0 %2037
    %2039 = vrot.lane.b32.xlu0 %v2028, 122
    %v2040 = vpop.permute.xlu0 %2039
    %v2045 = vadd.f32 %v2021, %v2034
    %v2046 = vadd.f32 %v2022, %v2036
    %v2047 = vadd.f32 %v2023, %v2038
    %v2048 = vadd.f32 %v2024, %v2040
    %v2049 = vmul.f32 %v554, %v1072
    %v2050 = vmul.f32 %v555, %v1072
    %v2051 = vmul.f32 %v556, %v1072
    %v2052 = vmul.f32 %v557, %v1072
    %2057 = vrot.lane.b32.xlu0 %v2049, 116
    %v2058 = vpop.permute.xlu0 %2057
    %2059 = vrot.lane.b32.xlu0 %v2050, 116
    %v2060 = vpop.permute.xlu0 %2059
    %2061 = vrot.lane.b32.xlu0 %v2051, 116
    %v2062 = vpop.permute.xlu0 %2061
    %2063 = vrot.lane.b32.xlu0 %v2052, 116
    %v2064 = vpop.permute.xlu0 %2063
    %v2069 = vadd.f32 %v2045, %v2058
    %v2070 = vadd.f32 %v2046, %v2060
    %v2071 = vadd.f32 %v2047, %v2062
    %v2072 = vadd.f32 %v2048, %v2064
    %v2073 = vmul.f32 %v570, %v528
    %v2074 = vmul.f32 %v571, %v528
    %v2075 = vmul.f32 %v572, %v528
    %v2076 = vmul.f32 %v573, %v528
    %2081 = vrot.lane.b32.xlu0 %v2073, 116
    %v2082 = vpop.permute.xlu0 %2081
    %2083 = vrot.lane.b32.xlu0 %v2074, 116
    %v2084 = vpop.permute.xlu0 %2083
    %2085 = vrot.lane.b32.xlu0 %v2075, 116
    %v2086 = vpop.permute.xlu0 %2085
    %2087 = vrot.lane.b32.xlu0 %v2076, 116
    %v2088 = vpop.permute.xlu0 %2087
    %v2093 = vadd.f32 %v2069, %v2082
    %v2094 = vadd.f32 %v2070, %v2084
    %v2095 = vadd.f32 %v2071, %v2086
    %v2096 = vadd.f32 %v2072, %v2088
    %v2097 = vmul.f32 %v1597, %v561
    %v2098 = vmul.f32 %v1598, %v561
    %v2099 = vmul.f32 %v1599, %v561
    %v2100 = vmul.f32 %v1600, %v561
    %v2101 = vadd.f32 %v2093, %v2097
    %v2102 = vadd.f32 %v2094, %v2098
    %v2103 = vadd.f32 %v2095, %v2099
    %v2104 = vadd.f32 %v2096, %v2100
    %v2105 = vmul.f32 %v1585, %v1132
    %v2106 = vmul.f32 %v1586, %v1132
    %v2107 = vmul.f32 %v1587, %v1132
    %v2108 = vmul.f32 %v1588, %v1132
    %2113 = vrot.lane.b32.xlu0 %v2105, 122
    %v2114 = vpop.permute.xlu0 %2113
    %2115 = vrot.lane.b32.xlu0 %v2106, 122
    %v2116 = vpop.permute.xlu0 %2115
    %2117 = vrot.lane.b32.xlu0 %v2107, 122
    %v2118 = vpop.permute.xlu0 %2117
    %2119 = vrot.lane.b32.xlu0 %v2108, 122
    %v2120 = vpop.permute.xlu0 %2119
    %v2125 = vadd.f32 %v2101, %v2114
    %v2126 = vadd.f32 %v2102, %v2116
    %v2127 = vadd.f32 %v2103, %v2118
    %v2128 = vadd.f32 %v2104, %v2120
    %v2129 = vmul.f32 %v1597, %v592
    %v2130 = vmul.f32 %v1598, %v592
    %v2131 = vmul.f32 %v1599, %v592
    %v2132 = vmul.f32 %v1600, %v592
    %2137 = vrot.lane.b32.xlu0 %v2129, 122
    %v2138 = vpop.permute.xlu0 %2137
    %2139 = vrot.lane.b32.xlu0 %v2130, 122
    %v2140 = vpop.permute.xlu0 %2139
    %2141 = vrot.lane.b32.xlu0 %v2131, 122
    %v2142 = vpop.permute.xlu0 %2141
    %2143 = vrot.lane.b32.xlu0 %v2132, 122
    %v2144 = vpop.permute.xlu0 %2143
    %v2149 = vadd.f32 %v2125, %v2138
    %v2150 = vadd.f32 %v2126, %v2140
    %v2151 = vadd.f32 %v2127, %v2142
    %v2152 = vadd.f32 %v2128, %v2144
    %v2153 = vmul.f32 %v1585, %v1183
    %v2154 = vmul.f32 %v1586, %v1183
    %v2155 = vmul.f32 %v1587, %v1183
    %v2156 = vmul.f32 %v1588, %v1183
    %2161 = vrot.lane.b32.xlu0 %v2153, 116
    %v2162 = vpop.permute.xlu0 %2161
    %2163 = vrot.lane.b32.xlu0 %v2154, 116
    %v2164 = vpop.permute.xlu0 %2163
    %2165 = vrot.lane.b32.xlu0 %v2155, 116
    %v2166 = vpop.permute.xlu0 %2165
    %2167 = vrot.lane.b32.xlu0 %v2156, 116
    %v2168 = vpop.permute.xlu0 %2167
    %v2173 = vadd.f32 %v2149, %v2162
    %v2174 = vadd.f32 %v2150, %v2164
    %v2175 = vadd.f32 %v2151, %v2166
    %v2176 = vadd.f32 %v2152, %v2168
    %v2177 = vmul.f32 %v1597, %v656
    %v2178 = vmul.f32 %v1598, %v656
    %v2179 = vmul.f32 %v1599, %v656
    %v2180 = vmul.f32 %v1600, %v656
    %2185 = vrot.lane.b32.xlu0 %v2177, 116
    %v2186 = vpop.permute.xlu0 %2185
    %2187 = vrot.lane.b32.xlu0 %v2178, 116
    %v2188 = vpop.permute.xlu0 %2187
    %2189 = vrot.lane.b32.xlu0 %v2179, 116
    %v2190 = vpop.permute.xlu0 %2189
    %2191 = vrot.lane.b32.xlu0 %v2180, 116
    %v2192 = vpop.permute.xlu0 %2191
    %v2197 = vadd.f32 %v2173, %v2186
    %v2198 = vadd.f32 %v2174, %v2188
    %v2199 = vadd.f32 %v2175, %v2190
    %v2200 = vadd.f32 %v2176, %v2192
    %v2201 = vmax.f32 %v1681, %v2197
    %v2202 = vmax.f32 %v1682, %v2198
    %v2203 = vmax.f32 %v1683, %v2199
    %v2204 = vmax.f32 %v1684, %v2200
    %v2205 = vld [vmem:[%s2] sm:$0x1]
    %v2207 = vlaneseq
    %v2208 = vshrl.u32 %v2207, 7
    %v2209 = vsub.s32 0, %v2208
    %v2210 = vrot.slane %v2205, %v2209
    %v2212 = vadd.f32 %v2201, %v2210
    %v2213 = vadd.f32 %v2202, %v2210
    %v2214 = vadd.f32 %v2203, %v2210
    %v2215 = vadd.f32 %v2204, %v2210
    %v2216 = vmax.f32 %v2212, 0.0
    %v2217 = vmax.f32 %v2213, 0.0
    %v2218 = vmax.f32 %v2214, 0.0
    %v2219 = vmax.f32 %v2215, 0.0
    %vm2220 = vcmask 244736
    %2221 = vst.msk [vmem:[#allocation2] sm:$0xff] %vm2220, %v2216
    %vm2222 = vcmask 238592
    %2223 = vst.msk [vmem:[#allocation2 + $0x10] sm:$0x3] %vm2222, %v2217
    %2224 = vst.msk [vmem:[#allocation2 + $0xd0] sm:$0xff] %vm2220, %v2218
    %2225 = vst.msk [vmem:[#allocation2 + $0xe0] sm:$0x3] %vm2222, %v2219
    %vm2230 = vcmask 1046528
    %v2231 = vrot.slane %v2216, 1
    %v2232 = vrot.slane %v2217, 1
    %v2233 = vsel %vm2230, %v2231, %v2232
    %v2234 = vrot.slane %v2218, 1
    %v2235 = vrot.slane %v2219, 1
    %v2236 = vsel %vm2230, %v2234, %v2235
    %2237 = vrot.lane.b32.xlu0 %v2233, 30
    %v2238 = vpop.permute.xlu0 %2237
    %2239 = vrot.lane.b32.xlu0 %v2232, 30
    %v2240 = vpop.permute.xlu0 %2239
    %2241 = vrot.lane.b32.xlu0 %v2236, 30
    %v2242 = vpop.permute.xlu0 %2241
    %2243 = vrot.lane.b32.xlu0 %v2235, 30
    %v2244 = vpop.permute.xlu0 %2243
    %vm2249 = vcmask 490736
    %2250 = vst.msk [vmem:[#allocation2] sm:$0xff] %vm2249, %v2238
    %vm2251 = vcmask 484592
    %2252 = vst.msk [vmem:[#allocation2 + $0x10] sm:$0x3] %vm2251, %v2240
    %2253 = vst.msk [vmem:[#allocation2 + $0xd0] sm:$0xff] %vm2249, %v2242
    %2254 = vst.msk [vmem:[#allocation2 + $0xe0] sm:$0x3] %vm2251, %v2244
    %vm2255 = vcmask 1045504
    %v2256 = vrot.slane %v2216, 2
    %v2257 = vrot.slane %v2217, 2
    %v2258 = vsel %vm2255, %v2256, %v2257
    %v2259 = vrot.slane %v2218, 2
    %v2260 = vrot.slane %v2219, 2
    %v2261 = vsel %vm2255, %v2259, %v2260
    %2262 = vrot.lane.b32.xlu0 %v2258, 60
    %v2263 = vpop.permute.xlu0 %2262
    %2264 = vrot.lane.b32.xlu0 %v2257, 60
    %v2265 = vpop.permute.xlu0 %2264
    %2266 = vrot.lane.b32.xlu0 %v2261, 60
    %v2267 = vpop.permute.xlu0 %2266
    %2268 = vrot.lane.b32.xlu0 %v2260, 60
    %v2269 = vpop.permute.xlu0 %2268
    %vm2274 = vcmask 736736
    %2275 = vst.msk [vmem:[#allocation2] sm:$0xff] %vm2274, %v2263
    %vm2276 = vcmask 730592
    %2277 = vst.msk [vmem:[#allocation2 + $0x10] sm:$0x3] %vm2276, %v2265
    %2278 = vst.msk [vmem:[#allocation2 + $0xd0] sm:$0xff] %vm2274, %v2267
    %2279 = vst.msk [vmem:[#allocation2 + $0xe0] sm:$0x3] %vm2276, %v2269
    %vm2280 = vcmask 1044480
    %v2281 = vrot.slane %v2216, 3
    %v2282 = vrot.slane %v2217, 3
    %v2283 = vsel %vm2280, %v2281, %v2282
    %v2284 = vrot.slane %v2218, 3
    %v2285 = vrot.slane %v2219, 3
    %v2286 = vsel %vm2280, %v2284, %v2285
    %2287 = vrot.lane.b32.xlu0 %v2283, 90
    %v2288 = vpop.permute.xlu0 %2287
    %2289 = vrot.lane.b32.xlu0 %v2282, 90
    %v2290 = vpop.permute.xlu0 %2289
    %2291 = vrot.lane.b32.xlu0 %v2286, 90
    %v2292 = vpop.permute.xlu0 %2291
    %2293 = vrot.lane.b32.xlu0 %v2285, 90
    %v2294 = vpop.permute.xlu0 %2293
    %vm2299 = vcmask 982736
    %2300 = vst.msk [vmem:[#allocation2] sm:$0xff] %vm2299, %v2288
    %vm2301 = vcmask 976592
    %2302 = vst.msk [vmem:[#allocation2 + $0x10] sm:$0x3] %vm2301, %v2290
    %2303 = vst.msk [vmem:[#allocation2 + $0xd0] sm:$0xff] %vm2299, %v2292
    %2304 = vst.msk [vmem:[#allocation2 + $0xe0] sm:$0x3] %vm2301, %v2294
    %vm2305 = vcmask 1043456
    %v2306 = vrot.slane %v2216, 4
    %v2307 = vrot.slane %v2217, 4
    %v2308 = vsel %vm2305, %v2306, %v2307
    %v2309 = vrot.slane %v2218, 4
    %v2310 = vrot.slane %v2219, 4
    %v2311 = vsel %vm2305, %v2309, %v2310
    %2312 = vrot.lane.b32.xlu0 %v2308, 120
    %v2313 = vpop.permute.xlu0 %2312
    %2314 = vrot.lane.b32.xlu0 %v2307, 120
    %v2315 = vpop.permute.xlu0 %2314
    %2316 = vrot.lane.b32.xlu0 %v2311, 120
    %v2317 = vpop.permute.xlu0 %2316
    %2318 = vrot.lane.b32.xlu0 %v2310, 120
    %v2319 = vpop.permute.xlu0 %2318
    %vm2324 = vcmask 1048512
    %2325 = vst.msk [vmem:[#allocation2] sm:$0xff] %vm2324, %v2313
    %vm2326 = vcmask 179200
    %2327 = vst.msk [vmem:[#allocation2 + $0x8] sm:$0xff] %vm2326, %v2313
    %vm2328 = vcmask 1042368
    %2329 = vst.msk [vmem:[#allocation2 + $0x10] sm:$0x3] %vm2328, %v2315
    %vm2330 = vcmask 173056
    %2331 = vst.msk [vmem:[#allocation2 + $0x18] sm:$0x3] %vm2330, %v2315
    %2332 = vst.msk [vmem:[#allocation2 + $0xd0] sm:$0xff] %vm2324, %v2317
    %2333 = vst.msk [vmem:[#allocation2 + $0xd8] sm:$0xff] %vm2326, %v2317
    %2334 = vst.msk [vmem:[#allocation2 + $0xe0] sm:$0x3] %vm2328, %v2319
    %2335 = vst.msk [vmem:[#allocation2 + $0xe8] sm:$0x3] %vm2330, %v2319
    %vm2336 = vcmask 1041408
    %v2337 = vrot.slane %v2216, 6
    %v2338 = vrot.slane %v2217, 6
    %v2339 = vsel %vm2336, %v2337, %v2338
    %v2340 = vrot.slane %v2218, 6
    %v2341 = vrot.slane %v2219, 6
    %v2342 = vsel %vm2336, %v2340, %v2341
    %2343 = vrot.lane.b32.xlu0 %v2337, 122
    %v2344 = vpop.permute.xlu0 %2343
    %2345 = vrot.lane.b32.xlu0 %v2339, 122
    %v2346 = vpop.permute.xlu0 %2345
    %2347 = vrot.lane.b32.xlu0 %v2340, 122
    %v2348 = vpop.permute.xlu0 %2347
    %2349 = vrot.lane.b32.xlu0 %v2342, 122
    %v2350 = vpop.permute.xlu0 %2349
    %vm2355 = vcmask 244738
    %2356 = vst.msk [vmem:[#allocation2 + $0x10] sm:$0xfc] %vm2355, %v2344
    %vm2357 = vcmask 240640
    %2358 = vst.msk [vmem:[#allocation2 + $0x20] sm:$0xf] %vm2357, %v2346
    %2359 = vst.msk [vmem:[#allocation2 + $0xe0] sm:$0xfc] %vm2355, %v2348
    %2360 = vst.msk [vmem:[#allocation2 + $0xf0] sm:$0xf] %vm2357, %v2350
    %vm2361 = vcmask 1040384
    %v2362 = vrot.slane %v2216, 7
    %v2363 = vrot.slane %v2217, 7
    %v2364 = vsel %vm2361, %v2362, %v2363
    %v2365 = vrot.slane %v2218, 7
    %v2366 = vrot.slane %v2219, 7
    %v2367 = vsel %vm2361, %v2365, %v2366
    %2368 = vrot.lane.b32.xlu0 %v2362, 24
    %v2369 = vpop.permute.xlu0 %2368
    %2370 = vrot.lane.b32.xlu0 %v2364, 24
    %v2371 = vpop.permute.xlu0 %2370
    %2372 = vrot.lane.b32.xlu0 %v2365, 24
    %v2373 = vpop.permute.xlu0 %2372
    %2374 = vrot.lane.b32.xlu0 %v2367, 24
    %v2375 = vpop.permute.xlu0 %2374
    %vm2380 = vcmask 490738
    %2381 = vst.msk [vmem:[#allocation2 + $0x10] sm:$0xfc] %vm2380, %v2369
    %vm2382 = vcmask 486640
    %2383 = vst.msk [vmem:[#allocation2 + $0x20] sm:$0xf] %vm2382, %v2371
    %2384 = vst.msk [vmem:[#allocation2 + $0xe0] sm:$0xfc] %vm2380, %v2373
    %2385 = vst.msk [vmem:[#allocation2 + $0xf0] sm:$0xf] %vm2382, %v2375
    %2386 = vrot.lane.b32.xlu0 %v2216, 54
    %v2387 = vpop.permute.xlu0 %2386
    %2388 = vrot.lane.b32.xlu0 %v2217, 54
    %v2389 = vpop.permute.xlu0 %2388
    %2390 = vrot.lane.b32.xlu0 %v2218, 54
    %v2391 = vpop.permute.xlu0 %2390
    %2392 = vrot.lane.b32.xlu0 %v2219, 54
    %v2393 = vpop.permute.xlu0 %2392
    %vm2398 = vcmask 736738
    %2399 = vst.msk [vmem:[#allocation2 + $0x10] sm:$0xfc] %vm2398, %v2387
    %vm2400 = vcmask 732640
    %2401 = vst.msk [vmem:[#allocation2 + $0x20] sm:$0xf] %vm2400, %v2389
    %2402 = vst.msk [vmem:[#allocation2 + $0xe0] sm:$0xfc] %vm2398, %v2391
    %2403 = vst.msk [vmem:[#allocation2 + $0xf0] sm:$0xf] %vm2400, %v2393
    %2404 = vrot.lane.b32.xlu0 %v2233, 84
    %v2405 = vpop.permute.xlu0 %2404
    %2406 = vrot.lane.b32.xlu0 %v2232, 84
    %v2407 = vpop.permute.xlu0 %2406
    %2408 = vrot.lane.b32.xlu0 %v2236, 84
    %v2409 = vpop.permute.xlu0 %2408
    %2410 = vrot.lane.b32.xlu0 %v2235, 84
    %v2411 = vpop.permute.xlu0 %2410
    %vm2416 = vcmask 982738
    %2417 = vst.msk [vmem:[#allocation2 + $0x10] sm:$0xfc] %vm2416, %v2405
    %vm2418 = vcmask 978640
    %2419 = vst.msk [vmem:[#allocation2 + $0x20] sm:$0xf] %vm2418, %v2407
    %2420 = vst.msk [vmem:[#allocation2 + $0xe0] sm:$0xfc] %vm2416, %v2409
    %2421 = vst.msk [vmem:[#allocation2 + $0xf0] sm:$0xf] %vm2418, %v2411
    %2422 = vrot.lane.b32.xlu0 %v2258, 114
    %v2423 = vpop.permute.xlu0 %2422
    %2424 = vrot.lane.b32.xlu0 %v2257, 114
    %v2425 = vpop.permute.xlu0 %2424
    %2426 = vrot.lane.b32.xlu0 %v2261, 114
    %v2427 = vpop.permute.xlu0 %2426
    %2428 = vrot.lane.b32.xlu0 %v2260, 114
    %v2429 = vpop.permute.xlu0 %2428
    %vm2434 = vcmask 1048514
    %2435 = vst.msk [vmem:[#allocation2 + $0x10] sm:$0xfc] %vm2434, %v2423
    %vm2436 = vcmask 179202
    %2437 = vst.msk [vmem:[#allocation2 + $0x18] sm:$0xfc] %vm2436, %v2423
    %vm2438 = vcmask 1044416
    %2439 = vst.msk [vmem:[#allocation2 + $0x20] sm:$0xf] %vm2438, %v2425
    %vm2440 = vcmask 175104
    %2441 = vst.msk [vmem:[#allocation2 + $0x28] sm:$0xf] %vm2440, %v2425
    %2442 = vst.msk [vmem:[#allocation2 + $0xe0] sm:$0xfc] %vm2434, %v2427
    %2443 = vst.msk [vmem:[#allocation2 + $0xe8] sm:$0xfc] %vm2436, %v2427
    %2444 = vst.msk [vmem:[#allocation2 + $0xf0] sm:$0xf] %vm2438, %v2429
    %2445 = vst.msk [vmem:[#allocation2 + $0xf8] sm:$0xf] %vm2440, %v2429
    %2446 = vrot.lane.b32.xlu0 %v2306, 116
    %v2447 = vpop.permute.xlu0 %2446
    %2448 = vrot.lane.b32.xlu0 %v2308, 116
    %v2449 = vpop.permute.xlu0 %2448
    %2450 = vrot.lane.b32.xlu0 %v2309, 116
    %v2451 = vpop.permute.xlu0 %2450
    %2452 = vrot.lane.b32.xlu0 %v2311, 116
    %v2453 = vpop.permute.xlu0 %2452
    %vm2458 = vcmask 244740
    %2459 = vst.msk [vmem:[#allocation2 + $0x20] sm:$0xf0] %vm2458, %v2447
    %vm2460 = vcmask 242688
    %2461 = vst.msk [vmem:[#allocation2 + $0x30] sm:$0x3f] %vm2460, %v2449
    %2462 = vst.msk [vmem:[#allocation2 + $0xf0] sm:$0xf0] %vm2458, %v2451
    %2463 = vst.msk [vmem:[#allocation2 + $0x100] sm:$0x3f] %vm2460, %v2453
    %vm2464 = vcmask 1042432
    %v2465 = vrot.slane %v2216, 5
    %v2466 = vrot.slane %v2217, 5
    %v2467 = vsel %vm2464, %v2465, %v2466
    %v2468 = vrot.slane %v2218, 5
    %v2469 = vrot.slane %v2219, 5
    %v2470 = vsel %vm2464, %v2468, %v2469
    %2471 = vrot.lane.b32.xlu0 %v2465, 18
    %v2472 = vpop.permute.xlu0 %2471
    %2473 = vrot.lane.b32.xlu0 %v2467, 18
    %v2474 = vpop.permute.xlu0 %2473
    %2475 = vrot.lane.b32.xlu0 %v2468, 18
    %v2476 = vpop.permute.xlu0 %2475
    %2477 = vrot.lane.b32.xlu0 %v2470, 18
    %v2478 = vpop.permute.xlu0 %2477
    %vm2483 = vcmask 490740
    %2484 = vst.msk [vmem:[#allocation2 + $0x20] sm:$0xf0] %vm2483, %v2472
    %vm2485 = vcmask 488688
    %2486 = vst.msk [vmem:[#allocation2 + $0x30] sm:$0x3f] %vm2485, %v2474
    %2487 = vst.msk [vmem:[#allocation2 + $0xf0] sm:$0xf0] %vm2483, %v2476
    %2488 = vst.msk [vmem:[#allocation2 + $0x100] sm:$0x3f] %vm2485, %v2478
    %2489 = vrot.lane.b32.xlu0 %v2337, 48
    %v2490 = vpop.permute.xlu0 %2489
    %2491 = vrot.lane.b32.xlu0 %v2339, 48
    %v2492 = vpop.permute.xlu0 %2491
    %2493 = vrot.lane.b32.xlu0 %v2340, 48
    %v2494 = vpop.permute.xlu0 %2493
    %2495 = vrot.lane.b32.xlu0 %v2342, 48
    %v2496 = vpop.permute.xlu0 %2495
    %vm2501 = vcmask 736740
    %2502 = vst.msk [vmem:[#allocation2 + $0x20] sm:$0xf0] %vm2501, %v2490
    %vm2503 = vcmask 734688
    %2504 = vst.msk [vmem:[#allocation2 + $0x30] sm:$0x3f] %vm2503, %v2492
    %2505 = vst.msk [vmem:[#allocation2 + $0xf0] sm:$0xf0] %vm2501, %v2494
    %2506 = vst.msk [vmem:[#allocation2 + $0x100] sm:$0x3f] %vm2503, %v2496
    %2507 = vrot.lane.b32.xlu0 %v2362, 78
    %v2508 = vpop.permute.xlu0 %2507
    %2509 = vrot.lane.b32.xlu0 %v2364, 78
    %v2510 = vpop.permute.xlu0 %2509
    %2511 = vrot.lane.b32.xlu0 %v2365, 78
    %v2512 = vpop.permute.xlu0 %2511
    %2513 = vrot.lane.b32.xlu0 %v2367, 78
    %v2514 = vpop.permute.xlu0 %2513
    %vm2519 = vcmask 982740
    %2520 = vst.msk [vmem:[#allocation2 + $0x20] sm:$0xf0] %vm2519, %v2508
    %vm2521 = vcmask 980688
    %2522 = vst.msk [vmem:[#allocation2 + $0x30] sm:$0x3f] %vm2521, %v2510
    %2523 = vst.msk [vmem:[#allocation2 + $0xf0] sm:$0xf0] %vm2519, %v2512
    %2524 = vst.msk [vmem:[#allocation2 + $0x100] sm:$0x3f] %vm2521, %v2514
    %2525 = vrot.lane.b32.xlu0 %v2216, 108
    %v2526 = vpop.permute.xlu0 %2525
    %2527 = vrot.lane.b32.xlu0 %v2217, 108
    %v2528 = vpop.permute.xlu0 %2527
    %2529 = vrot.lane.b32.xlu0 %v2218, 108
    %v2530 = vpop.permute.xlu0 %2529
    %2531 = vrot.lane.b32.xlu0 %v2219, 108
    %v2532 = vpop.permute.xlu0 %2531
    %vm2537 = vcmask 1048516
    %2538 = vst.msk [vmem:[#allocation2 + $0x20] sm:$0xf0] %vm2537, %v2526
    %vm2539 = vcmask 179204
    %2540 = vst.msk [vmem:[#allocation2 + $0x28] sm:$0xf0] %vm2539, %v2526
    %vm2541 = vcmask 1046464
    %2542 = vst.msk [vmem:[#allocation2 + $0x30] sm:$0x3f] %vm2541, %v2528
    %vm2543 = vcmask 177152
    %2544 = vst.msk [vmem:[#allocation2 + $0x38] sm:$0x3f] %vm2543, %v2528
    %2545 = vst.msk [vmem:[#allocation2 + $0xf0] sm:$0xf0] %vm2537, %v2530
    %2546 = vst.msk [vmem:[#allocation2 + $0xf8] sm:$0xf0] %vm2539, %v2530
    %2547 = vst.msk [vmem:[#allocation2 + $0x100] sm:$0x3f] %vm2541, %v2532
    %2548 = vst.msk [vmem:[#allocation2 + $0x108] sm:$0x3f] %vm2543, %v2532
    %2549 = vrot.lane.b32.xlu0 %v2256, 110
    %v2550 = vpop.permute.xlu0 %2549
    %2551 = vrot.lane.b32.xlu0 %v2258, 110
    %v2552 = vpop.permute.xlu0 %2551
    %2553 = vrot.lane.b32.xlu0 %v2259, 110
    %v2554 = vpop.permute.xlu0 %2553
    %2555 = vrot.lane.b32.xlu0 %v2261, 110
    %v2556 = vpop.permute.xlu0 %2555
    %vm2561 = vcmask 244742
    %2562 = vst.msk [vmem:[#allocation2 + $0x30] sm:$0xc0] %vm2561, %v2550
    %2563 = vst.msk [vmem:[#allocation2 + $0x40] sm:$0xff] %vm2220, %v2552
    %2564 = vst.msk [vmem:[#allocation2 + $0x100] sm:$0xc0] %vm2561, %v2554
    %2565 = vst.msk [vmem:[#allocation2 + $0x110] sm:$0xff] %vm2220, %v2556
    %2566 = vrot.lane.b32.xlu0 %v2281, 12
    %v2567 = vpop.permute.xlu0 %2566
    %2568 = vrot.lane.b32.xlu0 %v2283, 12
    %v2569 = vpop.permute.xlu0 %2568
    %2570 = vrot.lane.b32.xlu0 %v2284, 12
    %v2571 = vpop.permute.xlu0 %2570
    %2572 = vrot.lane.b32.xlu0 %v2286, 12
    %v2573 = vpop.permute.xlu0 %2572
    %vm2578 = vcmask 490742
    %2579 = vst.msk [vmem:[#allocation2 + $0x30] sm:$0xc0] %vm2578, %v2567
    %2580 = vst.msk [vmem:[#allocation2 + $0x40] sm:$0xff] %vm2249, %v2569
    %2581 = vst.msk [vmem:[#allocation2 + $0x100] sm:$0xc0] %vm2578, %v2571
    %2582 = vst.msk [vmem:[#allocation2 + $0x110] sm:$0xff] %vm2249, %v2573
    %2583 = vrot.lane.b32.xlu0 %v2306, 42
    %v2584 = vpop.permute.xlu0 %2583
    %2585 = vrot.lane.b32.xlu0 %v2308, 42
    %v2586 = vpop.permute.xlu0 %2585
    %2587 = vrot.lane.b32.xlu0 %v2309, 42
    %v2588 = vpop.permute.xlu0 %2587
    %2589 = vrot.lane.b32.xlu0 %v2311, 42
    %v2590 = vpop.permute.xlu0 %2589
    %vm2595 = vcmask 736742
    %2596 = vst.msk [vmem:[#allocation2 + $0x30] sm:$0xc0] %vm2595, %v2584
    %2597 = vst.msk [vmem:[#allocation2 + $0x40] sm:$0xff] %vm2274, %v2586
    %2598 = vst.msk [vmem:[#allocation2 + $0x100] sm:$0xc0] %vm2595, %v2588
    %2599 = vst.msk [vmem:[#allocation2 + $0x110] sm:$0xff] %vm2274, %v2590
    %2600 = vrot.lane.b32.xlu0 %v2465, 72
    %v2601 = vpop.permute.xlu0 %2600
    %2602 = vrot.lane.b32.xlu0 %v2467, 72
    %v2603 = vpop.permute.xlu0 %2602
    %2604 = vrot.lane.b32.xlu0 %v2468, 72
    %v2605 = vpop.permute.xlu0 %2604
    %2606 = vrot.lane.b32.xlu0 %v2470, 72
    %v2607 = vpop.permute.xlu0 %2606
    %vm2612 = vcmask 982742
    %2613 = vst.msk [vmem:[#allocation2 + $0x30] sm:$0xc0] %vm2612, %v2601
    %2614 = vst.msk [vmem:[#allocation2 + $0x40] sm:$0xff] %vm2299, %v2603
    %2615 = vst.msk [vmem:[#allocation2 + $0x100] sm:$0xc0] %vm2612, %v2605
    %2616 = vst.msk [vmem:[#allocation2 + $0x110] sm:$0xff] %vm2299, %v2607
    %2617 = vrot.lane.b32.xlu0 %v2337, 102
    %v2618 = vpop.permute.xlu0 %2617
    %2619 = vrot.lane.b32.xlu0 %v2339, 102
    %v2620 = vpop.permute.xlu0 %2619
    %2621 = vrot.lane.b32.xlu0 %v2340, 102
    %v2622 = vpop.permute.xlu0 %2621
    %2623 = vrot.lane.b32.xlu0 %v2342, 102
    %v2624 = vpop.permute.xlu0 %2623
    %vm2629 = vcmask 1048518
    %2630 = vst.msk [vmem:[#allocation2 + $0x30] sm:$0xc0] %vm2629, %v2618
    %vm2631 = vcmask 179206
    %2632 = vst.msk [vmem:[#allocation2 + $0x38] sm:$0xc0] %vm2631, %v2618
    %2633 = vst.msk [vmem:[#allocation2 + $0x40] sm:$0xff] %vm2324, %v2620
    %2634 = vst.msk [vmem:[#allocation2 + $0x48] sm:$0xff] %vm2326, %v2620
    %2635 = vst.msk [vmem:[#allocation2 + $0x100] sm:$0xc0] %vm2629, %v2622
    %2636 = vst.msk [vmem:[#allocation2 + $0x108] sm:$0xc0] %vm2631, %v2622
    %2637 = vst.msk [vmem:[#allocation2 + $0x110] sm:$0xff] %vm2324, %v2624
    %2638 = vst.msk [vmem:[#allocation2 + $0x118] sm:$0xff] %vm2326, %v2624
    %2639 = vrot.lane.b32.xlu0 %v2216, 104
    %v2640 = vpop.permute.xlu0 %2639
    %2641 = vrot.lane.b32.xlu0 %v2217, 104
    %v2642 = vpop.permute.xlu0 %2641
    %2643 = vrot.lane.b32.xlu0 %v2218, 104
    %v2644 = vpop.permute.xlu0 %2643
    %2645 = vrot.lane.b32.xlu0 %v2219, 104
    %v2646 = vpop.permute.xlu0 %2645
    %2651 = vst.msk [vmem:[#allocation2 + $0x50] sm:$0xff] %vm2220, %v2640
    %2652 = vst.msk [vmem:[#allocation2 + $0x60] sm:$0x3] %vm2222, %v2642
    %2653 = vst.msk [vmem:[#allocation2 + $0x120] sm:$0xff] %vm2220, %v2644
    %2654 = vst.msk [vmem:[#allocation2 + $0x130] sm:$0x3] %vm2222, %v2646
    %2655 = vrot.lane.b32.xlu0 %v2233, 6
    %v2656 = vpop.permute.xlu0 %2655
    %2657 = vrot.lane.b32.xlu0 %v2232, 6
    %v2658 = vpop.permute.xlu0 %2657
    %2659 = vrot.lane.b32.xlu0 %v2236, 6
    %v2660 = vpop.permute.xlu0 %2659
    %2661 = vrot.lane.b32.xlu0 %v2235, 6
    %v2662 = vpop.permute.xlu0 %2661
    %2667 = vst.msk [vmem:[#allocation2 + $0x50] sm:$0xff] %vm2249, %v2656
    %2668 = vst.msk [vmem:[#allocation2 + $0x60] sm:$0x3] %vm2251, %v2658
    %2669 = vst.msk [vmem:[#allocation2 + $0x120] sm:$0xff] %vm2249, %v2660
    %2670 = vst.msk [vmem:[#allocation2 + $0x130] sm:$0x3] %vm2251, %v2662
    %2671 = vrot.lane.b32.xlu0 %v2258, 36
    %v2672 = vpop.permute.xlu0 %2671
    %2673 = vrot.lane.b32.xlu0 %v2257, 36
    %v2674 = vpop.permute.xlu0 %2673
    %2675 = vrot.lane.b32.xlu0 %v2261, 36
    %v2676 = vpop.permute.xlu0 %2675
    %2677 = vrot.lane.b32.xlu0 %v2260, 36
    %v2678 = vpop.permute.xlu0 %2677
    %2683 = vst.msk [vmem:[#allocation2 + $0x50] sm:$0xff] %vm2274, %v2672
    %2684 = vst.msk [vmem:[#allocation2 + $0x60] sm:$0x3] %vm2276, %v2674
    %2685 = vst.msk [vmem:[#allocation2 + $0x120] sm:$0xff] %vm2274, %v2676
    %2686 = vst.msk [vmem:[#allocation2 + $0x130] sm:$0x3] %vm2276, %v2678
    %2687 = vrot.lane.b32.xlu0 %v2283, 66
    %v2688 = vpop.permute.xlu0 %2687
    %2689 = vrot.lane.b32.xlu0 %v2282, 66
    %v2690 = vpop.permute.xlu0 %2689
    %2691 = vrot.lane.b32.xlu0 %v2286, 66
    %v2692 = vpop.permute.xlu0 %2691
    %2693 = vrot.lane.b32.xlu0 %v2285, 66
    %v2694 = vpop.permute.xlu0 %2693
    %2699 = vst.msk [vmem:[#allocation2 + $0x50] sm:$0xff] %vm2299, %v2688
    %2700 = vst.msk [vmem:[#allocation2 + $0x60] sm:$0x3] %vm2301, %v2690
    %2701 = vst.msk [vmem:[#allocation2 + $0x120] sm:$0xff] %vm2299, %v2692
    %2702 = vst.msk [vmem:[#allocation2 + $0x130] sm:$0x3] %vm2301, %v2694
    %2703 = vrot.lane.b32.xlu0 %v2308, 96
    %v2704 = vpop.permute.xlu0 %2703
    %2705 = vrot.lane.b32.xlu0 %v2307, 96
    %v2706 = vpop.permute.xlu0 %2705
    %2707 = vrot.lane.b32.xlu0 %v2311, 96
    %v2708 = vpop.permute.xlu0 %2707
    %2709 = vrot.lane.b32.xlu0 %v2310, 96
    %v2710 = vpop.permute.xlu0 %2709
    %2715 = vst.msk [vmem:[#allocation2 + $0x50] sm:$0xff] %vm2324, %v2704
    %2716 = vst.msk [vmem:[#allocation2 + $0x58] sm:$0xff] %vm2326, %v2704
    %2717 = vst.msk [vmem:[#allocation2 + $0x60] sm:$0x3] %vm2328, %v2706
    %2718 = vst.msk [vmem:[#allocation2 + $0x68] sm:$0x3] %vm2330, %v2706
    %2719 = vst.msk [vmem:[#allocation2 + $0x120] sm:$0xff] %vm2324, %v2708
    %2720 = vst.msk [vmem:[#allocation2 + $0x128] sm:$0xff] %vm2326, %v2708
    %2721 = vst.msk [vmem:[#allocation2 + $0x130] sm:$0x3] %vm2328, %v2710
    %2722 = vst.msk [vmem:[#allocation2 + $0x138] sm:$0x3] %vm2330, %v2710
    %2723 = vrot.lane.b32.xlu0 %v2337, 98
    %v2724 = vpop.permute.xlu0 %2723
    %2725 = vrot.lane.b32.xlu0 %v2339, 98
    %v2726 = vpop.permute.xlu0 %2725
    %2727 = vrot.lane.b32.xlu0 %v2340, 98
    %v2728 = vpop.permute.xlu0 %2727
    %2729 = vrot.lane.b32.xlu0 %v2342, 98
    %v2730 = vpop.permute.xlu0 %2729
    %2735 = vst.msk [vmem:[#allocation2 + $0x60] sm:$0xfc] %vm2355, %v2724
    %2736 = vst.msk [vmem:[#allocation2 + $0x70] sm:$0xf] %vm2357, %v2726
    %2737 = vst.msk [vmem:[#allocation2 + $0x130] sm:$0xfc] %vm2355, %v2728
    %2738 = vst.msk [vmem:[#allocation2 + $0x140] sm:$0xf] %vm2357, %v2730
    %2743 = vst.msk [vmem:[#allocation2 + $0x60] sm:$0xfc] %vm2380, %v2362
    %2744 = vst.msk [vmem:[#allocation2 + $0x70] sm:$0xf] %vm2382, %v2364
    %2745 = vst.msk [vmem:[#allocation2 + $0x130] sm:$0xfc] %vm2380, %v2365
    %2746 = vst.msk [vmem:[#allocation2 + $0x140] sm:$0xf] %vm2382, %v2367
    %2747 = vrot.lane.b32.xlu0 %v2216, 30
    %v2748 = vpop.permute.xlu0 %2747
    %2749 = vrot.lane.b32.xlu0 %v2217, 30
    %v2750 = vpop.permute.xlu0 %2749
    %2751 = vrot.lane.b32.xlu0 %v2218, 30
    %v2752 = vpop.permute.xlu0 %2751
    %2753 = vrot.lane.b32.xlu0 %v2219, 30
    %v2754 = vpop.permute.xlu0 %2753
    %2759 = vst.msk [vmem:[#allocation2 + $0x60] sm:$0xfc] %vm2398, %v2748
    %2760 = vst.msk [vmem:[#allocation2 + $0x70] sm:$0xf] %vm2400, %v2750
    %2761 = vst.msk [vmem:[#allocation2 + $0x130] sm:$0xfc] %vm2398, %v2752
    %2762 = vst.msk [vmem:[#allocation2 + $0x140] sm:$0xf] %vm2400, %v2754
    %2763 = vrot.lane.b32.xlu0 %v2233, 60
    %v2764 = vpop.permute.xlu0 %2763
    %2765 = vrot.lane.b32.xlu0 %v2232, 60
    %v2766 = vpop.permute.xlu0 %2765
    %2767 = vrot.lane.b32.xlu0 %v2236, 60
    %v2768 = vpop.permute.xlu0 %2767
    %2769 = vrot.lane.b32.xlu0 %v2235, 60
    %v2770 = vpop.permute.xlu0 %2769
    %2775 = vst.msk [vmem:[#allocation2 + $0x60] sm:$0xfc] %vm2416, %v2764
    %2776 = vst.msk [vmem:[#allocation2 + $0x70] sm:$0xf] %vm2418, %v2766
    %2777 = vst.msk [vmem:[#allocation2 + $0x130] sm:$0xfc] %vm2416, %v2768
    %2778 = vst.msk [vmem:[#allocation2 + $0x140] sm:$0xf] %vm2418, %v2770
    %2779 = vrot.lane.b32.xlu0 %v2258, 90
    %v2780 = vpop.permute.xlu0 %2779
    %2781 = vrot.lane.b32.xlu0 %v2257, 90
    %v2782 = vpop.permute.xlu0 %2781
    %2783 = vrot.lane.b32.xlu0 %v2261, 90
    %v2784 = vpop.permute.xlu0 %2783
    %2785 = vrot.lane.b32.xlu0 %v2260, 90
    %v2786 = vpop.permute.xlu0 %2785
    %2791 = vst.msk [vmem:[#allocation2 + $0x60] sm:$0xfc] %vm2434, %v2780
    %2792 = vst.msk [vmem:[#allocation2 + $0x68] sm:$0xfc] %vm2436, %v2780
    %2793 = vst.msk [vmem:[#allocation2 + $0x70] sm:$0xf] %vm2438, %v2782
    %2794 = vst.msk [vmem:[#allocation2 + $0x78] sm:$0xf] %vm2440, %v2782
    %2795 = vst.msk [vmem:[#allocation2 + $0x130] sm:$0xfc] %vm2434, %v2784
    %2796 = vst.msk [vmem:[#allocation2 + $0x138] sm:$0xfc] %vm2436, %v2784
    %2797 = vst.msk [vmem:[#allocation2 + $0x140] sm:$0xf] %vm2438, %v2786
    %2798 = vst.msk [vmem:[#allocation2 + $0x148] sm:$0xf] %vm2440, %v2786
    %2799 = vrot.lane.b32.xlu0 %v2306, 92
    %v2800 = vpop.permute.xlu0 %2799
    %2801 = vrot.lane.b32.xlu0 %v2308, 92
    %v2802 = vpop.permute.xlu0 %2801
    %2803 = vrot.lane.b32.xlu0 %v2309, 92
    %v2804 = vpop.permute.xlu0 %2803
    %2805 = vrot.lane.b32.xlu0 %v2311, 92
    %v2806 = vpop.permute.xlu0 %2805
    %2811 = vst.msk [vmem:[#allocation2 + $0x70] sm:$0xf0] %vm2458, %v2800
    %2812 = vst.msk [vmem:[#allocation2 + $0x80] sm:$0x3f] %vm2460, %v2802
    %2813 = vst.msk [vmem:[#allocation2 + $0x140] sm:$0xf0] %vm2458, %v2804
    %2814 = vst.msk [vmem:[#allocation2 + $0x150] sm:$0x3f] %vm2460, %v2806
    %2815 = vrot.lane.b32.xlu0 %v2465, 122
    %v2816 = vpop.permute.xlu0 %2815
    %2817 = vrot.lane.b32.xlu0 %v2467, 122
    %v2818 = vpop.permute.xlu0 %2817
    %2819 = vrot.lane.b32.xlu0 %v2468, 122
    %v2820 = vpop.permute.xlu0 %2819
    %2821 = vrot.lane.b32.xlu0 %v2470, 122
    %v2822 = vpop.permute.xlu0 %2821
    %2827 = vst.msk [vmem:[#allocation2 + $0x70] sm:$0xf0] %vm2483, %v2816
    %2828 = vst.msk [vmem:[#allocation2 + $0x80] sm:$0x3f] %vm2485, %v2818
    %2829 = vst.msk [vmem:[#allocation2 + $0x140] sm:$0xf0] %vm2483, %v2820
    %2830 = vst.msk [vmem:[#allocation2 + $0x150] sm:$0x3f] %vm2485, %v2822
    %2831 = vrot.lane.b32.xlu0 %v2337, 24
    %v2832 = vpop.permute.xlu0 %2831
    %2833 = vrot.lane.b32.xlu0 %v2339, 24
    %v2834 = vpop.permute.xlu0 %2833
    %2835 = vrot.lane.b32.xlu0 %v2340, 24
    %v2836 = vpop.permute.xlu0 %2835
    %2837 = vrot.lane.b32.xlu0 %v2342, 24
    %v2838 = vpop.permute.xlu0 %2837
    %2843 = vst.msk [vmem:[#allocation2 + $0x70] sm:$0xf0] %vm2501, %v2832
    %2844 = vst.msk [vmem:[#allocation2 + $0x80] sm:$0x3f] %vm2503, %v2834
    %2845 = vst.msk [vmem:[#allocation2 + $0x140] sm:$0xf0] %vm2501, %v2836
    %2846 = vst.msk [vmem:[#allocation2 + $0x150] sm:$0x3f] %vm2503, %v2838
    %2847 = vrot.lane.b32.xlu0 %v2362, 54
    %v2848 = vpop.permute.xlu0 %2847
    %2849 = vrot.lane.b32.xlu0 %v2364, 54
    %v2850 = vpop.permute.xlu0 %2849
    %2851 = vrot.lane.b32.xlu0 %v2365, 54
    %v2852 = vpop.permute.xlu0 %2851
    %2853 = vrot.lane.b32.xlu0 %v2367, 54
    %v2854 = vpop.permute.xlu0 %2853
    %2859 = vst.msk [vmem:[#allocation2 + $0x70] sm:$0xf0] %vm2519, %v2848
    %2860 = vst.msk [vmem:[#allocation2 + $0x80] sm:$0x3f] %vm2521, %v2850
    %2861 = vst.msk [vmem:[#allocation2 + $0x140] sm:$0xf0] %vm2519, %v2852
    %2862 = vst.msk [vmem:[#allocation2 + $0x150] sm:$0x3f] %vm2521, %v2854
    %2863 = vrot.lane.b32.xlu0 %v2216, 84
    %v2864 = vpop.permute.xlu0 %2863
    %2865 = vrot.lane.b32.xlu0 %v2217, 84
    %v2866 = vpop.permute.xlu0 %2865
    %2867 = vrot.lane.b32.xlu0 %v2218, 84
    %v2868 = vpop.permute.xlu0 %2867
    %2869 = vrot.lane.b32.xlu0 %v2219, 84
    %v2870 = vpop.permute.xlu0 %2869
    %2875 = vst.msk [vmem:[#allocation2 + $0x70] sm:$0xf0] %vm2537, %v2864
    %2876 = vst.msk [vmem:[#allocation2 + $0x78] sm:$0xf0] %vm2539, %v2864
    %2877 = vst.msk [vmem:[#allocation2 + $0x80] sm:$0x3f] %vm2541, %v2866
    %2878 = vst.msk [vmem:[#allocation2 + $0x88] sm:$0x3f] %vm2543, %v2866
    %2879 = vst.msk [vmem:[#allocation2 + $0x140] sm:$0xf0] %vm2537, %v2868
    %2880 = vst.msk [vmem:[#allocation2 + $0x148] sm:$0xf0] %vm2539, %v2868
    %2881 = vst.msk [vmem:[#allocation2 + $0x150] sm:$0x3f] %vm2541, %v2870
    %2882 = vst.msk [vmem:[#allocation2 + $0x158] sm:$0x3f] %vm2543, %v2870
    %2883 = vrot.lane.b32.xlu0 %v2256, 86
    %v2884 = vpop.permute.xlu0 %2883
    %2885 = vrot.lane.b32.xlu0 %v2258, 86
    %v2886 = vpop.permute.xlu0 %2885
    %2887 = vrot.lane.b32.xlu0 %v2259, 86
    %v2888 = vpop.permute.xlu0 %2887
    %2889 = vrot.lane.b32.xlu0 %v2261, 86
    %v2890 = vpop.permute.xlu0 %2889
    %2895 = vst.msk [vmem:[#allocation2 + $0x80] sm:$0xc0] %vm2561, %v2884
    %2896 = vst.msk [vmem:[#allocation2 + $0x90] sm:$0xff] %vm2220, %v2886
    %2897 = vst.msk [vmem:[#allocation2 + $0x150] sm:$0xc0] %vm2561, %v2888
    %2898 = vst.msk [vmem:[#allocation2 + $0x160] sm:$0xff] %vm2220, %v2890
    %2899 = vrot.lane.b32.xlu0 %v2281, 116
    %v2900 = vpop.permute.xlu0 %2899
    %2901 = vrot.lane.b32.xlu0 %v2283, 116
    %v2902 = vpop.permute.xlu0 %2901
    %2903 = vrot.lane.b32.xlu0 %v2284, 116
    %v2904 = vpop.permute.xlu0 %2903
    %2905 = vrot.lane.b32.xlu0 %v2286, 116
    %v2906 = vpop.permute.xlu0 %2905
    %2911 = vst.msk [vmem:[#allocation2 + $0x80] sm:$0xc0] %vm2578, %v2900
    %2912 = vst.msk [vmem:[#allocation2 + $0x90] sm:$0xff] %vm2249, %v2902
    %2913 = vst.msk [vmem:[#allocation2 + $0x150] sm:$0xc0] %vm2578, %v2904
    %2914 = vst.msk [vmem:[#allocation2 + $0x160] sm:$0xff] %vm2249, %v2906
    %2915 = vrot.lane.b32.xlu0 %v2306, 18
    %v2916 = vpop.permute.xlu0 %2915
    %2917 = vrot.lane.b32.xlu0 %v2308, 18
    %v2918 = vpop.permute.xlu0 %2917
    %2919 = vrot.lane.b32.xlu0 %v2309, 18
    %v2920 = vpop.permute.xlu0 %2919
    %2921 = vrot.lane.b32.xlu0 %v2311, 18
    %v2922 = vpop.permute.xlu0 %2921
    %2927 = vst.msk [vmem:[#allocation2 + $0x80] sm:$0xc0] %vm2595, %v2916
    %2928 = vst.msk [vmem:[#allocation2 + $0x90] sm:$0xff] %vm2274, %v2918
    %2929 = vst.msk [vmem:[#allocation2 + $0x150] sm:$0xc0] %vm2595, %v2920
    %2930 = vst.msk [vmem:[#allocation2 + $0x160] sm:$0xff] %vm2274, %v2922
    %2931 = vrot.lane.b32.xlu0 %v2465, 48
    %v2932 = vpop.permute.xlu0 %2931
    %2933 = vrot.lane.b32.xlu0 %v2467, 48
    %v2934 = vpop.permute.xlu0 %2933
    %2935 = vrot.lane.b32.xlu0 %v2468, 48
    %v2936 = vpop.permute.xlu0 %2935
    %2937 = vrot.lane.b32.xlu0 %v2470, 48
    %v2938 = vpop.permute.xlu0 %2937
    %2943 = vst.msk [vmem:[#allocation2 + $0x80] sm:$0xc0] %vm2612, %v2932
    %2944 = vst.msk [vmem:[#allocation2 + $0x90] sm:$0xff] %vm2299, %v2934
    %2945 = vst.msk [vmem:[#allocation2 + $0x150] sm:$0xc0] %vm2612, %v2936
    %2946 = vst.msk [vmem:[#allocation2 + $0x160] sm:$0xff] %vm2299, %v2938
    %2947 = vrot.lane.b32.xlu0 %v2337, 78
    %v2948 = vpop.permute.xlu0 %2947
    %2949 = vrot.lane.b32.xlu0 %v2339, 78
    %v2950 = vpop.permute.xlu0 %2949
    %2951 = vrot.lane.b32.xlu0 %v2340, 78
    %v2952 = vpop.permute.xlu0 %2951
    %2953 = vrot.lane.b32.xlu0 %v2342, 78
    %v2954 = vpop.permute.xlu0 %2953
    %2959 = vst.msk [vmem:[#allocation2 + $0x80] sm:$0xc0] %vm2629, %v2948
    %2960 = vst.msk [vmem:[#allocation2 + $0x88] sm:$0xc0] %vm2631, %v2948
    %2961 = vst.msk [vmem:[#allocation2 + $0x90] sm:$0xff] %vm2324, %v2950
    %2962 = vst.msk [vmem:[#allocation2 + $0x98] sm:$0xff] %vm2326, %v2950
    %2963 = vst.msk [vmem:[#allocation2 + $0x150] sm:$0xc0] %vm2629, %v2952
    %2964 = vst.msk [vmem:[#allocation2 + $0x158] sm:$0xc0] %vm2631, %v2952
    %2965 = vst.msk [vmem:[#allocation2 + $0x160] sm:$0xff] %vm2324, %v2954
    %2966 = vst.msk [vmem:[#allocation2 + $0x168] sm:$0xff] %vm2326, %v2954
    %2967 = vrot.lane.b32.xlu0 %v2216, 80
    %v2968 = vpop.permute.xlu0 %2967
    %2969 = vrot.lane.b32.xlu0 %v2217, 80
    %v2970 = vpop.permute.xlu0 %2969
    %2971 = vrot.lane.b32.xlu0 %v2218, 80
    %v2972 = vpop.permute.xlu0 %2971
    %2973 = vrot.lane.b32.xlu0 %v2219, 80
    %v2974 = vpop.permute.xlu0 %2973
    %2979 = vst.msk [vmem:[#allocation2 + $0xa0] sm:$0xff] %vm2220, %v2968
    %2980 = vst.msk [vmem:[#allocation2 + $0xb0] sm:$0x3] %vm2222, %v2970
    %2981 = vst.msk [vmem:[#allocation2 + $0x170] sm:$0xff] %vm2220, %v2972
    %2982 = vst.msk [vmem:[#allocation2 + $0x180] sm:$0x3] %vm2222, %v2974
    %2983 = vrot.lane.b32.xlu0 %v2233, 110
    %v2984 = vpop.permute.xlu0 %2983
    %2985 = vrot.lane.b32.xlu0 %v2232, 110
    %v2986 = vpop.permute.xlu0 %2985
    %2987 = vrot.lane.b32.xlu0 %v2236, 110
    %v2988 = vpop.permute.xlu0 %2987
    %2989 = vrot.lane.b32.xlu0 %v2235, 110
    %v2990 = vpop.permute.xlu0 %2989
    %2995 = vst.msk [vmem:[#allocation2 + $0xa0] sm:$0xff] %vm2249, %v2984
    %2996 = vst.msk [vmem:[#allocation2 + $0xb0] sm:$0x3] %vm2251, %v2986
    %2997 = vst.msk [vmem:[#allocation2 + $0x170] sm:$0xff] %vm2249, %v2988
    %2998 = vst.msk [vmem:[#allocation2 + $0x180] sm:$0x3] %vm2251, %v2990
    %2999 = vrot.lane.b32.xlu0 %v2258, 12
    %v3000 = vpop.permute.xlu0 %2999
    %3001 = vrot.lane.b32.xlu0 %v2257, 12
    %v3002 = vpop.permute.xlu0 %3001
    %3003 = vrot.lane.b32.xlu0 %v2261, 12
    %v3004 = vpop.permute.xlu0 %3003
    %3005 = vrot.lane.b32.xlu0 %v2260, 12
    %v3006 = vpop.permute.xlu0 %3005
    %3011 = vst.msk [vmem:[#allocation2 + $0xa0] sm:$0xff] %vm2274, %v3000
    %3012 = vst.msk [vmem:[#allocation2 + $0xb0] sm:$0x3] %vm2276, %v3002
    %3013 = vst.msk [vmem:[#allocation2 + $0x170] sm:$0xff] %vm2274, %v3004
    %3014 = vst.msk [vmem:[#allocation2 + $0x180] sm:$0x3] %vm2276, %v3006
    %3015 = vrot.lane.b32.xlu0 %v2283, 42
    %v3016 = vpop.permute.xlu0 %3015
    %3017 = vrot.lane.b32.xlu0 %v2282, 42
    %v3018 = vpop.permute.xlu0 %3017
    %3019 = vrot.lane.b32.xlu0 %v2286, 42
    %v3020 = vpop.permute.xlu0 %3019
    %3021 = vrot.lane.b32.xlu0 %v2285, 42
    %v3022 = vpop.permute.xlu0 %3021
    %3027 = vst.msk [vmem:[#allocation2 + $0xa0] sm:$0xff] %vm2299, %v3016
    %3028 = vst.msk [vmem:[#allocation2 + $0xb0] sm:$0x3] %vm2301, %v3018
    %3029 = vst.msk [vmem:[#allocation2 + $0x170] sm:$0xff] %vm2299, %v3020
    %3030 = vst.msk [vmem:[#allocation2 + $0x180] sm:$0x3] %vm2301, %v3022
    %3031 = vrot.lane.b32.xlu0 %v2308, 72
    %v3032 = vpop.permute.xlu0 %3031
    %3033 = vrot.lane.b32.xlu0 %v2307, 72
    %v3034 = vpop.permute.xlu0 %3033
    %3035 = vrot.lane.b32.xlu0 %v2311, 72
    %v3036 = vpop.permute.xlu0 %3035
    %3037 = vrot.lane.b32.xlu0 %v2310, 72
    %v3038 = vpop.permute.xlu0 %3037
    %3043 = vst.msk [vmem:[#allocation2 + $0xa0] sm:$0xff] %vm2324, %v3032
    %3044 = vst.msk [vmem:[#allocation2 + $0xa8] sm:$0xff] %vm2326, %v3032
    %3045 = vst.msk [vmem:[#allocation2 + $0xb0] sm:$0x3] %vm2328, %v3034
    %3046 = vst.msk [vmem:[#allocation2 + $0xb8] sm:$0x3] %vm2330, %v3034
    %3047 = vst.msk [vmem:[#allocation2 + $0x170] sm:$0xff] %vm2324, %v3036
    %3048 = vst.msk [vmem:[#allocation2 + $0x178] sm:$0xff] %vm2326, %v3036
    %3049 = vst.msk [vmem:[#allocation2 + $0x180] sm:$0x3] %vm2328, %v3038
    %3050 = vst.msk [vmem:[#allocation2 + $0x188] sm:$0x3] %vm2330, %v3038
    %3051 = vrot.lane.b32.xlu0 %v2337, 74
    %v3052 = vpop.permute.xlu0 %3051
    %3053 = vrot.lane.b32.xlu0 %v2339, 74
    %v3054 = vpop.permute.xlu0 %3053
    %3055 = vrot.lane.b32.xlu0 %v2340, 74
    %v3056 = vpop.permute.xlu0 %3055
    %3057 = vrot.lane.b32.xlu0 %v2342, 74
    %v3058 = vpop.permute.xlu0 %3057
    %3063 = vst.msk [vmem:[#allocation2 + $0xb0] sm:$0xfc] %vm2355, %v3052
    %3064 = vst.msk [vmem:[#allocation2 + $0xc0] sm:$0xf] %vm2357, %v3054
    %3065 = vst.msk [vmem:[#allocation2 + $0x180] sm:$0xfc] %vm2355, %v3056
    %3066 = vst.msk [vmem:[#allocation2 + $0x190] sm:$0xf] %vm2357, %v3058
    %3067 = vrot.lane.b32.xlu0 %v2362, 104
    %v3068 = vpop.permute.xlu0 %3067
    %3069 = vrot.lane.b32.xlu0 %v2364, 104
    %v3070 = vpop.permute.xlu0 %3069
    %3071 = vrot.lane.b32.xlu0 %v2365, 104
    %v3072 = vpop.permute.xlu0 %3071
    %3073 = vrot.lane.b32.xlu0 %v2367, 104
    %v3074 = vpop.permute.xlu0 %3073
    %3079 = vst.msk [vmem:[#allocation2 + $0xb0] sm:$0xfc] %vm2380, %v3068
    %3080 = vst.msk [vmem:[#allocation2 + $0xc0] sm:$0xf] %vm2382, %v3070
    %3081 = vst.msk [vmem:[#allocation2 + $0x180] sm:$0xfc] %vm2380, %v3072
    %3082 = vst.msk [vmem:[#allocation2 + $0x190] sm:$0xf] %vm2382, %v3074
    %3083 = vrot.lane.b32.xlu0 %v2216, 6
    %v3084 = vpop.permute.xlu0 %3083
    %3085 = vrot.lane.b32.xlu0 %v2217, 6
    %v3086 = vpop.permute.xlu0 %3085
    %3087 = vrot.lane.b32.xlu0 %v2218, 6
    %v3088 = vpop.permute.xlu0 %3087
    %3089 = vrot.lane.b32.xlu0 %v2219, 6
    %v3090 = vpop.permute.xlu0 %3089
    %3095 = vst.msk [vmem:[#allocation2 + $0xb0] sm:$0xfc] %vm2398, %v3084
    %3096 = vst.msk [vmem:[#allocation2 + $0xc0] sm:$0xf] %vm2400, %v3086
    %3097 = vst.msk [vmem:[#allocation2 + $0x180] sm:$0xfc] %vm2398, %v3088
    %3098 = vst.msk [vmem:[#allocation2 + $0x190] sm:$0xf] %vm2400, %v3090
    %3099 = vrot.lane.b32.xlu0 %v2233, 36
    %v3100 = vpop.permute.xlu0 %3099
    %3101 = vrot.lane.b32.xlu0 %v2232, 36
    %v3102 = vpop.permute.xlu0 %3101
    %3103 = vrot.lane.b32.xlu0 %v2236, 36
    %v3104 = vpop.permute.xlu0 %3103
    %3105 = vrot.lane.b32.xlu0 %v2235, 36
    %v3106 = vpop.permute.xlu0 %3105
    %3111 = vst.msk [vmem:[#allocation2 + $0xb0] sm:$0xfc] %vm2416, %v3100
    %3112 = vst.msk [vmem:[#allocation2 + $0xc0] sm:$0xf] %vm2418, %v3102
    %3113 = vst.msk [vmem:[#allocation2 + $0x180] sm:$0xfc] %vm2416, %v3104
    %3114 = vst.msk [vmem:[#allocation2 + $0x190] sm:$0xf] %vm2418, %v3106
    %3115 = vrot.lane.b32.xlu0 %v2258, 66
    %v3116 = vpop.permute.xlu0 %3115
    %3117 = vrot.lane.b32.xlu0 %v2257, 66
    %v3118 = vpop.permute.xlu0 %3117
    %3119 = vrot.lane.b32.xlu0 %v2261, 66
    %v3120 = vpop.permute.xlu0 %3119
    %3121 = vrot.lane.b32.xlu0 %v2260, 66
    %v3122 = vpop.permute.xlu0 %3121
    %3127 = vst.msk [vmem:[#allocation2 + $0xb0] sm:$0xfc] %vm2434, %v3116
    %3128 = vst.msk [vmem:[#allocation2 + $0xb8] sm:$0xfc] %vm2436, %v3116
    %3129 = vst.msk [vmem:[#allocation2 + $0xc0] sm:$0xf] %vm2438, %v3118
    %3130 = vst.msk [vmem:[#allocation2 + $0xc8] sm:$0xf] %vm2440, %v3118
    %3131 = vst.msk [vmem:[#allocation2 + $0x180] sm:$0xfc] %vm2434, %v3120
    %3132 = vst.msk [vmem:[#allocation2 + $0x188] sm:$0xfc] %vm2436, %v3120
    %3133 = vst.msk [vmem:[#allocation2 + $0x190] sm:$0xf] %vm2438, %v3122
    %3134 = vst.msk [vmem:[#allocation2 + $0x198] sm:$0xf] %vm2440, %v3122
    %v3135 = vld [vmem:[#allocation2] sm:$0xff]
    %v3136 = vld [vmem:[#allocation2 + $0x8] sm:$0xff]
    %v3137 = vld [vmem:[#allocation2 + $0x10] sm:$0xff]
    %v3138 = vld [vmem:[#allocation2 + $0x18] sm:$0xff]
    %v3139 = vld [vmem:[#allocation2 + $0x20] sm:$0xff]
    %v3140 = vld [vmem:[#allocation2 + $0x28] sm:$0xff]
    %v3141 = vld [vmem:[#allocation2 + $0x30] sm:$0xff]
    %v3142 = vld [vmem:[#allocation2 + $0x38] sm:$0xff]
    %v3143 = vld [vmem:[#allocation2 + $0x40] sm:$0xff]
    %v3144 = vld [vmem:[#allocation2 + $0x48] sm:$0xff]
    %v3145 = vld [vmem:[#allocation2 + $0x50] sm:$0xff]
    %v3146 = vld [vmem:[#allocation2 + $0x58] sm:$0xff]
    %v3147 = vld [vmem:[#allocation2 + $0x60] sm:$0xff]
    %v3148 = vld [vmem:[#allocation2 + $0x68] sm:$0xff]
    %v3149 = vld [vmem:[#allocation2 + $0x70] sm:$0xff]
    %v3150 = vld [vmem:[#allocation2 + $0x78] sm:$0xff]
    %v3151 = vld [vmem:[#allocation2 + $0x80] sm:$0xff]
    %v3152 = vld [vmem:[#allocation2 + $0x88] sm:$0xff]
    %v3153 = vld [vmem:[#allocation2 + $0x90] sm:$0xff]
    %v3154 = vld [vmem:[#allocation2 + $0x98] sm:$0xff]
    %v3155 = vld [vmem:[#allocation2 + $0xa0] sm:$0xff]
    %v3156 = vld [vmem:[#allocation2 + $0xa8] sm:$0xff]
    %v3157 = vld [vmem:[#allocation2 + $0xb0] sm:$0xff]
    %v3158 = vld [vmem:[#allocation2 + $0xb8] sm:$0xff]
    %v3159 = vld [vmem:[#allocation2 + $0xc0] sm:$0xf]
    %v3160 = vld [vmem:[#allocation2 + $0xc8] sm:$0xf]
    %v3161 = vld [vmem:[#allocation2 + $0xd0] sm:$0xff]
    %v3162 = vld [vmem:[#allocation2 + $0xd8] sm:$0xff]
    %v3163 = vld [vmem:[#allocation2 + $0xe0] sm:$0xff]
    %v3164 = vld [vmem:[#allocation2 + $0xe8] sm:$0xff]
    %v3165 = vld [vmem:[#allocation2 + $0xf0] sm:$0xff]
    %v3166 = vld [vmem:[#allocation2 + $0xf8] sm:$0xff]
    %v3167 = vld [vmem:[#allocation2 + $0x100] sm:$0xff]
    %v3168 = vld [vmem:[#allocation2 + $0x108] sm:$0xff]
    %v3169 = vld [vmem:[#allocation2 + $0x110] sm:$0xff]
    %v3170 = vld [vmem:[#allocation2 + $0x118] sm:$0xff]
    %v3171 = vld [vmem:[#allocation2 + $0x120] sm:$0xff]
    %v3172 = vld [vmem:[#allocation2 + $0x128] sm:$0xff]
    %v3173 = vld [vmem:[#allocation2 + $0x130] sm:$0xff]
    %v3174 = vld [vmem:[#allocation2 + $0x138] sm:$0xff]
    %v3175 = vld [vmem:[#allocation2 + $0x140] sm:$0xff]
    %v3176 = vld [vmem:[#allocation2 + $0x148] sm:$0xff]
    %v3177 = vld [vmem:[#allocation2 + $0x150] sm:$0xff]
    %v3178 = vld [vmem:[#allocation2 + $0x158] sm:$0xff]
    %v3179 = vld [vmem:[#allocation2 + $0x160] sm:$0xff]
    %v3180 = vld [vmem:[#allocation2 + $0x168] sm:$0xff]
    %v3181 = vld [vmem:[#allocation2 + $0x170] sm:$0xff]
    %v3182 = vld [vmem:[#allocation2 + $0x178] sm:$0xff]
    %v3183 = vld [vmem:[#allocation2 + $0x180] sm:$0xff]
    %v3184 = vld [vmem:[#allocation2 + $0x188] sm:$0xff]
    %v3185 = vld [vmem:[#allocation2 + $0x190] sm:$0xf]
    %v3186 = vld [vmem:[#allocation2 + $0x198] sm:$0xf]
    %v3187 = vld [vmem:[%s3] sm:$0xff]
    %v3188 = vld [vmem:[%s3 + $0x8] sm:$0xff]
    %v3189 = vld [vmem:[%s3 + $0x10] sm:$0xff]
    %v3190 = vld [vmem:[%s3 + $0x18] sm:$0xff]
    %v3191 = vld [vmem:[%s3 + $0x20] sm:$0xff]
    %v3192 = vld [vmem:[%s3 + $0x28] sm:$0xff]
    %v3193 = vld [vmem:[%s3 + $0x30] sm:$0xff]
    %v3194 = vld [vmem:[%s3 + $0x38] sm:$0xff]
    %v3195 = vld [vmem:[%s3 + $0x40] sm:$0xff]
    %v3196 = vld [vmem:[%s3 + $0x48] sm:$0xff]
    %v3197 = vld [vmem:[%s3 + $0x50] sm:$0xff]
    %v3198 = vld [vmem:[%s3 + $0x58] sm:$0xff]
    %v3199 = vld [vmem:[%s3 + $0x60] sm:$0xff]
    %v3200 = vld [vmem:[%s3 + $0x68] sm:$0xff]
    %v3201 = vld [vmem:[%s3 + $0x70] sm:$0xff]
    %v3202 = vld [vmem:[%s3 + $0x78] sm:$0xff]
    %v3203 = vld [vmem:[%s3 + $0x80] sm:$0xff]
    %v3204 = vld [vmem:[%s3 + $0x88] sm:$0xff]
    %v3205 = vld [vmem:[%s3 + $0x90] sm:$0x3f]
    %v3207 = vsel %vm2326, %v3136, 0
    %v3210 = vsel %vm2326, %v3138, 0
    %v3213 = vsel %vm2326, %v3140, 0
    %v3216 = vsel %vm2326, %v3142, 0
    %v3219 = vsel %vm2326, %v3144, 0
    %v3222 = vsel %vm2326, %v3146, 0
    %v3225 = vsel %vm2326, %v3148, 0
    %v3228 = vsel %vm2326, %v3150, 0
    %v3231 = vsel %vm2326, %v3152, 0
    %v3234 = vsel %vm2326, %v3154, 0
    %v3237 = vsel %vm2326, %v3156, 0
    %v3240 = vsel %vm2326, %v3158, 0
    %v3243 = vsel %vm2326, %v3160, 0
    %v3246 = vsel %vm2255, %v3205, 0
    %3248 = vmatprep.subr.mxu0 0.0
    %3249 = vmatpush1.msra.mxu0 %v3187
    %3250 = vmatprep.subr.mxu0 0.0
    %3251 = vmatpush1.msra.mxu0 %v3188
    %3252 = vmatprep.subr.mxu0 0.0
    %3253 = vmatpush1.msra.mxu0 %v3189
    %3254 = vmatprep.subr.mxu0 0.0
    %3255 = vmatpush1.msra.mxu0 %v3190
    %3256 = vmatprep.subr.mxu0 0.0
    %3257 = vmatpush1.msra.mxu0 %v3191
    %3258 = vmatprep.subr.mxu0 0.0
    %3259 = vmatpush1.msra.mxu0 %v3192
    %3260 = vmatprep.subr.mxu0 0.0
    %3261 = vmatpush1.msra.mxu0 %v3193
    %3262 = vmatprep.subr.mxu0 0.0
    %3263 = vmatpush1.msra.mxu0 %v3194
    %3264 = vmatprep.subr.mxu0 0.0
    %3265 = vmatpush1.msra.mxu0 %v3195
    %3266 = vmatprep.subr.mxu0 0.0
    %3267 = vmatpush1.msra.mxu0 %v3196
    %3268 = vmatprep.subr.mxu0 0.0
    %3269 = vmatpush1.msra.mxu0 %v3197
    %3270 = vmatprep.subr.mxu0 0.0
    %3271 = vmatpush1.msra.mxu0 %v3198
    %3272 = vmatprep.subr.mxu0 0.0
    %3273 = vmatpush1.msra.mxu0 %v3199
    %3274 = vmatprep.subr.mxu0 0.0
    %3275 = vmatpush1.msra.mxu0 %v3200
    %3276 = vmatprep.subr.mxu0 0.0
    %3277 = vmatpush1.msra.mxu0 %v3201
    %3278 = vmatprep.subr.mxu0 0.0
    %3279 = vmatpush1.msra.mxu0 %v3202
    %3280 = vmatprep.subr.mxu0 0.0
    %3281 = vmatpush1.msra.mxu0 %v3203
    %3282 = vmatprep.subr.mxu0 0.0
    %3283 = vmatpush1.msra.mxu0 %v3204
    %3284 = vmatprep.subr.mxu0 0.0
    %3285 = vmatpush1.msra.mxu0 %v3246
    %3286 = vmatprep.subr.mxu0 0.0
    %3287 = vmatpush1.msra.mxu0 0.0
    %3288 = vmatprep.subr.mxu0 0.0
    %3289 = vmatpush1.msra.mxu0 0.0
    %3290 = vmatprep.subr.mxu0 0.0
    %3291 = vmatpush1.msra.mxu0 0.0
    %3292 = vmatprep.subr.mxu0 0.0
    %3293 = vmatpush1.msra.mxu0 0.0
    %3294 = vmatprep.subr.mxu0 0.0
    %3295 = vmatpush1.msra.mxu0 0.0
    %3296 = vmatprep.subr.mxu0 0.0
    %3297 = vmatpush1.msra.mxu0 0.0
    %3298 = vmatprep.subr.mxu0 0.0
    %3299 = vmatpush1.msra.mxu0 0.0
    %3300 = vmatprep.subr.mxu0 0.0
    %3301 = vmatpush1.msra.mxu0 0.0
    %3302 = vmatprep.subr.mxu0 0.0
    %3303 = vmatpush1.msra.mxu0 0.0
    %3304 = vmatprep.subr.mxu0 0.0
    %3305 = vmatpush1.msra.mxu0 0.0
    %3306 = vmatprep.subr.mxu0 0.0
    %3307 = vmatpush1.msra.mxu0 0.0
    %3308 = vmatprep.subr.mxu0 0.0
    %3309 = vmatpush1.msra.mxu0 0.0
    %3310 = vmatprep.subr.mxu0 0.0
    %3311 = vmatpush1.msra.mxu0 0.0
    %3312 = vmatprep.mubr.f32.mxu0 %v3207
    %3313 = vmatmul.mubr.f32.gmra.mrb[0].mxu0 %v3135
    %v3314 = vpop.f32.mrb[0].mxu0
    %v3315 = vadd.f32 0.0, %v3314
    %v3316 = vpop.f32.mrb[0].mxu0
    %3317 = vmatprep.mubr.f32.mxu0 %v3210
    %3318 = vmatmul.mubr.f32.gmra.mrb[0].mxu0 %v3137
    %v3319 = vpop.f32.mrb[0].mxu0
    %v3320 = vadd.f32 0.0, %v3319
    %v3321 = vpop.f32.mrb[0].mxu0
    %3322 = vmatprep.mubr.f32.mxu0 %v3213
    %3323 = vmatmul.mubr.f32.gmra.mrb[0].mxu0 %v3139
    %v3324 = vpop.f32.mrb[0].mxu0
    %v3325 = vadd.f32 0.0, %v3324
    %v3326 = vpop.f32.mrb[0].mxu0
    %3327 = vmatprep.mubr.f32.mxu0 %v3216
    %3328 = vmatmul.mubr.f32.gmra.mrb[0].mxu0 %v3141
    %v3329 = vpop.f32.mrb[0].mxu0
    %v3330 = vadd.f32 0.0, %v3329
    %v3331 = vpop.f32.mrb[0].mxu0
    %3332 = vmatprep.mubr.f32.mxu0 %v3219
    %3333 = vmatmul.mubr.f32.gmra.mrb[0].mxu0 %v3143
    %v3334 = vpop.f32.mrb[0].mxu0
    %v3335 = vadd.f32 0.0, %v3334
    %v3336 = vpop.f32.mrb[0].mxu0
    %3337 = vmatprep.mubr.f32.mxu0 %v3222
    %3338 = vmatmul.mubr.f32.gmra.mrb[0].mxu0 %v3145
    %v3339 = vpop.f32.mrb[0].mxu0
    %v3340 = vadd.f32 0.0, %v3339
    %v3341 = vpop.f32.mrb[0].mxu0
    %3342 = vmatprep.mubr.f32.mxu0 %v3225
    %3343 = vmatmul.mubr.f32.gmra.mrb[0].mxu0 %v3147
    %v3344 = vpop.f32.mrb[0].mxu0
    %v3345 = vadd.f32 0.0, %v3344
    %v3346 = vpop.f32.mrb[0].mxu0
    %3347 = vmatprep.mubr.f32.mxu0 %v3228
    %3348 = vmatmul.mubr.f32.gmra.mrb[0].mxu0 %v3149
    %v3349 = vpop.f32.mrb[0].mxu0
    %v3350 = vadd.f32 0.0, %v3349
    %v3351 = vpop.f32.mrb[0].mxu0
    %3352 = vmatprep.mubr.f32.mxu0 %v3231
    %3353 = vmatmul.mubr.f32.gmra.mrb[0].mxu0 %v3151
    %v3354 = vpop.f32.mrb[0].mxu0
    %v3355 = vadd.f32 0.0, %v3354
    %v3356 = vpop.f32.mrb[0].mxu0
    %3357 = vmatprep.mubr.f32.mxu0 %v3234
    %3358 = vmatmul.mubr.f32.gmra.mrb[0].mxu0 %v3153
    %v3359 = vpop.f32.mrb[0].mxu0
    %v3360 = vadd.f32 0.0, %v3359
    %v3361 = vpop.f32.mrb[0].mxu0
    %3362 = vmatprep.mubr.f32.mxu0 %v3237
    %3363 = vmatmul.mubr.f32.gmra.mrb[0].mxu0 %v3155
    %v3364 = vpop.f32.mrb[0].mxu0
    %v3365 = vadd.f32 0.0, %v3364
    %v3366 = vpop.f32.mrb[0].mxu0
    %3367 = vmatprep.mubr.f32.mxu0 %v3240
    %3368 = vmatmul.mubr.f32.gmra.mrb[0].mxu0 %v3157
    %v3369 = vpop.f32.mrb[0].mxu0
    %v3370 = vadd.f32 0.0, %v3369
    %v3371 = vpop.f32.mrb[0].mxu0
    %3372 = vmatprep.mubr.f32.mxu0 %v3243
    %3373 = vmatmul.mubr.f32.gmra.mrb[0].mxu0 %v3159
    %v3374 = vpop.f32.mrb[0].mxu0
    %v3375 = vadd.f32 0.0, %v3374
    %v3376 = vpop.f32.mrb[0].mxu0
    %3377 = vdwg.mxu0
    %v3379 = vsel %vm2326, %v3162, 0
    %v3382 = vsel %vm2326, %v3164, 0
    %v3385 = vsel %vm2326, %v3166, 0
    %v3388 = vsel %vm2326, %v3168, 0
    %v3391 = vsel %vm2326, %v3170, 0
    %v3394 = vsel %vm2326, %v3172, 0
    %v3397 = vsel %vm2326, %v3174, 0
    %v3400 = vsel %vm2326, %v3176, 0
    %v3403 = vsel %vm2326, %v3178, 0
    %v3406 = vsel %vm2326, %v3180, 0
    %v3409 = vsel %vm2326, %v3182, 0
    %v3412 = vsel %vm2326, %v3184, 0
    %v3415 = vsel %vm2326, %v3186, 0
    %3417 = vmatprep.subr.mxu0 0.0
    %3418 = vmatpush1.msra.mxu0 %v3187
    %3419 = vmatprep.subr.mxu0 0.0
    %3420 = vmatpush1.msra.mxu0 %v3188
    %3421 = vmatprep.subr.mxu0 0.0
    %3422 = vmatpush1.msra.mxu0 %v3189
    %3423 = vmatprep.subr.mxu0 0.0
    %3424 = vmatpush1.msra.mxu0 %v3190
    %3425 = vmatprep.subr.mxu0 0.0
    %3426 = vmatpush1.msra.mxu0 %v3191
    %3427 = vmatprep.subr.mxu0 0.0
    %3428 = vmatpush1.msra.mxu0 %v3192
    %3429 = vmatprep.subr.mxu0 0.0
    %3430 = vmatpush1.msra.mxu0 %v3193
    %3431 = vmatprep.subr.mxu0 0.0
    %3432 = vmatpush1.msra.mxu0 %v3194
    %3433 = vmatprep.subr.mxu0 0.0
    %3434 = vmatpush1.msra.mxu0 %v3195
    %3435 = vmatprep.subr.mxu0 0.0
    %3436 = vmatpush1.msra.mxu0 %v3196
    %3437 = vmatprep.subr.mxu0 0.0
    %3438 = vmatpush1.msra.mxu0 %v3197
    %3439 = vmatprep.subr.mxu0 0.0
    %3440 = vmatpush1.msra.mxu0 %v3198
    %3441 = vmatprep.subr.mxu0 0.0
    %3442 = vmatpush1.msra.mxu0 %v3199
    %3443 = vmatprep.subr.mxu0 0.0
    %3444 = vmatpush1.msra.mxu0 %v3200
    %3445 = vmatprep.subr.mxu0 0.0
    %3446 = vmatpush1.msra.mxu0 %v3201
    %3447 = vmatprep.subr.mxu0 0.0
    %3448 = vmatpush1.msra.mxu0 %v3202
    %3449 = vmatprep.subr.mxu0 0.0
    %3450 = vmatpush1.msra.mxu0 %v3203
    %3451 = vmatprep.subr.mxu0 0.0
    %3452 = vmatpush1.msra.mxu0 %v3204
    %3453 = vmatprep.subr.mxu0 0.0
    %3454 = vmatpush1.msra.mxu0 %v3246
    %3455 = vmatprep.subr.mxu0 0.0
    %3456 = vmatpush1.msra.mxu0 0.0
    %3457 = vmatprep.subr.mxu0 0.0
    %3458 = vmatpush1.msra.mxu0 0.0
    %3459 = vmatprep.subr.mxu0 0.0
    %3460 = vmatpush1.msra.mxu0 0.0
    %3461 = vmatprep.subr.mxu0 0.0
    %3462 = vmatpush1.msra.mxu0 0.0
    %3463 = vmatprep.subr.mxu0 0.0
    %3464 = vmatpush1.msra.mxu0 0.0
    %3465 = vmatprep.subr.mxu0 0.0
    %3466 = vmatpush1.msra.mxu0 0.0
    %3467 = vmatprep.subr.mxu0 0.0
    %3468 = vmatpush1.msra.mxu0 0.0
    %3469 = vmatprep.subr.mxu0 0.0
    %3470 = vmatpush1.msra.mxu0 0.0
    %3471 = vmatprep.subr.mxu0 0.0
    %3472 = vmatpush1.msra.mxu0 0.0
    %3473 = vmatprep.subr.mxu0 0.0
    %3474 = vmatpush1.msra.mxu0 0.0
    %3475 = vmatprep.subr.mxu0 0.0
    %3476 = vmatpush1.msra.mxu0 0.0
    %3477 = vmatprep.subr.mxu0 0.0
    %3478 = vmatpush1.msra.mxu0 0.0
    %3479 = vmatprep.subr.mxu0 0.0
    %3480 = vmatpush1.msra.mxu0 0.0
    %3481 = vmatprep.mubr.f32.mxu0 %v3379
    %3482 = vmatmul.mubr.f32.gmra.mrb[0].mxu0 %v3161
    %v3483 = vpop.f32.mrb[0].mxu0
    %v3484 = vadd.f32 0.0, %v3483
    %v3485 = vpop.f32.mrb[0].mxu0
    %3486 = vmatprep.mubr.f32.mxu0 %v3382
    %3487 = vmatmul.mubr.f32.gmra.mrb[0].mxu0 %v3163
    %v3488 = vpop.f32.mrb[0].mxu0
    %v3489 = vadd.f32 0.0, %v3488
    %v3490 = vpop.f32.mrb[0].mxu0
    %3491 = vmatprep.mubr.f32.mxu0 %v3385
    %3492 = vmatmul.mubr.f32.gmra.mrb[0].mxu0 %v3165
    %v3493 = vpop.f32.mrb[0].mxu0
    %v3494 = vadd.f32 0.0, %v3493
    %v3495 = vpop.f32.mrb[0].mxu0
    %3496 = vmatprep.mubr.f32.mxu0 %v3388
    %3497 = vmatmul.mubr.f32.gmra.mrb[0].mxu0 %v3167
    %v3498 = vpop.f32.mrb[0].mxu0
    %v3499 = vadd.f32 0.0, %v3498
    %v3500 = vpop.f32.mrb[0].mxu0
    %3501 = vmatprep.mubr.f32.mxu0 %v3391
    %3502 = vmatmul.mubr.f32.gmra.mrb[0].mxu0 %v3169
    %v3503 = vpop.f32.mrb[0].mxu0
    %v3504 = vadd.f32 0.0, %v3503
    %v3505 = vpop.f32.mrb[0].mxu0
    %3506 = vmatprep.mubr.f32.mxu0 %v3394
    %3507 = vmatmul.mubr.f32.gmra.mrb[0].mxu0 %v3171
    %v3508 = vpop.f32.mrb[0].mxu0
    %v3509 = vadd.f32 0.0, %v3508
    %v3510 = vpop.f32.mrb[0].mxu0
    %3511 = vmatprep.mubr.f32.mxu0 %v3397
    %3512 = vmatmul.mubr.f32.gmra.mrb[0].mxu0 %v3173
    %v3513 = vpop.f32.mrb[0].mxu0
    %v3514 = vadd.f32 0.0, %v3513
    %v3515 = vpop.f32.mrb[0].mxu0
    %3516 = vmatprep.mubr.f32.mxu0 %v3400
    %3517 = vmatmul.mubr.f32.gmra.mrb[0].mxu0 %v3175
    %v3518 = vpop.f32.mrb[0].mxu0
    %v3519 = vadd.f32 0.0, %v3518
    %v3520 = vpop.f32.mrb[0].mxu0
    %3521 = vmatprep.mubr.f32.mxu0 %v3403
    %3522 = vmatmul.mubr.f32.gmra.mrb[0].mxu0 %v3177
    %v3523 = vpop.f32.mrb[0].mxu0
    %v3524 = vadd.f32 0.0, %v3523
    %v3525 = vpop.f32.mrb[0].mxu0
    %3526 = vmatprep.mubr.f32.mxu0 %v3406
    %3527 = vmatmul.mubr.f32.gmra.mrb[0].mxu0 %v3179
    %v3528 = vpop.f32.mrb[0].mxu0
    %v3529 = vadd.f32 0.0, %v3528
    %v3530 = vpop.f32.mrb[0].mxu0
    %3531 = vmatprep.mubr.f32.mxu0 %v3409
    %3532 = vmatmul.mubr.f32.gmra.mrb[0].mxu0 %v3181
    %v3533 = vpop.f32.mrb[0].mxu0
    %v3534 = vadd.f32 0.0, %v3533
    %v3535 = vpop.f32.mrb[0].mxu0
    %3536 = vmatprep.mubr.f32.mxu0 %v3412
    %3537 = vmatmul.mubr.f32.gmra.mrb[0].mxu0 %v3183
    %v3538 = vpop.f32.mrb[0].mxu0
    %v3539 = vadd.f32 0.0, %v3538
    %v3540 = vpop.f32.mrb[0].mxu0
    %3541 = vmatprep.mubr.f32.mxu0 %v3415
    %3542 = vmatmul.mubr.f32.gmra.mrb[0].mxu0 %v3185
    %v3543 = vpop.f32.mrb[0].mxu0
    %v3544 = vadd.f32 0.0, %v3543
    %v3545 = vpop.f32.mrb[0].mxu0
    %3546 = vdwg.mxu0
    %v3573 = vrot.slane %v3315, 1
    %v3574 = vrot.slane %v3320, 1
    %v3575 = vsel %vm2230, %v3573, %v3574
    %v3576 = vrot.slane %v3325, 1
    %v3577 = vsel %vm2230, %v3574, %v3576
    %v3578 = vrot.slane %v3330, 1
    %v3579 = vsel %vm2230, %v3576, %v3578
    %v3580 = vrot.slane %v3335, 1
    %v3581 = vsel %vm2230, %v3578, %v3580
    %v3582 = vrot.slane %v3340, 1
    %v3583 = vsel %vm2230, %v3580, %v3582
    %v3584 = vrot.slane %v3345, 1
    %v3585 = vsel %vm2230, %v3582, %v3584
    %v3586 = vrot.slane %v3350, 1
    %v3587 = vsel %vm2230, %v3584, %v3586
    %v3588 = vrot.slane %v3355, 1
    %v3589 = vsel %vm2230, %v3586, %v3588
    %v3590 = vrot.slane %v3360, 1
    %v3591 = vsel %vm2230, %v3588, %v3590
    %v3592 = vrot.slane %v3365, 1
    %v3593 = vsel %vm2230, %v3590, %v3592
    %v3594 = vrot.slane %v3370, 1
    %v3595 = vsel %vm2230, %v3592, %v3594
    %v3596 = vrot.slane %v3375, 1
    %v3597 = vsel %vm2230, %v3594, %v3596
    %v3598 = vrot.slane %v3484, 1
    %v3599 = vrot.slane %v3489, 1
    %v3600 = vsel %vm2230, %v3598, %v3599
    %v3601 = vrot.slane %v3494, 1
    %v3602 = vsel %vm2230, %v3599, %v3601
    %v3603 = vrot.slane %v3499, 1
    %v3604 = vsel %vm2230, %v3601, %v3603
    %v3605 = vrot.slane %v3504, 1
    %v3606 = vsel %vm2230, %v3603, %v3605
    %v3607 = vrot.slane %v3509, 1
    %v3608 = vsel %vm2230, %v3605, %v3607
    %v3609 = vrot.slane %v3514, 1
    %v3610 = vsel %vm2230, %v3607, %v3609
    %v3611 = vrot.slane %v3519, 1
    %v3612 = vsel %vm2230, %v3609, %v3611
    %v3613 = vrot.slane %v3524, 1
    %v3614 = vsel %vm2230, %v3611, %v3613
    %v3615 = vrot.slane %v3529, 1
    %v3616 = vsel %vm2230, %v3613, %v3615
    %v3617 = vrot.slane %v3534, 1
    %v3618 = vsel %vm2230, %v3615, %v3617
    %v3619 = vrot.slane %v3539, 1
    %v3620 = vsel %vm2230, %v3617, %v3619
    %v3621 = vrot.slane %v3544, 1
    %v3622 = vsel %vm2230, %v3619, %v3621
    %v3649 = vmax.f32 %v3315, %v3575
    %v3650 = vmax.f32 %v3320, %v3577
    %v3651 = vmax.f32 %v3325, %v3579
    %v3652 = vmax.f32 %v3330, %v3581
    %v3653 = vmax.f32 %v3335, %v3583
    %v3654 = vmax.f32 %v3340, %v3585
    %v3655 = vmax.f32 %v3345, %v3587
    %v3656 = vmax.f32 %v3350, %v3589
    %v3657 = vmax.f32 %v3355, %v3591
    %v3658 = vmax.f32 %v3360, %v3593
    %v3659 = vmax.f32 %v3365, %v3595
    %v3660 = vmax.f32 %v3370, %v3597
    %v3661 = vmax.f32 %v3375, %v3596
    %v3662 = vmax.f32 %v3484, %v3600
    %v3663 = vmax.f32 %v3489, %v3602
    %v3664 = vmax.f32 %v3494, %v3604
    %v3665 = vmax.f32 %v3499, %v3606
    %v3666 = vmax.f32 %v3504, %v3608
    %v3667 = vmax.f32 %v3509, %v3610
    %v3668 = vmax.f32 %v3514, %v3612
    %v3669 = vmax.f32 %v3519, %v3614
    %v3670 = vmax.f32 %v3524, %v3616
    %v3671 = vmax.f32 %v3529, %v3618
    %v3672 = vmax.f32 %v3534, %v3620
    %v3673 = vmax.f32 %v3539, %v3622
    %v3674 = vmax.f32 %v3544, %v3621
    %v3699 = vrot.slane %v3650, 2
    %v3700 = vrot.slane %v3651, 2
    %v3701 = vsel %vm2255, %v3699, %v3700
    %v3702 = vrot.slane %v3652, 2
    %v3703 = vsel %vm2255, %v3700, %v3702
    %v3704 = vrot.slane %v3653, 2
    %v3705 = vsel %vm2255, %v3702, %v3704
    %v3706 = vrot.slane %v3654, 2
    %v3707 = vsel %vm2255, %v3704, %v3706
    %v3708 = vrot.slane %v3655, 2
    %v3709 = vrot.slane %v3656, 2
    %v3710 = vsel %vm2255, %v3708, %v3709
    %v3711 = vrot.slane %v3657, 2
    %v3712 = vsel %vm2255, %v3709, %v3711
    %v3713 = vrot.slane %v3658, 2
    %v3714 = vsel %vm2255, %v3711, %v3713
    %v3715 = vrot.slane %v3659, 2
    %v3716 = vsel %vm2255, %v3713, %v3715
    %v3717 = vrot.slane %v3660, 2
    %v3718 = vrot.slane %v3661, 2
    %v3719 = vsel %vm2255, %v3717, %v3718
    %v3720 = vrot.slane %v3663, 2
    %v3721 = vrot.slane %v3664, 2
    %v3722 = vsel %vm2255, %v3720, %v3721
    %v3723 = vrot.slane %v3665, 2
    %v3724 = vsel %vm2255, %v3721, %v3723
    %v3725 = vrot.slane %v3666, 2
    %v3726 = vsel %vm2255, %v3723, %v3725
    %v3727 = vrot.slane %v3667, 2
    %v3728 = vsel %vm2255, %v3725, %v3727
    %v3729 = vrot.slane %v3668, 2
    %v3730 = vrot.slane %v3669, 2
    %v3731 = vsel %vm2255, %v3729, %v3730
    %v3732 = vrot.slane %v3670, 2
    %v3733 = vsel %vm2255, %v3730, %v3732
    %v3734 = vrot.slane %v3671, 2
    %v3735 = vsel %vm2255, %v3732, %v3734
    %v3736 = vrot.slane %v3672, 2
    %v3737 = vsel %vm2255, %v3734, %v3736
    %v3738 = vrot.slane %v3673, 2
    %v3739 = vrot.slane %v3674, 2
    %v3740 = vsel %vm2255, %v3738, %v3739
    %v3761 = vmax.f32 %v3649, %v3701
    %v3762 = vmax.f32 %v3650, %v3703
    %v3763 = vmax.f32 %v3651, %v3705
    %v3764 = vmax.f32 %v3652, %v3707
    %v3765 = vmax.f32 %v3654, %v3710
    %v3766 = vmax.f32 %v3655, %v3712
    %v3767 = vmax.f32 %v3656, %v3714
    %v3768 = vmax.f32 %v3657, %v3716
    %v3769 = vmax.f32 %v3659, %v3719
    %v3770 = vmax.f32 %v3660, %v3718
    %v3771 = vmax.f32 %v3662, %v3722
    %v3772 = vmax.f32 %v3663, %v3724
    %v3773 = vmax.f32 %v3664, %v3726
    %v3774 = vmax.f32 %v3665, %v3728
    %v3775 = vmax.f32 %v3667, %v3731
    %v3776 = vmax.f32 %v3668, %v3733
    %v3777 = vmax.f32 %v3669, %v3735
    %v3778 = vmax.f32 %v3670, %v3737
    %v3779 = vmax.f32 %v3672, %v3740
    %v3780 = vmax.f32 %v3673, %v3739
    %v3784 = vunpack.c.l.s4 1983009808
    %v3785 = vunpack.c.0.s8 %v3784
    %v3786 = vlaneseq
    %v3787 = vshrl.u32 %v3786, 7
    %v3788 = vsub.s32 %v3785, %v3787
    %v3789 = vrot.slane %v3761, %v3788
    %v3791 = vunpack.c.l.s4 1983009808
    %v3792 = vunpack.c.0.s8 %v3791
    %v3793 = vlaneseq
    %v3794 = vshrl.u32 %v3793, 7
    %v3795 = vsub.s32 %v3792, %v3794
    %v3796 = vrot.slane %v3771, %v3795
    %vm3797 = vcmask 1044484
    %v3798 = vsel %vm3797, %v3789, %v3789
    %vm3799 = vcmask 1046534
    %v3800 = vsel %vm3799, %v3789, %v3798
    %v3801 = vrot.slane %v3796, 7
    %vm3802 = vcmask 1041409
    %v3803 = vsel %vm3802, %v3801, %v3800
    %vm3804 = vcmask 1043459
    %v3805 = vsel %vm3804, %v3801, %v3803
    %vm3806 = vcmask 1045509
    %v3807 = vsel %vm3806, %v3801, %v3805
    %vm3808 = vcmask 1047559
    %v3809 = vsel %vm3808, %v3801, %v3807
    %vm3811 = vcmask 123904
    %3812 = vst.msk [vmem:[#allocation3] sm:$0x3] %vm3811, %v3809
    %v3815 = vcombine.high %v3763, %v3763
    %v3817 = vunpack.c.l.s4 1983009808
    %v3818 = vunpack.c.0.s8 %v3817
    %v3819 = vlaneseq
    %v3820 = vshrl.u32 %v3819, 7
    %v3821 = vsub.s32 %v3818, %v3820
    %v3822 = vrot.slane %v3815, %v3821
    %v3823 = vcombine.high %v3773, %v3773
    %v3825 = vunpack.c.l.s4 1983009808
    %v3826 = vunpack.c.0.s8 %v3825
    %v3827 = vlaneseq
    %v3828 = vshrl.u32 %v3827, 7
    %v3829 = vsub.s32 %v3826, %v3828
    %v3830 = vrot.slane %v3823, %v3829
    %v3831 = vsel %vm3797, %v3822, %v3822
    %v3832 = vsel %vm3799, %v3822, %v3831
    %v3833 = vrot.slane %v3830, 7
    %v3834 = vsel %vm3802, %v3833, %v3832
    %v3835 = vsel %vm3804, %v3833, %v3834
    %v3836 = vsel %vm3806, %v3833, %v3835
    %v3837 = vsel %vm3808, %v3833, %v3836
    %3838 = vrot.lane.b32.xlu0 %v3837, 16
    %v3839 = vpop.permute.xlu0 %3838
    %vm3841 = vcmask 255104
    %3842 = vst.msk [vmem:[#allocation3] sm:$0x3] %vm3841, %v3839
    %v3846 = vunpack.c.l.s4 1983009808
    %v3847 = vunpack.c.0.s8 %v3846
    %v3848 = vlaneseq
    %v3849 = vshrl.u32 %v3848, 7
    %v3850 = vsub.s32 %v3847, %v3849
    %v3851 = vrot.slane %v3765, %v3850
    %v3853 = vunpack.c.l.s4 1983009808
    %v3854 = vunpack.c.0.s8 %v3853
    %v3855 = vlaneseq
    %v3856 = vshrl.u32 %v3855, 7
    %v3857 = vsub.s32 %v3854, %v3856
    %v3858 = vrot.slane %v3775, %v3857
    %v3859 = vsel %vm3797, %v3851, %v3851
    %v3860 = vsel %vm3799, %v3851, %v3859
    %v3861 = vrot.slane %v3858, 7
    %v3862 = vsel %vm3802, %v3861, %v3860
    %v3863 = vsel %vm3804, %v3861, %v3862
    %v3864 = vsel %vm3806, %v3861, %v3863
    %v3865 = vsel %vm3808, %v3861, %v3864
    %3866 = vrot.lane.b32.xlu0 %v3865, 32
    %v3867 = vpop.permute.xlu0 %3866
    %vm3869 = vcmask 386304
    %3870 = vst.msk [vmem:[#allocation3] sm:$0x3] %vm3869, %v3867
    %v3873 = vcombine.high %v3767, %v3767
    %v3875 = vunpack.c.l.s4 1983009808
    %v3876 = vunpack.c.0.s8 %v3875
    %v3877 = vlaneseq
    %v3878 = vshrl.u32 %v3877, 7
    %v3879 = vsub.s32 %v3876, %v3878
    %v3880 = vrot.slane %v3873, %v3879
    %v3881 = vcombine.high %v3777, %v3777
    %v3883 = vunpack.c.l.s4 1983009808
    %v3884 = vunpack.c.0.s8 %v3883
    %v3885 = vlaneseq
    %v3886 = vshrl.u32 %v3885, 7
    %v3887 = vsub.s32 %v3884, %v3886
    %v3888 = vrot.slane %v3881, %v3887
    %v3889 = vsel %vm3797, %v3880, %v3880
    %v3890 = vsel %vm3799, %v3880, %v3889
    %v3891 = vrot.slane %v3888, 7
    %v3892 = vsel %vm3802, %v3891, %v3890
    %v3893 = vsel %vm3804, %v3891, %v3892
    %v3894 = vsel %vm3806, %v3891, %v3893
    %v3895 = vsel %vm3808, %v3891, %v3894
    %3896 = vrot.lane.b32.xlu0 %v3895, 48
    %v3897 = vpop.permute.xlu0 %3896
    %vm3899 = vcmask 517504
    %3900 = vst.msk [vmem:[#allocation3] sm:$0x3] %vm3899, %v3897
    %v3904 = vunpack.c.l.s4 1983009808
    %v3905 = vunpack.c.0.s8 %v3904
    %v3906 = vlaneseq
    %v3907 = vshrl.u32 %v3906, 7
    %v3908 = vsub.s32 %v3905, %v3907
    %v3909 = vrot.slane %v3769, %v3908
    %v3911 = vunpack.c.l.s4 1983009808
    %v3912 = vunpack.c.0.s8 %v3911
    %v3913 = vlaneseq
    %v3914 = vshrl.u32 %v3913, 7
    %v3915 = vsub.s32 %v3912, %v3914
    %v3916 = vrot.slane %v3779, %v3915
    %v3917 = vsel %vm3797, %v3909, %v3909
    %v3918 = vsel %vm3799, %v3909, %v3917
    %v3919 = vrot.slane %v3916, 7
    %v3920 = vsel %vm3802, %v3919, %v3918
    %v3921 = vsel %vm3804, %v3919, %v3920
    %v3922 = vsel %vm3806, %v3919, %v3921
    %v3923 = vsel %vm3808, %v3919, %v3922
    %3924 = vrot.lane.b32.xlu0 %v3923, 64
    %v3925 = vpop.permute.xlu0 %3924
    %vm3927 = vcmask 648704
    %3928 = vst.msk [vmem:[#allocation3] sm:$0x3] %vm3927, %v3925
    %v3929 = vcombine.high %v3789, %v3789
    %v3930 = vcombine.high %v3796, %v3796
    %v3931 = vsel %vm3797, %v3929, %v3929
    %v3932 = vsel %vm3799, %v3929, %v3931
    %v3933 = vrot.slane %v3930, 7
    %v3934 = vsel %vm3802, %v3933, %v3932
    %v3935 = vsel %vm3804, %v3933, %v3934
    %v3936 = vsel %vm3806, %v3933, %v3935
    %v3937 = vsel %vm3808, %v3933, %v3936
    %3938 = vrot.lane.b32.xlu0 %v3937, 80
    %v3939 = vpop.permute.xlu0 %3938
    %vm3941 = vcmask 779904
    %3942 = vst.msk [vmem:[#allocation3] sm:$0x3] %vm3941, %v3939
    %v3943 = vcombine.high %v3822, %v3822
    %v3944 = vcombine.high %v3830, %v3830
    %v3945 = vsel %vm3797, %v3943, %v3943
    %v3946 = vsel %vm3799, %v3943, %v3945
    %v3947 = vrot.slane %v3944, 7
    %v3948 = vsel %vm3802, %v3947, %v3946
    %v3949 = vsel %vm3804, %v3947, %v3948
    %v3950 = vsel %vm3806, %v3947, %v3949
    %v3951 = vsel %vm3808, %v3947, %v3950
    %3952 = vrot.lane.b32.xlu0 %v3951, 96
    %v3953 = vpop.permute.xlu0 %3952
    %vm3955 = vcmask 911104
    %3956 = vst.msk [vmem:[#allocation3] sm:$0x3] %vm3955, %v3953
    %v3957 = vcombine.high %v3851, %v3851
    %v3958 = vcombine.high %v3858, %v3858
    %v3959 = vsel %vm3797, %v3957, %v3957
    %v3960 = vsel %vm3799, %v3957, %v3959
    %v3961 = vrot.slane %v3958, 7
    %v3962 = vsel %vm3802, %v3961, %v3960
    %v3963 = vsel %vm3804, %v3961, %v3962
    %v3964 = vsel %vm3806, %v3961, %v3963
    %v3965 = vsel %vm3808, %v3961, %v3964
    %3966 = vrot.lane.b32.xlu0 %v3965, 112
    %v3967 = vpop.permute.xlu0 %3966
    %vm3969 = vcmask 1042304
    %3970 = vst.msk [vmem:[#allocation3] sm:$0x3] %vm3969, %v3967
    %v3971 = vcombine.high %v3880, %v3880
    %v3972 = vcombine.high %v3888, %v3888
    %v3973 = vsel %vm3797, %v3971, %v3971
    %v3974 = vsel %vm3799, %v3971, %v3973
    %v3975 = vrot.slane %v3972, 7
    %v3976 = vsel %vm3802, %v3975, %v3974
    %v3977 = vsel %vm3804, %v3975, %v3976
    %v3978 = vsel %vm3806, %v3975, %v3977
    %v3979 = vsel %vm3808, %v3975, %v3978
    %3981 = vst.msk [vmem:[#allocation3 + $0x2] sm:$0x3] %vm3811, %v3979
    %v3982 = vcombine.high %v3909, %v3909
    %v3983 = vcombine.high %v3916, %v3916
    %v3984 = vsel %vm3797, %v3982, %v3982
    %v3985 = vsel %vm3799, %v3982, %v3984
    %v3986 = vrot.slane %v3983, 7
    %v3987 = vsel %vm3802, %v3986, %v3985
    %v3988 = vsel %vm3804, %v3986, %v3987
    %v3989 = vsel %vm3806, %v3986, %v3988
    %v3990 = vsel %vm3808, %v3986, %v3989
    %3991 = vrot.lane.b32.xlu0 %v3990, 16
    %v3992 = vpop.permute.xlu0 %3991
    %3994 = vst.msk [vmem:[#allocation3 + $0x2] sm:$0x3] %vm3841, %v3992
    %v3995 = vcombine.high %v3761, %v3761
    %v3997 = vunpack.c.l.s4 1983009808
    %v3998 = vunpack.c.0.s8 %v3997
    %v3999 = vlaneseq
    %v4000 = vshrl.u32 %v3999, 7
    %v4001 = vsub.s32 %v3998, %v4000
    %v4002 = vrot.slane %v3995, %v4001
    %v4003 = vcombine.high %v3771, %v3771
    %v4005 = vunpack.c.l.s4 1983009808
    %v4006 = vunpack.c.0.s8 %v4005
    %v4007 = vlaneseq
    %v4008 = vshrl.u32 %v4007, 7
    %v4009 = vsub.s32 %v4006, %v4008
    %v4010 = vrot.slane %v4003, %v4009
    %v4011 = vsel %vm3797, %v4002, %v4002
    %v4012 = vsel %vm3799, %v4002, %v4011
    %v4013 = vrot.slane %v4010, 7
    %v4014 = vsel %vm3802, %v4013, %v4012
    %v4015 = vsel %vm3804, %v4013, %v4014
    %v4016 = vsel %vm3806, %v4013, %v4015
    %v4017 = vsel %vm3808, %v4013, %v4016
    %4018 = vrot.lane.b32.xlu0 %v4017, 32
    %v4019 = vpop.permute.xlu0 %4018
    %4021 = vst.msk [vmem:[#allocation3 + $0x2] sm:$0x3] %vm3869, %v4019
    %v4025 = vunpack.c.l.s4 1983009808
    %v4026 = vunpack.c.0.s8 %v4025
    %v4027 = vlaneseq
    %v4028 = vshrl.u32 %v4027, 7
    %v4029 = vsub.s32 %v4026, %v4028
    %v4030 = vrot.slane %v3764, %v4029
    %v4032 = vunpack.c.l.s4 1983009808
    %v4033 = vunpack.c.0.s8 %v4032
    %v4034 = vlaneseq
    %v4035 = vshrl.u32 %v4034, 7
    %v4036 = vsub.s32 %v4033, %v4035
    %v4037 = vrot.slane %v3774, %v4036
    %v4038 = vsel %vm3797, %v4030, %v4030
    %v4039 = vsel %vm3799, %v4030, %v4038
    %v4040 = vrot.slane %v4037, 7
    %v4041 = vsel %vm3802, %v4040, %v4039
    %v4042 = vsel %vm3804, %v4040, %v4041
    %v4043 = vsel %vm3806, %v4040, %v4042
    %v4044 = vsel %vm3808, %v4040, %v4043
    %4045 = vrot.lane.b32.xlu0 %v4044, 48
    %v4046 = vpop.permute.xlu0 %4045
    %4048 = vst.msk [vmem:[#allocation3 + $0x2] sm:$0x3] %vm3899, %v4046
    %v4049 = vcombine.high %v3765, %v3765
    %v4051 = vunpack.c.l.s4 1983009808
    %v4052 = vunpack.c.0.s8 %v4051
    %v4053 = vlaneseq
    %v4054 = vshrl.u32 %v4053, 7
    %v4055 = vsub.s32 %v4052, %v4054
    %v4056 = vrot.slane %v4049, %v4055
    %v4057 = vcombine.high %v3775, %v3775
    %v4059 = vunpack.c.l.s4 1983009808
    %v4060 = vunpack.c.0.s8 %v4059
    %v4061 = vlaneseq
    %v4062 = vshrl.u32 %v4061, 7
    %v4063 = vsub.s32 %v4060, %v4062
    %v4064 = vrot.slane %v4057, %v4063
    %v4065 = vsel %vm3797, %v4056, %v4056
    %v4066 = vsel %vm3799, %v4056, %v4065
    %v4067 = vrot.slane %v4064, 7
    %v4068 = vsel %vm3802, %v4067, %v4066
    %v4069 = vsel %vm3804, %v4067, %v4068
    %v4070 = vsel %vm3806, %v4067, %v4069
    %v4071 = vsel %vm3808, %v4067, %v4070
    %4072 = vrot.lane.b32.xlu0 %v4071, 64
    %v4073 = vpop.permute.xlu0 %4072
    %4075 = vst.msk [vmem:[#allocation3 + $0x2] sm:$0x3] %vm3927, %v4073
    %v4079 = vunpack.c.l.s4 1983009808
    %v4080 = vunpack.c.0.s8 %v4079
    %v4081 = vlaneseq
    %v4082 = vshrl.u32 %v4081, 7
    %v4083 = vsub.s32 %v4080, %v4082
    %v4084 = vrot.slane %v3768, %v4083
    %v4086 = vunpack.c.l.s4 1983009808
    %v4087 = vunpack.c.0.s8 %v4086
    %v4088 = vlaneseq
    %v4089 = vshrl.u32 %v4088, 7
    %v4090 = vsub.s32 %v4087, %v4089
    %v4091 = vrot.slane %v3778, %v4090
    %v4092 = vsel %vm3797, %v4084, %v4084
    %v4093 = vsel %vm3799, %v4084, %v4092
    %v4094 = vrot.slane %v4091, 7
    %v4095 = vsel %vm3802, %v4094, %v4093
    %v4096 = vsel %vm3804, %v4094, %v4095
    %v4097 = vsel %vm3806, %v4094, %v4096
    %v4098 = vsel %vm3808, %v4094, %v4097
    %4099 = vrot.lane.b32.xlu0 %v4098, 80
    %v4100 = vpop.permute.xlu0 %4099
    %4102 = vst.msk [vmem:[#allocation3 + $0x2] sm:$0x3] %vm3941, %v4100
    %v4103 = vcombine.high %v3769, %v3769
    %v4105 = vunpack.c.l.s4 1983009808
    %v4106 = vunpack.c.0.s8 %v4105
    %v4107 = vlaneseq
    %v4108 = vshrl.u32 %v4107, 7
    %v4109 = vsub.s32 %v4106, %v4108
    %v4110 = vrot.slane %v4103, %v4109
    %v4111 = vcombine.high %v3779, %v3779
    %v4113 = vunpack.c.l.s4 1983009808
    %v4114 = vunpack.c.0.s8 %v4113
    %v4115 = vlaneseq
    %v4116 = vshrl.u32 %v4115, 7
    %v4117 = vsub.s32 %v4114, %v4116
    %v4118 = vrot.slane %v4111, %v4117
    %v4119 = vsel %vm3797, %v4110, %v4110
    %v4120 = vsel %vm3799, %v4110, %v4119
    %v4121 = vrot.slane %v4118, 7
    %v4122 = vsel %vm3802, %v4121, %v4120
    %v4123 = vsel %vm3804, %v4121, %v4122
    %v4124 = vsel %vm3806, %v4121, %v4123
    %v4125 = vsel %vm3808, %v4121, %v4124
    %4126 = vrot.lane.b32.xlu0 %v4125, 96
    %v4127 = vpop.permute.xlu0 %4126
    %4129 = vst.msk [vmem:[#allocation3 + $0x2] sm:$0x3] %vm3955, %v4127
    %v4130 = vcombine.high %v4002, %v4002
    %v4131 = vcombine.high %v4010, %v4010
    %v4132 = vsel %vm3797, %v4130, %v4130
    %v4133 = vsel %vm3799, %v4130, %v4132
    %v4134 = vrot.slane %v4131, 7
    %v4135 = vsel %vm3802, %v4134, %v4133
    %v4136 = vsel %vm3804, %v4134, %v4135
    %v4137 = vsel %vm3806, %v4134, %v4136
    %v4138 = vsel %vm3808, %v4134, %v4137
    %4139 = vrot.lane.b32.xlu0 %v4138, 112
    %v4140 = vpop.permute.xlu0 %4139
    %4142 = vst.msk [vmem:[#allocation3 + $0x2] sm:$0x3] %vm3969, %v4140
    %v4143 = vcombine.high %v4030, %v4030
    %v4144 = vcombine.high %v4037, %v4037
    %v4145 = vsel %vm3797, %v4143, %v4143
    %v4146 = vsel %vm3799, %v4143, %v4145
    %v4147 = vrot.slane %v4144, 7
    %v4148 = vsel %vm3802, %v4147, %v4146
    %v4149 = vsel %vm3804, %v4147, %v4148
    %v4150 = vsel %vm3806, %v4147, %v4149
    %v4151 = vsel %vm3808, %v4147, %v4150
    %4153 = vst.msk [vmem:[#allocation3 + $0x4] sm:$0x3] %vm3811, %v4151
    %v4154 = vcombine.high %v4056, %v4056
    %v4155 = vcombine.high %v4064, %v4064
    %v4156 = vsel %vm3797, %v4154, %v4154
    %v4157 = vsel %vm3799, %v4154, %v4156
    %v4158 = vrot.slane %v4155, 7
    %v4159 = vsel %vm3802, %v4158, %v4157
    %v4160 = vsel %vm3804, %v4158, %v4159
    %v4161 = vsel %vm3806, %v4158, %v4160
    %v4162 = vsel %vm3808, %v4158, %v4161
    %4163 = vrot.lane.b32.xlu0 %v4162, 16
    %v4164 = vpop.permute.xlu0 %4163
    %4166 = vst.msk [vmem:[#allocation3 + $0x4] sm:$0x3] %vm3841, %v4164
    %v4167 = vcombine.high %v4084, %v4084
    %v4168 = vcombine.high %v4091, %v4091
    %v4169 = vsel %vm3797, %v4167, %v4167
    %v4170 = vsel %vm3799, %v4167, %v4169
    %v4171 = vrot.slane %v4168, 7
    %v4172 = vsel %vm3802, %v4171, %v4170
    %v4173 = vsel %vm3804, %v4171, %v4172
    %v4174 = vsel %vm3806, %v4171, %v4173
    %v4175 = vsel %vm3808, %v4171, %v4174
    %4176 = vrot.lane.b32.xlu0 %v4175, 32
    %v4177 = vpop.permute.xlu0 %4176
    %4179 = vst.msk [vmem:[#allocation3 + $0x4] sm:$0x3] %vm3869, %v4177
    %v4180 = vcombine.high %v4110, %v4110
    %v4181 = vcombine.high %v4118, %v4118
    %v4182 = vsel %vm3797, %v4180, %v4180
    %v4183 = vsel %vm3799, %v4180, %v4182
    %v4184 = vrot.slane %v4181, 7
    %v4185 = vsel %vm3802, %v4184, %v4183
    %v4186 = vsel %vm3804, %v4184, %v4185
    %v4187 = vsel %vm3806, %v4184, %v4186
    %v4188 = vsel %vm3808, %v4184, %v4187
    %4189 = vrot.lane.b32.xlu0 %v4188, 48
    %v4190 = vpop.permute.xlu0 %4189
    %4192 = vst.msk [vmem:[#allocation3 + $0x4] sm:$0x3] %vm3899, %v4190
    %v4196 = vunpack.c.l.s4 1983009808
    %v4197 = vunpack.c.0.s8 %v4196
    %v4198 = vlaneseq
    %v4199 = vshrl.u32 %v4198, 7
    %v4200 = vsub.s32 %v4197, %v4199
    %v4201 = vrot.slane %v3762, %v4200
    %v4203 = vunpack.c.l.s4 1983009808
    %v4204 = vunpack.c.0.s8 %v4203
    %v4205 = vlaneseq
    %v4206 = vshrl.u32 %v4205, 7
    %v4207 = vsub.s32 %v4204, %v4206
    %v4208 = vrot.slane %v3772, %v4207
    %v4209 = vsel %vm3797, %v4201, %v4201
    %v4210 = vsel %vm3799, %v4201, %v4209
    %v4211 = vrot.slane %v4208, 7
    %v4212 = vsel %vm3802, %v4211, %v4210
    %v4213 = vsel %vm3804, %v4211, %v4212
    %v4214 = vsel %vm3806, %v4211, %v4213
    %v4215 = vsel %vm3808, %v4211, %v4214
    %4216 = vrot.lane.b32.xlu0 %v4215, 64
    %v4217 = vpop.permute.xlu0 %4216
    %4219 = vst.msk [vmem:[#allocation3 + $0x4] sm:$0x3] %vm3927, %v4217
    %v4220 = vcombine.high %v3764, %v3764
    %v4222 = vunpack.c.l.s4 1983009808
    %v4223 = vunpack.c.0.s8 %v4222
    %v4224 = vlaneseq
    %v4225 = vshrl.u32 %v4224, 7
    %v4226 = vsub.s32 %v4223, %v4225
    %v4227 = vrot.slane %v4220, %v4226
    %v4228 = vcombine.high %v3774, %v3774
    %v4230 = vunpack.c.l.s4 1983009808
    %v4231 = vunpack.c.0.s8 %v4230
    %v4232 = vlaneseq
    %v4233 = vshrl.u32 %v4232, 7
    %v4234 = vsub.s32 %v4231, %v4233
    %v4235 = vrot.slane %v4228, %v4234
    %v4236 = vsel %vm3797, %v4227, %v4227
    %v4237 = vsel %vm3799, %v4227, %v4236
    %v4238 = vrot.slane %v4235, 7
    %v4239 = vsel %vm3802, %v4238, %v4237
    %v4240 = vsel %vm3804, %v4238, %v4239
    %v4241 = vsel %vm3806, %v4238, %v4240
    %v4242 = vsel %vm3808, %v4238, %v4241
    %4243 = vrot.lane.b32.xlu0 %v4242, 80
    %v4244 = vpop.permute.xlu0 %4243
    %4246 = vst.msk [vmem:[#allocation3 + $0x4] sm:$0x3] %vm3941, %v4244
    %v4250 = vunpack.c.l.s4 1983009808
    %v4251 = vunpack.c.0.s8 %v4250
    %v4252 = vlaneseq
    %v4253 = vshrl.u32 %v4252, 7
    %v4254 = vsub.s32 %v4251, %v4253
    %v4255 = vrot.slane %v3766, %v4254
    %v4257 = vunpack.c.l.s4 1983009808
    %v4258 = vunpack.c.0.s8 %v4257
    %v4259 = vlaneseq
    %v4260 = vshrl.u32 %v4259, 7
    %v4261 = vsub.s32 %v4258, %v4260
    %v4262 = vrot.slane %v3776, %v4261
    %v4263 = vsel %vm3797, %v4255, %v4255
    %v4264 = vsel %vm3799, %v4255, %v4263
    %v4265 = vrot.slane %v4262, 7
    %v4266 = vsel %vm3802, %v4265, %v4264
    %v4267 = vsel %vm3804, %v4265, %v4266
    %v4268 = vsel %vm3806, %v4265, %v4267
    %v4269 = vsel %vm3808, %v4265, %v4268
    %4270 = vrot.lane.b32.xlu0 %v4269, 96
    %v4271 = vpop.permute.xlu0 %4270
    %4273 = vst.msk [vmem:[#allocation3 + $0x4] sm:$0x3] %vm3955, %v4271
    %v4274 = vcombine.high %v3768, %v3768
    %v4276 = vunpack.c.l.s4 1983009808
    %v4277 = vunpack.c.0.s8 %v4276
    %v4278 = vlaneseq
    %v4279 = vshrl.u32 %v4278, 7
    %v4280 = vsub.s32 %v4277, %v4279
    %v4281 = vrot.slane %v4274, %v4280
    %v4282 = vcombine.high %v3778, %v3778
    %v4284 = vunpack.c.l.s4 1983009808
    %v4285 = vunpack.c.0.s8 %v4284
    %v4286 = vlaneseq
    %v4287 = vshrl.u32 %v4286, 7
    %v4288 = vsub.s32 %v4285, %v4287
    %v4289 = vrot.slane %v4282, %v4288
    %v4290 = vsel %vm3797, %v4281, %v4281
    %v4291 = vsel %vm3799, %v4281, %v4290
    %v4292 = vrot.slane %v4289, 7
    %v4293 = vsel %vm3802, %v4292, %v4291
    %v4294 = vsel %vm3804, %v4292, %v4293
    %v4295 = vsel %vm3806, %v4292, %v4294
    %v4296 = vsel %vm3808, %v4292, %v4295
    %4297 = vrot.lane.b32.xlu0 %v4296, 112
    %v4298 = vpop.permute.xlu0 %4297
    %4300 = vst.msk [vmem:[#allocation3 + $0x4] sm:$0x3] %vm3969, %v4298
    %v4304 = vunpack.c.l.s4 1983009808
    %v4305 = vunpack.c.0.s8 %v4304
    %v4306 = vlaneseq
    %v4307 = vshrl.u32 %v4306, 7
    %v4308 = vsub.s32 %v4305, %v4307
    %v4309 = vrot.slane %v3770, %v4308
    %v4311 = vunpack.c.l.s4 1983009808
    %v4312 = vunpack.c.0.s8 %v4311
    %v4313 = vlaneseq
    %v4314 = vshrl.u32 %v4313, 7
    %v4315 = vsub.s32 %v4312, %v4314
    %v4316 = vrot.slane %v3780, %v4315
    %v4317 = vsel %vm3797, %v4309, %v4309
    %v4318 = vsel %vm3799, %v4309, %v4317
    %v4319 = vrot.slane %v4316, 7
    %v4320 = vsel %vm3802, %v4319, %v4318
    %v4321 = vsel %vm3804, %v4319, %v4320
    %v4322 = vsel %vm3806, %v4319, %v4321
    %v4323 = vsel %vm3808, %v4319, %v4322
    %4325 = vst.msk [vmem:[#allocation3 + $0x6] sm:$0x3] %vm3811, %v4323
    %v4326 = vld [vmem:[#allocation3] sm:$0xff]
    %v4327 = vld [vmem:[%s4] sm:$0xf]
    %v4329 = vlaneseq
    %v4330 = vshrl.u32 %v4329, 7
    %v4331 = vsub.s32 0, %v4330
    %v4332 = vrot.slane %v4327, %v4331
    %v4333 = vlaneseq
    %v4334 = vshrl.u32 %v4333, 7
    %v4335 = vsub.s32 1, %v4334
    %v4336 = vrot.slane %v4327, %v4335
    %v4337 = vlaneseq
    %v4338 = vshrl.u32 %v4337, 7
    %v4339 = vsub.s32 2, %v4338
    %v4340 = vrot.slane %v4327, %v4339
    %v4341 = vlaneseq
    %v4342 = vshrl.u32 %v4341, 7
    %v4343 = vsub.s32 3, %v4342
    %v4344 = vrot.slane %v4327, %v4343
    %v4345 = vcombine.low %v4332, %v4336
    %v4346 = vcombine.low %v4340, %v4344
    %v4348 = vunpack.c.l.s4 1983009808
    %v4349 = vunpack.c.0.s8 %v4348
    %v4350 = vlaneseq
    %v4351 = vshrl.u32 %v4350, 7
    %v4352 = vsub.s32 %v4349, %v4351
    %v4353 = vrot.slane %v4345, %v4352
    %v4355 = vunpack.c.l.s4 1983009808
    %v4356 = vunpack.c.0.s8 %v4355
    %v4357 = vlaneseq
    %v4358 = vshrl.u32 %v4357, 7
    %v4359 = vsub.s32 %v4356, %v4358
    %v4360 = vrot.slane %v4346, %v4359
    %v4361 = vcombine.low %v4353, %v4360
    %v4363 = vadd.f32 %v4326, %v4361
    %v4364 = vmax.f32 %v4363, 0.0
    %v4365 = vld [vmem:[%s5] sm:$0xff]
    %v4366 = vld [vmem:[%s5 + $0x8] sm:$0xff]
    %v4367 = vld [vmem:[%s5 + $0x10] sm:$0xff]
    %v4368 = vld [vmem:[%s5 + $0x18] sm:$0xff]
    %v4369 = vld [vmem:[%s5 + $0x20] sm:$0xff]
    %v4370 = vld [vmem:[%s5 + $0x28] sm:$0xff]
    %v4371 = vld [vmem:[%s5 + $0x30] sm:$0xff]
    %v4372 = vld [vmem:[%s5 + $0x38] sm:$0xff]
    %v4373 = vld [vmem:[%s5 + $0x40] sm:$0xff]
    %v4374 = vld [vmem:[%s5 + $0x48] sm:$0xff]
    %v4375 = vld [vmem:[%s5 + $0x50] sm:$0xff]
    %v4376 = vld [vmem:[%s5 + $0x58] sm:$0xff]
    %v4377 = vld [vmem:[%s5 + $0x60] sm:$0xff]
    %v4378 = vld [vmem:[%s5 + $0x68] sm:$0xff]
    %v4379 = vld [vmem:[%s5 + $0x70] sm:$0xff]
    %v4380 = vld [vmem:[%s5 + $0x78] sm:$0xff]
    %v4381 = vld [vmem:[%s5 + $0x80] sm:$0xff]
    %v4382 = vld [vmem:[%s5 + $0x88] sm:$0xff]
    %v4383 = vld [vmem:[%s5 + $0x90] sm:$0xff]
    %v4384 = vld [vmem:[%s5 + $0x98] sm:$0xff]
    %v4385 = vld [vmem:[%s5 + $0xa0] sm:$0xff]
    %v4386 = vld [vmem:[%s5 + $0xa8] sm:$0xff]
    %v4387 = vld [vmem:[%s5 + $0xb0] sm:$0xff]
    %v4388 = vld [vmem:[%s5 + $0xb8] sm:$0xff]
    %v4389 = vld [vmem:[%s5 + $0xc0] sm:$0xff]
    %v4390 = vld [vmem:[%s5 + $0xc8] sm:$0xff]
    %v4391 = vld [vmem:[%s5 + $0xd0] sm:$0xff]
    %v4392 = vld [vmem:[%s5 + $0xd8] sm:$0xff]
    %v4393 = vld [vmem:[%s5 + $0xe0] sm:$0xff]
    %v4394 = vld [vmem:[%s5 + $0xe8] sm:$0xff]
    %v4395 = vld [vmem:[%s5 + $0xf0] sm:$0xff]
    %v4396 = vld [vmem:[%s5 + $0xf8] sm:$0xff]
    %v4397 = vld [vmem:[%s5 + $0x100] sm:$0xff]
    %v4398 = vld [vmem:[%s5 + $0x108] sm:$0xff]
    %v4399 = vld [vmem:[%s5 + $0x110] sm:$0xff]
    %v4400 = vld [vmem:[%s5 + $0x118] sm:$0xff]
    %v4401 = vld [vmem:[%s5 + $0x120] sm:$0xff]
    %v4402 = vld [vmem:[%s5 + $0x128] sm:$0xff]
    %v4403 = vld [vmem:[%s5 + $0x130] sm:$0xff]
    %v4404 = vld [vmem:[%s5 + $0x138] sm:$0xff]
    %v4405 = vld [vmem:[%s5 + $0x140] sm:$0xff]
    %v4406 = vld [vmem:[%s5 + $0x148] sm:$0xff]
    %v4407 = vld [vmem:[%s5 + $0x150] sm:$0xff]
    %v4408 = vld [vmem:[%s5 + $0x158] sm:$0xff]
    %v4409 = vld [vmem:[%s5 + $0x160] sm:$0xff]
    %v4410 = vld [vmem:[%s5 + $0x168] sm:$0xff]
    %v4411 = vld [vmem:[%s5 + $0x170] sm:$0xff]
    %v4412 = vld [vmem:[%s5 + $0x178] sm:$0xff]
    %v4413 = vld [vmem:[%s5 + $0x180] sm:$0xff]
    %v4414 = vld [vmem:[%s5 + $0x188] sm:$0xff]
    %v4415 = vld [vmem:[%s6] sm:$0x1]
    %v4417 = vlaneseq
    %v4418 = vshrl.u32 %v4417, 7
    %v4419 = vsub.s32 0, %v4418
    %v4420 = vrot.slane %v4415, %v4419
    %v4423 = vcombine.high %v4364, %v4364
    %v4425 = vunpack.c.l.s4 1983009808
    %v4426 = vunpack.c.0.s8 %v4425
    %v4427 = vlaneseq
    %v4428 = vshrl.u32 %v4427, 7
    %v4429 = vsub.s32 %v4426, %v4428
    %v4430 = vrot.slane %v4364, %v4429
    %v4432 = vunpack.c.l.s4 1983009808
    %v4433 = vunpack.c.0.s8 %v4432
    %v4434 = vlaneseq
    %v4435 = vshrl.u32 %v4434, 7
    %v4436 = vsub.s32 %v4433, %v4435
    %v4437 = vrot.slane %v4423, %v4436
    %v4438 = vcombine.high %v4430, %v4430
    %v4439 = vcombine.high %v4437, %v4437
    %vm4443 = vcmask 130048
    %v4444 = vsel %vm4443, %v4439, 0
    %4446 = vmatprep.subr.mxu0 0.0
    %4447 = vmatpush1.msra.mxu0 %v4365
    %4448 = vmatprep.subr.mxu0 0.0
    %4449 = vmatpush1.msra.mxu0 %v4366
    %4450 = vmatprep.subr.mxu0 0.0
    %4451 = vmatpush1.msra.mxu0 %v4367
    %4452 = vmatprep.subr.mxu0 0.0
    %4453 = vmatpush1.msra.mxu0 %v4368
    %4454 = vmatprep.subr.mxu0 0.0
    %4455 = vmatpush1.msra.mxu0 %v4369
    %4456 = vmatprep.subr.mxu0 0.0
    %4457 = vmatpush1.msra.mxu0 %v4370
    %4458 = vmatprep.subr.mxu0 0.0
    %4459 = vmatpush1.msra.mxu0 %v4371
    %4460 = vmatprep.subr.mxu0 0.0
    %4461 = vmatpush1.msra.mxu0 %v4372
    %4462 = vmatprep.subr.mxu0 0.0
    %4463 = vmatpush1.msra.mxu0 %v4373
    %4464 = vmatprep.subr.mxu0 0.0
    %4465 = vmatpush1.msra.mxu0 %v4374
    %4466 = vmatprep.subr.mxu0 0.0
    %4467 = vmatpush1.msra.mxu0 %v4375
    %4468 = vmatprep.subr.mxu0 0.0
    %4469 = vmatpush1.msra.mxu0 %v4376
    %4470 = vmatprep.subr.mxu0 0.0
    %4471 = vmatpush1.msra.mxu0 %v4377
    %4472 = vmatprep.subr.mxu0 0.0
    %4473 = vmatpush1.msra.mxu0 %v4378
    %4474 = vmatprep.subr.mxu0 0.0
    %4475 = vmatpush1.msra.mxu0 %v4379
    %4476 = vmatprep.subr.mxu0 0.0
    %4477 = vmatpush1.msra.mxu0 %v4380
    %4478 = vmatprep.subr.mxu0 0.0
    %4479 = vmatpush1.msra.mxu0 %v4381
    %4480 = vmatprep.subr.mxu0 0.0
    %4481 = vmatpush1.msra.mxu0 %v4382
    %4482 = vmatprep.subr.mxu0 0.0
    %4483 = vmatpush1.msra.mxu0 %v4383
    %4484 = vmatprep.subr.mxu0 0.0
    %4485 = vmatpush1.msra.mxu0 %v4384
    %4486 = vmatprep.subr.mxu0 0.0
    %4487 = vmatpush1.msra.mxu0 %v4385
    %4488 = vmatprep.subr.mxu0 0.0
    %4489 = vmatpush1.msra.mxu0 %v4386
    %4490 = vmatprep.subr.mxu0 0.0
    %4491 = vmatpush1.msra.mxu0 %v4387
    %4492 = vmatprep.subr.mxu0 0.0
    %4493 = vmatpush1.msra.mxu0 %v4388
    %4494 = vmatprep.subr.mxu0 0.0
    %4495 = vmatpush1.msra.mxu0 %v4389
    %4496 = vmatprep.subr.mxu0 0.0
    %4497 = vmatpush1.msra.mxu0 %v4390
    %4498 = vmatprep.subr.mxu0 0.0
    %4499 = vmatpush1.msra.mxu0 %v4391
    %4500 = vmatprep.subr.mxu0 0.0
    %4501 = vmatpush1.msra.mxu0 %v4392
    %4502 = vmatprep.subr.mxu0 0.0
    %4503 = vmatpush1.msra.mxu0 %v4393
    %4504 = vmatprep.subr.mxu0 0.0
    %4505 = vmatpush1.msra.mxu0 %v4394
    %4506 = vmatprep.subr.mxu0 0.0
    %4507 = vmatpush1.msra.mxu0 %v4395
    %4508 = vmatprep.subr.mxu0 0.0
    %4509 = vmatpush1.msra.mxu0 %v4396
    %4510 = vmatprep.mubr.f32.mxu0 %v4438
    %4511 = vmatmul.mubr.f32.gmra.mrb[0].mxu0 %v4430
    %v4512 = vpop.f32.mrb[0].mxu0
    %v4513 = vadd.f32 %v4420, %v4512
    %v4514 = vpop.f32.mrb[0].mxu0
    %4515 = vdwg.mxu0
    %4516 = vmatprep.subr.mxu0 0.0
    %4517 = vmatpush1.msra.mxu0 %v4397
    %4518 = vmatprep.subr.mxu0 0.0
    %4519 = vmatpush1.msra.mxu0 %v4398
    %4520 = vmatprep.subr.mxu0 0.0
    %4521 = vmatpush1.msra.mxu0 %v4399
    %4522 = vmatprep.subr.mxu0 0.0
    %4523 = vmatpush1.msra.mxu0 %v4400
    %4524 = vmatprep.subr.mxu0 0.0
    %4525 = vmatpush1.msra.mxu0 %v4401
    %4526 = vmatprep.subr.mxu0 0.0
    %4527 = vmatpush1.msra.mxu0 %v4402
    %4528 = vmatprep.subr.mxu0 0.0
    %4529 = vmatpush1.msra.mxu0 %v4403
    %4530 = vmatprep.subr.mxu0 0.0
    %4531 = vmatpush1.msra.mxu0 %v4404
    %4532 = vmatprep.subr.mxu0 0.0
    %4533 = vmatpush1.msra.mxu0 %v4405
    %4534 = vmatprep.subr.mxu0 0.0
    %4535 = vmatpush1.msra.mxu0 %v4406
    %4536 = vmatprep.subr.mxu0 0.0
    %4537 = vmatpush1.msra.mxu0 %v4407
    %4538 = vmatprep.subr.mxu0 0.0
    %4539 = vmatpush1.msra.mxu0 %v4408
    %4540 = vmatprep.subr.mxu0 0.0
    %4541 = vmatpush1.msra.mxu0 %v4409
    %4542 = vmatprep.subr.mxu0 0.0
    %4543 = vmatpush1.msra.mxu0 %v4410
    %4544 = vmatprep.subr.mxu0 0.0
    %4545 = vmatpush1.msra.mxu0 %v4411
    %4546 = vmatprep.subr.mxu0 0.0
    %4547 = vmatpush1.msra.mxu0 %v4412
    %4548 = vmatprep.subr.mxu0 0.0
    %4549 = vmatpush1.msra.mxu0 %v4413
    %4550 = vmatprep.subr.mxu0 0.0
    %4551 = vmatpush1.msra.mxu0 %v4414
    %4552 = vmatprep.subr.mxu0 0.0
    %4553 = vmatpush1.msra.mxu0 0.0
    %4554 = vmatprep.subr.mxu0 0.0
    %4555 = vmatpush1.msra.mxu0 0.0
    %4556 = vmatprep.subr.mxu0 0.0
    %4557 = vmatpush1.msra.mxu0 0.0
    %4558 = vmatprep.subr.mxu0 0.0
    %4559 = vmatpush1.msra.mxu0 0.0
    %4560 = vmatprep.subr.mxu0 0.0
    %4561 = vmatpush1.msra.mxu0 0.0
    %4562 = vmatprep.subr.mxu0 0.0
    %4563 = vmatpush1.msra.mxu0 0.0
    %4564 = vmatprep.subr.mxu0 0.0
    %4565 = vmatpush1.msra.mxu0 0.0
    %4566 = vmatprep.subr.mxu0 0.0
    %4567 = vmatpush1.msra.mxu0 0.0
    %4568 = vmatprep.subr.mxu0 0.0
    %4569 = vmatpush1.msra.mxu0 0.0
    %4570 = vmatprep.subr.mxu0 0.0
    %4571 = vmatpush1.msra.mxu0 0.0
    %4572 = vmatprep.subr.mxu0 0.0
    %4573 = vmatpush1.msra.mxu0 0.0
    %4574 = vmatprep.subr.mxu0 0.0
    %4575 = vmatpush1.msra.mxu0 0.0
    %4576 = vmatprep.subr.mxu0 0.0
    %4577 = vmatpush1.msra.mxu0 0.0
    %4578 = vmatprep.subr.mxu0 0.0
    %4579 = vmatpush1.msra.mxu0 0.0
    %4580 = vmatprep.mubr.f32.mxu0 %v4444
    %4581 = vmatmul.mubr.f32.gmra.mrb[0].mxu0 %v4437
    %v4582 = vpop.f32.mrb[0].mxu0
    %v4583 = vadd.f32 %v4513, %v4582
    %v4584 = vpop.f32.mrb[0].mxu0
    %4585 = vdwg.mxu0
    %v4586 = vmax.f32 %v4583, 0.0
    %v4587 = vld [vmem:[%s7] sm:$0xff]
    %v4588 = vld [vmem:[%s7 + $0x8] sm:$0xff]
    %v4589 = vld [vmem:[%s7 + $0x10] sm:$0xff]
    %v4590 = vld [vmem:[%s7 + $0x18] sm:$0xff]
    %v4591 = vld [vmem:[%s7 + $0x20] sm:$0xff]
    %v4592 = vld [vmem:[%s7 + $0x28] sm:$0xff]
    %v4593 = vld [vmem:[%s7 + $0x30] sm:$0xff]
    %v4594 = vld [vmem:[%s7 + $0x38] sm:$0xff]
    %v4595 = vld [vmem:[%s7 + $0x40] sm:$0xff]
    %v4596 = vld [vmem:[%s7 + $0x48] sm:$0xff]
    %v4597 = vld [vmem:[%s7 + $0x50] sm:$0xff]
    %v4598 = vld [vmem:[%s7 + $0x58] sm:$0xff]
    %v4599 = vld [vmem:[%s7 + $0x60] sm:$0xff]
    %v4600 = vld [vmem:[%s7 + $0x68] sm:$0xff]
    %v4601 = vld [vmem:[%s7 + $0x70] sm:$0xff]
    %v4602 = vld [vmem:[%s8] sm:$0x1]
    %v4604 = vlaneseq
    %v4605 = vshrl.u32 %v4604, 7
    %v4606 = vsub.s32 0, %v4605
    %v4607 = vrot.slane %v4602, %v4606
    %vm4609 = vcmask 982016
    %v4611 = vsel %vm4609, %v4586, 0
    %4613 = vmatprep.subr.mxu0 0.0
    %4614 = vmatpush1.msra.mxu0 %v4587
    %4615 = vmatprep.subr.mxu0 0.0
    %4616 = vmatpush1.msra.mxu0 %v4588
    %4617 = vmatprep.subr.mxu0 0.0
    %4618 = vmatpush1.msra.mxu0 %v4589
    %4619 = vmatprep.subr.mxu0 0.0
    %4620 = vmatpush1.msra.mxu0 %v4590
    %4621 = vmatprep.subr.mxu0 0.0
    %4622 = vmatpush1.msra.mxu0 %v4591
    %4623 = vmatprep.subr.mxu0 0.0
    %4624 = vmatpush1.msra.mxu0 %v4592
    %4625 = vmatprep.subr.mxu0 0.0
    %4626 = vmatpush1.msra.mxu0 %v4593
    %4627 = vmatprep.subr.mxu0 0.0
    %4628 = vmatpush1.msra.mxu0 %v4594
    %4629 = vmatprep.subr.mxu0 0.0
    %4630 = vmatpush1.msra.mxu0 %v4595
    %4631 = vmatprep.subr.mxu0 0.0
    %4632 = vmatpush1.msra.mxu0 %v4596
    %4633 = vmatprep.subr.mxu0 0.0
    %4634 = vmatpush1.msra.mxu0 %v4597
    %4635 = vmatprep.subr.mxu0 0.0
    %4636 = vmatpush1.msra.mxu0 %v4598
    %4637 = vmatprep.subr.mxu0 0.0
    %4638 = vmatpush1.msra.mxu0 %v4599
    %4639 = vmatprep.subr.mxu0 0.0
    %4640 = vmatpush1.msra.mxu0 %v4600
    %4641 = vmatprep.subr.mxu0 0.0
    %4642 = vmatpush1.msra.mxu0 %v4601
    %4643 = vmatprep.subr.mxu0 0.0
    %4644 = vmatpush1.msra.mxu0 0.0
    %4645 = vmatprep.subr.mxu0 0.0
    %4646 = vmatpush1.msra.mxu0 0.0
    %4647 = vmatprep.subr.mxu0 0.0
    %4648 = vmatpush1.msra.mxu0 0.0
    %4649 = vmatprep.subr.mxu0 0.0
    %4650 = vmatpush1.msra.mxu0 0.0
    %4651 = vmatprep.subr.mxu0 0.0
    %4652 = vmatpush1.msra.mxu0 0.0
    %4653 = vmatprep.subr.mxu0 0.0
    %4654 = vmatpush1.msra.mxu0 0.0
    %4655 = vmatprep.subr.mxu0 0.0
    %4656 = vmatpush1.msra.mxu0 0.0
    %4657 = vmatprep.subr.mxu0 0.0
    %4658 = vmatpush1.msra.mxu0 0.0
    %4659 = vmatprep.subr.mxu0 0.0
    %4660 = vmatpush1.msra.mxu0 0.0
    %4661 = vmatprep.subr.mxu0 0.0
    %4662 = vmatpush1.msra.mxu0 0.0
    %4663 = vmatprep.subr.mxu0 0.0
    %4664 = vmatpush1.msra.mxu0 0.0
    %4665 = vmatprep.subr.mxu0 0.0
    %4666 = vmatpush1.msra.mxu0 0.0
    %4667 = vmatprep.subr.mxu0 0.0
    %4668 = vmatpush1.msra.mxu0 0.0
    %4669 = vmatprep.subr.mxu0 0.0
    %4670 = vmatpush1.msra.mxu0 0.0
    %4671 = vmatprep.subr.mxu0 0.0
    %4672 = vmatpush1.msra.mxu0 0.0
    %4673 = vmatprep.subr.mxu0 0.0
    %4674 = vmatpush1.msra.mxu0 0.0
    %4675 = vmatprep.subr.mxu0 0.0
    %4676 = vmatpush1.msra.mxu0 0.0
    %4677 = vmatprep.mubr.f32.mxu0 0.0
    %4678 = vmatmul.mubr.f32.gmra.mrb[0].mxu0 %v4611
    %v4679 = vpop.f32.mrb[0].mxu0
    %v4680 = vadd.f32 %v4607, %v4679
    %v4681 = vpop.f32.mrb[0].mxu0
    %4682 = vdwg.mxu0
    %v4683 = vmax.f32 %v4680, 0.0
    %v4684 = vld [vmem:[%s9] sm:$0xff]
    %v4685 = vld [vmem:[%s9 + $0x8] sm:$0xff]
    %v4686 = vld [vmem:[%s9 + $0x10] sm:$0xff]
    %v4687 = vld [vmem:[%s9 + $0x18] sm:$0xff]
    %v4688 = vld [vmem:[%s9 + $0x20] sm:$0xff]
    %v4689 = vld [vmem:[%s9 + $0x28] sm:$0xff]
    %v4690 = vld [vmem:[%s9 + $0x30] sm:$0xff]
    %v4691 = vld [vmem:[%s9 + $0x38] sm:$0xff]
    %v4692 = vld [vmem:[%s9 + $0x40] sm:$0xff]
    %v4693 = vld [vmem:[%s9 + $0x48] sm:$0xff]
    %v4694 = vld [vmem:[%s9 + $0x50] sm:$0xf]
    %v4695 = vld [vmem:[%s10] sm:$0x1]
    %v4697 = vlaneseq
    %v4698 = vshrl.u32 %v4697, 7
    %v4699 = vsub.s32 0, %v4698
    %v4700 = vrot.slane %v4695, %v4699
    %vm4702 = vcmask 687104
    %v4704 = vsel %vm4702, %v4683, 0
    %v4707 = vsel %vm2305, %v4694, 0
    %4709 = vmatprep.subr.mxu0 0.0
    %4710 = vmatpush1.msra.mxu0 %v4684
    %4711 = vmatprep.subr.mxu0 0.0
    %4712 = vmatpush1.msra.mxu0 %v4685
    %4713 = vmatprep.subr.mxu0 0.0
    %4714 = vmatpush1.msra.mxu0 %v4686
    %4715 = vmatprep.subr.mxu0 0.0
    %4716 = vmatpush1.msra.mxu0 %v4687
    %4717 = vmatprep.subr.mxu0 0.0
    %4718 = vmatpush1.msra.mxu0 %v4688
    %4719 = vmatprep.subr.mxu0 0.0
    %4720 = vmatpush1.msra.mxu0 %v4689
    %4721 = vmatprep.subr.mxu0 0.0
    %4722 = vmatpush1.msra.mxu0 %v4690
    %4723 = vmatprep.subr.mxu0 0.0
    %4724 = vmatpush1.msra.mxu0 %v4691
    %4725 = vmatprep.subr.mxu0 0.0
    %4726 = vmatpush1.msra.mxu0 %v4692
    %4727 = vmatprep.subr.mxu0 0.0
    %4728 = vmatpush1.msra.mxu0 %v4693
    %4729 = vmatprep.subr.mxu0 0.0
    %4730 = vmatpush1.msra.mxu0 %v4707
    %4731 = vmatprep.subr.mxu0 0.0
    %4732 = vmatpush1.msra.mxu0 0.0
    %4733 = vmatprep.subr.mxu0 0.0
    %4734 = vmatpush1.msra.mxu0 0.0
    %4735 = vmatprep.subr.mxu0 0.0
    %4736 = vmatpush1.msra.mxu0 0.0
    %4737 = vmatprep.subr.mxu0 0.0
    %4738 = vmatpush1.msra.mxu0 0.0
    %4739 = vmatprep.subr.mxu0 0.0
    %4740 = vmatpush1.msra.mxu0 0.0
    %4741 = vmatprep.subr.mxu0 0.0
    %4742 = vmatpush1.msra.mxu0 0.0
    %4743 = vmatprep.subr.mxu0 0.0
    %4744 = vmatpush1.msra.mxu0 0.0
    %4745 = vmatprep.subr.mxu0 0.0
    %4746 = vmatpush1.msra.mxu0 0.0
    %4747 = vmatprep.subr.mxu0 0.0
    %4748 = vmatpush1.msra.mxu0 0.0
    %4749 = vmatprep.subr.mxu0 0.0
    %4750 = vmatpush1.msra.mxu0 0.0
    %4751 = vmatprep.subr.mxu0 0.0
    %4752 = vmatpush1.msra.mxu0 0.0
    %4753 = vmatprep.subr.mxu0 0.0
    %4754 = vmatpush1.msra.mxu0 0.0
    %4755 = vmatprep.subr.mxu0 0.0
    %4756 = vmatpush1.msra.mxu0 0.0
    %4757 = vmatprep.subr.mxu0 0.0
    %4758 = vmatpush1.msra.mxu0 0.0
    %4759 = vmatprep.subr.mxu0 0.0
    %4760 = vmatpush1.msra.mxu0 0.0
    %4761 = vmatprep.subr.mxu0 0.0
    %4762 = vmatpush1.msra.mxu0 0.0
    %4763 = vmatprep.subr.mxu0 0.0
    %4764 = vmatpush1.msra.mxu0 0.0
    %4765 = vmatprep.subr.mxu0 0.0
    %4766 = vmatpush1.msra.mxu0 0.0
    %4767 = vmatprep.subr.mxu0 0.0
    %4768 = vmatpush1.msra.mxu0 0.0
    %4769 = vmatprep.subr.mxu0 0.0
    %4770 = vmatpush1.msra.mxu0 0.0
    %4771 = vmatprep.subr.mxu0 0.0
    %4772 = vmatpush1.msra.mxu0 0.0
    %4773 = vmatprep.mubr.f32.mxu0 0.0
    %4774 = vmatmul.mubr.f32.gmra.mrb[0].mxu0 %v4704
    %v4775 = vpop.f32.mrb[0].mxu0
    %v4776 = vadd.f32 %v4700, %v4775
    %v4777 = vpop.f32.mrb[0].mxu0
    %4778 = vdwg.mxu0
    %vm4779 = vcmask 74752
    %4780 = vst.msk [vmem:[#allocation4] sm:$0x3] %vm4779, %v4776
    // Predicated region
    $region46: #{net_forward.1} parent=1 // pred_check
      _
    $region47: #{net_forward.1} parent=1 // pred_check_branch
      %4782 = sbr.rel (0) target = $region49
    $region48: #{net_forward.1} parent=1 // pred_region
      %s4784 = ssub.s32 32, 32
      %4785 = vsyncadd [#allocation5], %s4784
      %s4787 = sshll.u32 [#allocation4], 4
      %s4788 = int_to_ptr.vmem [resolvable:$true] %s4787
      %4790 = dma.vmem_to_hbm [thread:$0]  %s4788, 32, %s11, [#allocation5]
    $region49: #{net_forward.1} parent=1 // pred_fallthru
      _
    // Predicated region
    $region50: #{net_forward.1} parent=1 // pred_check
      _
    $region51: #{net_forward.1} parent=1 // pred_check_branch
      %4792 = sbr.rel (0) target = $region53
    $region52: #{net_forward.1} parent=1 // pred_region
      %4793 = dma.done [#allocation5], 32
    $region53: #{net_forward.1} parent=1 // pred_fallthru
      _
    %4794 = vsyncpa [#allocation5], 1

</llo_original>
